<compile_context>
chip_gen: v6e
topology: v6e:2x2x1
jax: 0.10.0
libtpu: 0.0.40
codegen_flags: <defaults>
</compile_context>

<pallas_src>
import functools

import jax
import jax.numpy as jnp
from jax.experimental import pallas as pl
from jax.experimental.pallas import tpu as pltpu


def _layernorm(x, g, b, eps=1e-5):
    mu = jnp.mean(x, axis=-1, keepdims=True)
    var = jnp.mean((x - mu) ** 2, axis=-1, keepdims=True)
    return (x - mu) * jax.lax.rsqrt(var + eps) * g + b


def _latent_encoder_kernel(
    causal_ref, hmask_ref,
    x_ref, y_ref,
    w_emb_x_ref, w_emb_y_ref, b_emb_ref,
    w_qkv_ref, b_qkv_ref, w_o_ref, b_o_ref,
    ln1_g_ref, ln1_b_ref, ln2_g_ref, ln2_b_ref,
    w_ff1_ref, b_ff1_ref, w_ff2_ref, b_ff2_ref,
    lnf_g_ref, lnf_b_ref,
    w_heads_ref, b_heads_ref,
    out_ref,
    *, num_layers, nhead, min_std,
):
    S = causal_ref.shape[-1]
    M = x_ref.shape[0]                 # TB * S flattened rows
    TB = M // S
    H = w_emb_x_ref.shape[1]
    hd = H // nhead
    Z = w_heads_ref.shape[1] // 2
    scale = 1.0 / float(hd) ** 0.5

    def _mm(a, b):
        return jnp.dot(a, b, preferred_element_type=jnp.float32)

    causal = causal_ref[...]           # (S, S) additive mask (0 / -1e30)
    hmask = hmask_ref[...]             # (nhead, H) disjoint lane masks

    # enc_emb on all TB*S rows at once (x / y kept separate: no HBM concat)
    h = (_mm(x_ref[...], w_emb_x_ref[...])
         + _mm(y_ref[...], w_emb_y_ref[...]) + b_emb_ref[...])     # (M, H)

    # nn.TransformerEncoder: num_layers x post-norm layers (ReLU FF), final LN
    # NOTE: static Python loops are fine at L=2 / nhead=8; switch to
    # lax.fori_loop with dynamic w[l] indexing if these grow.
    for l in range(num_layers):
        qkv = _mm(h, w_qkv_ref[l]) + b_qkv_ref[l:l + 1]            # (M, 3H)
        q3 = qkv[:, 0:H].reshape(TB, S, H)
        k3 = qkv[:, H:2 * H].reshape(TB, S, H)
        v3 = qkv[:, 2 * H:3 * H].reshape(TB, S, H)

        attn3 = jnp.zeros((TB, S, H), jnp.float32)
        for hh in range(nhead):
            m = hmask[hh:hh + 1]                                   # (1, H)
            qm = q3 * m                                            # mask Q only
            s = jnp.einsum("bqh,bkh->bqk", qm, k3,
                           preferred_element_type=jnp.float32) * scale + causal
            s = s - jnp.max(s, axis=-1, keepdims=True)
            p = jnp.exp(s)
            p = p * pl.reciprocal(jnp.sum(p, axis=-1, keepdims=True),
                                  approx=True)
            attn3 = attn3 + jnp.einsum("bqk,bkh->bqh", p, v3 * m,
                                       preferred_element_type=jnp.float32)

        attn = attn3.reshape(M, H)
        attn = _mm(attn, w_o_ref[l]) + b_o_ref[l:l + 1]
        h = _layernorm(h + attn, ln1_g_ref[l:l + 1], ln1_b_ref[l:l + 1])

        ff = _mm(h, w_ff1_ref[l]) + b_ff1_ref[l:l + 1]
        ff = jnp.maximum(ff, 0.0)                                  # ReLU
        ff = _mm(ff, w_ff2_ref[l]) + b_ff2_ref[l:l + 1]
        h = _layernorm(h + ff, ln2_g_ref[l:l + 1], ln2_b_ref[l:l + 1])

    h = _layernorm(h, lnf_g_ref[...], lnf_b_ref[...])              # encoder_norm

    # sequence pooling per batch element: mean / last / max over seq
    h3 = h.reshape(TB, S, H)
    r_mean = jnp.mean(h3, axis=1)                                  # (TB, H)
    r_last = h3[:, S - 1, :]                                       # (TB, H)
    r_max = jnp.max(h3, axis=1)                                    # (TB, H)
    r = jnp.concatenate([r_mean, r_last, r_max], axis=-1)          # (TB, 3H)

    # fused mean / log_var heads: one (TB,3H)@(3H,2Z) matmul
    heads = _mm(r, w_heads_ref[...]) + b_heads_ref[...]            # (TB, 2Z)
    mean = heads[:, :Z]
    sigma = min_std + (1.0 - min_std) * jax.nn.sigmoid(0.5 * heads[:, Z:])
    out_ref[...] = jnp.concatenate([mean, sigma], axis=-1)         # (TB, 2Z)


def latent_encoder_forward(x, y, params, *, nhead=8, min_std=0.01,
                           batch_tile=16):
    x = x.astype(jnp.float32)
    y = y.astype(jnp.float32)
    B, S, Dx = x.shape
    Dy = y.shape[-1]
    H = params["w_emb"].shape[1]
    Z = params["w_mean"].shape[1]
    L = params["w_q"].shape[0]

    # batch tiling (pad B up to a multiple of the tile; padded rows are
    # computed but discarded — they never mix with real batch elements)
    TB = min(B, batch_tile)
    B_pad = ((B + TB - 1) // TB) * TB
    if B_pad != B:
        pad = B_pad - B
        x = jnp.concatenate([x, jnp.zeros((pad, S, Dx), jnp.float32)], axis=0)
        y = jnp.concatenate([y, jnp.zeros((pad, S, Dy), jnp.float32)], axis=0)
    x_flat = x.reshape(B_pad * S, Dx)
    y_flat = y.reshape(B_pad * S, Dy)

    # hoisted constants: causal additive mask + per-head disjoint lane masks
    idx = jnp.arange(S)
    causal = jnp.where(idx[None, :] <= idx[:, None], 0.0, -1e30).astype(jnp.float32)
    head_mask = (jnp.arange(H)[None, :] // (H // nhead)
                 == jnp.arange(nhead)[:, None]).astype(jnp.float32)

    # fused weights (done once at trace time, outside the kernel)
    w_qkv = jnp.concatenate([params["w_q"], params["w_k"], params["w_v"]], axis=-1)
    b_qkv = jnp.concatenate([params["b_q"], params["b_k"], params["b_v"]], axis=-1)
    w_heads = jnp.concatenate([params["w_mean"], params["w_lv"]], axis=-1)
    b_heads = jnp.concatenate([params["b_mean"], params["b_lv"]], axis=-1)

    weights = [
        params["w_emb"][:Dx], params["w_emb"][Dx:], params["b_emb"],
        w_qkv, b_qkv, params["w_o"], params["b_o"],
        params["ln1_g"], params["ln1_b"], params["ln2_g"], params["ln2_b"],
        params["w_ff1"], params["b_ff1"], params["w_ff2"], params["b_ff2"],
        params["lnf_g"], params["lnf_b"],
        w_heads, b_heads,
    ]

    def _full_spec(shape):
        nd = len(shape)
        return pl.BlockSpec(shape, lambda b, _nd=nd: (0,) * _nd)

    in_specs = [
        _full_spec(causal.shape),
        _full_spec(head_mask.shape),
        pl.BlockSpec((TB * S, Dx), lambda b: (b, 0)),
        pl.BlockSpec((TB * S, Dy), lambda b: (b, 0)),
    ]
    in_specs += [_full_spec(w.shape) for w in weights]

    out_specs = pl.BlockSpec((TB, 2 * Z), lambda b: (b, 0))
    out_shape = jax.ShapeDtypeStruct((B_pad, 2 * Z), jnp.float32)

    kernel = functools.partial(_latent_encoder_kernel, num_layers=L,
                               nhead=nhead, min_std=min_std)
    out = pl.pallas_call(
        kernel,
        grid=(B_pad // TB,),
        in_specs=in_specs,
        out_specs=out_specs,
        out_shape=out_shape,
        compiler_params=pltpu.CompilerParams(
            dimension_semantics=("parallel",)),
    )(causal, head_mask, x_flat, y_flat, *weights)

    mean = out[:B, :Z]
    sigma = out[:B, Z:]
    return mean, sigma


def init_params(key, input_dim, hidden=32, latent=32, num_layers=2, ff_mult=8):
    FF = hidden * ff_mult
    keys = iter(jax.random.split(key, 32))

    def w(shape):
        return jax.random.normal(next(keys), shape, jnp.float32) / jnp.sqrt(shape[-2])

    def b(shape):
        return 0.01 * jax.random.normal(next(keys), shape, jnp.float32)

    return {
        "w_emb": w((input_dim, hidden)), "b_emb": b((1, hidden)),
        "w_q": w((num_layers, hidden, hidden)), "b_q": b((num_layers, hidden)),
        "w_k": w((num_layers, hidden, hidden)), "b_k": b((num_layers, hidden)),
        "w_v": w((num_layers, hidden, hidden)), "b_v": b((num_layers, hidden)),
        "w_o": w((num_layers, hidden, hidden)), "b_o": b((num_layers, hidden)),
        "ln1_g": jnp.ones((num_layers, hidden), jnp.float32),
        "ln1_b": jnp.zeros((num_layers, hidden), jnp.float32),
        "ln2_g": jnp.ones((num_layers, hidden), jnp.float32),
        "ln2_b": jnp.zeros((num_layers, hidden), jnp.float32),
        "w_ff1": w((num_layers, hidden, FF)), "b_ff1": b((num_layers, FF)),
        "w_ff2": w((num_layers, FF, hidden)), "b_ff2": b((num_layers, hidden)),
        "lnf_g": jnp.ones((1, hidden), jnp.float32),
        "lnf_b": jnp.zeros((1, hidden), jnp.float32),
        "w_mean": w((3 * hidden, latent)), "b_mean": b((1, latent)),
        "w_lv": w((3 * hidden, latent)), "b_lv": b((1, latent)),
    }


def _ln_ref(x, g, b, eps=1e-5):
    mu = jnp.mean(x, axis=-1, keepdims=True)
    var = jnp.mean((x - mu) ** 2, axis=-1, keepdims=True)
    return (x - mu) * jax.lax.rsqrt(var + eps) * g + b


def reference_forward(x, y, P, *, nhead, min_std):
    """Pure-JAX reference mirroring the PyTorch forward (post-norm, ReLU FF)."""
    xy = jnp.concatenate([x, y], axis=-1).astype(jnp.float32)
    B, S, _ = xy.shape
    H = P["w_emb"].shape[1]
    hd = H // nhead
    L = P["w_q"].shape[0]
    h = xy @ P["w_emb"] + P["b_emb"]
    causal = jnp.where(jnp.arange(S)[None, :] <= jnp.arange(S)[:, None], 0.0, -1e30)
    for l in range(L):
        q = h @ P["w_q"][l] + P["b_q"][l]
        k = h @ P["w_k"][l] + P["b_k"][l]
        v = h @ P["w_v"][l] + P["b_v"][l]
        qh = q.reshape(B, S, nhead, hd)
        kh = k.reshape(B, S, nhead, hd)
        vh = v.reshape(B, S, nhead, hd)
        s = jnp.einsum("bqnd,bknd->bnqk", qh, kh) / jnp.sqrt(float(hd)) + causal
        p = jax.nn.softmax(s, axis=-1)
        o = jnp.einsum("bnqk,bknd->bqnd", p, vh).reshape(B, S, H)
        o = o @ P["w_o"][l] + P["b_o"][l]
        h = _ln_ref(h + o, P["ln1_g"][l], P["ln1_b"][l])
        ff = jax.nn.relu(h @ P["w_ff1"][l] + P["b_ff1"][l]) @ P["w_ff2"][l] + P["b_ff2"][l]
        h = _ln_ref(h + ff, P["ln2_g"][l], P["ln2_b"][l])
    h = _ln_ref(h, P["lnf_g"], P["lnf_b"])
    r = jnp.concatenate([h.mean(axis=1), h[:, -1, :], h.max(axis=1)], axis=-1)
    mean = r @ P["w_mean"] + P["b_mean"]
    log_sigma = r @ P["w_lv"] + P["b_lv"]
    sigma = min_std + (1.0 - min_std) * jax.nn.sigmoid(0.5 * log_sigma)
    return mean, sigma


if __name__ == "__main__":
    B, S = 2, 8
    x_dim, y_dim = 3, 1
    hidden, latent, nhead, num_layers = 32, 32, 8, 2
    min_std = 0.01

    key = jax.random.PRNGKey(0)
    kx, ky, kp = jax.random.split(key, 3)
    x = jax.random.normal(kx, (B, S, x_dim), jnp.float32)
    y = jax.random.normal(ky, (B, S, y_dim), jnp.float32)
    params = init_params(kp, x_dim + y_dim, hidden, latent, num_layers)

    mean, sigma = latent_encoder_forward(x, y, params, nhead=nhead, min_std=min_std)
    jax.block_until_ready((mean, sigma))

    ref_mean, ref_sigma = reference_forward(x, y, params, nhead=nhead, min_std=min_std)
    assert mean.shape == (B, latent) and sigma.shape == (B, latent)
    assert bool(jnp.allclose(mean, ref_mean, atol=2e-3, rtol=2e-3))
    assert bool(jnp.allclose(sigma, ref_sigma, atol=2e-3, rtol=2e-3))
    print("KERNEL_OK")
</pallas_src>

<mosaic_0001>
module attributes {stable_mosaic.version = 11 : i64} {
  func.func @_latent_encoder_kernel(%arg0: i32, %arg1: memref<8x8xf32, #tpu.memory_space<vmem>>, %arg2: memref<8x32xf32, #tpu.memory_space<vmem>>, %arg3: memref<16x3xf32, #tpu.memory_space<vmem>>, %arg4: memref<16x1xf32, #tpu.memory_space<vmem>>, %arg5: memref<3x32xf32, #tpu.memory_space<vmem>>, %arg6: memref<1x32xf32, #tpu.memory_space<vmem>>, %arg7: memref<1x32xf32, #tpu.memory_space<vmem>>, %arg8: memref<2x32x96xf32, #tpu.memory_space<vmem>>, %arg9: memref<2x96xf32, #tpu.memory_space<vmem>>, %arg10: memref<2x32x32xf32, #tpu.memory_space<vmem>>, %arg11: memref<2x32xf32, #tpu.memory_space<vmem>>, %arg12: memref<2x32xf32, #tpu.memory_space<vmem>>, %arg13: memref<2x32xf32, #tpu.memory_space<vmem>>, %arg14: memref<2x32xf32, #tpu.memory_space<vmem>>, %arg15: memref<2x32xf32, #tpu.memory_space<vmem>>, %arg16: memref<2x32x256xf32, #tpu.memory_space<vmem>>, %arg17: memref<2x256xf32, #tpu.memory_space<vmem>>, %arg18: memref<2x256x32xf32, #tpu.memory_space<vmem>>, %arg19: memref<2x32xf32, #tpu.memory_space<vmem>>, %arg20: memref<1x32xf32, #tpu.memory_space<vmem>>, %arg21: memref<1x32xf32, #tpu.memory_space<vmem>>, %arg22: memref<96x64xf32, #tpu.memory_space<vmem>>, %arg23: memref<1x64xf32, #tpu.memory_space<vmem>>, %arg24: memref<2x64xf32, #tpu.memory_space<vmem>>) attributes {dimension_semantics = [#tpu.dimension_semantics<parallel>], iteration_bounds = array<i64: 1>, scalar_prefetch = 0 : i64, scratch_operands = 0 : i64, tpu.core_type = #tpu.core_type<tc>, window_params = [{pipeline_mode = #tpu.pipeline_mode<synchronous>, transform_indices = @transform_0, window_bounds = array<i64: 8, 8>}, {pipeline_mode = #tpu.pipeline_mode<synchronous>, transform_indices = @transform_1, window_bounds = array<i64: 8, 32>}, {transform_indices = @transform_2, window_bounds = array<i64: 16, 3>}, {transform_indices = @transform_3, window_bounds = array<i64: 16, 1>}, {pipeline_mode = #tpu.pipeline_mode<synchronous>, transform_indices = @transform_4, window_bounds = array<i64: 3, 32>}, {pipeline_mode = #tpu.pipeline_mode<synchronous>, transform_indices = @transform_5, window_bounds = array<i64: 1, 32>}, {pipeline_mode = #tpu.pipeline_mode<synchronous>, transform_indices = @transform_6, window_bounds = array<i64: 1, 32>}, {pipeline_mode = #tpu.pipeline_mode<synchronous>, transform_indices = @transform_7, window_bounds = array<i64: 2, 32, 96>}, {pipeline_mode = #tpu.pipeline_mode<synchronous>, transform_indices = @transform_8, window_bounds = array<i64: 2, 96>}, {pipeline_mode = #tpu.pipeline_mode<synchronous>, transform_indices = @transform_9, window_bounds = array<i64: 2, 32, 32>}, {pipeline_mode = #tpu.pipeline_mode<synchronous>, transform_indices = @transform_10, window_bounds = array<i64: 2, 32>}, {pipeline_mode = #tpu.pipeline_mode<synchronous>, transform_indices = @transform_11, window_bounds = array<i64: 2, 32>}, {pipeline_mode = #tpu.pipeline_mode<synchronous>, transform_indices = @transform_12, window_bounds = array<i64: 2, 32>}, {pipeline_mode = #tpu.pipeline_mode<synchronous>, transform_indices = @transform_13, window_bounds = array<i64: 2, 32>}, {pipeline_mode = #tpu.pipeline_mode<synchronous>, transform_indices = @transform_14, window_bounds = array<i64: 2, 32>}, {pipeline_mode = #tpu.pipeline_mode<synchronous>, transform_indices = @transform_15, window_bounds = array<i64: 2, 32, 256>}, {pipeline_mode = #tpu.pipeline_mode<synchronous>, transform_indices = @transform_16, window_bounds = array<i64: 2, 256>}, {pipeline_mode = #tpu.pipeline_mode<synchronous>, transform_indices = @transform_17, window_bounds = array<i64: 2, 256, 32>}, {pipeline_mode = #tpu.pipeline_mode<synchronous>, transform_indices = @transform_18, window_bounds = array<i64: 2, 32>}, {pipeline_mode = #tpu.pipeline_mode<synchronous>, transform_indices = @transform_19, window_bounds = array<i64: 1, 32>}, {pipeline_mode = #tpu.pipeline_mode<synchronous>, transform_indices = @transform_20, window_bounds = array<i64: 1, 32>}, {pipeline_mode = #tpu.pipeline_mode<synchronous>, transform_indices = @transform_21, window_bounds = array<i64: 96, 64>}, {pipeline_mode = #tpu.pipeline_mode<synchronous>, transform_indices = @transform_22, window_bounds = array<i64: 1, 64>}, {transform_indices = @transform_23, window_bounds = array<i64: 2, 64>}]} {
    %c0 = arith.constant 0 : index
    %c0_0 = arith.constant 0 : index
    %0 = vector.load %arg1[%c0, %c0_0] : memref<8x8xf32, #tpu.memory_space<vmem>>, vector<8x8xf32>
    %c0_1 = arith.constant 0 : index
    %c0_2 = arith.constant 0 : index
    %1 = vector.load %arg2[%c0_1, %c0_2] : memref<8x32xf32, #tpu.memory_space<vmem>>, vector<8x32xf32>
    %c0_3 = arith.constant 0 : index
    %c0_4 = arith.constant 0 : index
    %2 = vector.load %arg3[%c0_3, %c0_4] : memref<16x3xf32, #tpu.memory_space<vmem>>, vector<16x3xf32>
    %c0_5 = arith.constant 0 : index
    %c0_6 = arith.constant 0 : index
    %3 = vector.load %arg5[%c0_5, %c0_6] : memref<3x32xf32, #tpu.memory_space<vmem>>, vector<3x32xf32>
    %cst = arith.constant dense<0.000000e+00> : vector<16x32xf32>
    %4 = tpu.matmul %2, %3, %cst {dimension_numbers = #tpu.dot_dimension_numbers<[1], [0], [0], [1], [0, 0, 1, 1], [], []>} : vector<16x3xf32>, vector<3x32xf32>, vector<16x32xf32> -> vector<16x32xf32>
    %c0_7 = arith.constant 0 : index
    %c0_8 = arith.constant 0 : index
    %5 = vector.load %arg4[%c0_7, %c0_8] : memref<16x1xf32, #tpu.memory_space<vmem>>, vector<16x1xf32>
    %c0_9 = arith.constant 0 : index
    %c0_10 = arith.constant 0 : index
    %6 = vector.load %arg6[%c0_9, %c0_10] : memref<1x32xf32, #tpu.memory_space<vmem>>, vector<1x32xf32>
    %cst_11 = arith.constant dense<0.000000e+00> : vector<16x32xf32>
    %7 = tpu.matmul %5, %6, %cst_11 {dimension_numbers = #tpu.dot_dimension_numbers<[1], [0], [0], [1], [0, 0, 1, 1], [], []>} : vector<16x1xf32>, vector<1x32xf32>, vector<16x32xf32> -> vector<16x32xf32>
    %8 = arith.addf %4, %7 : vector<16x32xf32>
    %c0_12 = arith.constant 0 : index
    %c0_13 = arith.constant 0 : index
    %9 = vector.load %arg7[%c0_12, %c0_13] : memref<1x32xf32, #tpu.memory_space<vmem>>, vector<1x32xf32>
    %10 = vector.broadcast %9 : vector<1x32xf32> to vector<16x32xf32>
    %11 = arith.addf %8, %10 : vector<16x32xf32>
    %c0_14 = arith.constant 0 : index
    %c0_15 = arith.constant 0 : index
    %c0_16 = arith.constant 0 : index
    %12 = vector.load %arg8[%c0_14, %c0_15, %c0_16] : memref<2x32x96xf32, #tpu.memory_space<vmem>>, vector<1x32x96xf32>
    %13 = vector.shape_cast %12 : vector<1x32x96xf32> to vector<32x96xf32>
    %cst_17 = arith.constant dense<0.000000e+00> : vector<16x96xf32>
    %14 = tpu.matmul %11, %13, %cst_17 {dimension_numbers = #tpu.dot_dimension_numbers<[1], [0], [0], [1], [0, 0, 1, 1], [], []>} : vector<16x32xf32>, vector<32x96xf32>, vector<16x96xf32> -> vector<16x96xf32>
    %c0_18 = arith.constant 0 : index
    %c0_19 = arith.constant 0 : index
    %15 = vector.load %arg9[%c0_18, %c0_19] : memref<2x96xf32, #tpu.memory_space<vmem>>, vector<1x96xf32>
    %16 = vector.broadcast %15 : vector<1x96xf32> to vector<16x96xf32>
    %17 = arith.addf %14, %16 : vector<16x96xf32>
    %18 = vector.extract_strided_slice %17 {offsets = [0, 0], sizes = [16, 32], strides = [1, 1]} : vector<16x96xf32> to vector<16x32xf32>
    %19 = vector.shape_cast %18 : vector<16x32xf32> to vector<2x8x32xf32>
    %20 = vector.extract_strided_slice %17 {offsets = [0, 32], sizes = [16, 32], strides = [1, 1]} : vector<16x96xf32> to vector<16x32xf32>
    %21 = vector.shape_cast %20 : vector<16x32xf32> to vector<2x8x32xf32>
    %22 = vector.extract_strided_slice %17 {offsets = [0, 64], sizes = [16, 32], strides = [1, 1]} : vector<16x96xf32> to vector<16x32xf32>
    %23 = vector.shape_cast %22 : vector<16x32xf32> to vector<2x8x32xf32>
    %cst_20 = arith.constant 0.000000e+00 : f32
    %24 = vector.broadcast %cst_20 : f32 to vector<2x8x32xf32>
    %25 = vector.extract_strided_slice %1 {offsets = [0, 0], sizes = [1, 32], strides = [1, 1]} : vector<8x32xf32> to vector<1x32xf32>
    %26 = vector.shape_cast %25 : vector<1x32xf32> to vector<1x1x32xf32>
    %27 = vector.broadcast %26 : vector<1x1x32xf32> to vector<2x8x32xf32>
    %28 = arith.mulf %19, %27 : vector<2x8x32xf32>
    "tpu.trace_start"() <{level = 10 : i32, message = "bqh,bkh->bqk"}> : () -> ()
    %cst_21 = arith.constant dense<0.000000e+00> : vector<2x8x8xf32>
    %29 = tpu.matmul %28, %21, %cst_21 {dimension_numbers = #tpu.dot_dimension_numbers<[2], [2], [1], [1], [0, 0, 0, 1, 1, 1], [0], [0]>} : vector<2x8x32xf32>, vector<2x8x32xf32>, vector<2x8x8xf32> -> vector<2x8x8xf32>
    "tpu.trace_stop"() : () -> ()
    %cst_22 = arith.constant 5.000000e-01 : f32
    %30 = vector.broadcast %cst_22 : f32 to vector<2x8x8xf32>
    %31 = arith.mulf %29, %30 : vector<2x8x8xf32>
    %32 = vector.shape_cast %0 : vector<8x8xf32> to vector<1x8x8xf32>
    %33 = vector.broadcast %32 : vector<1x8x8xf32> to vector<2x8x8xf32>
    %34 = arith.addf %31, %33 : vector<2x8x8xf32>
    %cst_23 = arith.constant dense<0xFF800000> : vector<2x8xf32>
    %35 = vector.multi_reduction <maximumf>, %34, %cst_23 [2] : vector<2x8x8xf32> to vector<2x8xf32>
    %36 = vector.shape_cast %35 : vector<2x8xf32> to vector<2x8x1xf32>
    %37 = vector.broadcast %36 : vector<2x8x1xf32> to vector<2x8x8xf32>
    %38 = arith.subf %34, %37 : vector<2x8x8xf32>
    %39 = math.exp %38 : vector<2x8x8xf32>
    %cst_24 = arith.constant dense<0.000000e+00> : vector<2x8xf32>
    %40 = vector.multi_reduction <add>, %39, %cst_24 [2] : vector<2x8x8xf32> to vector<2x8xf32>
    %41 = vector.shape_cast %40 : vector<2x8xf32> to vector<2x8x1xf32>
    %42 = tpu.reciprocal %41 {approx = true} : vector<2x8x1xf32> -> vector<2x8x1xf32>
    %43 = vector.broadcast %42 : vector<2x8x1xf32> to vector<2x8x8xf32>
    %44 = arith.mulf %39, %43 : vector<2x8x8xf32>
    %45 = vector.shape_cast %25 : vector<1x32xf32> to vector<1x1x32xf32>
    %46 = vector.broadcast %45 : vector<1x1x32xf32> to vector<2x8x32xf32>
    %47 = arith.mulf %23, %46 : vector<2x8x32xf32>
    "tpu.trace_start"() <{level = 10 : i32, message = "bqk,bkh->bqh"}> : () -> ()
    %cst_25 = arith.constant dense<0.000000e+00> : vector<2x8x32xf32>
    %48 = tpu.matmul %44, %47, %cst_25 {dimension_numbers = #tpu.dot_dimension_numbers<[2], [1], [1], [2], [0, 0, 0, 1, 1, 2], [0], [0]>} : vector<2x8x8xf32>, vector<2x8x32xf32>, vector<2x8x32xf32> -> vector<2x8x32xf32>
    "tpu.trace_stop"() : () -> ()
    %49 = arith.addf %24, %48 : vector<2x8x32xf32>
    %50 = vector.extract_strided_slice %1 {offsets = [1, 0], sizes = [1, 32], strides = [1, 1]} : vector<8x32xf32> to vector<1x32xf32>
    %51 = vector.shape_cast %50 : vector<1x32xf32> to vector<1x1x32xf32>
    %52 = vector.broadcast %51 : vector<1x1x32xf32> to vector<2x8x32xf32>
    %53 = arith.mulf %19, %52 : vector<2x8x32xf32>
    "tpu.trace_start"() <{level = 10 : i32, message = "bqh,bkh->bqk"}> : () -> ()
    %cst_26 = arith.constant dense<0.000000e+00> : vector<2x8x8xf32>
    %54 = tpu.matmul %53, %21, %cst_26 {dimension_numbers = #tpu.dot_dimension_numbers<[2], [2], [1], [1], [0, 0, 0, 1, 1, 1], [0], [0]>} : vector<2x8x32xf32>, vector<2x8x32xf32>, vector<2x8x8xf32> -> vector<2x8x8xf32>
    "tpu.trace_stop"() : () -> ()
    %cst_27 = arith.constant 5.000000e-01 : f32
    %55 = vector.broadcast %cst_27 : f32 to vector<2x8x8xf32>
    %56 = arith.mulf %54, %55 : vector<2x8x8xf32>
    %57 = vector.shape_cast %0 : vector<8x8xf32> to vector<1x8x8xf32>
    %58 = vector.broadcast %57 : vector<1x8x8xf32> to vector<2x8x8xf32>
    %59 = arith.addf %56, %58 : vector<2x8x8xf32>
    %cst_28 = arith.constant dense<0xFF800000> : vector<2x8xf32>
    %60 = vector.multi_reduction <maximumf>, %59, %cst_28 [2] : vector<2x8x8xf32> to vector<2x8xf32>
    %61 = vector.shape_cast %60 : vector<2x8xf32> to vector<2x8x1xf32>
    %62 = vector.broadcast %61 : vector<2x8x1xf32> to vector<2x8x8xf32>
    %63 = arith.subf %59, %62 : vector<2x8x8xf32>
    %64 = math.exp %63 : vector<2x8x8xf32>
    %cst_29 = arith.constant dense<0.000000e+00> : vector<2x8xf32>
    %65 = vector.multi_reduction <add>, %64, %cst_29 [2] : vector<2x8x8xf32> to vector<2x8xf32>
    %66 = vector.shape_cast %65 : vector<2x8xf32> to vector<2x8x1xf32>
    %67 = tpu.reciprocal %66 {approx = true} : vector<2x8x1xf32> -> vector<2x8x1xf32>
    %68 = vector.broadcast %67 : vector<2x8x1xf32> to vector<2x8x8xf32>
    %69 = arith.mulf %64, %68 : vector<2x8x8xf32>
    %70 = vector.shape_cast %50 : vector<1x32xf32> to vector<1x1x32xf32>
    %71 = vector.broadcast %70 : vector<1x1x32xf32> to vector<2x8x32xf32>
    %72 = arith.mulf %23, %71 : vector<2x8x32xf32>
    "tpu.trace_start"() <{level = 10 : i32, message = "bqk,bkh->bqh"}> : () -> ()
    %cst_30 = arith.constant dense<0.000000e+00> : vector<2x8x32xf32>
    %73 = tpu.matmul %69, %72, %cst_30 {dimension_numbers = #tpu.dot_dimension_numbers<[2], [1], [1], [2], [0, 0, 0, 1, 1, 2], [0], [0]>} : vector<2x8x8xf32>, vector<2x8x32xf32>, vector<2x8x32xf32> -> vector<2x8x32xf32>
    "tpu.trace_stop"() : () -> ()
    %74 = arith.addf %49, %73 : vector<2x8x32xf32>
    %75 = vector.extract_strided_slice %1 {offsets = [2, 0], sizes = [1, 32], strides = [1, 1]} : vector<8x32xf32> to vector<1x32xf32>
    %76 = vector.shape_cast %75 : vector<1x32xf32> to vector<1x1x32xf32>
    %77 = vector.broadcast %76 : vector<1x1x32xf32> to vector<2x8x32xf32>
    %78 = arith.mulf %19, %77 : vector<2x8x32xf32>
    "tpu.trace_start"() <{level = 10 : i32, message = "bqh,bkh->bqk"}> : () -> ()
    %cst_31 = arith.constant dense<0.000000e+00> : vector<2x8x8xf32>
    %79 = tpu.matmul %78, %21, %cst_31 {dimension_numbers = #tpu.dot_dimension_numbers<[2], [2], [1], [1], [0, 0, 0, 1, 1, 1], [0], [0]>} : vector<2x8x32xf32>, vector<2x8x32xf32>, vector<2x8x8xf32> -> vector<2x8x8xf32>
    "tpu.trace_stop"() : () -> ()
    %cst_32 = arith.constant 5.000000e-01 : f32
    %80 = vector.broadcast %cst_32 : f32 to vector<2x8x8xf32>
    %81 = arith.mulf %79, %80 : vector<2x8x8xf32>
    %82 = vector.shape_cast %0 : vector<8x8xf32> to vector<1x8x8xf32>
    %83 = vector.broadcast %82 : vector<1x8x8xf32> to vector<2x8x8xf32>
    %84 = arith.addf %81, %83 : vector<2x8x8xf32>
    %cst_33 = arith.constant dense<0xFF800000> : vector<2x8xf32>
    %85 = vector.multi_reduction <maximumf>, %84, %cst_33 [2] : vector<2x8x8xf32> to vector<2x8xf32>
    %86 = vector.shape_cast %85 : vector<2x8xf32> to vector<2x8x1xf32>
    %87 = vector.broadcast %86 : vector<2x8x1xf32> to vector<2x8x8xf32>
    %88 = arith.subf %84, %87 : vector<2x8x8xf32>
    %89 = math.exp %88 : vector<2x8x8xf32>
    %cst_34 = arith.constant dense<0.000000e+00> : vector<2x8xf32>
    %90 = vector.multi_reduction <add>, %89, %cst_34 [2] : vector<2x8x8xf32> to vector<2x8xf32>
    %91 = vector.shape_cast %90 : vector<2x8xf32> to vector<2x8x1xf32>
    %92 = tpu.reciprocal %91 {approx = true} : vector<2x8x1xf32> -> vector<2x8x1xf32>
    %93 = vector.broadcast %92 : vector<2x8x1xf32> to vector<2x8x8xf32>
    %94 = arith.mulf %89, %93 : vector<2x8x8xf32>
    %95 = vector.shape_cast %75 : vector<1x32xf32> to vector<1x1x32xf32>
    %96 = vector.broadcast %95 : vector<1x1x32xf32> to vector<2x8x32xf32>
    %97 = arith.mulf %23, %96 : vector<2x8x32xf32>
    "tpu.trace_start"() <{level = 10 : i32, message = "bqk,bkh->bqh"}> : () -> ()
    %cst_35 = arith.constant dense<0.000000e+00> : vector<2x8x32xf32>
    %98 = tpu.matmul %94, %97, %cst_35 {dimension_numbers = #tpu.dot_dimension_numbers<[2], [1], [1], [2], [0, 0, 0, 1, 1, 2], [0], [0]>} : vector<2x8x8xf32>, vector<2x8x32xf32>, vector<2x8x32xf32> -> vector<2x8x32xf32>
    "tpu.trace_stop"() : () -> ()
    %99 = arith.addf %74, %98 : vector<2x8x32xf32>
    %100 = vector.extract_strided_slice %1 {offsets = [3, 0], sizes = [1, 32], strides = [1, 1]} : vector<8x32xf32> to vector<1x32xf32>
    %101 = vector.shape_cast %100 : vector<1x32xf32> to vector<1x1x32xf32>
    %102 = vector.broadcast %101 : vector<1x1x32xf32> to vector<2x8x32xf32>
    %103 = arith.mulf %19, %102 : vector<2x8x32xf32>
    "tpu.trace_start"() <{level = 10 : i32, message = "bqh,bkh->bqk"}> : () -> ()
    %cst_36 = arith.constant dense<0.000000e+00> : vector<2x8x8xf32>
    %104 = tpu.matmul %103, %21, %cst_36 {dimension_numbers = #tpu.dot_dimension_numbers<[2], [2], [1], [1], [0, 0, 0, 1, 1, 1], [0], [0]>} : vector<2x8x32xf32>, vector<2x8x32xf32>, vector<2x8x8xf32> -> vector<2x8x8xf32>
    "tpu.trace_stop"() : () -> ()
    %cst_37 = arith.constant 5.000000e-01 : f32
    %105 = vector.broadcast %cst_37 : f32 to vector<2x8x8xf32>
    %106 = arith.mulf %104, %105 : vector<2x8x8xf32>
    %107 = vector.shape_cast %0 : vector<8x8xf32> to vector<1x8x8xf32>
    %108 = vector.broadcast %107 : vector<1x8x8xf32> to vector<2x8x8xf32>
    %109 = arith.addf %106, %108 : vector<2x8x8xf32>
    %cst_38 = arith.constant dense<0xFF800000> : vector<2x8xf32>
    %110 = vector.multi_reduction <maximumf>, %109, %cst_38 [2] : vector<2x8x8xf32> to vector<2x8xf32>
    %111 = vector.shape_cast %110 : vector<2x8xf32> to vector<2x8x1xf32>
    %112 = vector.broadcast %111 : vector<2x8x1xf32> to vector<2x8x8xf32>
    %113 = arith.subf %109, %112 : vector<2x8x8xf32>
    %114 = math.exp %113 : vector<2x8x8xf32>
    %cst_39 = arith.constant dense<0.000000e+00> : vector<2x8xf32>
    %115 = vector.multi_reduction <add>, %114, %cst_39 [2] : vector<2x8x8xf32> to vector<2x8xf32>
    %116 = vector.shape_cast %115 : vector<2x8xf32> to vector<2x8x1xf32>
    %117 = tpu.reciprocal %116 {approx = true} : vector<2x8x1xf32> -> vector<2x8x1xf32>
    %118 = vector.broadcast %117 : vector<2x8x1xf32> to vector<2x8x8xf32>
    %119 = arith.mulf %114, %118 : vector<2x8x8xf32>
    %120 = vector.shape_cast %100 : vector<1x32xf32> to vector<1x1x32xf32>
    %121 = vector.broadcast %120 : vector<1x1x32xf32> to vector<2x8x32xf32>
    %122 = arith.mulf %23, %121 : vector<2x8x32xf32>
    "tpu.trace_start"() <{level = 10 : i32, message = "bqk,bkh->bqh"}> : () -> ()
    %cst_40 = arith.constant dense<0.000000e+00> : vector<2x8x32xf32>
    %123 = tpu.matmul %119, %122, %cst_40 {dimension_numbers = #tpu.dot_dimension_numbers<[2], [1], [1], [2], [0, 0, 0, 1, 1, 2], [0], [0]>} : vector<2x8x8xf32>, vector<2x8x32xf32>, vector<2x8x32xf32> -> vector<2x8x32xf32>
    "tpu.trace_stop"() : () -> ()
    %124 = arith.addf %99, %123 : vector<2x8x32xf32>
    %125 = vector.extract_strided_slice %1 {offsets = [4, 0], sizes = [1, 32], strides = [1, 1]} : vector<8x32xf32> to vector<1x32xf32>
    %126 = vector.shape_cast %125 : vector<1x32xf32> to vector<1x1x32xf32>
    %127 = vector.broadcast %126 : vector<1x1x32xf32> to vector<2x8x32xf32>
    %128 = arith.mulf %19, %127 : vector<2x8x32xf32>
    "tpu.trace_start"() <{level = 10 : i32, message = "bqh,bkh->bqk"}> : () -> ()
    %cst_41 = arith.constant dense<0.000000e+00> : vector<2x8x8xf32>
    %129 = tpu.matmul %128, %21, %cst_41 {dimension_numbers = #tpu.dot_dimension_numbers<[2], [2], [1], [1], [0, 0, 0, 1, 1, 1], [0], [0]>} : vector<2x8x32xf32>, vector<2x8x32xf32>, vector<2x8x8xf32> -> vector<2x8x8xf32>
    "tpu.trace_stop"() : () -> ()
    %cst_42 = arith.constant 5.000000e-01 : f32
    %130 = vector.broadcast %cst_42 : f32 to vector<2x8x8xf32>
    %131 = arith.mulf %129, %130 : vector<2x8x8xf32>
    %132 = vector.shape_cast %0 : vector<8x8xf32> to vector<1x8x8xf32>
    %133 = vector.broadcast %132 : vector<1x8x8xf32> to vector<2x8x8xf32>
    %134 = arith.addf %131, %133 : vector<2x8x8xf32>
    %cst_43 = arith.constant dense<0xFF800000> : vector<2x8xf32>
    %135 = vector.multi_reduction <maximumf>, %134, %cst_43 [2] : vector<2x8x8xf32> to vector<2x8xf32>
    %136 = vector.shape_cast %135 : vector<2x8xf32> to vector<2x8x1xf32>
    %137 = vector.broadcast %136 : vector<2x8x1xf32> to vector<2x8x8xf32>
    %138 = arith.subf %134, %137 : vector<2x8x8xf32>
    %139 = math.exp %138 : vector<2x8x8xf32>
    %cst_44 = arith.constant dense<0.000000e+00> : vector<2x8xf32>
    %140 = vector.multi_reduction <add>, %139, %cst_44 [2] : vector<2x8x8xf32> to vector<2x8xf32>
    %141 = vector.shape_cast %140 : vector<2x8xf32> to vector<2x8x1xf32>
    %142 = tpu.reciprocal %141 {approx = true} : vector<2x8x1xf32> -> vector<2x8x1xf32>
    %143 = vector.broadcast %142 : vector<2x8x1xf32> to vector<2x8x8xf32>
    %144 = arith.mulf %139, %143 : vector<2x8x8xf32>
    %145 = vector.shape_cast %125 : vector<1x32xf32> to vector<1x1x32xf32>
    %146 = vector.broadcast %145 : vector<1x1x32xf32> to vector<2x8x32xf32>
    %147 = arith.mulf %23, %146 : vector<2x8x32xf32>
    "tpu.trace_start"() <{level = 10 : i32, message = "bqk,bkh->bqh"}> : () -> ()
    %cst_45 = arith.constant dense<0.000000e+00> : vector<2x8x32xf32>
    %148 = tpu.matmul %144, %147, %cst_45 {dimension_numbers = #tpu.dot_dimension_numbers<[2], [1], [1], [2], [0, 0, 0, 1, 1, 2], [0], [0]>} : vector<2x8x8xf32>, vector<2x8x32xf32>, vector<2x8x32xf32> -> vector<2x8x32xf32>
    "tpu.trace_stop"() : () -> ()
    %149 = arith.addf %124, %148 : vector<2x8x32xf32>
    %150 = vector.extract_strided_slice %1 {offsets = [5, 0], sizes = [1, 32], strides = [1, 1]} : vector<8x32xf32> to vector<1x32xf32>
    %151 = vector.shape_cast %150 : vector<1x32xf32> to vector<1x1x32xf32>
    %152 = vector.broadcast %151 : vector<1x1x32xf32> to vector<2x8x32xf32>
    %153 = arith.mulf %19, %152 : vector<2x8x32xf32>
    "tpu.trace_start"() <{level = 10 : i32, message = "bqh,bkh->bqk"}> : () -> ()
    %cst_46 = arith.constant dense<0.000000e+00> : vector<2x8x8xf32>
    %154 = tpu.matmul %153, %21, %cst_46 {dimension_numbers = #tpu.dot_dimension_numbers<[2], [2], [1], [1], [0, 0, 0, 1, 1, 1], [0], [0]>} : vector<2x8x32xf32>, vector<2x8x32xf32>, vector<2x8x8xf32> -> vector<2x8x8xf32>
    "tpu.trace_stop"() : () -> ()
    %cst_47 = arith.constant 5.000000e-01 : f32
    %155 = vector.broadcast %cst_47 : f32 to vector<2x8x8xf32>
    %156 = arith.mulf %154, %155 : vector<2x8x8xf32>
    %157 = vector.shape_cast %0 : vector<8x8xf32> to vector<1x8x8xf32>
    %158 = vector.broadcast %157 : vector<1x8x8xf32> to vector<2x8x8xf32>
    %159 = arith.addf %156, %158 : vector<2x8x8xf32>
    %cst_48 = arith.constant dense<0xFF800000> : vector<2x8xf32>
    %160 = vector.multi_reduction <maximumf>, %159, %cst_48 [2] : vector<2x8x8xf32> to vector<2x8xf32>
    %161 = vector.shape_cast %160 : vector<2x8xf32> to vector<2x8x1xf32>
    %162 = vector.broadcast %161 : vector<2x8x1xf32> to vector<2x8x8xf32>
    %163 = arith.subf %159, %162 : vector<2x8x8xf32>
    %164 = math.exp %163 : vector<2x8x8xf32>
    %cst_49 = arith.constant dense<0.000000e+00> : vector<2x8xf32>
    %165 = vector.multi_reduction <add>, %164, %cst_49 [2] : vector<2x8x8xf32> to vector<2x8xf32>
    %166 = vector.shape_cast %165 : vector<2x8xf32> to vector<2x8x1xf32>
    %167 = tpu.reciprocal %166 {approx = true} : vector<2x8x1xf32> -> vector<2x8x1xf32>
    %168 = vector.broadcast %167 : vector<2x8x1xf32> to vector<2x8x8xf32>
    %169 = arith.mulf %164, %168 : vector<2x8x8xf32>
    %170 = vector.shape_cast %150 : vector<1x32xf32> to vector<1x1x32xf32>
    %171 = vector.broadcast %170 : vector<1x1x32xf32> to vector<2x8x32xf32>
    %172 = arith.mulf %23, %171 : vector<2x8x32xf32>
    "tpu.trace_start"() <{level = 10 : i32, message = "bqk,bkh->bqh"}> : () -> ()
    %cst_50 = arith.constant dense<0.000000e+00> : vector<2x8x32xf32>
    %173 = tpu.matmul %169, %172, %cst_50 {dimension_numbers = #tpu.dot_dimension_numbers<[2], [1], [1], [2], [0, 0, 0, 1, 1, 2], [0], [0]>} : vector<2x8x8xf32>, vector<2x8x32xf32>, vector<2x8x32xf32> -> vector<2x8x32xf32>
    "tpu.trace_stop"() : () -> ()
    %174 = arith.addf %149, %173 : vector<2x8x32xf32>
    %175 = vector.extract_strided_slice %1 {offsets = [6, 0], sizes = [1, 32], strides = [1, 1]} : vector<8x32xf32> to vector<1x32xf32>
    %176 = vector.shape_cast %175 : vector<1x32xf32> to vector<1x1x32xf32>
    %177 = vector.broadcast %176 : vector<1x1x32xf32> to vector<2x8x32xf32>
    %178 = arith.mulf %19, %177 : vector<2x8x32xf32>
    "tpu.trace_start"() <{level = 10 : i32, message = "bqh,bkh->bqk"}> : () -> ()
    %cst_51 = arith.constant dense<0.000000e+00> : vector<2x8x8xf32>
    %179 = tpu.matmul %178, %21, %cst_51 {dimension_numbers = #tpu.dot_dimension_numbers<[2], [2], [1], [1], [0, 0, 0, 1, 1, 1], [0], [0]>} : vector<2x8x32xf32>, vector<2x8x32xf32>, vector<2x8x8xf32> -> vector<2x8x8xf32>
    "tpu.trace_stop"() : () -> ()
    %cst_52 = arith.constant 5.000000e-01 : f32
    %180 = vector.broadcast %cst_52 : f32 to vector<2x8x8xf32>
    %181 = arith.mulf %179, %180 : vector<2x8x8xf32>
    %182 = vector.shape_cast %0 : vector<8x8xf32> to vector<1x8x8xf32>
    %183 = vector.broadcast %182 : vector<1x8x8xf32> to vector<2x8x8xf32>
    %184 = arith.addf %181, %183 : vector<2x8x8xf32>
    %cst_53 = arith.constant dense<0xFF800000> : vector<2x8xf32>
    %185 = vector.multi_reduction <maximumf>, %184, %cst_53 [2] : vector<2x8x8xf32> to vector<2x8xf32>
    %186 = vector.shape_cast %185 : vector<2x8xf32> to vector<2x8x1xf32>
    %187 = vector.broadcast %186 : vector<2x8x1xf32> to vector<2x8x8xf32>
    %188 = arith.subf %184, %187 : vector<2x8x8xf32>
    %189 = math.exp %188 : vector<2x8x8xf32>
    %cst_54 = arith.constant dense<0.000000e+00> : vector<2x8xf32>
    %190 = vector.multi_reduction <add>, %189, %cst_54 [2] : vector<2x8x8xf32> to vector<2x8xf32>
    %191 = vector.shape_cast %190 : vector<2x8xf32> to vector<2x8x1xf32>
    %192 = tpu.reciprocal %191 {approx = true} : vector<2x8x1xf32> -> vector<2x8x1xf32>
    %193 = vector.broadcast %192 : vector<2x8x1xf32> to vector<2x8x8xf32>
    %194 = arith.mulf %189, %193 : vector<2x8x8xf32>
    %195 = vector.shape_cast %175 : vector<1x32xf32> to vector<1x1x32xf32>
    %196 = vector.broadcast %195 : vector<1x1x32xf32> to vector<2x8x32xf32>
    %197 = arith.mulf %23, %196 : vector<2x8x32xf32>
    "tpu.trace_start"() <{level = 10 : i32, message = "bqk,bkh->bqh"}> : () -> ()
    %cst_55 = arith.constant dense<0.000000e+00> : vector<2x8x32xf32>
    %198 = tpu.matmul %194, %197, %cst_55 {dimension_numbers = #tpu.dot_dimension_numbers<[2], [1], [1], [2], [0, 0, 0, 1, 1, 2], [0], [0]>} : vector<2x8x8xf32>, vector<2x8x32xf32>, vector<2x8x32xf32> -> vector<2x8x32xf32>
    "tpu.trace_stop"() : () -> ()
    %199 = arith.addf %174, %198 : vector<2x8x32xf32>
    %200 = vector.extract_strided_slice %1 {offsets = [7, 0], sizes = [1, 32], strides = [1, 1]} : vector<8x32xf32> to vector<1x32xf32>
    %201 = vector.shape_cast %200 : vector<1x32xf32> to vector<1x1x32xf32>
    %202 = vector.broadcast %201 : vector<1x1x32xf32> to vector<2x8x32xf32>
    %203 = arith.mulf %19, %202 : vector<2x8x32xf32>
    "tpu.trace_start"() <{level = 10 : i32, message = "bqh,bkh->bqk"}> : () -> ()
    %cst_56 = arith.constant dense<0.000000e+00> : vector<2x8x8xf32>
    %204 = tpu.matmul %203, %21, %cst_56 {dimension_numbers = #tpu.dot_dimension_numbers<[2], [2], [1], [1], [0, 0, 0, 1, 1, 1], [0], [0]>} : vector<2x8x32xf32>, vector<2x8x32xf32>, vector<2x8x8xf32> -> vector<2x8x8xf32>
    "tpu.trace_stop"() : () -> ()
    %cst_57 = arith.constant 5.000000e-01 : f32
    %205 = vector.broadcast %cst_57 : f32 to vector<2x8x8xf32>
    %206 = arith.mulf %204, %205 : vector<2x8x8xf32>
    %207 = vector.shape_cast %0 : vector<8x8xf32> to vector<1x8x8xf32>
    %208 = vector.broadcast %207 : vector<1x8x8xf32> to vector<2x8x8xf32>
    %209 = arith.addf %206, %208 : vector<2x8x8xf32>
    %cst_58 = arith.constant dense<0xFF800000> : vector<2x8xf32>
    %210 = vector.multi_reduction <maximumf>, %209, %cst_58 [2] : vector<2x8x8xf32> to vector<2x8xf32>
    %211 = vector.shape_cast %210 : vector<2x8xf32> to vector<2x8x1xf32>
    %212 = vector.broadcast %211 : vector<2x8x1xf32> to vector<2x8x8xf32>
    %213 = arith.subf %209, %212 : vector<2x8x8xf32>
    %214 = math.exp %213 : vector<2x8x8xf32>
    %cst_59 = arith.constant dense<0.000000e+00> : vector<2x8xf32>
    %215 = vector.multi_reduction <add>, %214, %cst_59 [2] : vector<2x8x8xf32> to vector<2x8xf32>
    %216 = vector.shape_cast %215 : vector<2x8xf32> to vector<2x8x1xf32>
    %217 = tpu.reciprocal %216 {approx = true} : vector<2x8x1xf32> -> vector<2x8x1xf32>
    %218 = vector.broadcast %217 : vector<2x8x1xf32> to vector<2x8x8xf32>
    %219 = arith.mulf %214, %218 : vector<2x8x8xf32>
    %220 = vector.shape_cast %200 : vector<1x32xf32> to vector<1x1x32xf32>
    %221 = vector.broadcast %220 : vector<1x1x32xf32> to vector<2x8x32xf32>
    %222 = arith.mulf %23, %221 : vector<2x8x32xf32>
    "tpu.trace_start"() <{level = 10 : i32, message = "bqk,bkh->bqh"}> : () -> ()
    %cst_60 = arith.constant dense<0.000000e+00> : vector<2x8x32xf32>
    %223 = tpu.matmul %219, %222, %cst_60 {dimension_numbers = #tpu.dot_dimension_numbers<[2], [1], [1], [2], [0, 0, 0, 1, 1, 2], [0], [0]>} : vector<2x8x8xf32>, vector<2x8x32xf32>, vector<2x8x32xf32> -> vector<2x8x32xf32>
    "tpu.trace_stop"() : () -> ()
    %224 = arith.addf %199, %223 : vector<2x8x32xf32>
    %225 = vector.shape_cast %224 : vector<2x8x32xf32> to vector<16x32xf32>
    %c0_61 = arith.constant 0 : index
    %c0_62 = arith.constant 0 : index
    %c0_63 = arith.constant 0 : index
    %226 = vector.load %arg10[%c0_61, %c0_62, %c0_63] : memref<2x32x32xf32, #tpu.memory_space<vmem>>, vector<1x32x32xf32>
    %227 = vector.shape_cast %226 : vector<1x32x32xf32> to vector<32x32xf32>
    %cst_64 = arith.constant dense<0.000000e+00> : vector<16x32xf32>
    %228 = tpu.matmul %225, %227, %cst_64 {dimension_numbers = #tpu.dot_dimension_numbers<[1], [0], [0], [1], [0, 0, 1, 1], [], []>} : vector<16x32xf32>, vector<32x32xf32>, vector<16x32xf32> -> vector<16x32xf32>
    %c0_65 = arith.constant 0 : index
    %c0_66 = arith.constant 0 : index
    %229 = vector.load %arg11[%c0_65, %c0_66] : memref<2x32xf32, #tpu.memory_space<vmem>>, vector<1x32xf32>
    %230 = vector.broadcast %229 : vector<1x32xf32> to vector<16x32xf32>
    %231 = arith.addf %228, %230 : vector<16x32xf32>
    %232 = arith.addf %11, %231 : vector<16x32xf32>
    %c0_67 = arith.constant 0 : index
    %c0_68 = arith.constant 0 : index
    %233 = vector.load %arg12[%c0_67, %c0_68] : memref<2x32xf32, #tpu.memory_space<vmem>>, vector<1x32xf32>
    %c0_69 = arith.constant 0 : index
    %c0_70 = arith.constant 0 : index
    %234 = vector.load %arg13[%c0_69, %c0_70] : memref<2x32xf32, #tpu.memory_space<vmem>>, vector<1x32xf32>
    %cst_71 = arith.constant dense<0.000000e+00> : vector<16xf32>
    %235 = vector.multi_reduction <add>, %232, %cst_71 [1] : vector<16x32xf32> to vector<16xf32>
    %236 = vector.shape_cast %235 : vector<16xf32> to vector<16x1xf32>
    %cst_72 = arith.constant 3.200000e+01 : f32
    %237 = vector.broadcast %cst_72 : f32 to vector<16x1xf32>
    %238 = arith.divf %236, %237 : vector<16x1xf32>
    %239 = vector.broadcast %238 : vector<16x1xf32> to vector<16x32xf32>
    %240 = arith.subf %232, %239 : vector<16x32xf32>
    %241 = arith.mulf %240, %240 : vector<16x32xf32>
    %cst_73 = arith.constant dense<0.000000e+00> : vector<16xf32>
    %242 = vector.multi_reduction <add>, %241, %cst_73 [1] : vector<16x32xf32> to vector<16xf32>
    %243 = vector.shape_cast %242 : vector<16xf32> to vector<16x1xf32>
    %cst_74 = arith.constant 3.200000e+01 : f32
    %244 = vector.broadcast %cst_74 : f32 to vector<16x1xf32>
    %245 = arith.divf %243, %244 : vector<16x1xf32>
    %246 = vector.broadcast %238 : vector<16x1xf32> to vector<16x32xf32>
    %247 = arith.subf %232, %246 : vector<16x32xf32>
    %cst_75 = arith.constant 9.99999974E-6 : f32
    %248 = vector.broadcast %cst_75 : f32 to vector<16x1xf32>
    %249 = arith.addf %245, %248 : vector<16x1xf32>
    %250 = math.rsqrt %249 : vector<16x1xf32>
    %251 = vector.broadcast %250 : vector<16x1xf32> to vector<16x32xf32>
    %252 = arith.mulf %247, %251 : vector<16x32xf32>
    %253 = vector.broadcast %233 : vector<1x32xf32> to vector<16x32xf32>
    %254 = arith.mulf %252, %253 : vector<16x32xf32>
    %255 = vector.broadcast %234 : vector<1x32xf32> to vector<16x32xf32>
    %256 = arith.addf %254, %255 : vector<16x32xf32>
    %c0_76 = arith.constant 0 : index
    %c0_77 = arith.constant 0 : index
    %c0_78 = arith.constant 0 : index
    %257 = vector.load %arg16[%c0_76, %c0_77, %c0_78] : memref<2x32x256xf32, #tpu.memory_space<vmem>>, vector<1x32x256xf32>
    %258 = vector.shape_cast %257 : vector<1x32x256xf32> to vector<32x256xf32>
    %cst_79 = arith.constant dense<0.000000e+00> : vector<16x256xf32>
    %259 = tpu.matmul %256, %258, %cst_79 {dimension_numbers = #tpu.dot_dimension_numbers<[1], [0], [0], [1], [0, 0, 1, 1], [], []>} : vector<16x32xf32>, vector<32x256xf32>, vector<16x256xf32> -> vector<16x256xf32>
    %c0_80 = arith.constant 0 : index
    %c0_81 = arith.constant 0 : index
    %260 = vector.load %arg17[%c0_80, %c0_81] : memref<2x256xf32, #tpu.memory_space<vmem>>, vector<1x256xf32>
    %261 = vector.broadcast %260 : vector<1x256xf32> to vector<16x256xf32>
    %262 = arith.addf %259, %261 : vector<16x256xf32>
    %cst_82 = arith.constant 0.000000e+00 : f32
    %263 = vector.broadcast %cst_82 : f32 to vector<16x256xf32>
    %264 = arith.maximumf %262, %263 : vector<16x256xf32>
    %c0_83 = arith.constant 0 : index
    %c0_84 = arith.constant 0 : index
    %c0_85 = arith.constant 0 : index
    %265 = vector.load %arg18[%c0_83, %c0_84, %c0_85] : memref<2x256x32xf32, #tpu.memory_space<vmem>>, vector<1x256x32xf32>
    %266 = vector.shape_cast %265 : vector<1x256x32xf32> to vector<256x32xf32>
    %cst_86 = arith.constant dense<0.000000e+00> : vector<16x32xf32>
    %267 = tpu.matmul %264, %266, %cst_86 {dimension_numbers = #tpu.dot_dimension_numbers<[1], [0], [0], [1], [0, 0, 1, 1], [], []>} : vector<16x256xf32>, vector<256x32xf32>, vector<16x32xf32> -> vector<16x32xf32>
    %c0_87 = arith.constant 0 : index
    %c0_88 = arith.constant 0 : index
    %268 = vector.load %arg19[%c0_87, %c0_88] : memref<2x32xf32, #tpu.memory_space<vmem>>, vector<1x32xf32>
    %269 = vector.broadcast %268 : vector<1x32xf32> to vector<16x32xf32>
    %270 = arith.addf %267, %269 : vector<16x32xf32>
    %271 = arith.addf %256, %270 : vector<16x32xf32>
    %c0_89 = arith.constant 0 : index
    %c0_90 = arith.constant 0 : index
    %272 = vector.load %arg14[%c0_89, %c0_90] : memref<2x32xf32, #tpu.memory_space<vmem>>, vector<1x32xf32>
    %c0_91 = arith.constant 0 : index
    %c0_92 = arith.constant 0 : index
    %273 = vector.load %arg15[%c0_91, %c0_92] : memref<2x32xf32, #tpu.memory_space<vmem>>, vector<1x32xf32>
    %cst_93 = arith.constant dense<0.000000e+00> : vector<16xf32>
    %274 = vector.multi_reduction <add>, %271, %cst_93 [1] : vector<16x32xf32> to vector<16xf32>
    %275 = vector.shape_cast %274 : vector<16xf32> to vector<16x1xf32>
    %cst_94 = arith.constant 3.200000e+01 : f32
    %276 = vector.broadcast %cst_94 : f32 to vector<16x1xf32>
    %277 = arith.divf %275, %276 : vector<16x1xf32>
    %278 = vector.broadcast %277 : vector<16x1xf32> to vector<16x32xf32>
    %279 = arith.subf %271, %278 : vector<16x32xf32>
    %280 = arith.mulf %279, %279 : vector<16x32xf32>
    %cst_95 = arith.constant dense<0.000000e+00> : vector<16xf32>
    %281 = vector.multi_reduction <add>, %280, %cst_95 [1] : vector<16x32xf32> to vector<16xf32>
    %282 = vector.shape_cast %281 : vector<16xf32> to vector<16x1xf32>
    %cst_96 = arith.constant 3.200000e+01 : f32
    %283 = vector.broadcast %cst_96 : f32 to vector<16x1xf32>
    %284 = arith.divf %282, %283 : vector<16x1xf32>
    %285 = vector.broadcast %277 : vector<16x1xf32> to vector<16x32xf32>
    %286 = arith.subf %271, %285 : vector<16x32xf32>
    %cst_97 = arith.constant 9.99999974E-6 : f32
    %287 = vector.broadcast %cst_97 : f32 to vector<16x1xf32>
    %288 = arith.addf %284, %287 : vector<16x1xf32>
    %289 = math.rsqrt %288 : vector<16x1xf32>
    %290 = vector.broadcast %289 : vector<16x1xf32> to vector<16x32xf32>
    %291 = arith.mulf %286, %290 : vector<16x32xf32>
    %292 = vector.broadcast %272 : vector<1x32xf32> to vector<16x32xf32>
    %293 = arith.mulf %291, %292 : vector<16x32xf32>
    %294 = vector.broadcast %273 : vector<1x32xf32> to vector<16x32xf32>
    %295 = arith.addf %293, %294 : vector<16x32xf32>
    %c1 = arith.constant 1 : index
    %c0_98 = arith.constant 0 : index
    %c0_99 = arith.constant 0 : index
    %296 = vector.load %arg8[%c1, %c0_98, %c0_99] : memref<2x32x96xf32, #tpu.memory_space<vmem>>, vector<1x32x96xf32>
    %297 = vector.shape_cast %296 : vector<1x32x96xf32> to vector<32x96xf32>
    %cst_100 = arith.constant dense<0.000000e+00> : vector<16x96xf32>
    %298 = tpu.matmul %295, %297, %cst_100 {dimension_numbers = #tpu.dot_dimension_numbers<[1], [0], [0], [1], [0, 0, 1, 1], [], []>} : vector<16x32xf32>, vector<32x96xf32>, vector<16x96xf32> -> vector<16x96xf32>
    %c1_101 = arith.constant 1 : index
    %c0_102 = arith.constant 0 : index
    %299 = vector.load %arg9[%c1_101, %c0_102] : memref<2x96xf32, #tpu.memory_space<vmem>>, vector<1x96xf32>
    %300 = vector.broadcast %299 : vector<1x96xf32> to vector<16x96xf32>
    %301 = arith.addf %298, %300 : vector<16x96xf32>
    %302 = vector.extract_strided_slice %301 {offsets = [0, 0], sizes = [16, 32], strides = [1, 1]} : vector<16x96xf32> to vector<16x32xf32>
    %303 = vector.shape_cast %302 : vector<16x32xf32> to vector<2x8x32xf32>
    %304 = vector.extract_strided_slice %301 {offsets = [0, 32], sizes = [16, 32], strides = [1, 1]} : vector<16x96xf32> to vector<16x32xf32>
    %305 = vector.shape_cast %304 : vector<16x32xf32> to vector<2x8x32xf32>
    %306 = vector.extract_strided_slice %301 {offsets = [0, 64], sizes = [16, 32], strides = [1, 1]} : vector<16x96xf32> to vector<16x32xf32>
    %307 = vector.shape_cast %306 : vector<16x32xf32> to vector<2x8x32xf32>
    %cst_103 = arith.constant 0.000000e+00 : f32
    %308 = vector.broadcast %cst_103 : f32 to vector<2x8x32xf32>
    %309 = vector.extract_strided_slice %1 {offsets = [0, 0], sizes = [1, 32], strides = [1, 1]} : vector<8x32xf32> to vector<1x32xf32>
    %310 = vector.shape_cast %309 : vector<1x32xf32> to vector<1x1x32xf32>
    %311 = vector.broadcast %310 : vector<1x1x32xf32> to vector<2x8x32xf32>
    %312 = arith.mulf %303, %311 : vector<2x8x32xf32>
    "tpu.trace_start"() <{level = 10 : i32, message = "bqh,bkh->bqk"}> : () -> ()
    %cst_104 = arith.constant dense<0.000000e+00> : vector<2x8x8xf32>
    %313 = tpu.matmul %312, %305, %cst_104 {dimension_numbers = #tpu.dot_dimension_numbers<[2], [2], [1], [1], [0, 0, 0, 1, 1, 1], [0], [0]>} : vector<2x8x32xf32>, vector<2x8x32xf32>, vector<2x8x8xf32> -> vector<2x8x8xf32>
    "tpu.trace_stop"() : () -> ()
    %cst_105 = arith.constant 5.000000e-01 : f32
    %314 = vector.broadcast %cst_105 : f32 to vector<2x8x8xf32>
    %315 = arith.mulf %313, %314 : vector<2x8x8xf32>
    %316 = vector.shape_cast %0 : vector<8x8xf32> to vector<1x8x8xf32>
    %317 = vector.broadcast %316 : vector<1x8x8xf32> to vector<2x8x8xf32>
    %318 = arith.addf %315, %317 : vector<2x8x8xf32>
    %cst_106 = arith.constant dense<0xFF800000> : vector<2x8xf32>
    %319 = vector.multi_reduction <maximumf>, %318, %cst_106 [2] : vector<2x8x8xf32> to vector<2x8xf32>
    %320 = vector.shape_cast %319 : vector<2x8xf32> to vector<2x8x1xf32>
    %321 = vector.broadcast %320 : vector<2x8x1xf32> to vector<2x8x8xf32>
    %322 = arith.subf %318, %321 : vector<2x8x8xf32>
    %323 = math.exp %322 : vector<2x8x8xf32>
    %cst_107 = arith.constant dense<0.000000e+00> : vector<2x8xf32>
    %324 = vector.multi_reduction <add>, %323, %cst_107 [2] : vector<2x8x8xf32> to vector<2x8xf32>
    %325 = vector.shape_cast %324 : vector<2x8xf32> to vector<2x8x1xf32>
    %326 = tpu.reciprocal %325 {approx = true} : vector<2x8x1xf32> -> vector<2x8x1xf32>
    %327 = vector.broadcast %326 : vector<2x8x1xf32> to vector<2x8x8xf32>
    %328 = arith.mulf %323, %327 : vector<2x8x8xf32>
    %329 = vector.shape_cast %309 : vector<1x32xf32> to vector<1x1x32xf32>
    %330 = vector.broadcast %329 : vector<1x1x32xf32> to vector<2x8x32xf32>
    %331 = arith.mulf %307, %330 : vector<2x8x32xf32>
    "tpu.trace_start"() <{level = 10 : i32, message = "bqk,bkh->bqh"}> : () -> ()
    %cst_108 = arith.constant dense<0.000000e+00> : vector<2x8x32xf32>
    %332 = tpu.matmul %328, %331, %cst_108 {dimension_numbers = #tpu.dot_dimension_numbers<[2], [1], [1], [2], [0, 0, 0, 1, 1, 2], [0], [0]>} : vector<2x8x8xf32>, vector<2x8x32xf32>, vector<2x8x32xf32> -> vector<2x8x32xf32>
    "tpu.trace_stop"() : () -> ()
    %333 = arith.addf %308, %332 : vector<2x8x32xf32>
    %334 = vector.extract_strided_slice %1 {offsets = [1, 0], sizes = [1, 32], strides = [1, 1]} : vector<8x32xf32> to vector<1x32xf32>
    %335 = vector.shape_cast %334 : vector<1x32xf32> to vector<1x1x32xf32>
    %336 = vector.broadcast %335 : vector<1x1x32xf32> to vector<2x8x32xf32>
    %337 = arith.mulf %303, %336 : vector<2x8x32xf32>
    "tpu.trace_start"() <{level = 10 : i32, message = "bqh,bkh->bqk"}> : () -> ()
    %cst_109 = arith.constant dense<0.000000e+00> : vector<2x8x8xf32>
    %338 = tpu.matmul %337, %305, %cst_109 {dimension_numbers = #tpu.dot_dimension_numbers<[2], [2], [1], [1], [0, 0, 0, 1, 1, 1], [0], [0]>} : vector<2x8x32xf32>, vector<2x8x32xf32>, vector<2x8x8xf32> -> vector<2x8x8xf32>
    "tpu.trace_stop"() : () -> ()
    %cst_110 = arith.constant 5.000000e-01 : f32
    %339 = vector.broadcast %cst_110 : f32 to vector<2x8x8xf32>
    %340 = arith.mulf %338, %339 : vector<2x8x8xf32>
    %341 = vector.shape_cast %0 : vector<8x8xf32> to vector<1x8x8xf32>
    %342 = vector.broadcast %341 : vector<1x8x8xf32> to vector<2x8x8xf32>
    %343 = arith.addf %340, %342 : vector<2x8x8xf32>
    %cst_111 = arith.constant dense<0xFF800000> : vector<2x8xf32>
    %344 = vector.multi_reduction <maximumf>, %343, %cst_111 [2] : vector<2x8x8xf32> to vector<2x8xf32>
    %345 = vector.shape_cast %344 : vector<2x8xf32> to vector<2x8x1xf32>
    %346 = vector.broadcast %345 : vector<2x8x1xf32> to vector<2x8x8xf32>
    %347 = arith.subf %343, %346 : vector<2x8x8xf32>
    %348 = math.exp %347 : vector<2x8x8xf32>
    %cst_112 = arith.constant dense<0.000000e+00> : vector<2x8xf32>
    %349 = vector.multi_reduction <add>, %348, %cst_112 [2] : vector<2x8x8xf32> to vector<2x8xf32>
    %350 = vector.shape_cast %349 : vector<2x8xf32> to vector<2x8x1xf32>
    %351 = tpu.reciprocal %350 {approx = true} : vector<2x8x1xf32> -> vector<2x8x1xf32>
    %352 = vector.broadcast %351 : vector<2x8x1xf32> to vector<2x8x8xf32>
    %353 = arith.mulf %348, %352 : vector<2x8x8xf32>
    %354 = vector.shape_cast %334 : vector<1x32xf32> to vector<1x1x32xf32>
    %355 = vector.broadcast %354 : vector<1x1x32xf32> to vector<2x8x32xf32>
    %356 = arith.mulf %307, %355 : vector<2x8x32xf32>
    "tpu.trace_start"() <{level = 10 : i32, message = "bqk,bkh->bqh"}> : () -> ()
    %cst_113 = arith.constant dense<0.000000e+00> : vector<2x8x32xf32>
    %357 = tpu.matmul %353, %356, %cst_113 {dimension_numbers = #tpu.dot_dimension_numbers<[2], [1], [1], [2], [0, 0, 0, 1, 1, 2], [0], [0]>} : vector<2x8x8xf32>, vector<2x8x32xf32>, vector<2x8x32xf32> -> vector<2x8x32xf32>
    "tpu.trace_stop"() : () -> ()
    %358 = arith.addf %333, %357 : vector<2x8x32xf32>
    %359 = vector.extract_strided_slice %1 {offsets = [2, 0], sizes = [1, 32], strides = [1, 1]} : vector<8x32xf32> to vector<1x32xf32>
    %360 = vector.shape_cast %359 : vector<1x32xf32> to vector<1x1x32xf32>
    %361 = vector.broadcast %360 : vector<1x1x32xf32> to vector<2x8x32xf32>
    %362 = arith.mulf %303, %361 : vector<2x8x32xf32>
    "tpu.trace_start"() <{level = 10 : i32, message = "bqh,bkh->bqk"}> : () -> ()
    %cst_114 = arith.constant dense<0.000000e+00> : vector<2x8x8xf32>
    %363 = tpu.matmul %362, %305, %cst_114 {dimension_numbers = #tpu.dot_dimension_numbers<[2], [2], [1], [1], [0, 0, 0, 1, 1, 1], [0], [0]>} : vector<2x8x32xf32>, vector<2x8x32xf32>, vector<2x8x8xf32> -> vector<2x8x8xf32>
    "tpu.trace_stop"() : () -> ()
    %cst_115 = arith.constant 5.000000e-01 : f32
    %364 = vector.broadcast %cst_115 : f32 to vector<2x8x8xf32>
    %365 = arith.mulf %363, %364 : vector<2x8x8xf32>
    %366 = vector.shape_cast %0 : vector<8x8xf32> to vector<1x8x8xf32>
    %367 = vector.broadcast %366 : vector<1x8x8xf32> to vector<2x8x8xf32>
    %368 = arith.addf %365, %367 : vector<2x8x8xf32>
    %cst_116 = arith.constant dense<0xFF800000> : vector<2x8xf32>
    %369 = vector.multi_reduction <maximumf>, %368, %cst_116 [2] : vector<2x8x8xf32> to vector<2x8xf32>
    %370 = vector.shape_cast %369 : vector<2x8xf32> to vector<2x8x1xf32>
    %371 = vector.broadcast %370 : vector<2x8x1xf32> to vector<2x8x8xf32>
    %372 = arith.subf %368, %371 : vector<2x8x8xf32>
    %373 = math.exp %372 : vector<2x8x8xf32>
    %cst_117 = arith.constant dense<0.000000e+00> : vector<2x8xf32>
    %374 = vector.multi_reduction <add>, %373, %cst_117 [2] : vector<2x8x8xf32> to vector<2x8xf32>
    %375 = vector.shape_cast %374 : vector<2x8xf32> to vector<2x8x1xf32>
    %376 = tpu.reciprocal %375 {approx = true} : vector<2x8x1xf32> -> vector<2x8x1xf32>
    %377 = vector.broadcast %376 : vector<2x8x1xf32> to vector<2x8x8xf32>
    %378 = arith.mulf %373, %377 : vector<2x8x8xf32>
    %379 = vector.shape_cast %359 : vector<1x32xf32> to vector<1x1x32xf32>
    %380 = vector.broadcast %379 : vector<1x1x32xf32> to vector<2x8x32xf32>
    %381 = arith.mulf %307, %380 : vector<2x8x32xf32>
    "tpu.trace_start"() <{level = 10 : i32, message = "bqk,bkh->bqh"}> : () -> ()
    %cst_118 = arith.constant dense<0.000000e+00> : vector<2x8x32xf32>
    %382 = tpu.matmul %378, %381, %cst_118 {dimension_numbers = #tpu.dot_dimension_numbers<[2], [1], [1], [2], [0, 0, 0, 1, 1, 2], [0], [0]>} : vector<2x8x8xf32>, vector<2x8x32xf32>, vector<2x8x32xf32> -> vector<2x8x32xf32>
    "tpu.trace_stop"() : () -> ()
    %383 = arith.addf %358, %382 : vector<2x8x32xf32>
    %384 = vector.extract_strided_slice %1 {offsets = [3, 0], sizes = [1, 32], strides = [1, 1]} : vector<8x32xf32> to vector<1x32xf32>
    %385 = vector.shape_cast %384 : vector<1x32xf32> to vector<1x1x32xf32>
    %386 = vector.broadcast %385 : vector<1x1x32xf32> to vector<2x8x32xf32>
    %387 = arith.mulf %303, %386 : vector<2x8x32xf32>
    "tpu.trace_start"() <{level = 10 : i32, message = "bqh,bkh->bqk"}> : () -> ()
    %cst_119 = arith.constant dense<0.000000e+00> : vector<2x8x8xf32>
    %388 = tpu.matmul %387, %305, %cst_119 {dimension_numbers = #tpu.dot_dimension_numbers<[2], [2], [1], [1], [0, 0, 0, 1, 1, 1], [0], [0]>} : vector<2x8x32xf32>, vector<2x8x32xf32>, vector<2x8x8xf32> -> vector<2x8x8xf32>
    "tpu.trace_stop"() : () -> ()
    %cst_120 = arith.constant 5.000000e-01 : f32
    %389 = vector.broadcast %cst_120 : f32 to vector<2x8x8xf32>
    %390 = arith.mulf %388, %389 : vector<2x8x8xf32>
    %391 = vector.shape_cast %0 : vector<8x8xf32> to vector<1x8x8xf32>
    %392 = vector.broadcast %391 : vector<1x8x8xf32> to vector<2x8x8xf32>
    %393 = arith.addf %390, %392 : vector<2x8x8xf32>
    %cst_121 = arith.constant dense<0xFF800000> : vector<2x8xf32>
    %394 = vector.multi_reduction <maximumf>, %393, %cst_121 [2] : vector<2x8x8xf32> to vector<2x8xf32>
    %395 = vector.shape_cast %394 : vector<2x8xf32> to vector<2x8x1xf32>
    %396 = vector.broadcast %395 : vector<2x8x1xf32> to vector<2x8x8xf32>
    %397 = arith.subf %393, %396 : vector<2x8x8xf32>
    %398 = math.exp %397 : vector<2x8x8xf32>
    %cst_122 = arith.constant dense<0.000000e+00> : vector<2x8xf32>
    %399 = vector.multi_reduction <add>, %398, %cst_122 [2] : vector<2x8x8xf32> to vector<2x8xf32>
    %400 = vector.shape_cast %399 : vector<2x8xf32> to vector<2x8x1xf32>
    %401 = tpu.reciprocal %400 {approx = true} : vector<2x8x1xf32> -> vector<2x8x1xf32>
    %402 = vector.broadcast %401 : vector<2x8x1xf32> to vector<2x8x8xf32>
    %403 = arith.mulf %398, %402 : vector<2x8x8xf32>
    %404 = vector.shape_cast %384 : vector<1x32xf32> to vector<1x1x32xf32>
    %405 = vector.broadcast %404 : vector<1x1x32xf32> to vector<2x8x32xf32>
    %406 = arith.mulf %307, %405 : vector<2x8x32xf32>
    "tpu.trace_start"() <{level = 10 : i32, message = "bqk,bkh->bqh"}> : () -> ()
    %cst_123 = arith.constant dense<0.000000e+00> : vector<2x8x32xf32>
    %407 = tpu.matmul %403, %406, %cst_123 {dimension_numbers = #tpu.dot_dimension_numbers<[2], [1], [1], [2], [0, 0, 0, 1, 1, 2], [0], [0]>} : vector<2x8x8xf32>, vector<2x8x32xf32>, vector<2x8x32xf32> -> vector<2x8x32xf32>
    "tpu.trace_stop"() : () -> ()
    %408 = arith.addf %383, %407 : vector<2x8x32xf32>
    %409 = vector.extract_strided_slice %1 {offsets = [4, 0], sizes = [1, 32], strides = [1, 1]} : vector<8x32xf32> to vector<1x32xf32>
    %410 = vector.shape_cast %409 : vector<1x32xf32> to vector<1x1x32xf32>
    %411 = vector.broadcast %410 : vector<1x1x32xf32> to vector<2x8x32xf32>
    %412 = arith.mulf %303, %411 : vector<2x8x32xf32>
    "tpu.trace_start"() <{level = 10 : i32, message = "bqh,bkh->bqk"}> : () -> ()
    %cst_124 = arith.constant dense<0.000000e+00> : vector<2x8x8xf32>
    %413 = tpu.matmul %412, %305, %cst_124 {dimension_numbers = #tpu.dot_dimension_numbers<[2], [2], [1], [1], [0, 0, 0, 1, 1, 1], [0], [0]>} : vector<2x8x32xf32>, vector<2x8x32xf32>, vector<2x8x8xf32> -> vector<2x8x8xf32>
    "tpu.trace_stop"() : () -> ()
    %cst_125 = arith.constant 5.000000e-01 : f32
    %414 = vector.broadcast %cst_125 : f32 to vector<2x8x8xf32>
    %415 = arith.mulf %413, %414 : vector<2x8x8xf32>
    %416 = vector.shape_cast %0 : vector<8x8xf32> to vector<1x8x8xf32>
    %417 = vector.broadcast %416 : vector<1x8x8xf32> to vector<2x8x8xf32>
    %418 = arith.addf %415, %417 : vector<2x8x8xf32>
    %cst_126 = arith.constant dense<0xFF800000> : vector<2x8xf32>
    %419 = vector.multi_reduction <maximumf>, %418, %cst_126 [2] : vector<2x8x8xf32> to vector<2x8xf32>
    %420 = vector.shape_cast %419 : vector<2x8xf32> to vector<2x8x1xf32>
    %421 = vector.broadcast %420 : vector<2x8x1xf32> to vector<2x8x8xf32>
    %422 = arith.subf %418, %421 : vector<2x8x8xf32>
    %423 = math.exp %422 : vector<2x8x8xf32>
    %cst_127 = arith.constant dense<0.000000e+00> : vector<2x8xf32>
    %424 = vector.multi_reduction <add>, %423, %cst_127 [2] : vector<2x8x8xf32> to vector<2x8xf32>
    %425 = vector.shape_cast %424 : vector<2x8xf32> to vector<2x8x1xf32>
    %426 = tpu.reciprocal %425 {approx = true} : vector<2x8x1xf32> -> vector<2x8x1xf32>
    %427 = vector.broadcast %426 : vector<2x8x1xf32> to vector<2x8x8xf32>
    %428 = arith.mulf %423, %427 : vector<2x8x8xf32>
    %429 = vector.shape_cast %409 : vector<1x32xf32> to vector<1x1x32xf32>
    %430 = vector.broadcast %429 : vector<1x1x32xf32> to vector<2x8x32xf32>
    %431 = arith.mulf %307, %430 : vector<2x8x32xf32>
    "tpu.trace_start"() <{level = 10 : i32, message = "bqk,bkh->bqh"}> : () -> ()
    %cst_128 = arith.constant dense<0.000000e+00> : vector<2x8x32xf32>
    %432 = tpu.matmul %428, %431, %cst_128 {dimension_numbers = #tpu.dot_dimension_numbers<[2], [1], [1], [2], [0, 0, 0, 1, 1, 2], [0], [0]>} : vector<2x8x8xf32>, vector<2x8x32xf32>, vector<2x8x32xf32> -> vector<2x8x32xf32>
    "tpu.trace_stop"() : () -> ()
    %433 = arith.addf %408, %432 : vector<2x8x32xf32>
    %434 = vector.extract_strided_slice %1 {offsets = [5, 0], sizes = [1, 32], strides = [1, 1]} : vector<8x32xf32> to vector<1x32xf32>
    %435 = vector.shape_cast %434 : vector<1x32xf32> to vector<1x1x32xf32>
    %436 = vector.broadcast %435 : vector<1x1x32xf32> to vector<2x8x32xf32>
    %437 = arith.mulf %303, %436 : vector<2x8x32xf32>
    "tpu.trace_start"() <{level = 10 : i32, message = "bqh,bkh->bqk"}> : () -> ()
    %cst_129 = arith.constant dense<0.000000e+00> : vector<2x8x8xf32>
    %438 = tpu.matmul %437, %305, %cst_129 {dimension_numbers = #tpu.dot_dimension_numbers<[2], [2], [1], [1], [0, 0, 0, 1, 1, 1], [0], [0]>} : vector<2x8x32xf32>, vector<2x8x32xf32>, vector<2x8x8xf32> -> vector<2x8x8xf32>
    "tpu.trace_stop"() : () -> ()
    %cst_130 = arith.constant 5.000000e-01 : f32
    %439 = vector.broadcast %cst_130 : f32 to vector<2x8x8xf32>
    %440 = arith.mulf %438, %439 : vector<2x8x8xf32>
    %441 = vector.shape_cast %0 : vector<8x8xf32> to vector<1x8x8xf32>
    %442 = vector.broadcast %441 : vector<1x8x8xf32> to vector<2x8x8xf32>
    %443 = arith.addf %440, %442 : vector<2x8x8xf32>
    %cst_131 = arith.constant dense<0xFF800000> : vector<2x8xf32>
    %444 = vector.multi_reduction <maximumf>, %443, %cst_131 [2] : vector<2x8x8xf32> to vector<2x8xf32>
    %445 = vector.shape_cast %444 : vector<2x8xf32> to vector<2x8x1xf32>
    %446 = vector.broadcast %445 : vector<2x8x1xf32> to vector<2x8x8xf32>
    %447 = arith.subf %443, %446 : vector<2x8x8xf32>
    %448 = math.exp %447 : vector<2x8x8xf32>
    %cst_132 = arith.constant dense<0.000000e+00> : vector<2x8xf32>
    %449 = vector.multi_reduction <add>, %448, %cst_132 [2] : vector<2x8x8xf32> to vector<2x8xf32>
    %450 = vector.shape_cast %449 : vector<2x8xf32> to vector<2x8x1xf32>
    %451 = tpu.reciprocal %450 {approx = true} : vector<2x8x1xf32> -> vector<2x8x1xf32>
    %452 = vector.broadcast %451 : vector<2x8x1xf32> to vector<2x8x8xf32>
    %453 = arith.mulf %448, %452 : vector<2x8x8xf32>
    %454 = vector.shape_cast %434 : vector<1x32xf32> to vector<1x1x32xf32>
    %455 = vector.broadcast %454 : vector<1x1x32xf32> to vector<2x8x32xf32>
    %456 = arith.mulf %307, %455 : vector<2x8x32xf32>
    "tpu.trace_start"() <{level = 10 : i32, message = "bqk,bkh->bqh"}> : () -> ()
    %cst_133 = arith.constant dense<0.000000e+00> : vector<2x8x32xf32>
    %457 = tpu.matmul %453, %456, %cst_133 {dimension_numbers = #tpu.dot_dimension_numbers<[2], [1], [1], [2], [0, 0, 0, 1, 1, 2], [0], [0]>} : vector<2x8x8xf32>, vector<2x8x32xf32>, vector<2x8x32xf32> -> vector<2x8x32xf32>
    "tpu.trace_stop"() : () -> ()
    %458 = arith.addf %433, %457 : vector<2x8x32xf32>
    %459 = vector.extract_strided_slice %1 {offsets = [6, 0], sizes = [1, 32], strides = [1, 1]} : vector<8x32xf32> to vector<1x32xf32>
    %460 = vector.shape_cast %459 : vector<1x32xf32> to vector<1x1x32xf32>
    %461 = vector.broadcast %460 : vector<1x1x32xf32> to vector<2x8x32xf32>
    %462 = arith.mulf %303, %461 : vector<2x8x32xf32>
    "tpu.trace_start"() <{level = 10 : i32, message = "bqh,bkh->bqk"}> : () -> ()
    %cst_134 = arith.constant dense<0.000000e+00> : vector<2x8x8xf32>
    %463 = tpu.matmul %462, %305, %cst_134 {dimension_numbers = #tpu.dot_dimension_numbers<[2], [2], [1], [1], [0, 0, 0, 1, 1, 1], [0], [0]>} : vector<2x8x32xf32>, vector<2x8x32xf32>, vector<2x8x8xf32> -> vector<2x8x8xf32>
    "tpu.trace_stop"() : () -> ()
    %cst_135 = arith.constant 5.000000e-01 : f32
    %464 = vector.broadcast %cst_135 : f32 to vector<2x8x8xf32>
    %465 = arith.mulf %463, %464 : vector<2x8x8xf32>
    %466 = vector.shape_cast %0 : vector<8x8xf32> to vector<1x8x8xf32>
    %467 = vector.broadcast %466 : vector<1x8x8xf32> to vector<2x8x8xf32>
    %468 = arith.addf %465, %467 : vector<2x8x8xf32>
    %cst_136 = arith.constant dense<0xFF800000> : vector<2x8xf32>
    %469 = vector.multi_reduction <maximumf>, %468, %cst_136 [2] : vector<2x8x8xf32> to vector<2x8xf32>
    %470 = vector.shape_cast %469 : vector<2x8xf32> to vector<2x8x1xf32>
    %471 = vector.broadcast %470 : vector<2x8x1xf32> to vector<2x8x8xf32>
    %472 = arith.subf %468, %471 : vector<2x8x8xf32>
    %473 = math.exp %472 : vector<2x8x8xf32>
    %cst_137 = arith.constant dense<0.000000e+00> : vector<2x8xf32>
    %474 = vector.multi_reduction <add>, %473, %cst_137 [2] : vector<2x8x8xf32> to vector<2x8xf32>
    %475 = vector.shape_cast %474 : vector<2x8xf32> to vector<2x8x1xf32>
    %476 = tpu.reciprocal %475 {approx = true} : vector<2x8x1xf32> -> vector<2x8x1xf32>
    %477 = vector.broadcast %476 : vector<2x8x1xf32> to vector<2x8x8xf32>
    %478 = arith.mulf %473, %477 : vector<2x8x8xf32>
    %479 = vector.shape_cast %459 : vector<1x32xf32> to vector<1x1x32xf32>
    %480 = vector.broadcast %479 : vector<1x1x32xf32> to vector<2x8x32xf32>
    %481 = arith.mulf %307, %480 : vector<2x8x32xf32>
    "tpu.trace_start"() <{level = 10 : i32, message = "bqk,bkh->bqh"}> : () -> ()
    %cst_138 = arith.constant dense<0.000000e+00> : vector<2x8x32xf32>
    %482 = tpu.matmul %478, %481, %cst_138 {dimension_numbers = #tpu.dot_dimension_numbers<[2], [1], [1], [2], [0, 0, 0, 1, 1, 2], [0], [0]>} : vector<2x8x8xf32>, vector<2x8x32xf32>, vector<2x8x32xf32> -> vector<2x8x32xf32>
    "tpu.trace_stop"() : () -> ()
    %483 = arith.addf %458, %482 : vector<2x8x32xf32>
    %484 = vector.extract_strided_slice %1 {offsets = [7, 0], sizes = [1, 32], strides = [1, 1]} : vector<8x32xf32> to vector<1x32xf32>
    %485 = vector.shape_cast %484 : vector<1x32xf32> to vector<1x1x32xf32>
    %486 = vector.broadcast %485 : vector<1x1x32xf32> to vector<2x8x32xf32>
    %487 = arith.mulf %303, %486 : vector<2x8x32xf32>
    "tpu.trace_start"() <{level = 10 : i32, message = "bqh,bkh->bqk"}> : () -> ()
    %cst_139 = arith.constant dense<0.000000e+00> : vector<2x8x8xf32>
    %488 = tpu.matmul %487, %305, %cst_139 {dimension_numbers = #tpu.dot_dimension_numbers<[2], [2], [1], [1], [0, 0, 0, 1, 1, 1], [0], [0]>} : vector<2x8x32xf32>, vector<2x8x32xf32>, vector<2x8x8xf32> -> vector<2x8x8xf32>
    "tpu.trace_stop"() : () -> ()
    %cst_140 = arith.constant 5.000000e-01 : f32
    %489 = vector.broadcast %cst_140 : f32 to vector<2x8x8xf32>
    %490 = arith.mulf %488, %489 : vector<2x8x8xf32>
    %491 = vector.shape_cast %0 : vector<8x8xf32> to vector<1x8x8xf32>
    %492 = vector.broadcast %491 : vector<1x8x8xf32> to vector<2x8x8xf32>
    %493 = arith.addf %490, %492 : vector<2x8x8xf32>
    %cst_141 = arith.constant dense<0xFF800000> : vector<2x8xf32>
    %494 = vector.multi_reduction <maximumf>, %493, %cst_141 [2] : vector<2x8x8xf32> to vector<2x8xf32>
    %495 = vector.shape_cast %494 : vector<2x8xf32> to vector<2x8x1xf32>
    %496 = vector.broadcast %495 : vector<2x8x1xf32> to vector<2x8x8xf32>
    %497 = arith.subf %493, %496 : vector<2x8x8xf32>
    %498 = math.exp %497 : vector<2x8x8xf32>
    %cst_142 = arith.constant dense<0.000000e+00> : vector<2x8xf32>
    %499 = vector.multi_reduction <add>, %498, %cst_142 [2] : vector<2x8x8xf32> to vector<2x8xf32>
    %500 = vector.shape_cast %499 : vector<2x8xf32> to vector<2x8x1xf32>
    %501 = tpu.reciprocal %500 {approx = true} : vector<2x8x1xf32> -> vector<2x8x1xf32>
    %502 = vector.broadcast %501 : vector<2x8x1xf32> to vector<2x8x8xf32>
    %503 = arith.mulf %498, %502 : vector<2x8x8xf32>
    %504 = vector.shape_cast %484 : vector<1x32xf32> to vector<1x1x32xf32>
    %505 = vector.broadcast %504 : vector<1x1x32xf32> to vector<2x8x32xf32>
    %506 = arith.mulf %307, %505 : vector<2x8x32xf32>
    "tpu.trace_start"() <{level = 10 : i32, message = "bqk,bkh->bqh"}> : () -> ()
    %cst_143 = arith.constant dense<0.000000e+00> : vector<2x8x32xf32>
    %507 = tpu.matmul %503, %506, %cst_143 {dimension_numbers = #tpu.dot_dimension_numbers<[2], [1], [1], [2], [0, 0, 0, 1, 1, 2], [0], [0]>} : vector<2x8x8xf32>, vector<2x8x32xf32>, vector<2x8x32xf32> -> vector<2x8x32xf32>
    "tpu.trace_stop"() : () -> ()
    %508 = arith.addf %483, %507 : vector<2x8x32xf32>
    %509 = vector.shape_cast %508 : vector<2x8x32xf32> to vector<16x32xf32>
    %c1_144 = arith.constant 1 : index
    %c0_145 = arith.constant 0 : index
    %c0_146 = arith.constant 0 : index
    %510 = vector.load %arg10[%c1_144, %c0_145, %c0_146] : memref<2x32x32xf32, #tpu.memory_space<vmem>>, vector<1x32x32xf32>
    %511 = vector.shape_cast %510 : vector<1x32x32xf32> to vector<32x32xf32>
    %cst_147 = arith.constant dense<0.000000e+00> : vector<16x32xf32>
    %512 = tpu.matmul %509, %511, %cst_147 {dimension_numbers = #tpu.dot_dimension_numbers<[1], [0], [0], [1], [0, 0, 1, 1], [], []>} : vector<16x32xf32>, vector<32x32xf32>, vector<16x32xf32> -> vector<16x32xf32>
    %c1_148 = arith.constant 1 : index
    %c0_149 = arith.constant 0 : index
    %513 = vector.load %arg11[%c1_148, %c0_149] : memref<2x32xf32, #tpu.memory_space<vmem>>, vector<1x32xf32>
    %514 = vector.broadcast %513 : vector<1x32xf32> to vector<16x32xf32>
    %515 = arith.addf %512, %514 : vector<16x32xf32>
    %516 = arith.addf %295, %515 : vector<16x32xf32>
    %c1_150 = arith.constant 1 : index
    %c0_151 = arith.constant 0 : index
    %517 = vector.load %arg12[%c1_150, %c0_151] : memref<2x32xf32, #tpu.memory_space<vmem>>, vector<1x32xf32>
    %c1_152 = arith.constant 1 : index
    %c0_153 = arith.constant 0 : index
    %518 = vector.load %arg13[%c1_152, %c0_153] : memref<2x32xf32, #tpu.memory_space<vmem>>, vector<1x32xf32>
    %cst_154 = arith.constant dense<0.000000e+00> : vector<16xf32>
    %519 = vector.multi_reduction <add>, %516, %cst_154 [1] : vector<16x32xf32> to vector<16xf32>
    %520 = vector.shape_cast %519 : vector<16xf32> to vector<16x1xf32>
    %cst_155 = arith.constant 3.200000e+01 : f32
    %521 = vector.broadcast %cst_155 : f32 to vector<16x1xf32>
    %522 = arith.divf %520, %521 : vector<16x1xf32>
    %523 = vector.broadcast %522 : vector<16x1xf32> to vector<16x32xf32>
    %524 = arith.subf %516, %523 : vector<16x32xf32>
    %525 = arith.mulf %524, %524 : vector<16x32xf32>
    %cst_156 = arith.constant dense<0.000000e+00> : vector<16xf32>
    %526 = vector.multi_reduction <add>, %525, %cst_156 [1] : vector<16x32xf32> to vector<16xf32>
    %527 = vector.shape_cast %526 : vector<16xf32> to vector<16x1xf32>
    %cst_157 = arith.constant 3.200000e+01 : f32
    %528 = vector.broadcast %cst_157 : f32 to vector<16x1xf32>
    %529 = arith.divf %527, %528 : vector<16x1xf32>
    %530 = vector.broadcast %522 : vector<16x1xf32> to vector<16x32xf32>
    %531 = arith.subf %516, %530 : vector<16x32xf32>
    %cst_158 = arith.constant 9.99999974E-6 : f32
    %532 = vector.broadcast %cst_158 : f32 to vector<16x1xf32>
    %533 = arith.addf %529, %532 : vector<16x1xf32>
    %534 = math.rsqrt %533 : vector<16x1xf32>
    %535 = vector.broadcast %534 : vector<16x1xf32> to vector<16x32xf32>
    %536 = arith.mulf %531, %535 : vector<16x32xf32>
    %537 = vector.broadcast %517 : vector<1x32xf32> to vector<16x32xf32>
    %538 = arith.mulf %536, %537 : vector<16x32xf32>
    %539 = vector.broadcast %518 : vector<1x32xf32> to vector<16x32xf32>
    %540 = arith.addf %538, %539 : vector<16x32xf32>
    %c1_159 = arith.constant 1 : index
    %c0_160 = arith.constant 0 : index
    %c0_161 = arith.constant 0 : index
    %541 = vector.load %arg16[%c1_159, %c0_160, %c0_161] : memref<2x32x256xf32, #tpu.memory_space<vmem>>, vector<1x32x256xf32>
    %542 = vector.shape_cast %541 : vector<1x32x256xf32> to vector<32x256xf32>
    %cst_162 = arith.constant dense<0.000000e+00> : vector<16x256xf32>
    %543 = tpu.matmul %540, %542, %cst_162 {dimension_numbers = #tpu.dot_dimension_numbers<[1], [0], [0], [1], [0, 0, 1, 1], [], []>} : vector<16x32xf32>, vector<32x256xf32>, vector<16x256xf32> -> vector<16x256xf32>
    %c1_163 = arith.constant 1 : index
    %c0_164 = arith.constant 0 : index
    %544 = vector.load %arg17[%c1_163, %c0_164] : memref<2x256xf32, #tpu.memory_space<vmem>>, vector<1x256xf32>
    %545 = vector.broadcast %544 : vector<1x256xf32> to vector<16x256xf32>
    %546 = arith.addf %543, %545 : vector<16x256xf32>
    %cst_165 = arith.constant 0.000000e+00 : f32
    %547 = vector.broadcast %cst_165 : f32 to vector<16x256xf32>
    %548 = arith.maximumf %546, %547 : vector<16x256xf32>
    %c1_166 = arith.constant 1 : index
    %c0_167 = arith.constant 0 : index
    %c0_168 = arith.constant 0 : index
    %549 = vector.load %arg18[%c1_166, %c0_167, %c0_168] : memref<2x256x32xf32, #tpu.memory_space<vmem>>, vector<1x256x32xf32>
    %550 = vector.shape_cast %549 : vector<1x256x32xf32> to vector<256x32xf32>
    %cst_169 = arith.constant dense<0.000000e+00> : vector<16x32xf32>
    %551 = tpu.matmul %548, %550, %cst_169 {dimension_numbers = #tpu.dot_dimension_numbers<[1], [0], [0], [1], [0, 0, 1, 1], [], []>} : vector<16x256xf32>, vector<256x32xf32>, vector<16x32xf32> -> vector<16x32xf32>
    %c1_170 = arith.constant 1 : index
    %c0_171 = arith.constant 0 : index
    %552 = vector.load %arg19[%c1_170, %c0_171] : memref<2x32xf32, #tpu.memory_space<vmem>>, vector<1x32xf32>
    %553 = vector.broadcast %552 : vector<1x32xf32> to vector<16x32xf32>
    %554 = arith.addf %551, %553 : vector<16x32xf32>
    %555 = arith.addf %540, %554 : vector<16x32xf32>
    %c1_172 = arith.constant 1 : index
    %c0_173 = arith.constant 0 : index
    %556 = vector.load %arg14[%c1_172, %c0_173] : memref<2x32xf32, #tpu.memory_space<vmem>>, vector<1x32xf32>
    %c1_174 = arith.constant 1 : index
    %c0_175 = arith.constant 0 : index
    %557 = vector.load %arg15[%c1_174, %c0_175] : memref<2x32xf32, #tpu.memory_space<vmem>>, vector<1x32xf32>
    %cst_176 = arith.constant dense<0.000000e+00> : vector<16xf32>
    %558 = vector.multi_reduction <add>, %555, %cst_176 [1] : vector<16x32xf32> to vector<16xf32>
    %559 = vector.shape_cast %558 : vector<16xf32> to vector<16x1xf32>
    %cst_177 = arith.constant 3.200000e+01 : f32
    %560 = vector.broadcast %cst_177 : f32 to vector<16x1xf32>
    %561 = arith.divf %559, %560 : vector<16x1xf32>
    %562 = vector.broadcast %561 : vector<16x1xf32> to vector<16x32xf32>
    %563 = arith.subf %555, %562 : vector<16x32xf32>
    %564 = arith.mulf %563, %563 : vector<16x32xf32>
    %cst_178 = arith.constant dense<0.000000e+00> : vector<16xf32>
    %565 = vector.multi_reduction <add>, %564, %cst_178 [1] : vector<16x32xf32> to vector<16xf32>
    %566 = vector.shape_cast %565 : vector<16xf32> to vector<16x1xf32>
    %cst_179 = arith.constant 3.200000e+01 : f32
    %567 = vector.broadcast %cst_179 : f32 to vector<16x1xf32>
    %568 = arith.divf %566, %567 : vector<16x1xf32>
    %569 = vector.broadcast %561 : vector<16x1xf32> to vector<16x32xf32>
    %570 = arith.subf %555, %569 : vector<16x32xf32>
    %cst_180 = arith.constant 9.99999974E-6 : f32
    %571 = vector.broadcast %cst_180 : f32 to vector<16x1xf32>
    %572 = arith.addf %568, %571 : vector<16x1xf32>
    %573 = math.rsqrt %572 : vector<16x1xf32>
    %574 = vector.broadcast %573 : vector<16x1xf32> to vector<16x32xf32>
    %575 = arith.mulf %570, %574 : vector<16x32xf32>
    %576 = vector.broadcast %556 : vector<1x32xf32> to vector<16x32xf32>
    %577 = arith.mulf %575, %576 : vector<16x32xf32>
    %578 = vector.broadcast %557 : vector<1x32xf32> to vector<16x32xf32>
    %579 = arith.addf %577, %578 : vector<16x32xf32>
    %c0_181 = arith.constant 0 : index
    %c0_182 = arith.constant 0 : index
    %580 = vector.load %arg20[%c0_181, %c0_182] : memref<1x32xf32, #tpu.memory_space<vmem>>, vector<1x32xf32>
    %c0_183 = arith.constant 0 : index
    %c0_184 = arith.constant 0 : index
    %581 = vector.load %arg21[%c0_183, %c0_184] : memref<1x32xf32, #tpu.memory_space<vmem>>, vector<1x32xf32>
    %cst_185 = arith.constant dense<0.000000e+00> : vector<16xf32>
    %582 = vector.multi_reduction <add>, %579, %cst_185 [1] : vector<16x32xf32> to vector<16xf32>
    %583 = vector.shape_cast %582 : vector<16xf32> to vector<16x1xf32>
    %cst_186 = arith.constant 3.200000e+01 : f32
    %584 = vector.broadcast %cst_186 : f32 to vector<16x1xf32>
    %585 = arith.divf %583, %584 : vector<16x1xf32>
    %586 = vector.broadcast %585 : vector<16x1xf32> to vector<16x32xf32>
    %587 = arith.subf %579, %586 : vector<16x32xf32>
    %588 = arith.mulf %587, %587 : vector<16x32xf32>
    %cst_187 = arith.constant dense<0.000000e+00> : vector<16xf32>
    %589 = vector.multi_reduction <add>, %588, %cst_187 [1] : vector<16x32xf32> to vector<16xf32>
    %590 = vector.shape_cast %589 : vector<16xf32> to vector<16x1xf32>
    %cst_188 = arith.constant 3.200000e+01 : f32
    %591 = vector.broadcast %cst_188 : f32 to vector<16x1xf32>
    %592 = arith.divf %590, %591 : vector<16x1xf32>
    %593 = vector.broadcast %585 : vector<16x1xf32> to vector<16x32xf32>
    %594 = arith.subf %579, %593 : vector<16x32xf32>
    %cst_189 = arith.constant 9.99999974E-6 : f32
    %595 = vector.broadcast %cst_189 : f32 to vector<16x1xf32>
    %596 = arith.addf %592, %595 : vector<16x1xf32>
    %597 = math.rsqrt %596 : vector<16x1xf32>
    %598 = vector.broadcast %597 : vector<16x1xf32> to vector<16x32xf32>
    %599 = arith.mulf %594, %598 : vector<16x32xf32>
    %600 = vector.broadcast %580 : vector<1x32xf32> to vector<16x32xf32>
    %601 = arith.mulf %599, %600 : vector<16x32xf32>
    %602 = vector.broadcast %581 : vector<1x32xf32> to vector<16x32xf32>
    %603 = arith.addf %601, %602 : vector<16x32xf32>
    %604 = vector.shape_cast %603 : vector<16x32xf32> to vector<2x8x32xf32>
    %cst_190 = arith.constant dense<0.000000e+00> : vector<2x32xf32>
    %605 = vector.multi_reduction <add>, %604, %cst_190 [1] : vector<2x8x32xf32> to vector<2x32xf32>
    %cst_191 = arith.constant 8.000000e+00 : f32
    %606 = vector.broadcast %cst_191 : f32 to vector<2x32xf32>
    %607 = arith.divf %605, %606 : vector<2x32xf32>
    %608 = vector.extract_strided_slice %604 {offsets = [0, 7, 0], sizes = [2, 1, 32], strides = [1, 1, 1]} : vector<2x8x32xf32> to vector<2x1x32xf32>
    %609 = vector.shape_cast %608 : vector<2x1x32xf32> to vector<2x32xf32>
    %cst_192 = arith.constant dense<0xFF800000> : vector<2x32xf32>
    %610 = vector.multi_reduction <maximumf>, %604, %cst_192 [1] : vector<2x8x32xf32> to vector<2x32xf32>
    %611 = tpu.concatenate %607, %609, %610 in 1 : vector<2x32xf32>, vector<2x32xf32>, vector<2x32xf32> -> vector<2x96xf32>
    %c0_193 = arith.constant 0 : index
    %c0_194 = arith.constant 0 : index
    %612 = vector.load %arg22[%c0_193, %c0_194] : memref<96x64xf32, #tpu.memory_space<vmem>>, vector<96x64xf32>
    %cst_195 = arith.constant dense<0.000000e+00> : vector<2x64xf32>
    %613 = tpu.matmul %611, %612, %cst_195 {dimension_numbers = #tpu.dot_dimension_numbers<[1], [0], [0], [1], [0, 0, 1, 1], [], []>} : vector<2x96xf32>, vector<96x64xf32>, vector<2x64xf32> -> vector<2x64xf32>
    %c0_196 = arith.constant 0 : index
    %c0_197 = arith.constant 0 : index
    %614 = vector.load %arg23[%c0_196, %c0_197] : memref<1x64xf32, #tpu.memory_space<vmem>>, vector<1x64xf32>
    %615 = vector.broadcast %614 : vector<1x64xf32> to vector<2x64xf32>
    %616 = arith.addf %613, %615 : vector<2x64xf32>
    %617 = vector.extract_strided_slice %616 {offsets = [0, 0], sizes = [2, 32], strides = [1, 1]} : vector<2x64xf32> to vector<2x32xf32>
    %618 = vector.extract_strided_slice %616 {offsets = [0, 32], sizes = [2, 32], strides = [1, 1]} : vector<2x64xf32> to vector<2x32xf32>
    %cst_198 = arith.constant 5.000000e-01 : f32
    %619 = vector.broadcast %cst_198 : f32 to vector<2x32xf32>
    %620 = arith.mulf %619, %618 : vector<2x32xf32>
    %621 = arith.negf %620 : vector<2x32xf32>
    %622 = math.exp %621 : vector<2x32xf32>
    %cst_199 = arith.constant 1.000000e+00 : f32
    %623 = vector.broadcast %cst_199 : f32 to vector<2x32xf32>
    %624 = arith.addf %623, %622 : vector<2x32xf32>
    %625 = arith.divf %623, %624 : vector<2x32xf32>
    %cst_200 = arith.constant 9.900000e-01 : f32
    %626 = vector.broadcast %cst_200 : f32 to vector<2x32xf32>
    %627 = arith.mulf %626, %625 : vector<2x32xf32>
    %cst_201 = arith.constant 0.00999999977 : f32
    %628 = vector.broadcast %cst_201 : f32 to vector<2x32xf32>
    %629 = arith.addf %628, %627 : vector<2x32xf32>
    %630 = tpu.concatenate %617, %629 in 1 : vector<2x32xf32>, vector<2x32xf32> -> vector<2x64xf32>
    %c0_202 = arith.constant 0 : index
    %c0_203 = arith.constant 0 : index
    %631 = vector.load %arg24[%c0_202, %c0_203] : memref<2x64xf32, #tpu.memory_space<vmem>>, vector<2x64xf32>
    tpu.vector_store %arg24[%c0_202, %c0_203], %630 {strides = array<i32>} : memref<2x64xf32, #tpu.memory_space<vmem>>, vector<2x64xf32>,
    return
  }
  func.func @transform_0(%arg0: i32) -> (i32, i32) {
    %c0_i32 = arith.constant 0 : i32
    %c0_i32_0 = arith.constant 0 : i32
    %c0_i32_1 = arith.constant 0 : i32
    return %c0_i32, %c0_i32_0 : i32, i32
  }
  func.func @transform_1(%arg0: i32) -> (i32, i32) {
    %c0_i32 = arith.constant 0 : i32
    %c0_i32_0 = arith.constant 0 : i32
    %c0_i32_1 = arith.constant 0 : i32
    return %c0_i32, %c0_i32_0 : i32, i32
  }
  func.func @transform_2(%arg0: i32) -> (i32, i32) {
    %c0_i32 = arith.constant 0 : i32
    %c0_i32_0 = arith.constant 0 : i32
    return %arg0, %c0_i32 : i32, i32
  }
  func.func @transform_3(%arg0: i32) -> (i32, i32) {
    %c0_i32 = arith.constant 0 : i32
    %c0_i32_0 = arith.constant 0 : i32
    return %arg0, %c0_i32 : i32, i32
  }
  func.func @transform_4(%arg0: i32) -> (i32, i32) {
    %c0_i32 = arith.constant 0 : i32
    %c0_i32_0 = arith.constant 0 : i32
    %c0_i32_1 = arith.constant 0 : i32
    return %c0_i32, %c0_i32_0 : i32, i32
  }
  func.func @transform_5(%arg0: i32) -> (i32, i32) {
    %c0_i32 = arith.constant 0 : i32
    %c0_i32_0 = arith.constant 0 : i32
    %c0_i32_1 = arith.constant 0 : i32
    return %c0_i32, %c0_i32_0 : i32, i32
  }
  func.func @transform_6(%arg0: i32) -> (i32, i32) {
    %c0_i32 = arith.constant 0 : i32
    %c0_i32_0 = arith.constant 0 : i32
    %c0_i32_1 = arith.constant 0 : i32
    return %c0_i32, %c0_i32_0 : i32, i32
  }
  func.func @transform_7(%arg0: i32) -> (i32, i32, i32) {
    %c0_i32 = arith.constant 0 : i32
    %c0_i32_0 = arith.constant 0 : i32
    %c0_i32_1 = arith.constant 0 : i32
    %c0_i32_2 = arith.constant 0 : i32
    return %c0_i32, %c0_i32_0, %c0_i32_1 : i32, i32, i32
  }
  func.func @transform_8(%arg0: i32) -> (i32, i32) {
    %c0_i32 = arith.constant 0 : i32
    %c0_i32_0 = arith.constant 0 : i32
    %c0_i32_1 = arith.constant 0 : i32
    return %c0_i32, %c0_i32_0 : i32, i32
  }
  func.func @transform_9(%arg0: i32) -> (i32, i32, i32) {
    %c0_i32 = arith.constant 0 : i32
    %c0_i32_0 = arith.constant 0 : i32
    %c0_i32_1 = arith.constant 0 : i32
    %c0_i32_2 = arith.constant 0 : i32
    return %c0_i32, %c0_i32_0, %c0_i32_1 : i32, i32, i32
  }
  func.func @transform_10(%arg0: i32) -> (i32, i32) {
    %c0_i32 = arith.constant 0 : i32
    %c0_i32_0 = arith.constant 0 : i32
    %c0_i32_1 = arith.constant 0 : i32
    return %c0_i32, %c0_i32_0 : i32, i32
  }
  func.func @transform_11(%arg0: i32) -> (i32, i32) {
    %c0_i32 = arith.constant 0 : i32
    %c0_i32_0 = arith.constant 0 : i32
    %c0_i32_1 = arith.constant 0 : i32
    return %c0_i32, %c0_i32_0 : i32, i32
  }
  func.func @transform_12(%arg0: i32) -> (i32, i32) {
    %c0_i32 = arith.constant 0 : i32
    %c0_i32_0 = arith.constant 0 : i32
    %c0_i32_1 = arith.constant 0 : i32
    return %c0_i32, %c0_i32_0 : i32, i32
  }
  func.func @transform_13(%arg0: i32) -> (i32, i32) {
    %c0_i32 = arith.constant 0 : i32
    %c0_i32_0 = arith.constant 0 : i32
    %c0_i32_1 = arith.constant 0 : i32
    return %c0_i32, %c0_i32_0 : i32, i32
  }
  func.func @transform_14(%arg0: i32) -> (i32, i32) {
    %c0_i32 = arith.constant 0 : i32
    %c0_i32_0 = arith.constant 0 : i32
    %c0_i32_1 = arith.constant 0 : i32
    return %c0_i32, %c0_i32_0 : i32, i32
  }
  func.func @transform_15(%arg0: i32) -> (i32, i32, i32) {
    %c0_i32 = arith.constant 0 : i32
    %c0_i32_0 = arith.constant 0 : i32
    %c0_i32_1 = arith.constant 0 : i32
    %c0_i32_2 = arith.constant 0 : i32
    return %c0_i32, %c0_i32_0, %c0_i32_1 : i32, i32, i32
  }
  func.func @transform_16(%arg0: i32) -> (i32, i32) {
    %c0_i32 = arith.constant 0 : i32
    %c0_i32_0 = arith.constant 0 : i32
    %c0_i32_1 = arith.constant 0 : i32
    return %c0_i32, %c0_i32_0 : i32, i32
  }
  func.func @transform_17(%arg0: i32) -> (i32, i32, i32) {
    %c0_i32 = arith.constant 0 : i32
    %c0_i32_0 = arith.constant 0 : i32
    %c0_i32_1 = arith.constant 0 : i32
    %c0_i32_2 = arith.constant 0 : i32
    return %c0_i32, %c0_i32_0, %c0_i32_1 : i32, i32, i32
  }
  func.func @transform_18(%arg0: i32) -> (i32, i32) {
    %c0_i32 = arith.constant 0 : i32
    %c0_i32_0 = arith.constant 0 : i32
    %c0_i32_1 = arith.constant 0 : i32
    return %c0_i32, %c0_i32_0 : i32, i32
  }
  func.func @transform_19(%arg0: i32) -> (i32, i32) {
    %c0_i32 = arith.constant 0 : i32
    %c0_i32_0 = arith.constant 0 : i32
    %c0_i32_1 = arith.constant 0 : i32
    return %c0_i32, %c0_i32_0 : i32, i32
  }
  func.func @transform_20(%arg0: i32) -> (i32, i32) {
    %c0_i32 = arith.constant 0 : i32
    %c0_i32_0 = arith.constant 0 : i32
    %c0_i32_1 = arith.constant 0 : i32
    return %c0_i32, %c0_i32_0 : i32, i32
  }
  func.func @transform_21(%arg0: i32) -> (i32, i32) {
    %c0_i32 = arith.constant 0 : i32
    %c0_i32_0 = arith.constant 0 : i32
    %c0_i32_1 = arith.constant 0 : i32
    return %c0_i32, %c0_i32_0 : i32, i32
  }
  func.func @transform_22(%arg0: i32) -> (i32, i32) {
    %c0_i32 = arith.constant 0 : i32
    %c0_i32_0 = arith.constant 0 : i32
    %c0_i32_1 = arith.constant 0 : i32
    return %c0_i32, %c0_i32_0 : i32, i32
  }
  func.func @transform_23(%arg0: i32) -> (i32, i32) {
    %c0_i32 = arith.constant 0 : i32
    %c0_i32_0 = arith.constant 0 : i32
    return %arg0, %c0_i32 : i32, i32
  }
}

</mosaic_0001>

<llo_original>
// kernel: tpu_custom_call.1
$region0: #{tpu_custom_call.1}
  #allocation0 [shape = 'u32[]', space=smem, size = 0x4, offset = 0x4, fixed_abs, tag = 'smem constant byte address 0x4 - core index']
  #allocation1 [shape = 'u32[144,128]{1,0:T(1,128)}', space=vmem, size = 0x12000, scoped, tag = 'internal scratch']
  %s0 = inlined_call_operand.vmem [shape: f32[8,8], index: 0, kind: input, shape index: {}]
  %s1 = inlined_call_operand.vmem [shape: f32[8,32], index: 1, kind: input, shape index: {}]
  %s2 = inlined_call_operand.vmem [shape: f32[16,3], index: 2, kind: input, shape index: {}]
  %s3 = inlined_call_operand.vmem [shape: f32[16,1], index: 3, kind: input, shape index: {}]
  %s4 = inlined_call_operand.vmem [shape: f32[3,32], index: 4, kind: input, shape index: {}]
  %s5 = inlined_call_operand.vmem [shape: f32[1,32], index: 5, kind: input, shape index: {}]
  %s6 = inlined_call_operand.vmem [shape: f32[1,32], index: 6, kind: input, shape index: {}]
  %s7 = inlined_call_operand.vmem [shape: f32[2,32,96], index: 7, kind: input, shape index: {}]
  %s8 = inlined_call_operand.vmem [shape: f32[2,96], index: 8, kind: input, shape index: {}]
  %s9 = inlined_call_operand.vmem [shape: f32[2,32,32], index: 9, kind: input, shape index: {}]
  %s10 = inlined_call_operand.vmem [shape: f32[2,32], index: 10, kind: input, shape index: {}]
  %s11 = inlined_call_operand.vmem [shape: f32[2,32], index: 11, kind: input, shape index: {}]
  %s12 = inlined_call_operand.vmem [shape: f32[2,32], index: 12, kind: input, shape index: {}]
  %s13 = inlined_call_operand.vmem [shape: f32[2,32], index: 13, kind: input, shape index: {}]
  %s14 = inlined_call_operand.vmem [shape: f32[2,32], index: 14, kind: input, shape index: {}]
  %s15 = inlined_call_operand.vmem [shape: f32[2,32,256], index: 15, kind: input, shape index: {}]
  %s16 = inlined_call_operand.vmem [shape: f32[2,256], index: 16, kind: input, shape index: {}]
  %s17 = inlined_call_operand.vmem [shape: f32[2,256,32], index: 17, kind: input, shape index: {}]
  %s18 = inlined_call_operand.vmem [shape: f32[2,32], index: 18, kind: input, shape index: {}]
  %s19 = inlined_call_operand.vmem [shape: f32[1,32], index: 19, kind: input, shape index: {}]
  %s20 = inlined_call_operand.vmem [shape: f32[1,32], index: 20, kind: input, shape index: {}]
  %s21 = inlined_call_operand.vmem [shape: f32[96,64], index: 21, kind: input, shape index: {}]
  %s22 = inlined_call_operand.vmem [shape: f32[1,64], index: 22, kind: input, shape index: {}]
  %s23 = inlined_call_operand.hbm [shape: f32[2,64], index: 23, kind: output, shape index: {}]
  %s24 = sld [smem:[#allocation0]]
  $region102: #{tpu_custom_call.1} parent=0
    _
  %s26 = ssub.s32 1, %s24
  %s27 = scalar_select 0, %s26, %s24
  $region1: #{tpu_custom_call.1} parent=0
    #allocation2 [shape = 'u8[1024]{0}', space=vmem, size = 0x400, scoped, tag = 'output window, operand 0, single buffered']
    #allocation3 [shape = 's32[1]{0}', space=sflag, size = 0x4, scoped, tag = 'scoped memory for tpu_custom_call.1']
    %28 = vsyncpa [#allocation3], 0
    // Predicated region
    $region2: #{tpu_custom_call.1} parent=1 // pred_check
      _
    $region3: #{tpu_custom_call.1} parent=1 // pred_check_branch
      %30 = sbr.rel (0) target = $region5
    $region4: #{tpu_custom_call.1} parent=1 // pred_region
      _
    $region5: #{tpu_custom_call.1} parent=1 // pred_fallthru
      _
    // Predicated region
    $region6: #{tpu_custom_call.1} parent=1 // pred_check
      _
    $region7: #{tpu_custom_call.1} parent=1 // pred_check_branch
      %32 = sbr.rel (0) target = $region9
    $region8: #{tpu_custom_call.1} parent=1 // pred_region
      _
    $region9: #{tpu_custom_call.1} parent=1 // pred_fallthru
      _
    // Predicated region
    $region10: #{tpu_custom_call.1} parent=1 // pred_check
      _
    $region11: #{tpu_custom_call.1} parent=1 // pred_check_branch
      %34 = sbr.rel (0) target = $region13
    $region12: #{tpu_custom_call.1} parent=1 // pred_region
      _
    $region13: #{tpu_custom_call.1} parent=1 // pred_fallthru
      _
    // Predicated region
    $region14: #{tpu_custom_call.1} parent=1 // pred_check
      _
    $region15: #{tpu_custom_call.1} parent=1 // pred_check_branch
      %36 = sbr.rel (0) target = $region17
    $region16: #{tpu_custom_call.1} parent=1 // pred_region
      _
    $region17: #{tpu_custom_call.1} parent=1 // pred_fallthru
      _
    // Predicated region
    $region18: #{tpu_custom_call.1} parent=1 // pred_check
      _
    $region19: #{tpu_custom_call.1} parent=1 // pred_check_branch
      %38 = sbr.rel (0) target = $region21
    $region20: #{tpu_custom_call.1} parent=1 // pred_region
      _
    $region21: #{tpu_custom_call.1} parent=1 // pred_fallthru
      _
    // Predicated region
    $region22: #{tpu_custom_call.1} parent=1 // pred_check
      _
    $region23: #{tpu_custom_call.1} parent=1 // pred_check_branch
      %40 = sbr.rel (0) target = $region25
    $region24: #{tpu_custom_call.1} parent=1 // pred_region
      _
    $region25: #{tpu_custom_call.1} parent=1 // pred_fallthru
      _
    // Predicated region
    $region26: #{tpu_custom_call.1} parent=1 // pred_check
      _
    $region27: #{tpu_custom_call.1} parent=1 // pred_check_branch
      %42 = sbr.rel (0) target = $region29
    $region28: #{tpu_custom_call.1} parent=1 // pred_region
      _
    $region29: #{tpu_custom_call.1} parent=1 // pred_fallthru
      _
    // Predicated region
    $region30: #{tpu_custom_call.1} parent=1 // pred_check
      _
    $region31: #{tpu_custom_call.1} parent=1 // pred_check_branch
      %44 = sbr.rel (0) target = $region33
    $region32: #{tpu_custom_call.1} parent=1 // pred_region
      _
    $region33: #{tpu_custom_call.1} parent=1 // pred_fallthru
      _
    // Predicated region
    $region34: #{tpu_custom_call.1} parent=1 // pred_check
      _
    $region35: #{tpu_custom_call.1} parent=1 // pred_check_branch
      %46 = sbr.rel (0) target = $region37
    $region36: #{tpu_custom_call.1} parent=1 // pred_region
      _
    $region37: #{tpu_custom_call.1} parent=1 // pred_fallthru
      _
    // Predicated region
    $region38: #{tpu_custom_call.1} parent=1 // pred_check
      _
    $region39: #{tpu_custom_call.1} parent=1 // pred_check_branch
      %48 = sbr.rel (0) target = $region41
    $region40: #{tpu_custom_call.1} parent=1 // pred_region
      _
    $region41: #{tpu_custom_call.1} parent=1 // pred_fallthru
      _
    // Predicated region
    $region42: #{tpu_custom_call.1} parent=1 // pred_check
      _
    $region43: #{tpu_custom_call.1} parent=1 // pred_check_branch
      %50 = sbr.rel (0) target = $region45
    $region44: #{tpu_custom_call.1} parent=1 // pred_region
      _
    $region45: #{tpu_custom_call.1} parent=1 // pred_fallthru
      _
    // Predicated region
    $region46: #{tpu_custom_call.1} parent=1 // pred_check
      _
    $region47: #{tpu_custom_call.1} parent=1 // pred_check_branch
      %52 = sbr.rel (0) target = $region49
    $region48: #{tpu_custom_call.1} parent=1 // pred_region
      _
    $region49: #{tpu_custom_call.1} parent=1 // pred_fallthru
      _
    // Predicated region
    $region50: #{tpu_custom_call.1} parent=1 // pred_check
      _
    $region51: #{tpu_custom_call.1} parent=1 // pred_check_branch
      %54 = sbr.rel (0) target = $region53
    $region52: #{tpu_custom_call.1} parent=1 // pred_region
      _
    $region53: #{tpu_custom_call.1} parent=1 // pred_fallthru
      _
    // Predicated region
    $region54: #{tpu_custom_call.1} parent=1 // pred_check
      _
    $region55: #{tpu_custom_call.1} parent=1 // pred_check_branch
      %56 = sbr.rel (0) target = $region57
    $region56: #{tpu_custom_call.1} parent=1 // pred_region
      _
    $region57: #{tpu_custom_call.1} parent=1 // pred_fallthru
      _
    // Predicated region
    $region58: #{tpu_custom_call.1} parent=1 // pred_check
      _
    $region59: #{tpu_custom_call.1} parent=1 // pred_check_branch
      %58 = sbr.rel (0) target = $region61
    $region60: #{tpu_custom_call.1} parent=1 // pred_region
      _
    $region61: #{tpu_custom_call.1} parent=1 // pred_fallthru
      _
    // Predicated region
    $region62: #{tpu_custom_call.1} parent=1 // pred_check
      _
    $region63: #{tpu_custom_call.1} parent=1 // pred_check_branch
      %60 = sbr.rel (0) target = $region65
    $region64: #{tpu_custom_call.1} parent=1 // pred_region
      _
    $region65: #{tpu_custom_call.1} parent=1 // pred_fallthru
      _
    // Predicated region
    $region66: #{tpu_custom_call.1} parent=1 // pred_check
      _
    $region67: #{tpu_custom_call.1} parent=1 // pred_check_branch
      %62 = sbr.rel (0) target = $region69
    $region68: #{tpu_custom_call.1} parent=1 // pred_region
      _
    $region69: #{tpu_custom_call.1} parent=1 // pred_fallthru
      _
    // Predicated region
    $region70: #{tpu_custom_call.1} parent=1 // pred_check
      _
    $region71: #{tpu_custom_call.1} parent=1 // pred_check_branch
      %64 = sbr.rel (0) target = $region73
    $region72: #{tpu_custom_call.1} parent=1 // pred_region
      _
    $region73: #{tpu_custom_call.1} parent=1 // pred_fallthru
      _
    // Predicated region
    $region74: #{tpu_custom_call.1} parent=1 // pred_check
      _
    $region75: #{tpu_custom_call.1} parent=1 // pred_check_branch
      %66 = sbr.rel (0) target = $region77
    $region76: #{tpu_custom_call.1} parent=1 // pred_region
      _
    $region77: #{tpu_custom_call.1} parent=1 // pred_fallthru
      _
    // Predicated region
    $region78: #{tpu_custom_call.1} parent=1 // pred_check
      _
    $region79: #{tpu_custom_call.1} parent=1 // pred_check_branch
      %68 = sbr.rel (0) target = $region81
    $region80: #{tpu_custom_call.1} parent=1 // pred_region
      _
    $region81: #{tpu_custom_call.1} parent=1 // pred_fallthru
      _
    // Predicated region
    $region82: #{tpu_custom_call.1} parent=1 // pred_check
      _
    $region83: #{tpu_custom_call.1} parent=1 // pred_check_branch
      %70 = sbr.rel (0) target = $region85
    $region84: #{tpu_custom_call.1} parent=1 // pred_region
      _
    $region85: #{tpu_custom_call.1} parent=1 // pred_fallthru
      _
    // Predicated region
    $region86: #{tpu_custom_call.1} parent=1 // pred_check
      _
    $region87: #{tpu_custom_call.1} parent=1 // pred_check_branch
      %72 = sbr.rel (0) target = $region89
    $region88: #{tpu_custom_call.1} parent=1 // pred_region
      _
    $region89: #{tpu_custom_call.1} parent=1 // pred_fallthru
      _
    // Predicated region
    $region90: #{tpu_custom_call.1} parent=1 // pred_check
      _
    $region91: #{tpu_custom_call.1} parent=1 // pred_check_branch
      %74 = sbr.rel (0) target = $region93
    $region92: #{tpu_custom_call.1} parent=1 // pred_region
      _
    $region93: #{tpu_custom_call.1} parent=1 // pred_fallthru
      _
    %v75 = vld [vmem:[%s0] sm:$0xff]
    %v76 = vld [vmem:[%s1] sm:$0xff]
    %v77 = vld [vmem:[%s2] sm:$0xff]
    %v78 = vld [vmem:[%s2 + $0x8] sm:$0xff]
    %v79 = vld [vmem:[%s4] sm:$0x7]
    %v80 = vld [vmem:[%s3] sm:$0xff]
    %v81 = vld [vmem:[%s3 + $0x8] sm:$0xff]
    %v82 = vld [vmem:[%s5] sm:$0x1]
    %vm83 = vcmask 7168
    %v85 = vsel %vm83, %v80, 0
    %v88 = vsel %vm83, %v81, 0
    %vm90 = vcmask 1040384
    %v92 = vsel %vm90, %v82, 0
    %94 = vmatprep.subr.mxu0 0.0
    %95 = vmatpush1.msra.mxu0 0.0
    %96 = vmatprep.subr.mxu0 0.0
    %97 = vmatpush1.msra.mxu0 0.0
    %98 = vmatprep.subr.mxu0 0.0
    %99 = vmatpush1.msra.mxu0 0.0
    %100 = vmatprep.subr.mxu0 0.0
    %101 = vmatpush1.msra.mxu0 0.0
    %102 = vmatprep.subr.mxu0 0.0
    %103 = vmatpush1.msra.mxu0 0.0
    %104 = vmatprep.subr.mxu0 0.0
    %105 = vmatpush1.msra.mxu0 0.0
    %106 = vmatprep.subr.mxu0 0.0
    %107 = vmatpush1.msra.mxu0 0.0
    %108 = vmatprep.subr.mxu0 0.0
    %109 = vmatpush1.msra.mxu0 0.0
    %110 = vmatprep.subr.mxu0 0.0
    %111 = vmatpush1.msra.mxu0 0.0
    %112 = vmatprep.subr.mxu0 0.0
    %113 = vmatpush1.msra.mxu0 0.0
    %114 = vmatprep.subr.mxu0 0.0
    %115 = vmatpush1.msra.mxu0 0.0
    %116 = vmatprep.subr.mxu0 0.0
    %117 = vmatpush1.msra.mxu0 0.0
    %118 = vmatprep.subr.mxu0 0.0
    %119 = vmatpush1.msra.mxu0 0.0
    %120 = vmatprep.subr.mxu0 0.0
    %121 = vmatpush1.msra.mxu0 0.0
    %122 = vmatprep.subr.mxu0 0.0
    %123 = vmatpush1.msra.mxu0 0.0
    %124 = vmatprep.subr.mxu0 0.0
    %125 = vmatpush1.msra.mxu0 %v92
    %126 = vmatprep.subr.mxu0 0.0
    %127 = vmatpush2.msra.mxu0 0.0
    %128 = vmatprep.subr.mxu0 0.0
    %129 = vmatpush2.msra.mxu0 0.0
    %130 = vmatprep.subr.mxu0 0.0
    %131 = vmatpush2.msra.mxu0 0.0
    %132 = vmatprep.subr.mxu0 0.0
    %133 = vmatpush2.msra.mxu0 0.0
    %134 = vmatprep.subr.mxu0 0.0
    %135 = vmatpush2.msra.mxu0 0.0
    %136 = vmatprep.subr.mxu0 0.0
    %137 = vmatpush2.msra.mxu0 0.0
    %138 = vmatprep.subr.mxu0 0.0
    %139 = vmatpush2.msra.mxu0 0.0
    %140 = vmatprep.subr.mxu0 0.0
    %141 = vmatpush2.msra.mxu0 0.0
    %142 = vmatprep.subr.mxu0 0.0
    %143 = vmatpush2.msra.mxu0 0.0
    %144 = vmatprep.subr.mxu0 0.0
    %145 = vmatpush2.msra.mxu0 0.0
    %146 = vmatprep.subr.mxu0 0.0
    %147 = vmatpush2.msra.mxu0 0.0
    %148 = vmatprep.subr.mxu0 0.0
    %149 = vmatpush2.msra.mxu0 0.0
    %150 = vmatprep.subr.mxu0 0.0
    %151 = vmatpush2.msra.mxu0 0.0
    %152 = vmatprep.subr.mxu0 0.0
    %153 = vmatpush2.msra.mxu0 0.0
    %154 = vmatprep.subr.mxu0 0.0
    %155 = vmatpush2.msra.mxu0 0.0
    %156 = vmatprep.subr.mxu0 0.0
    %157 = vmatpush2.msra.mxu0 0.0
    %158 = vmatprep.mubr.f32.mxu0 0.0
    %159 = vmatmul.mubr.f32.gmra.mxu0 %v85
    %v160 = vpop.f32.mrf.mxu0
    %v161 = vadd.f32 0.0, %v160
    %v162 = vpop.f32.mrf.mxu0
    %163 = vmatprep.mubr.f32.mxu0 0.0
    %164 = vmatmul.mubr.f32.gmra.mxu0 %v88
    %v165 = vpop.f32.mrf.mxu0
    %v166 = vadd.f32 0.0, %v165
    %v167 = vpop.f32.mrf.mxu0
    %168 = vdwg.mxu0
    %vm169 = vcmask 23552
    %v171 = vsel %vm169, %v77, 0
    %v174 = vsel %vm169, %v78, 0
    %vm176 = vcmask 1042432
    %v178 = vsel %vm176, %v79, 0
    %180 = vmatprep.subr.mxu0 0.0
    %181 = vmatpush1.msra.mxu0 0.0
    %182 = vmatprep.subr.mxu0 0.0
    %183 = vmatpush1.msra.mxu0 0.0
    %184 = vmatprep.subr.mxu0 0.0
    %185 = vmatpush1.msra.mxu0 0.0
    %186 = vmatprep.subr.mxu0 0.0
    %187 = vmatpush1.msra.mxu0 0.0
    %188 = vmatprep.subr.mxu0 0.0
    %189 = vmatpush1.msra.mxu0 0.0
    %190 = vmatprep.subr.mxu0 0.0
    %191 = vmatpush1.msra.mxu0 0.0
    %192 = vmatprep.subr.mxu0 0.0
    %193 = vmatpush1.msra.mxu0 0.0
    %194 = vmatprep.subr.mxu0 0.0
    %195 = vmatpush1.msra.mxu0 0.0
    %196 = vmatprep.subr.mxu0 0.0
    %197 = vmatpush1.msra.mxu0 0.0
    %198 = vmatprep.subr.mxu0 0.0
    %199 = vmatpush1.msra.mxu0 0.0
    %200 = vmatprep.subr.mxu0 0.0
    %201 = vmatpush1.msra.mxu0 0.0
    %202 = vmatprep.subr.mxu0 0.0
    %203 = vmatpush1.msra.mxu0 0.0
    %204 = vmatprep.subr.mxu0 0.0
    %205 = vmatpush1.msra.mxu0 0.0
    %206 = vmatprep.subr.mxu0 0.0
    %207 = vmatpush1.msra.mxu0 0.0
    %208 = vmatprep.subr.mxu0 0.0
    %209 = vmatpush1.msra.mxu0 0.0
    %210 = vmatprep.subr.mxu0 0.0
    %211 = vmatpush1.msra.mxu0 %v178
    %212 = vmatprep.subr.mxu0 0.0
    %213 = vmatpush2.msra.mxu0 0.0
    %214 = vmatprep.subr.mxu0 0.0
    %215 = vmatpush2.msra.mxu0 0.0
    %216 = vmatprep.subr.mxu0 0.0
    %217 = vmatpush2.msra.mxu0 0.0
    %218 = vmatprep.subr.mxu0 0.0
    %219 = vmatpush2.msra.mxu0 0.0
    %220 = vmatprep.subr.mxu0 0.0
    %221 = vmatpush2.msra.mxu0 0.0
    %222 = vmatprep.subr.mxu0 0.0
    %223 = vmatpush2.msra.mxu0 0.0
    %224 = vmatprep.subr.mxu0 0.0
    %225 = vmatpush2.msra.mxu0 0.0
    %226 = vmatprep.subr.mxu0 0.0
    %227 = vmatpush2.msra.mxu0 0.0
    %228 = vmatprep.subr.mxu0 0.0
    %229 = vmatpush2.msra.mxu0 0.0
    %230 = vmatprep.subr.mxu0 0.0
    %231 = vmatpush2.msra.mxu0 0.0
    %232 = vmatprep.subr.mxu0 0.0
    %233 = vmatpush2.msra.mxu0 0.0
    %234 = vmatprep.subr.mxu0 0.0
    %235 = vmatpush2.msra.mxu0 0.0
    %236 = vmatprep.subr.mxu0 0.0
    %237 = vmatpush2.msra.mxu0 0.0
    %238 = vmatprep.subr.mxu0 0.0
    %239 = vmatpush2.msra.mxu0 0.0
    %240 = vmatprep.subr.mxu0 0.0
    %241 = vmatpush2.msra.mxu0 0.0
    %242 = vmatprep.subr.mxu0 0.0
    %243 = vmatpush2.msra.mxu0 0.0
    %244 = vmatprep.mubr.f32.mxu0 0.0
    %245 = vmatmul.mubr.f32.gmra.mxu0 %v171
    %v246 = vpop.f32.mrf.mxu0
    %v247 = vadd.f32 %v161, %v246
    %v248 = vpop.f32.mrf.mxu0
    %249 = vmatprep.mubr.f32.mxu0 0.0
    %250 = vmatmul.mubr.f32.gmra.mxu0 %v174
    %v251 = vpop.f32.mrf.mxu0
    %v252 = vadd.f32 %v166, %v251
    %v253 = vpop.f32.mrf.mxu0
    %254 = vdwg.mxu0
    %v255 = vld [vmem:[%s6] sm:$0x1]
    %v257 = vlaneseq
    %v258 = vshrl.u32 %v257, 7
    %v259 = vsub.s32 0, %v258
    %v260 = vrot.slane %v255, %v259
    %v262 = vadd.f32 %v247, %v260
    %v263 = vadd.f32 %v252, %v260
    %v264 = vld [vmem:[%s7] sm:$0xff]
    %v265 = vld [vmem:[%s7 + $0x8] sm:$0xff]
    %v266 = vld [vmem:[%s7 + $0x10] sm:$0xff]
    %v267 = vld [vmem:[%s7 + $0x18] sm:$0xff]
    %v268 = vld [vmem:[%s8] sm:$0x1]
    %v269 = vlaneseq
    %v270 = vshrl.u32 %v269, 7
    %v271 = vsub.s32 0, %v270
    %v272 = vrot.slane %v268, %v271
    %vm273 = vcmask 261120
    %v275 = vsel %vm273, %v262, 0
    %v278 = vsel %vm273, %v263, 0
    %280 = vmatprep.subr.mxu0 0.0
    %281 = vmatpush1.msra.mxu0 0.0
    %282 = vmatprep.subr.mxu0 0.0
    %283 = vmatpush1.msra.mxu0 0.0
    %284 = vmatprep.subr.mxu0 0.0
    %285 = vmatpush1.msra.mxu0 0.0
    %286 = vmatprep.subr.mxu0 0.0
    %287 = vmatpush1.msra.mxu0 0.0
    %288 = vmatprep.subr.mxu0 0.0
    %289 = vmatpush1.msra.mxu0 0.0
    %290 = vmatprep.subr.mxu0 0.0
    %291 = vmatpush1.msra.mxu0 0.0
    %292 = vmatprep.subr.mxu0 0.0
    %293 = vmatpush1.msra.mxu0 0.0
    %294 = vmatprep.subr.mxu0 0.0
    %295 = vmatpush1.msra.mxu0 0.0
    %296 = vmatprep.subr.mxu0 0.0
    %297 = vmatpush1.msra.mxu0 0.0
    %298 = vmatprep.subr.mxu0 0.0
    %299 = vmatpush1.msra.mxu0 0.0
    %300 = vmatprep.subr.mxu0 0.0
    %301 = vmatpush1.msra.mxu0 0.0
    %302 = vmatprep.subr.mxu0 0.0
    %303 = vmatpush1.msra.mxu0 0.0
    %304 = vmatprep.subr.mxu0 0.0
    %305 = vmatpush1.msra.mxu0 %v267
    %306 = vmatprep.subr.mxu0 0.0
    %307 = vmatpush1.msra.mxu0 %v266
    %308 = vmatprep.subr.mxu0 0.0
    %309 = vmatpush1.msra.mxu0 %v265
    %310 = vmatprep.subr.mxu0 0.0
    %311 = vmatpush1.msra.mxu0 %v264
    %312 = vmatprep.subr.mxu0 0.0
    %313 = vmatpush2.msra.mxu0 0.0
    %314 = vmatprep.subr.mxu0 0.0
    %315 = vmatpush2.msra.mxu0 0.0
    %316 = vmatprep.subr.mxu0 0.0
    %317 = vmatpush2.msra.mxu0 0.0
    %318 = vmatprep.subr.mxu0 0.0
    %319 = vmatpush2.msra.mxu0 0.0
    %320 = vmatprep.subr.mxu0 0.0
    %321 = vmatpush2.msra.mxu0 0.0
    %322 = vmatprep.subr.mxu0 0.0
    %323 = vmatpush2.msra.mxu0 0.0
    %324 = vmatprep.subr.mxu0 0.0
    %325 = vmatpush2.msra.mxu0 0.0
    %326 = vmatprep.subr.mxu0 0.0
    %327 = vmatpush2.msra.mxu0 0.0
    %328 = vmatprep.subr.mxu0 0.0
    %329 = vmatpush2.msra.mxu0 0.0
    %330 = vmatprep.subr.mxu0 0.0
    %331 = vmatpush2.msra.mxu0 0.0
    %332 = vmatprep.subr.mxu0 0.0
    %333 = vmatpush2.msra.mxu0 0.0
    %334 = vmatprep.subr.mxu0 0.0
    %335 = vmatpush2.msra.mxu0 0.0
    %336 = vmatprep.subr.mxu0 0.0
    %337 = vmatpush2.msra.mxu0 0.0
    %338 = vmatprep.subr.mxu0 0.0
    %339 = vmatpush2.msra.mxu0 0.0
    %340 = vmatprep.subr.mxu0 0.0
    %341 = vmatpush2.msra.mxu0 0.0
    %342 = vmatprep.subr.mxu0 0.0
    %343 = vmatpush2.msra.mxu0 0.0
    %344 = vmatprep.mubr.f32.mxu0 0.0
    %345 = vmatmul.mubr.f32.gmra.mxu0 %v275
    %v346 = vpop.f32.mrf.mxu0
    %v347 = vadd.f32 %v272, %v346
    %v348 = vpop.f32.mrf.mxu0
    %349 = vmatprep.mubr.f32.mxu0 0.0
    %350 = vmatmul.mubr.f32.gmra.mxu0 %v278
    %v351 = vpop.f32.mrf.mxu0
    %v352 = vadd.f32 %v272, %v351
    %v353 = vpop.f32.mrf.mxu0
    %354 = vdwg.mxu0
    %v355 = vlaneseq
    %v356 = vshrl.u32 %v355, 7
    %v357 = vsub.s32 0, %v356
    %v358 = vrot.slane %v76, %v357
    %v359 = vmul.f32 %v347, %v358
    %v360 = vmul.f32 %v352, %v358
    %362 = vrot.lane.b32.xlu0 %v347, 96
    %v363 = vpop.permute.xlu0 %362
    %v365 = vsel %vm273, %v359, 0
    %v367 = vsel %vm273, %v363, 0
    %369 = vmatprep.subr.mxu0 0.0
    %370 = vmatpush1.xpose.msra.mxu0 0.0
    %371 = vmatprep.subr.mxu0 0.0
    %372 = vmatpush1.xpose.msra.mxu0 0.0
    %373 = vmatprep.subr.mxu0 0.0
    %374 = vmatpush1.xpose.msra.mxu0 0.0
    %375 = vmatprep.subr.mxu0 0.0
    %376 = vmatpush1.xpose.msra.mxu0 0.0
    %377 = vmatprep.subr.mxu0 0.0
    %378 = vmatpush1.xpose.msra.mxu0 0.0
    %379 = vmatprep.subr.mxu0 0.0
    %380 = vmatpush1.xpose.msra.mxu0 0.0
    %381 = vmatprep.subr.mxu0 0.0
    %382 = vmatpush1.xpose.msra.mxu0 0.0
    %383 = vmatprep.subr.mxu0 0.0
    %384 = vmatpush1.xpose.msra.mxu0 0.0
    %385 = vmatprep.subr.mxu0 0.0
    %386 = vmatpush1.xpose.msra.mxu0 0.0
    %387 = vmatprep.subr.mxu0 0.0
    %388 = vmatpush1.xpose.msra.mxu0 0.0
    %389 = vmatprep.subr.mxu0 0.0
    %390 = vmatpush1.xpose.msra.mxu0 0.0
    %391 = vmatprep.subr.mxu0 0.0
    %392 = vmatpush1.xpose.msra.mxu0 0.0
    %393 = vmatprep.subr.mxu0 0.0
    %394 = vmatpush1.xpose.msra.mxu0 0.0
    %395 = vmatprep.subr.mxu0 0.0
    %396 = vmatpush1.xpose.msra.mxu0 0.0
    %397 = vmatprep.subr.mxu0 0.0
    %398 = vmatpush1.xpose.msra.mxu0 0.0
    %399 = vmatprep.subr.mxu0 0.0
    %400 = vmatpush1.xpose.msra.mxu0 %v367
    %401 = vmatprep.subr.mxu0 0.0
    %402 = vmatpush2.xpose.msra.mxu0 0.0
    %403 = vmatprep.subr.mxu0 0.0
    %404 = vmatpush2.xpose.msra.mxu0 0.0
    %405 = vmatprep.subr.mxu0 0.0
    %406 = vmatpush2.xpose.msra.mxu0 0.0
    %407 = vmatprep.subr.mxu0 0.0
    %408 = vmatpush2.xpose.msra.mxu0 0.0
    %409 = vmatprep.subr.mxu0 0.0
    %410 = vmatpush2.xpose.msra.mxu0 0.0
    %411 = vmatprep.subr.mxu0 0.0
    %412 = vmatpush2.xpose.msra.mxu0 0.0
    %413 = vmatprep.subr.mxu0 0.0
    %414 = vmatpush2.xpose.msra.mxu0 0.0
    %415 = vmatprep.subr.mxu0 0.0
    %416 = vmatpush2.xpose.msra.mxu0 0.0
    %417 = vmatprep.subr.mxu0 0.0
    %418 = vmatpush2.xpose.msra.mxu0 0.0
    %419 = vmatprep.subr.mxu0 0.0
    %420 = vmatpush2.xpose.msra.mxu0 0.0
    %421 = vmatprep.subr.mxu0 0.0
    %422 = vmatpush2.xpose.msra.mxu0 0.0
    %423 = vmatprep.subr.mxu0 0.0
    %424 = vmatpush2.xpose.msra.mxu0 0.0
    %425 = vmatprep.subr.mxu0 0.0
    %426 = vmatpush2.xpose.msra.mxu0 0.0
    %427 = vmatprep.subr.mxu0 0.0
    %428 = vmatpush2.xpose.msra.mxu0 0.0
    %429 = vmatprep.subr.mxu0 0.0
    %430 = vmatpush2.xpose.msra.mxu0 0.0
    %431 = vmatprep.subr.mxu0 0.0
    %432 = vmatpush2.xpose.msra.mxu0 0.0
    %433 = vmatprep.mubr.f32.mxu0 0.0
    %434 = vmatmul.mubr.f32.gmra.mxu0 %v365
    %v435 = vpop.f32.mrf.mxu0
    %v436 = vadd.f32 0.0, %v435
    %v437 = vpop.f32.mrf.mxu0
    %438 = vdwg.mxu0
    %440 = vrot.lane.b32.xlu0 %v352, 96
    %v441 = vpop.permute.xlu0 %440
    %v443 = vsel %vm273, %v360, 0
    %v445 = vsel %vm273, %v441, 0
    %447 = vmatprep.subr.mxu0 0.0
    %448 = vmatpush1.xpose.msra.mxu0 0.0
    %449 = vmatprep.subr.mxu0 0.0
    %450 = vmatpush1.xpose.msra.mxu0 0.0
    %451 = vmatprep.subr.mxu0 0.0
    %452 = vmatpush1.xpose.msra.mxu0 0.0
    %453 = vmatprep.subr.mxu0 0.0
    %454 = vmatpush1.xpose.msra.mxu0 0.0
    %455 = vmatprep.subr.mxu0 0.0
    %456 = vmatpush1.xpose.msra.mxu0 0.0
    %457 = vmatprep.subr.mxu0 0.0
    %458 = vmatpush1.xpose.msra.mxu0 0.0
    %459 = vmatprep.subr.mxu0 0.0
    %460 = vmatpush1.xpose.msra.mxu0 0.0
    %461 = vmatprep.subr.mxu0 0.0
    %462 = vmatpush1.xpose.msra.mxu0 0.0
    %463 = vmatprep.subr.mxu0 0.0
    %464 = vmatpush1.xpose.msra.mxu0 0.0
    %465 = vmatprep.subr.mxu0 0.0
    %466 = vmatpush1.xpose.msra.mxu0 0.0
    %467 = vmatprep.subr.mxu0 0.0
    %468 = vmatpush1.xpose.msra.mxu0 0.0
    %469 = vmatprep.subr.mxu0 0.0
    %470 = vmatpush1.xpose.msra.mxu0 0.0
    %471 = vmatprep.subr.mxu0 0.0
    %472 = vmatpush1.xpose.msra.mxu0 0.0
    %473 = vmatprep.subr.mxu0 0.0
    %474 = vmatpush1.xpose.msra.mxu0 0.0
    %475 = vmatprep.subr.mxu0 0.0
    %476 = vmatpush1.xpose.msra.mxu0 0.0
    %477 = vmatprep.subr.mxu0 0.0
    %478 = vmatpush1.xpose.msra.mxu0 %v445
    %479 = vmatprep.subr.mxu0 0.0
    %480 = vmatpush2.xpose.msra.mxu0 0.0
    %481 = vmatprep.subr.mxu0 0.0
    %482 = vmatpush2.xpose.msra.mxu0 0.0
    %483 = vmatprep.subr.mxu0 0.0
    %484 = vmatpush2.xpose.msra.mxu0 0.0
    %485 = vmatprep.subr.mxu0 0.0
    %486 = vmatpush2.xpose.msra.mxu0 0.0
    %487 = vmatprep.subr.mxu0 0.0
    %488 = vmatpush2.xpose.msra.mxu0 0.0
    %489 = vmatprep.subr.mxu0 0.0
    %490 = vmatpush2.xpose.msra.mxu0 0.0
    %491 = vmatprep.subr.mxu0 0.0
    %492 = vmatpush2.xpose.msra.mxu0 0.0
    %493 = vmatprep.subr.mxu0 0.0
    %494 = vmatpush2.xpose.msra.mxu0 0.0
    %495 = vmatprep.subr.mxu0 0.0
    %496 = vmatpush2.xpose.msra.mxu0 0.0
    %497 = vmatprep.subr.mxu0 0.0
    %498 = vmatpush2.xpose.msra.mxu0 0.0
    %499 = vmatprep.subr.mxu0 0.0
    %500 = vmatpush2.xpose.msra.mxu0 0.0
    %501 = vmatprep.subr.mxu0 0.0
    %502 = vmatpush2.xpose.msra.mxu0 0.0
    %503 = vmatprep.subr.mxu0 0.0
    %504 = vmatpush2.xpose.msra.mxu0 0.0
    %505 = vmatprep.subr.mxu0 0.0
    %506 = vmatpush2.xpose.msra.mxu0 0.0
    %507 = vmatprep.subr.mxu0 0.0
    %508 = vmatpush2.xpose.msra.mxu0 0.0
    %509 = vmatprep.subr.mxu0 0.0
    %510 = vmatpush2.xpose.msra.mxu0 0.0
    %511 = vmatprep.mubr.f32.mxu0 0.0
    %512 = vmatmul.mubr.f32.gmra.mxu0 %v443
    %v513 = vpop.f32.mrf.mxu0
    %v514 = vadd.f32 0.0, %v513
    %v515 = vpop.f32.mrf.mxu0
    %516 = vdwg.mxu0
    %v517 = vmul.f32 %v436, 0.5
    %v518 = vmul.f32 %v514, 0.5
    %v519 = vadd.f32 %v517, %v75
    %v520 = vadd.f32 %v518, %v75
    %vm521 = vcmask 64512
    %v522 = vsel %vm521, %v519, -inf
    %523 = vmax.xlane.f32.xlu0 %v522
    %v524 = vpop.xlane.xlu0 %523
    %v525 = vsel %vm521, %v520, -inf
    %526 = vmax.xlane.f32.xlu0 %v525
    %v527 = vpop.xlane.xlu0 %526
    %v528 = vsub.f32 %v519, %v524
    %v529 = vsub.f32 %v520, %v527
    %v530 = vmul.f32 %v528, 1.442695
    %v531 = vpow.pop %v530
    %v532 = vmul.f32 %v529, 1.442695
    %v533 = vpow.pop %v532
    %v534 = vsel %vm521, %v531, 0.0
    %535 = vadd.xlane.f32.xlu0 %v534
    %v536 = vpop.xlane.xlu0 %535
    %v537 = vsel %vm521, %v533, 0.0
    %538 = vadd.xlane.f32.xlu0 %v537
    %v539 = vpop.xlane.xlu0 %538
    %v540 = vrcp.pop %v536
    %v541 = vrcp.pop %v539
    %v542 = vmul.f32 %v531, %v540
    %v543 = vmul.f32 %v533, %v541
    %545 = vrot.lane.b32.xlu0 %v358, 64
    %v546 = vpop.permute.xlu0 %545
    %v548 = vmul.f32 %v347, %v546
    %v549 = vmul.f32 %v352, %v546
    %v550 = vlaneseq
    %v551 = vshrl.u32 %v550, 7
    %v552 = vsub.s32 1, %v551
    %v553 = vrot.slane %v76, %v552
    %v554 = vmul.f32 %v347, %v553
    %v555 = vmul.f32 %v352, %v553
    %v557 = vsel %vm273, %v554, 0
    %559 = vmatprep.subr.mxu0 0.0
    %560 = vmatpush1.xpose.msra.mxu0 0.0
    %561 = vmatprep.subr.mxu0 0.0
    %562 = vmatpush1.xpose.msra.mxu0 0.0
    %563 = vmatprep.subr.mxu0 0.0
    %564 = vmatpush1.xpose.msra.mxu0 0.0
    %565 = vmatprep.subr.mxu0 0.0
    %566 = vmatpush1.xpose.msra.mxu0 0.0
    %567 = vmatprep.subr.mxu0 0.0
    %568 = vmatpush1.xpose.msra.mxu0 0.0
    %569 = vmatprep.subr.mxu0 0.0
    %570 = vmatpush1.xpose.msra.mxu0 0.0
    %571 = vmatprep.subr.mxu0 0.0
    %572 = vmatpush1.xpose.msra.mxu0 0.0
    %573 = vmatprep.subr.mxu0 0.0
    %574 = vmatpush1.xpose.msra.mxu0 0.0
    %575 = vmatprep.subr.mxu0 0.0
    %576 = vmatpush1.xpose.msra.mxu0 0.0
    %577 = vmatprep.subr.mxu0 0.0
    %578 = vmatpush1.xpose.msra.mxu0 0.0
    %579 = vmatprep.subr.mxu0 0.0
    %580 = vmatpush1.xpose.msra.mxu0 0.0
    %581 = vmatprep.subr.mxu0 0.0
    %582 = vmatpush1.xpose.msra.mxu0 0.0
    %583 = vmatprep.subr.mxu0 0.0
    %584 = vmatpush1.xpose.msra.mxu0 0.0
    %585 = vmatprep.subr.mxu0 0.0
    %586 = vmatpush1.xpose.msra.mxu0 0.0
    %587 = vmatprep.subr.mxu0 0.0
    %588 = vmatpush1.xpose.msra.mxu0 0.0
    %589 = vmatprep.subr.mxu0 0.0
    %590 = vmatpush1.xpose.msra.mxu0 %v367
    %591 = vmatprep.subr.mxu0 0.0
    %592 = vmatpush2.xpose.msra.mxu0 0.0
    %593 = vmatprep.subr.mxu0 0.0
    %594 = vmatpush2.xpose.msra.mxu0 0.0
    %595 = vmatprep.subr.mxu0 0.0
    %596 = vmatpush2.xpose.msra.mxu0 0.0
    %597 = vmatprep.subr.mxu0 0.0
    %598 = vmatpush2.xpose.msra.mxu0 0.0
    %599 = vmatprep.subr.mxu0 0.0
    %600 = vmatpush2.xpose.msra.mxu0 0.0
    %601 = vmatprep.subr.mxu0 0.0
    %602 = vmatpush2.xpose.msra.mxu0 0.0
    %603 = vmatprep.subr.mxu0 0.0
    %604 = vmatpush2.xpose.msra.mxu0 0.0
    %605 = vmatprep.subr.mxu0 0.0
    %606 = vmatpush2.xpose.msra.mxu0 0.0
    %607 = vmatprep.subr.mxu0 0.0
    %608 = vmatpush2.xpose.msra.mxu0 0.0
    %609 = vmatprep.subr.mxu0 0.0
    %610 = vmatpush2.xpose.msra.mxu0 0.0
    %611 = vmatprep.subr.mxu0 0.0
    %612 = vmatpush2.xpose.msra.mxu0 0.0
    %613 = vmatprep.subr.mxu0 0.0
    %614 = vmatpush2.xpose.msra.mxu0 0.0
    %615 = vmatprep.subr.mxu0 0.0
    %616 = vmatpush2.xpose.msra.mxu0 0.0
    %617 = vmatprep.subr.mxu0 0.0
    %618 = vmatpush2.xpose.msra.mxu0 0.0
    %619 = vmatprep.subr.mxu0 0.0
    %620 = vmatpush2.xpose.msra.mxu0 0.0
    %621 = vmatprep.subr.mxu0 0.0
    %622 = vmatpush2.xpose.msra.mxu0 0.0
    %623 = vmatprep.mubr.f32.mxu0 0.0
    %624 = vmatmul.mubr.f32.gmra.mxu0 %v557
    %v625 = vpop.f32.mrf.mxu0
    %v626 = vadd.f32 0.0, %v625
    %v627 = vpop.f32.mrf.mxu0
    %628 = vdwg.mxu0
    %v630 = vsel %vm273, %v555, 0
    %632 = vmatprep.subr.mxu0 0.0
    %633 = vmatpush1.xpose.msra.mxu0 0.0
    %634 = vmatprep.subr.mxu0 0.0
    %635 = vmatpush1.xpose.msra.mxu0 0.0
    %636 = vmatprep.subr.mxu0 0.0
    %637 = vmatpush1.xpose.msra.mxu0 0.0
    %638 = vmatprep.subr.mxu0 0.0
    %639 = vmatpush1.xpose.msra.mxu0 0.0
    %640 = vmatprep.subr.mxu0 0.0
    %641 = vmatpush1.xpose.msra.mxu0 0.0
    %642 = vmatprep.subr.mxu0 0.0
    %643 = vmatpush1.xpose.msra.mxu0 0.0
    %644 = vmatprep.subr.mxu0 0.0
    %645 = vmatpush1.xpose.msra.mxu0 0.0
    %646 = vmatprep.subr.mxu0 0.0
    %647 = vmatpush1.xpose.msra.mxu0 0.0
    %648 = vmatprep.subr.mxu0 0.0
    %649 = vmatpush1.xpose.msra.mxu0 0.0
    %650 = vmatprep.subr.mxu0 0.0
    %651 = vmatpush1.xpose.msra.mxu0 0.0
    %652 = vmatprep.subr.mxu0 0.0
    %653 = vmatpush1.xpose.msra.mxu0 0.0
    %654 = vmatprep.subr.mxu0 0.0
    %655 = vmatpush1.xpose.msra.mxu0 0.0
    %656 = vmatprep.subr.mxu0 0.0
    %657 = vmatpush1.xpose.msra.mxu0 0.0
    %658 = vmatprep.subr.mxu0 0.0
    %659 = vmatpush1.xpose.msra.mxu0 0.0
    %660 = vmatprep.subr.mxu0 0.0
    %661 = vmatpush1.xpose.msra.mxu0 0.0
    %662 = vmatprep.subr.mxu0 0.0
    %663 = vmatpush1.xpose.msra.mxu0 %v445
    %664 = vmatprep.subr.mxu0 0.0
    %665 = vmatpush2.xpose.msra.mxu0 0.0
    %666 = vmatprep.subr.mxu0 0.0
    %667 = vmatpush2.xpose.msra.mxu0 0.0
    %668 = vmatprep.subr.mxu0 0.0
    %669 = vmatpush2.xpose.msra.mxu0 0.0
    %670 = vmatprep.subr.mxu0 0.0
    %671 = vmatpush2.xpose.msra.mxu0 0.0
    %672 = vmatprep.subr.mxu0 0.0
    %673 = vmatpush2.xpose.msra.mxu0 0.0
    %674 = vmatprep.subr.mxu0 0.0
    %675 = vmatpush2.xpose.msra.mxu0 0.0
    %676 = vmatprep.subr.mxu0 0.0
    %677 = vmatpush2.xpose.msra.mxu0 0.0
    %678 = vmatprep.subr.mxu0 0.0
    %679 = vmatpush2.xpose.msra.mxu0 0.0
    %680 = vmatprep.subr.mxu0 0.0
    %681 = vmatpush2.xpose.msra.mxu0 0.0
    %682 = vmatprep.subr.mxu0 0.0
    %683 = vmatpush2.xpose.msra.mxu0 0.0
    %684 = vmatprep.subr.mxu0 0.0
    %685 = vmatpush2.xpose.msra.mxu0 0.0
    %686 = vmatprep.subr.mxu0 0.0
    %687 = vmatpush2.xpose.msra.mxu0 0.0
    %688 = vmatprep.subr.mxu0 0.0
    %689 = vmatpush2.xpose.msra.mxu0 0.0
    %690 = vmatprep.subr.mxu0 0.0
    %691 = vmatpush2.xpose.msra.mxu0 0.0
    %692 = vmatprep.subr.mxu0 0.0
    %693 = vmatpush2.xpose.msra.mxu0 0.0
    %694 = vmatprep.subr.mxu0 0.0
    %695 = vmatpush2.xpose.msra.mxu0 0.0
    %696 = vmatprep.mubr.f32.mxu0 0.0
    %697 = vmatmul.mubr.f32.gmra.mxu0 %v630
    %v698 = vpop.f32.mrf.mxu0
    %v699 = vadd.f32 0.0, %v698
    %v700 = vpop.f32.mrf.mxu0
    %701 = vdwg.mxu0
    %v702 = vmul.f32 %v626, 0.5
    %v703 = vmul.f32 %v699, 0.5
    %v704 = vadd.f32 %v702, %v75
    %v705 = vadd.f32 %v703, %v75
    %v706 = vsel %vm521, %v704, -inf
    %707 = vmax.xlane.f32.xlu0 %v706
    %v708 = vpop.xlane.xlu0 %707
    %v709 = vsel %vm521, %v705, -inf
    %710 = vmax.xlane.f32.xlu0 %v709
    %v711 = vpop.xlane.xlu0 %710
    %v712 = vsub.f32 %v704, %v708
    %v713 = vsub.f32 %v705, %v711
    %v714 = vmul.f32 %v712, 1.442695
    %v715 = vpow.pop %v714
    %v716 = vmul.f32 %v713, 1.442695
    %v717 = vpow.pop %v716
    %v718 = vsel %vm521, %v715, 0.0
    %719 = vadd.xlane.f32.xlu0 %v718
    %v720 = vpop.xlane.xlu0 %719
    %v721 = vsel %vm521, %v717, 0.0
    %722 = vadd.xlane.f32.xlu0 %v721
    %v723 = vpop.xlane.xlu0 %722
    %v724 = vrcp.pop %v720
    %v725 = vrcp.pop %v723
    %v726 = vmul.f32 %v715, %v724
    %v727 = vmul.f32 %v717, %v725
    %729 = vrot.lane.b32.xlu0 %v553, 64
    %v730 = vpop.permute.xlu0 %729
    %v732 = vmul.f32 %v347, %v730
    %v733 = vmul.f32 %v352, %v730
    %735 = vrot.lane.b32.xlu0 %v732, 64
    %v736 = vpop.permute.xlu0 %735
    %v739 = vsel %vm521, %v726, 0
    %741 = vmatprep.subr.mxu0 0.0
    %742 = vmatpush1.msra.mxu0 0.0
    %743 = vmatprep.subr.mxu0 0.0
    %744 = vmatpush1.msra.mxu0 0.0
    %745 = vmatprep.subr.mxu0 0.0
    %746 = vmatpush1.msra.mxu0 0.0
    %747 = vmatprep.subr.mxu0 0.0
    %748 = vmatpush1.msra.mxu0 0.0
    %749 = vmatprep.subr.mxu0 0.0
    %750 = vmatpush1.msra.mxu0 0.0
    %751 = vmatprep.subr.mxu0 0.0
    %752 = vmatpush1.msra.mxu0 0.0
    %753 = vmatprep.subr.mxu0 0.0
    %754 = vmatpush1.msra.mxu0 0.0
    %755 = vmatprep.subr.mxu0 0.0
    %756 = vmatpush1.msra.mxu0 0.0
    %757 = vmatprep.subr.mxu0 0.0
    %758 = vmatpush1.msra.mxu0 0.0
    %759 = vmatprep.subr.mxu0 0.0
    %760 = vmatpush1.msra.mxu0 0.0
    %761 = vmatprep.subr.mxu0 0.0
    %762 = vmatpush1.msra.mxu0 0.0
    %763 = vmatprep.subr.mxu0 0.0
    %764 = vmatpush1.msra.mxu0 0.0
    %765 = vmatprep.subr.mxu0 0.0
    %766 = vmatpush1.msra.mxu0 0.0
    %767 = vmatprep.subr.mxu0 0.0
    %768 = vmatpush1.msra.mxu0 0.0
    %769 = vmatprep.subr.mxu0 0.0
    %770 = vmatpush1.msra.mxu0 0.0
    %771 = vmatprep.subr.mxu0 0.0
    %772 = vmatpush1.msra.mxu0 %v736
    %773 = vmatprep.subr.mxu0 0.0
    %774 = vmatpush2.msra.mxu0 0.0
    %775 = vmatprep.subr.mxu0 0.0
    %776 = vmatpush2.msra.mxu0 0.0
    %777 = vmatprep.subr.mxu0 0.0
    %778 = vmatpush2.msra.mxu0 0.0
    %779 = vmatprep.subr.mxu0 0.0
    %780 = vmatpush2.msra.mxu0 0.0
    %781 = vmatprep.subr.mxu0 0.0
    %782 = vmatpush2.msra.mxu0 0.0
    %783 = vmatprep.subr.mxu0 0.0
    %784 = vmatpush2.msra.mxu0 0.0
    %785 = vmatprep.subr.mxu0 0.0
    %786 = vmatpush2.msra.mxu0 0.0
    %787 = vmatprep.subr.mxu0 0.0
    %788 = vmatpush2.msra.mxu0 0.0
    %789 = vmatprep.subr.mxu0 0.0
    %790 = vmatpush2.msra.mxu0 0.0
    %791 = vmatprep.subr.mxu0 0.0
    %792 = vmatpush2.msra.mxu0 0.0
    %793 = vmatprep.subr.mxu0 0.0
    %794 = vmatpush2.msra.mxu0 0.0
    %795 = vmatprep.subr.mxu0 0.0
    %796 = vmatpush2.msra.mxu0 0.0
    %797 = vmatprep.subr.mxu0 0.0
    %798 = vmatpush2.msra.mxu0 0.0
    %799 = vmatprep.subr.mxu0 0.0
    %800 = vmatpush2.msra.mxu0 0.0
    %801 = vmatprep.subr.mxu0 0.0
    %802 = vmatpush2.msra.mxu0 0.0
    %803 = vmatprep.subr.mxu0 0.0
    %804 = vmatpush2.msra.mxu0 0.0
    %805 = vmatprep.mubr.f32.mxu0 0.0
    %806 = vmatmul.mubr.f32.gmra.mxu0 %v739
    %v807 = vpop.f32.mrf.mxu0
    %v808 = vadd.f32 0.0, %v807
    %v809 = vpop.f32.mrf.mxu0
    %810 = vdwg.mxu0
    %812 = vrot.lane.b32.xlu0 %v733, 64
    %v813 = vpop.permute.xlu0 %812
    %v816 = vsel %vm521, %v727, 0
    %818 = vmatprep.subr.mxu0 0.0
    %819 = vmatpush1.msra.mxu0 0.0
    %820 = vmatprep.subr.mxu0 0.0
    %821 = vmatpush1.msra.mxu0 0.0
    %822 = vmatprep.subr.mxu0 0.0
    %823 = vmatpush1.msra.mxu0 0.0
    %824 = vmatprep.subr.mxu0 0.0
    %825 = vmatpush1.msra.mxu0 0.0
    %826 = vmatprep.subr.mxu0 0.0
    %827 = vmatpush1.msra.mxu0 0.0
    %828 = vmatprep.subr.mxu0 0.0
    %829 = vmatpush1.msra.mxu0 0.0
    %830 = vmatprep.subr.mxu0 0.0
    %831 = vmatpush1.msra.mxu0 0.0
    %832 = vmatprep.subr.mxu0 0.0
    %833 = vmatpush1.msra.mxu0 0.0
    %834 = vmatprep.subr.mxu0 0.0
    %835 = vmatpush1.msra.mxu0 0.0
    %836 = vmatprep.subr.mxu0 0.0
    %837 = vmatpush1.msra.mxu0 0.0
    %838 = vmatprep.subr.mxu0 0.0
    %839 = vmatpush1.msra.mxu0 0.0
    %840 = vmatprep.subr.mxu0 0.0
    %841 = vmatpush1.msra.mxu0 0.0
    %842 = vmatprep.subr.mxu0 0.0
    %843 = vmatpush1.msra.mxu0 0.0
    %844 = vmatprep.subr.mxu0 0.0
    %845 = vmatpush1.msra.mxu0 0.0
    %846 = vmatprep.subr.mxu0 0.0
    %847 = vmatpush1.msra.mxu0 0.0
    %848 = vmatprep.subr.mxu0 0.0
    %849 = vmatpush1.msra.mxu0 %v813
    %850 = vmatprep.subr.mxu0 0.0
    %851 = vmatpush2.msra.mxu0 0.0
    %852 = vmatprep.subr.mxu0 0.0
    %853 = vmatpush2.msra.mxu0 0.0
    %854 = vmatprep.subr.mxu0 0.0
    %855 = vmatpush2.msra.mxu0 0.0
    %856 = vmatprep.subr.mxu0 0.0
    %857 = vmatpush2.msra.mxu0 0.0
    %858 = vmatprep.subr.mxu0 0.0
    %859 = vmatpush2.msra.mxu0 0.0
    %860 = vmatprep.subr.mxu0 0.0
    %861 = vmatpush2.msra.mxu0 0.0
    %862 = vmatprep.subr.mxu0 0.0
    %863 = vmatpush2.msra.mxu0 0.0
    %864 = vmatprep.subr.mxu0 0.0
    %865 = vmatpush2.msra.mxu0 0.0
    %866 = vmatprep.subr.mxu0 0.0
    %867 = vmatpush2.msra.mxu0 0.0
    %868 = vmatprep.subr.mxu0 0.0
    %869 = vmatpush2.msra.mxu0 0.0
    %870 = vmatprep.subr.mxu0 0.0
    %871 = vmatpush2.msra.mxu0 0.0
    %872 = vmatprep.subr.mxu0 0.0
    %873 = vmatpush2.msra.mxu0 0.0
    %874 = vmatprep.subr.mxu0 0.0
    %875 = vmatpush2.msra.mxu0 0.0
    %876 = vmatprep.subr.mxu0 0.0
    %877 = vmatpush2.msra.mxu0 0.0
    %878 = vmatprep.subr.mxu0 0.0
    %879 = vmatpush2.msra.mxu0 0.0
    %880 = vmatprep.subr.mxu0 0.0
    %881 = vmatpush2.msra.mxu0 0.0
    %882 = vmatprep.mubr.f32.mxu0 0.0
    %883 = vmatmul.mubr.f32.gmra.mxu0 %v816
    %v884 = vpop.f32.mrf.mxu0
    %v885 = vadd.f32 0.0, %v884
    %v886 = vpop.f32.mrf.mxu0
    %887 = vdwg.mxu0
    %889 = vrot.lane.b32.xlu0 %v548, 64
    %v890 = vpop.permute.xlu0 %889
    %v893 = vsel %vm521, %v542, 0
    %895 = vmatprep.subr.mxu0 0.0
    %896 = vmatpush1.msra.mxu0 0.0
    %897 = vmatprep.subr.mxu0 0.0
    %898 = vmatpush1.msra.mxu0 0.0
    %899 = vmatprep.subr.mxu0 0.0
    %900 = vmatpush1.msra.mxu0 0.0
    %901 = vmatprep.subr.mxu0 0.0
    %902 = vmatpush1.msra.mxu0 0.0
    %903 = vmatprep.subr.mxu0 0.0
    %904 = vmatpush1.msra.mxu0 0.0
    %905 = vmatprep.subr.mxu0 0.0
    %906 = vmatpush1.msra.mxu0 0.0
    %907 = vmatprep.subr.mxu0 0.0
    %908 = vmatpush1.msra.mxu0 0.0
    %909 = vmatprep.subr.mxu0 0.0
    %910 = vmatpush1.msra.mxu0 0.0
    %911 = vmatprep.subr.mxu0 0.0
    %912 = vmatpush1.msra.mxu0 0.0
    %913 = vmatprep.subr.mxu0 0.0
    %914 = vmatpush1.msra.mxu0 0.0
    %915 = vmatprep.subr.mxu0 0.0
    %916 = vmatpush1.msra.mxu0 0.0
    %917 = vmatprep.subr.mxu0 0.0
    %918 = vmatpush1.msra.mxu0 0.0
    %919 = vmatprep.subr.mxu0 0.0
    %920 = vmatpush1.msra.mxu0 0.0
    %921 = vmatprep.subr.mxu0 0.0
    %922 = vmatpush1.msra.mxu0 0.0
    %923 = vmatprep.subr.mxu0 0.0
    %924 = vmatpush1.msra.mxu0 0.0
    %925 = vmatprep.subr.mxu0 0.0
    %926 = vmatpush1.msra.mxu0 %v890
    %927 = vmatprep.subr.mxu0 0.0
    %928 = vmatpush2.msra.mxu0 0.0
    %929 = vmatprep.subr.mxu0 0.0
    %930 = vmatpush2.msra.mxu0 0.0
    %931 = vmatprep.subr.mxu0 0.0
    %932 = vmatpush2.msra.mxu0 0.0
    %933 = vmatprep.subr.mxu0 0.0
    %934 = vmatpush2.msra.mxu0 0.0
    %935 = vmatprep.subr.mxu0 0.0
    %936 = vmatpush2.msra.mxu0 0.0
    %937 = vmatprep.subr.mxu0 0.0
    %938 = vmatpush2.msra.mxu0 0.0
    %939 = vmatprep.subr.mxu0 0.0
    %940 = vmatpush2.msra.mxu0 0.0
    %941 = vmatprep.subr.mxu0 0.0
    %942 = vmatpush2.msra.mxu0 0.0
    %943 = vmatprep.subr.mxu0 0.0
    %944 = vmatpush2.msra.mxu0 0.0
    %945 = vmatprep.subr.mxu0 0.0
    %946 = vmatpush2.msra.mxu0 0.0
    %947 = vmatprep.subr.mxu0 0.0
    %948 = vmatpush2.msra.mxu0 0.0
    %949 = vmatprep.subr.mxu0 0.0
    %950 = vmatpush2.msra.mxu0 0.0
    %951 = vmatprep.subr.mxu0 0.0
    %952 = vmatpush2.msra.mxu0 0.0
    %953 = vmatprep.subr.mxu0 0.0
    %954 = vmatpush2.msra.mxu0 0.0
    %955 = vmatprep.subr.mxu0 0.0
    %956 = vmatpush2.msra.mxu0 0.0
    %957 = vmatprep.subr.mxu0 0.0
    %958 = vmatpush2.msra.mxu0 0.0
    %959 = vmatprep.mubr.f32.mxu0 0.0
    %960 = vmatmul.mubr.f32.gmra.mxu0 %v893
    %v961 = vpop.f32.mrf.mxu0
    %v962 = vadd.f32 %v808, %v961
    %v963 = vpop.f32.mrf.mxu0
    %964 = vdwg.mxu0
    %966 = vrot.lane.b32.xlu0 %v549, 64
    %v967 = vpop.permute.xlu0 %966
    %v970 = vsel %vm521, %v543, 0
    %972 = vmatprep.subr.mxu0 0.0
    %973 = vmatpush1.msra.mxu0 0.0
    %974 = vmatprep.subr.mxu0 0.0
    %975 = vmatpush1.msra.mxu0 0.0
    %976 = vmatprep.subr.mxu0 0.0
    %977 = vmatpush1.msra.mxu0 0.0
    %978 = vmatprep.subr.mxu0 0.0
    %979 = vmatpush1.msra.mxu0 0.0
    %980 = vmatprep.subr.mxu0 0.0
    %981 = vmatpush1.msra.mxu0 0.0
    %982 = vmatprep.subr.mxu0 0.0
    %983 = vmatpush1.msra.mxu0 0.0
    %984 = vmatprep.subr.mxu0 0.0
    %985 = vmatpush1.msra.mxu0 0.0
    %986 = vmatprep.subr.mxu0 0.0
    %987 = vmatpush1.msra.mxu0 0.0
    %988 = vmatprep.subr.mxu0 0.0
    %989 = vmatpush1.msra.mxu0 0.0
    %990 = vmatprep.subr.mxu0 0.0
    %991 = vmatpush1.msra.mxu0 0.0
    %992 = vmatprep.subr.mxu0 0.0
    %993 = vmatpush1.msra.mxu0 0.0
    %994 = vmatprep.subr.mxu0 0.0
    %995 = vmatpush1.msra.mxu0 0.0
    %996 = vmatprep.subr.mxu0 0.0
    %997 = vmatpush1.msra.mxu0 0.0
    %998 = vmatprep.subr.mxu0 0.0
    %999 = vmatpush1.msra.mxu0 0.0
    %1000 = vmatprep.subr.mxu0 0.0
    %1001 = vmatpush1.msra.mxu0 0.0
    %1002 = vmatprep.subr.mxu0 0.0
    %1003 = vmatpush1.msra.mxu0 %v967
    %1004 = vmatprep.subr.mxu0 0.0
    %1005 = vmatpush2.msra.mxu0 0.0
    %1006 = vmatprep.subr.mxu0 0.0
    %1007 = vmatpush2.msra.mxu0 0.0
    %1008 = vmatprep.subr.mxu0 0.0
    %1009 = vmatpush2.msra.mxu0 0.0
    %1010 = vmatprep.subr.mxu0 0.0
    %1011 = vmatpush2.msra.mxu0 0.0
    %1012 = vmatprep.subr.mxu0 0.0
    %1013 = vmatpush2.msra.mxu0 0.0
    %1014 = vmatprep.subr.mxu0 0.0
    %1015 = vmatpush2.msra.mxu0 0.0
    %1016 = vmatprep.subr.mxu0 0.0
    %1017 = vmatpush2.msra.mxu0 0.0
    %1018 = vmatprep.subr.mxu0 0.0
    %1019 = vmatpush2.msra.mxu0 0.0
    %1020 = vmatprep.subr.mxu0 0.0
    %1021 = vmatpush2.msra.mxu0 0.0
    %1022 = vmatprep.subr.mxu0 0.0
    %1023 = vmatpush2.msra.mxu0 0.0
    %1024 = vmatprep.subr.mxu0 0.0
    %1025 = vmatpush2.msra.mxu0 0.0
    %1026 = vmatprep.subr.mxu0 0.0
    %1027 = vmatpush2.msra.mxu0 0.0
    %1028 = vmatprep.subr.mxu0 0.0
    %1029 = vmatpush2.msra.mxu0 0.0
    %1030 = vmatprep.subr.mxu0 0.0
    %1031 = vmatpush2.msra.mxu0 0.0
    %1032 = vmatprep.subr.mxu0 0.0
    %1033 = vmatpush2.msra.mxu0 0.0
    %1034 = vmatprep.subr.mxu0 0.0
    %1035 = vmatpush2.msra.mxu0 0.0
    %1036 = vmatprep.mubr.f32.mxu0 0.0
    %1037 = vmatmul.mubr.f32.gmra.mxu0 %v970
    %v1038 = vpop.f32.mrf.mxu0
    %v1039 = vadd.f32 %v885, %v1038
    %v1040 = vpop.f32.mrf.mxu0
    %1041 = vdwg.mxu0
    %v1042 = vlaneseq
    %v1043 = vshrl.u32 %v1042, 7
    %v1044 = vsub.s32 2, %v1043
    %v1045 = vrot.slane %v76, %v1044
    %v1046 = vmul.f32 %v347, %v1045
    %v1047 = vmul.f32 %v352, %v1045
    %v1049 = vsel %vm273, %v1046, 0
    %1051 = vmatprep.subr.mxu0 0.0
    %1052 = vmatpush1.xpose.msra.mxu0 0.0
    %1053 = vmatprep.subr.mxu0 0.0
    %1054 = vmatpush1.xpose.msra.mxu0 0.0
    %1055 = vmatprep.subr.mxu0 0.0
    %1056 = vmatpush1.xpose.msra.mxu0 0.0
    %1057 = vmatprep.subr.mxu0 0.0
    %1058 = vmatpush1.xpose.msra.mxu0 0.0
    %1059 = vmatprep.subr.mxu0 0.0
    %1060 = vmatpush1.xpose.msra.mxu0 0.0
    %1061 = vmatprep.subr.mxu0 0.0
    %1062 = vmatpush1.xpose.msra.mxu0 0.0
    %1063 = vmatprep.subr.mxu0 0.0
    %1064 = vmatpush1.xpose.msra.mxu0 0.0
    %1065 = vmatprep.subr.mxu0 0.0
    %1066 = vmatpush1.xpose.msra.mxu0 0.0
    %1067 = vmatprep.subr.mxu0 0.0
    %1068 = vmatpush1.xpose.msra.mxu0 0.0
    %1069 = vmatprep.subr.mxu0 0.0
    %1070 = vmatpush1.xpose.msra.mxu0 0.0
    %1071 = vmatprep.subr.mxu0 0.0
    %1072 = vmatpush1.xpose.msra.mxu0 0.0
    %1073 = vmatprep.subr.mxu0 0.0
    %1074 = vmatpush1.xpose.msra.mxu0 0.0
    %1075 = vmatprep.subr.mxu0 0.0
    %1076 = vmatpush1.xpose.msra.mxu0 0.0
    %1077 = vmatprep.subr.mxu0 0.0
    %1078 = vmatpush1.xpose.msra.mxu0 0.0
    %1079 = vmatprep.subr.mxu0 0.0
    %1080 = vmatpush1.xpose.msra.mxu0 0.0
    %1081 = vmatprep.subr.mxu0 0.0
    %1082 = vmatpush1.xpose.msra.mxu0 %v367
    %1083 = vmatprep.subr.mxu0 0.0
    %1084 = vmatpush2.xpose.msra.mxu0 0.0
    %1085 = vmatprep.subr.mxu0 0.0
    %1086 = vmatpush2.xpose.msra.mxu0 0.0
    %1087 = vmatprep.subr.mxu0 0.0
    %1088 = vmatpush2.xpose.msra.mxu0 0.0
    %1089 = vmatprep.subr.mxu0 0.0
    %1090 = vmatpush2.xpose.msra.mxu0 0.0
    %1091 = vmatprep.subr.mxu0 0.0
    %1092 = vmatpush2.xpose.msra.mxu0 0.0
    %1093 = vmatprep.subr.mxu0 0.0
    %1094 = vmatpush2.xpose.msra.mxu0 0.0
    %1095 = vmatprep.subr.mxu0 0.0
    %1096 = vmatpush2.xpose.msra.mxu0 0.0
    %1097 = vmatprep.subr.mxu0 0.0
    %1098 = vmatpush2.xpose.msra.mxu0 0.0
    %1099 = vmatprep.subr.mxu0 0.0
    %1100 = vmatpush2.xpose.msra.mxu0 0.0
    %1101 = vmatprep.subr.mxu0 0.0
    %1102 = vmatpush2.xpose.msra.mxu0 0.0
    %1103 = vmatprep.subr.mxu0 0.0
    %1104 = vmatpush2.xpose.msra.mxu0 0.0
    %1105 = vmatprep.subr.mxu0 0.0
    %1106 = vmatpush2.xpose.msra.mxu0 0.0
    %1107 = vmatprep.subr.mxu0 0.0
    %1108 = vmatpush2.xpose.msra.mxu0 0.0
    %1109 = vmatprep.subr.mxu0 0.0
    %1110 = vmatpush2.xpose.msra.mxu0 0.0
    %1111 = vmatprep.subr.mxu0 0.0
    %1112 = vmatpush2.xpose.msra.mxu0 0.0
    %1113 = vmatprep.subr.mxu0 0.0
    %1114 = vmatpush2.xpose.msra.mxu0 0.0
    %1115 = vmatprep.mubr.f32.mxu0 0.0
    %1116 = vmatmul.mubr.f32.gmra.mxu0 %v1049
    %v1117 = vpop.f32.mrf.mxu0
    %v1118 = vadd.f32 0.0, %v1117
    %v1119 = vpop.f32.mrf.mxu0
    %1120 = vdwg.mxu0
    %v1122 = vsel %vm273, %v1047, 0
    %1124 = vmatprep.subr.mxu0 0.0
    %1125 = vmatpush1.xpose.msra.mxu0 0.0
    %1126 = vmatprep.subr.mxu0 0.0
    %1127 = vmatpush1.xpose.msra.mxu0 0.0
    %1128 = vmatprep.subr.mxu0 0.0
    %1129 = vmatpush1.xpose.msra.mxu0 0.0
    %1130 = vmatprep.subr.mxu0 0.0
    %1131 = vmatpush1.xpose.msra.mxu0 0.0
    %1132 = vmatprep.subr.mxu0 0.0
    %1133 = vmatpush1.xpose.msra.mxu0 0.0
    %1134 = vmatprep.subr.mxu0 0.0
    %1135 = vmatpush1.xpose.msra.mxu0 0.0
    %1136 = vmatprep.subr.mxu0 0.0
    %1137 = vmatpush1.xpose.msra.mxu0 0.0
    %1138 = vmatprep.subr.mxu0 0.0
    %1139 = vmatpush1.xpose.msra.mxu0 0.0
    %1140 = vmatprep.subr.mxu0 0.0
    %1141 = vmatpush1.xpose.msra.mxu0 0.0
    %1142 = vmatprep.subr.mxu0 0.0
    %1143 = vmatpush1.xpose.msra.mxu0 0.0
    %1144 = vmatprep.subr.mxu0 0.0
    %1145 = vmatpush1.xpose.msra.mxu0 0.0
    %1146 = vmatprep.subr.mxu0 0.0
    %1147 = vmatpush1.xpose.msra.mxu0 0.0
    %1148 = vmatprep.subr.mxu0 0.0
    %1149 = vmatpush1.xpose.msra.mxu0 0.0
    %1150 = vmatprep.subr.mxu0 0.0
    %1151 = vmatpush1.xpose.msra.mxu0 0.0
    %1152 = vmatprep.subr.mxu0 0.0
    %1153 = vmatpush1.xpose.msra.mxu0 0.0
    %1154 = vmatprep.subr.mxu0 0.0
    %1155 = vmatpush1.xpose.msra.mxu0 %v445
    %1156 = vmatprep.subr.mxu0 0.0
    %1157 = vmatpush2.xpose.msra.mxu0 0.0
    %1158 = vmatprep.subr.mxu0 0.0
    %1159 = vmatpush2.xpose.msra.mxu0 0.0
    %1160 = vmatprep.subr.mxu0 0.0
    %1161 = vmatpush2.xpose.msra.mxu0 0.0
    %1162 = vmatprep.subr.mxu0 0.0
    %1163 = vmatpush2.xpose.msra.mxu0 0.0
    %1164 = vmatprep.subr.mxu0 0.0
    %1165 = vmatpush2.xpose.msra.mxu0 0.0
    %1166 = vmatprep.subr.mxu0 0.0
    %1167 = vmatpush2.xpose.msra.mxu0 0.0
    %1168 = vmatprep.subr.mxu0 0.0
    %1169 = vmatpush2.xpose.msra.mxu0 0.0
    %1170 = vmatprep.subr.mxu0 0.0
    %1171 = vmatpush2.xpose.msra.mxu0 0.0
    %1172 = vmatprep.subr.mxu0 0.0
    %1173 = vmatpush2.xpose.msra.mxu0 0.0
    %1174 = vmatprep.subr.mxu0 0.0
    %1175 = vmatpush2.xpose.msra.mxu0 0.0
    %1176 = vmatprep.subr.mxu0 0.0
    %1177 = vmatpush2.xpose.msra.mxu0 0.0
    %1178 = vmatprep.subr.mxu0 0.0
    %1179 = vmatpush2.xpose.msra.mxu0 0.0
    %1180 = vmatprep.subr.mxu0 0.0
    %1181 = vmatpush2.xpose.msra.mxu0 0.0
    %1182 = vmatprep.subr.mxu0 0.0
    %1183 = vmatpush2.xpose.msra.mxu0 0.0
    %1184 = vmatprep.subr.mxu0 0.0
    %1185 = vmatpush2.xpose.msra.mxu0 0.0
    %1186 = vmatprep.subr.mxu0 0.0
    %1187 = vmatpush2.xpose.msra.mxu0 0.0
    %1188 = vmatprep.mubr.f32.mxu0 0.0
    %1189 = vmatmul.mubr.f32.gmra.mxu0 %v1122
    %v1190 = vpop.f32.mrf.mxu0
    %v1191 = vadd.f32 0.0, %v1190
    %v1192 = vpop.f32.mrf.mxu0
    %1193 = vdwg.mxu0
    %v1194 = vmul.f32 %v1118, 0.5
    %v1195 = vmul.f32 %v1191, 0.5
    %v1196 = vadd.f32 %v1194, %v75
    %v1197 = vadd.f32 %v1195, %v75
    %v1198 = vsel %vm521, %v1196, -inf
    %1199 = vmax.xlane.f32.xlu0 %v1198
    %v1200 = vpop.xlane.xlu0 %1199
    %v1201 = vsel %vm521, %v1197, -inf
    %1202 = vmax.xlane.f32.xlu0 %v1201
    %v1203 = vpop.xlane.xlu0 %1202
    %v1204 = vsub.f32 %v1196, %v1200
    %v1205 = vsub.f32 %v1197, %v1203
    %v1206 = vmul.f32 %v1204, 1.442695
    %v1207 = vpow.pop %v1206
    %v1208 = vmul.f32 %v1205, 1.442695
    %v1209 = vpow.pop %v1208
    %v1210 = vsel %vm521, %v1207, 0.0
    %1211 = vadd.xlane.f32.xlu0 %v1210
    %v1212 = vpop.xlane.xlu0 %1211
    %v1213 = vsel %vm521, %v1209, 0.0
    %1214 = vadd.xlane.f32.xlu0 %v1213
    %v1215 = vpop.xlane.xlu0 %1214
    %v1216 = vrcp.pop %v1212
    %v1217 = vrcp.pop %v1215
    %v1218 = vmul.f32 %v1207, %v1216
    %v1219 = vmul.f32 %v1209, %v1217
    %1221 = vrot.lane.b32.xlu0 %v1045, 64
    %v1222 = vpop.permute.xlu0 %1221
    %v1224 = vmul.f32 %v347, %v1222
    %v1225 = vmul.f32 %v352, %v1222
    %1227 = vrot.lane.b32.xlu0 %v1224, 64
    %v1228 = vpop.permute.xlu0 %1227
    %v1231 = vsel %vm521, %v1218, 0
    %1233 = vmatprep.subr.mxu0 0.0
    %1234 = vmatpush1.msra.mxu0 0.0
    %1235 = vmatprep.subr.mxu0 0.0
    %1236 = vmatpush1.msra.mxu0 0.0
    %1237 = vmatprep.subr.mxu0 0.0
    %1238 = vmatpush1.msra.mxu0 0.0
    %1239 = vmatprep.subr.mxu0 0.0
    %1240 = vmatpush1.msra.mxu0 0.0
    %1241 = vmatprep.subr.mxu0 0.0
    %1242 = vmatpush1.msra.mxu0 0.0
    %1243 = vmatprep.subr.mxu0 0.0
    %1244 = vmatpush1.msra.mxu0 0.0
    %1245 = vmatprep.subr.mxu0 0.0
    %1246 = vmatpush1.msra.mxu0 0.0
    %1247 = vmatprep.subr.mxu0 0.0
    %1248 = vmatpush1.msra.mxu0 0.0
    %1249 = vmatprep.subr.mxu0 0.0
    %1250 = vmatpush1.msra.mxu0 0.0
    %1251 = vmatprep.subr.mxu0 0.0
    %1252 = vmatpush1.msra.mxu0 0.0
    %1253 = vmatprep.subr.mxu0 0.0
    %1254 = vmatpush1.msra.mxu0 0.0
    %1255 = vmatprep.subr.mxu0 0.0
    %1256 = vmatpush1.msra.mxu0 0.0
    %1257 = vmatprep.subr.mxu0 0.0
    %1258 = vmatpush1.msra.mxu0 0.0
    %1259 = vmatprep.subr.mxu0 0.0
    %1260 = vmatpush1.msra.mxu0 0.0
    %1261 = vmatprep.subr.mxu0 0.0
    %1262 = vmatpush1.msra.mxu0 0.0
    %1263 = vmatprep.subr.mxu0 0.0
    %1264 = vmatpush1.msra.mxu0 %v1228
    %1265 = vmatprep.subr.mxu0 0.0
    %1266 = vmatpush2.msra.mxu0 0.0
    %1267 = vmatprep.subr.mxu0 0.0
    %1268 = vmatpush2.msra.mxu0 0.0
    %1269 = vmatprep.subr.mxu0 0.0
    %1270 = vmatpush2.msra.mxu0 0.0
    %1271 = vmatprep.subr.mxu0 0.0
    %1272 = vmatpush2.msra.mxu0 0.0
    %1273 = vmatprep.subr.mxu0 0.0
    %1274 = vmatpush2.msra.mxu0 0.0
    %1275 = vmatprep.subr.mxu0 0.0
    %1276 = vmatpush2.msra.mxu0 0.0
    %1277 = vmatprep.subr.mxu0 0.0
    %1278 = vmatpush2.msra.mxu0 0.0
    %1279 = vmatprep.subr.mxu0 0.0
    %1280 = vmatpush2.msra.mxu0 0.0
    %1281 = vmatprep.subr.mxu0 0.0
    %1282 = vmatpush2.msra.mxu0 0.0
    %1283 = vmatprep.subr.mxu0 0.0
    %1284 = vmatpush2.msra.mxu0 0.0
    %1285 = vmatprep.subr.mxu0 0.0
    %1286 = vmatpush2.msra.mxu0 0.0
    %1287 = vmatprep.subr.mxu0 0.0
    %1288 = vmatpush2.msra.mxu0 0.0
    %1289 = vmatprep.subr.mxu0 0.0
    %1290 = vmatpush2.msra.mxu0 0.0
    %1291 = vmatprep.subr.mxu0 0.0
    %1292 = vmatpush2.msra.mxu0 0.0
    %1293 = vmatprep.subr.mxu0 0.0
    %1294 = vmatpush2.msra.mxu0 0.0
    %1295 = vmatprep.subr.mxu0 0.0
    %1296 = vmatpush2.msra.mxu0 0.0
    %1297 = vmatprep.mubr.f32.mxu0 0.0
    %1298 = vmatmul.mubr.f32.gmra.mxu0 %v1231
    %v1299 = vpop.f32.mrf.mxu0
    %v1300 = vadd.f32 0.0, %v1299
    %v1301 = vpop.f32.mrf.mxu0
    %1302 = vdwg.mxu0
    %1304 = vrot.lane.b32.xlu0 %v1225, 64
    %v1305 = vpop.permute.xlu0 %1304
    %v1308 = vsel %vm521, %v1219, 0
    %1310 = vmatprep.subr.mxu0 0.0
    %1311 = vmatpush1.msra.mxu0 0.0
    %1312 = vmatprep.subr.mxu0 0.0
    %1313 = vmatpush1.msra.mxu0 0.0
    %1314 = vmatprep.subr.mxu0 0.0
    %1315 = vmatpush1.msra.mxu0 0.0
    %1316 = vmatprep.subr.mxu0 0.0
    %1317 = vmatpush1.msra.mxu0 0.0
    %1318 = vmatprep.subr.mxu0 0.0
    %1319 = vmatpush1.msra.mxu0 0.0
    %1320 = vmatprep.subr.mxu0 0.0
    %1321 = vmatpush1.msra.mxu0 0.0
    %1322 = vmatprep.subr.mxu0 0.0
    %1323 = vmatpush1.msra.mxu0 0.0
    %1324 = vmatprep.subr.mxu0 0.0
    %1325 = vmatpush1.msra.mxu0 0.0
    %1326 = vmatprep.subr.mxu0 0.0
    %1327 = vmatpush1.msra.mxu0 0.0
    %1328 = vmatprep.subr.mxu0 0.0
    %1329 = vmatpush1.msra.mxu0 0.0
    %1330 = vmatprep.subr.mxu0 0.0
    %1331 = vmatpush1.msra.mxu0 0.0
    %1332 = vmatprep.subr.mxu0 0.0
    %1333 = vmatpush1.msra.mxu0 0.0
    %1334 = vmatprep.subr.mxu0 0.0
    %1335 = vmatpush1.msra.mxu0 0.0
    %1336 = vmatprep.subr.mxu0 0.0
    %1337 = vmatpush1.msra.mxu0 0.0
    %1338 = vmatprep.subr.mxu0 0.0
    %1339 = vmatpush1.msra.mxu0 0.0
    %1340 = vmatprep.subr.mxu0 0.0
    %1341 = vmatpush1.msra.mxu0 %v1305
    %1342 = vmatprep.subr.mxu0 0.0
    %1343 = vmatpush2.msra.mxu0 0.0
    %1344 = vmatprep.subr.mxu0 0.0
    %1345 = vmatpush2.msra.mxu0 0.0
    %1346 = vmatprep.subr.mxu0 0.0
    %1347 = vmatpush2.msra.mxu0 0.0
    %1348 = vmatprep.subr.mxu0 0.0
    %1349 = vmatpush2.msra.mxu0 0.0
    %1350 = vmatprep.subr.mxu0 0.0
    %1351 = vmatpush2.msra.mxu0 0.0
    %1352 = vmatprep.subr.mxu0 0.0
    %1353 = vmatpush2.msra.mxu0 0.0
    %1354 = vmatprep.subr.mxu0 0.0
    %1355 = vmatpush2.msra.mxu0 0.0
    %1356 = vmatprep.subr.mxu0 0.0
    %1357 = vmatpush2.msra.mxu0 0.0
    %1358 = vmatprep.subr.mxu0 0.0
    %1359 = vmatpush2.msra.mxu0 0.0
    %1360 = vmatprep.subr.mxu0 0.0
    %1361 = vmatpush2.msra.mxu0 0.0
    %1362 = vmatprep.subr.mxu0 0.0
    %1363 = vmatpush2.msra.mxu0 0.0
    %1364 = vmatprep.subr.mxu0 0.0
    %1365 = vmatpush2.msra.mxu0 0.0
    %1366 = vmatprep.subr.mxu0 0.0
    %1367 = vmatpush2.msra.mxu0 0.0
    %1368 = vmatprep.subr.mxu0 0.0
    %1369 = vmatpush2.msra.mxu0 0.0
    %1370 = vmatprep.subr.mxu0 0.0
    %1371 = vmatpush2.msra.mxu0 0.0
    %1372 = vmatprep.subr.mxu0 0.0
    %1373 = vmatpush2.msra.mxu0 0.0
    %1374 = vmatprep.mubr.f32.mxu0 0.0
    %1375 = vmatmul.mubr.f32.gmra.mxu0 %v1308
    %v1376 = vpop.f32.mrf.mxu0
    %v1377 = vadd.f32 0.0, %v1376
    %v1378 = vpop.f32.mrf.mxu0
    %1379 = vdwg.mxu0
    %v1380 = vadd.f32 %v962, %v1300
    %v1381 = vadd.f32 %v1039, %v1377
    %v1382 = vlaneseq
    %v1383 = vshrl.u32 %v1382, 7
    %v1384 = vsub.s32 3, %v1383
    %v1385 = vrot.slane %v76, %v1384
    %v1386 = vmul.f32 %v347, %v1385
    %v1387 = vmul.f32 %v352, %v1385
    %v1389 = vsel %vm273, %v1386, 0
    %1391 = vmatprep.subr.mxu0 0.0
    %1392 = vmatpush1.xpose.msra.mxu0 0.0
    %1393 = vmatprep.subr.mxu0 0.0
    %1394 = vmatpush1.xpose.msra.mxu0 0.0
    %1395 = vmatprep.subr.mxu0 0.0
    %1396 = vmatpush1.xpose.msra.mxu0 0.0
    %1397 = vmatprep.subr.mxu0 0.0
    %1398 = vmatpush1.xpose.msra.mxu0 0.0
    %1399 = vmatprep.subr.mxu0 0.0
    %1400 = vmatpush1.xpose.msra.mxu0 0.0
    %1401 = vmatprep.subr.mxu0 0.0
    %1402 = vmatpush1.xpose.msra.mxu0 0.0
    %1403 = vmatprep.subr.mxu0 0.0
    %1404 = vmatpush1.xpose.msra.mxu0 0.0
    %1405 = vmatprep.subr.mxu0 0.0
    %1406 = vmatpush1.xpose.msra.mxu0 0.0
    %1407 = vmatprep.subr.mxu0 0.0
    %1408 = vmatpush1.xpose.msra.mxu0 0.0
    %1409 = vmatprep.subr.mxu0 0.0
    %1410 = vmatpush1.xpose.msra.mxu0 0.0
    %1411 = vmatprep.subr.mxu0 0.0
    %1412 = vmatpush1.xpose.msra.mxu0 0.0
    %1413 = vmatprep.subr.mxu0 0.0
    %1414 = vmatpush1.xpose.msra.mxu0 0.0
    %1415 = vmatprep.subr.mxu0 0.0
    %1416 = vmatpush1.xpose.msra.mxu0 0.0
    %1417 = vmatprep.subr.mxu0 0.0
    %1418 = vmatpush1.xpose.msra.mxu0 0.0
    %1419 = vmatprep.subr.mxu0 0.0
    %1420 = vmatpush1.xpose.msra.mxu0 0.0
    %1421 = vmatprep.subr.mxu0 0.0
    %1422 = vmatpush1.xpose.msra.mxu0 %v367
    %1423 = vmatprep.subr.mxu0 0.0
    %1424 = vmatpush2.xpose.msra.mxu0 0.0
    %1425 = vmatprep.subr.mxu0 0.0
    %1426 = vmatpush2.xpose.msra.mxu0 0.0
    %1427 = vmatprep.subr.mxu0 0.0
    %1428 = vmatpush2.xpose.msra.mxu0 0.0
    %1429 = vmatprep.subr.mxu0 0.0
    %1430 = vmatpush2.xpose.msra.mxu0 0.0
    %1431 = vmatprep.subr.mxu0 0.0
    %1432 = vmatpush2.xpose.msra.mxu0 0.0
    %1433 = vmatprep.subr.mxu0 0.0
    %1434 = vmatpush2.xpose.msra.mxu0 0.0
    %1435 = vmatprep.subr.mxu0 0.0
    %1436 = vmatpush2.xpose.msra.mxu0 0.0
    %1437 = vmatprep.subr.mxu0 0.0
    %1438 = vmatpush2.xpose.msra.mxu0 0.0
    %1439 = vmatprep.subr.mxu0 0.0
    %1440 = vmatpush2.xpose.msra.mxu0 0.0
    %1441 = vmatprep.subr.mxu0 0.0
    %1442 = vmatpush2.xpose.msra.mxu0 0.0
    %1443 = vmatprep.subr.mxu0 0.0
    %1444 = vmatpush2.xpose.msra.mxu0 0.0
    %1445 = vmatprep.subr.mxu0 0.0
    %1446 = vmatpush2.xpose.msra.mxu0 0.0
    %1447 = vmatprep.subr.mxu0 0.0
    %1448 = vmatpush2.xpose.msra.mxu0 0.0
    %1449 = vmatprep.subr.mxu0 0.0
    %1450 = vmatpush2.xpose.msra.mxu0 0.0
    %1451 = vmatprep.subr.mxu0 0.0
    %1452 = vmatpush2.xpose.msra.mxu0 0.0
    %1453 = vmatprep.subr.mxu0 0.0
    %1454 = vmatpush2.xpose.msra.mxu0 0.0
    %1455 = vmatprep.mubr.f32.mxu0 0.0
    %1456 = vmatmul.mubr.f32.gmra.mxu0 %v1389
    %v1457 = vpop.f32.mrf.mxu0
    %v1458 = vadd.f32 0.0, %v1457
    %v1459 = vpop.f32.mrf.mxu0
    %1460 = vdwg.mxu0
    %v1462 = vsel %vm273, %v1387, 0
    %1464 = vmatprep.subr.mxu0 0.0
    %1465 = vmatpush1.xpose.msra.mxu0 0.0
    %1466 = vmatprep.subr.mxu0 0.0
    %1467 = vmatpush1.xpose.msra.mxu0 0.0
    %1468 = vmatprep.subr.mxu0 0.0
    %1469 = vmatpush1.xpose.msra.mxu0 0.0
    %1470 = vmatprep.subr.mxu0 0.0
    %1471 = vmatpush1.xpose.msra.mxu0 0.0
    %1472 = vmatprep.subr.mxu0 0.0
    %1473 = vmatpush1.xpose.msra.mxu0 0.0
    %1474 = vmatprep.subr.mxu0 0.0
    %1475 = vmatpush1.xpose.msra.mxu0 0.0
    %1476 = vmatprep.subr.mxu0 0.0
    %1477 = vmatpush1.xpose.msra.mxu0 0.0
    %1478 = vmatprep.subr.mxu0 0.0
    %1479 = vmatpush1.xpose.msra.mxu0 0.0
    %1480 = vmatprep.subr.mxu0 0.0
    %1481 = vmatpush1.xpose.msra.mxu0 0.0
    %1482 = vmatprep.subr.mxu0 0.0
    %1483 = vmatpush1.xpose.msra.mxu0 0.0
    %1484 = vmatprep.subr.mxu0 0.0
    %1485 = vmatpush1.xpose.msra.mxu0 0.0
    %1486 = vmatprep.subr.mxu0 0.0
    %1487 = vmatpush1.xpose.msra.mxu0 0.0
    %1488 = vmatprep.subr.mxu0 0.0
    %1489 = vmatpush1.xpose.msra.mxu0 0.0
    %1490 = vmatprep.subr.mxu0 0.0
    %1491 = vmatpush1.xpose.msra.mxu0 0.0
    %1492 = vmatprep.subr.mxu0 0.0
    %1493 = vmatpush1.xpose.msra.mxu0 0.0
    %1494 = vmatprep.subr.mxu0 0.0
    %1495 = vmatpush1.xpose.msra.mxu0 %v445
    %1496 = vmatprep.subr.mxu0 0.0
    %1497 = vmatpush2.xpose.msra.mxu0 0.0
    %1498 = vmatprep.subr.mxu0 0.0
    %1499 = vmatpush2.xpose.msra.mxu0 0.0
    %1500 = vmatprep.subr.mxu0 0.0
    %1501 = vmatpush2.xpose.msra.mxu0 0.0
    %1502 = vmatprep.subr.mxu0 0.0
    %1503 = vmatpush2.xpose.msra.mxu0 0.0
    %1504 = vmatprep.subr.mxu0 0.0
    %1505 = vmatpush2.xpose.msra.mxu0 0.0
    %1506 = vmatprep.subr.mxu0 0.0
    %1507 = vmatpush2.xpose.msra.mxu0 0.0
    %1508 = vmatprep.subr.mxu0 0.0
    %1509 = vmatpush2.xpose.msra.mxu0 0.0
    %1510 = vmatprep.subr.mxu0 0.0
    %1511 = vmatpush2.xpose.msra.mxu0 0.0
    %1512 = vmatprep.subr.mxu0 0.0
    %1513 = vmatpush2.xpose.msra.mxu0 0.0
    %1514 = vmatprep.subr.mxu0 0.0
    %1515 = vmatpush2.xpose.msra.mxu0 0.0
    %1516 = vmatprep.subr.mxu0 0.0
    %1517 = vmatpush2.xpose.msra.mxu0 0.0
    %1518 = vmatprep.subr.mxu0 0.0
    %1519 = vmatpush2.xpose.msra.mxu0 0.0
    %1520 = vmatprep.subr.mxu0 0.0
    %1521 = vmatpush2.xpose.msra.mxu0 0.0
    %1522 = vmatprep.subr.mxu0 0.0
    %1523 = vmatpush2.xpose.msra.mxu0 0.0
    %1524 = vmatprep.subr.mxu0 0.0
    %1525 = vmatpush2.xpose.msra.mxu0 0.0
    %1526 = vmatprep.subr.mxu0 0.0
    %1527 = vmatpush2.xpose.msra.mxu0 0.0
    %1528 = vmatprep.mubr.f32.mxu0 0.0
    %1529 = vmatmul.mubr.f32.gmra.mxu0 %v1462
    %v1530 = vpop.f32.mrf.mxu0
    %v1531 = vadd.f32 0.0, %v1530
    %v1532 = vpop.f32.mrf.mxu0
    %1533 = vdwg.mxu0
    %v1534 = vmul.f32 %v1458, 0.5
    %v1535 = vmul.f32 %v1531, 0.5
    %v1536 = vadd.f32 %v1534, %v75
    %v1537 = vadd.f32 %v1535, %v75
    %v1538 = vsel %vm521, %v1536, -inf
    %1539 = vmax.xlane.f32.xlu0 %v1538
    %v1540 = vpop.xlane.xlu0 %1539
    %v1541 = vsel %vm521, %v1537, -inf
    %1542 = vmax.xlane.f32.xlu0 %v1541
    %v1543 = vpop.xlane.xlu0 %1542
    %v1544 = vsub.f32 %v1536, %v1540
    %v1545 = vsub.f32 %v1537, %v1543
    %v1546 = vmul.f32 %v1544, 1.442695
    %v1547 = vpow.pop %v1546
    %v1548 = vmul.f32 %v1545, 1.442695
    %v1549 = vpow.pop %v1548
    %v1550 = vsel %vm521, %v1547, 0.0
    %1551 = vadd.xlane.f32.xlu0 %v1550
    %v1552 = vpop.xlane.xlu0 %1551
    %v1553 = vsel %vm521, %v1549, 0.0
    %1554 = vadd.xlane.f32.xlu0 %v1553
    %v1555 = vpop.xlane.xlu0 %1554
    %v1556 = vrcp.pop %v1552
    %v1557 = vrcp.pop %v1555
    %v1558 = vmul.f32 %v1547, %v1556
    %v1559 = vmul.f32 %v1549, %v1557
    %1561 = vrot.lane.b32.xlu0 %v1385, 64
    %v1562 = vpop.permute.xlu0 %1561
    %v1564 = vmul.f32 %v347, %v1562
    %v1565 = vmul.f32 %v352, %v1562
    %1567 = vrot.lane.b32.xlu0 %v1564, 64
    %v1568 = vpop.permute.xlu0 %1567
    %v1571 = vsel %vm521, %v1558, 0
    %1573 = vmatprep.subr.mxu0 0.0
    %1574 = vmatpush1.msra.mxu0 0.0
    %1575 = vmatprep.subr.mxu0 0.0
    %1576 = vmatpush1.msra.mxu0 0.0
    %1577 = vmatprep.subr.mxu0 0.0
    %1578 = vmatpush1.msra.mxu0 0.0
    %1579 = vmatprep.subr.mxu0 0.0
    %1580 = vmatpush1.msra.mxu0 0.0
    %1581 = vmatprep.subr.mxu0 0.0
    %1582 = vmatpush1.msra.mxu0 0.0
    %1583 = vmatprep.subr.mxu0 0.0
    %1584 = vmatpush1.msra.mxu0 0.0
    %1585 = vmatprep.subr.mxu0 0.0
    %1586 = vmatpush1.msra.mxu0 0.0
    %1587 = vmatprep.subr.mxu0 0.0
    %1588 = vmatpush1.msra.mxu0 0.0
    %1589 = vmatprep.subr.mxu0 0.0
    %1590 = vmatpush1.msra.mxu0 0.0
    %1591 = vmatprep.subr.mxu0 0.0
    %1592 = vmatpush1.msra.mxu0 0.0
    %1593 = vmatprep.subr.mxu0 0.0
    %1594 = vmatpush1.msra.mxu0 0.0
    %1595 = vmatprep.subr.mxu0 0.0
    %1596 = vmatpush1.msra.mxu0 0.0
    %1597 = vmatprep.subr.mxu0 0.0
    %1598 = vmatpush1.msra.mxu0 0.0
    %1599 = vmatprep.subr.mxu0 0.0
    %1600 = vmatpush1.msra.mxu0 0.0
    %1601 = vmatprep.subr.mxu0 0.0
    %1602 = vmatpush1.msra.mxu0 0.0
    %1603 = vmatprep.subr.mxu0 0.0
    %1604 = vmatpush1.msra.mxu0 %v1568
    %1605 = vmatprep.subr.mxu0 0.0
    %1606 = vmatpush2.msra.mxu0 0.0
    %1607 = vmatprep.subr.mxu0 0.0
    %1608 = vmatpush2.msra.mxu0 0.0
    %1609 = vmatprep.subr.mxu0 0.0
    %1610 = vmatpush2.msra.mxu0 0.0
    %1611 = vmatprep.subr.mxu0 0.0
    %1612 = vmatpush2.msra.mxu0 0.0
    %1613 = vmatprep.subr.mxu0 0.0
    %1614 = vmatpush2.msra.mxu0 0.0
    %1615 = vmatprep.subr.mxu0 0.0
    %1616 = vmatpush2.msra.mxu0 0.0
    %1617 = vmatprep.subr.mxu0 0.0
    %1618 = vmatpush2.msra.mxu0 0.0
    %1619 = vmatprep.subr.mxu0 0.0
    %1620 = vmatpush2.msra.mxu0 0.0
    %1621 = vmatprep.subr.mxu0 0.0
    %1622 = vmatpush2.msra.mxu0 0.0
    %1623 = vmatprep.subr.mxu0 0.0
    %1624 = vmatpush2.msra.mxu0 0.0
    %1625 = vmatprep.subr.mxu0 0.0
    %1626 = vmatpush2.msra.mxu0 0.0
    %1627 = vmatprep.subr.mxu0 0.0
    %1628 = vmatpush2.msra.mxu0 0.0
    %1629 = vmatprep.subr.mxu0 0.0
    %1630 = vmatpush2.msra.mxu0 0.0
    %1631 = vmatprep.subr.mxu0 0.0
    %1632 = vmatpush2.msra.mxu0 0.0
    %1633 = vmatprep.subr.mxu0 0.0
    %1634 = vmatpush2.msra.mxu0 0.0
    %1635 = vmatprep.subr.mxu0 0.0
    %1636 = vmatpush2.msra.mxu0 0.0
    %1637 = vmatprep.mubr.f32.mxu0 0.0
    %1638 = vmatmul.mubr.f32.gmra.mxu0 %v1571
    %v1639 = vpop.f32.mrf.mxu0
    %v1640 = vadd.f32 0.0, %v1639
    %v1641 = vpop.f32.mrf.mxu0
    %1642 = vdwg.mxu0
    %1644 = vrot.lane.b32.xlu0 %v1565, 64
    %v1645 = vpop.permute.xlu0 %1644
    %v1648 = vsel %vm521, %v1559, 0
    %1650 = vmatprep.subr.mxu0 0.0
    %1651 = vmatpush1.msra.mxu0 0.0
    %1652 = vmatprep.subr.mxu0 0.0
    %1653 = vmatpush1.msra.mxu0 0.0
    %1654 = vmatprep.subr.mxu0 0.0
    %1655 = vmatpush1.msra.mxu0 0.0
    %1656 = vmatprep.subr.mxu0 0.0
    %1657 = vmatpush1.msra.mxu0 0.0
    %1658 = vmatprep.subr.mxu0 0.0
    %1659 = vmatpush1.msra.mxu0 0.0
    %1660 = vmatprep.subr.mxu0 0.0
    %1661 = vmatpush1.msra.mxu0 0.0
    %1662 = vmatprep.subr.mxu0 0.0
    %1663 = vmatpush1.msra.mxu0 0.0
    %1664 = vmatprep.subr.mxu0 0.0
    %1665 = vmatpush1.msra.mxu0 0.0
    %1666 = vmatprep.subr.mxu0 0.0
    %1667 = vmatpush1.msra.mxu0 0.0
    %1668 = vmatprep.subr.mxu0 0.0
    %1669 = vmatpush1.msra.mxu0 0.0
    %1670 = vmatprep.subr.mxu0 0.0
    %1671 = vmatpush1.msra.mxu0 0.0
    %1672 = vmatprep.subr.mxu0 0.0
    %1673 = vmatpush1.msra.mxu0 0.0
    %1674 = vmatprep.subr.mxu0 0.0
    %1675 = vmatpush1.msra.mxu0 0.0
    %1676 = vmatprep.subr.mxu0 0.0
    %1677 = vmatpush1.msra.mxu0 0.0
    %1678 = vmatprep.subr.mxu0 0.0
    %1679 = vmatpush1.msra.mxu0 0.0
    %1680 = vmatprep.subr.mxu0 0.0
    %1681 = vmatpush1.msra.mxu0 %v1645
    %1682 = vmatprep.subr.mxu0 0.0
    %1683 = vmatpush2.msra.mxu0 0.0
    %1684 = vmatprep.subr.mxu0 0.0
    %1685 = vmatpush2.msra.mxu0 0.0
    %1686 = vmatprep.subr.mxu0 0.0
    %1687 = vmatpush2.msra.mxu0 0.0
    %1688 = vmatprep.subr.mxu0 0.0
    %1689 = vmatpush2.msra.mxu0 0.0
    %1690 = vmatprep.subr.mxu0 0.0
    %1691 = vmatpush2.msra.mxu0 0.0
    %1692 = vmatprep.subr.mxu0 0.0
    %1693 = vmatpush2.msra.mxu0 0.0
    %1694 = vmatprep.subr.mxu0 0.0
    %1695 = vmatpush2.msra.mxu0 0.0
    %1696 = vmatprep.subr.mxu0 0.0
    %1697 = vmatpush2.msra.mxu0 0.0
    %1698 = vmatprep.subr.mxu0 0.0
    %1699 = vmatpush2.msra.mxu0 0.0
    %1700 = vmatprep.subr.mxu0 0.0
    %1701 = vmatpush2.msra.mxu0 0.0
    %1702 = vmatprep.subr.mxu0 0.0
    %1703 = vmatpush2.msra.mxu0 0.0
    %1704 = vmatprep.subr.mxu0 0.0
    %1705 = vmatpush2.msra.mxu0 0.0
    %1706 = vmatprep.subr.mxu0 0.0
    %1707 = vmatpush2.msra.mxu0 0.0
    %1708 = vmatprep.subr.mxu0 0.0
    %1709 = vmatpush2.msra.mxu0 0.0
    %1710 = vmatprep.subr.mxu0 0.0
    %1711 = vmatpush2.msra.mxu0 0.0
    %1712 = vmatprep.subr.mxu0 0.0
    %1713 = vmatpush2.msra.mxu0 0.0
    %1714 = vmatprep.mubr.f32.mxu0 0.0
    %1715 = vmatmul.mubr.f32.gmra.mxu0 %v1648
    %v1716 = vpop.f32.mrf.mxu0
    %v1717 = vadd.f32 0.0, %v1716
    %v1718 = vpop.f32.mrf.mxu0
    %1719 = vdwg.mxu0
    %v1720 = vadd.f32 %v1380, %v1640
    %v1721 = vadd.f32 %v1381, %v1717
    %v1722 = vlaneseq
    %v1723 = vshrl.u32 %v1722, 7
    %v1724 = vsub.s32 4, %v1723
    %v1725 = vrot.slane %v76, %v1724
    %v1726 = vmul.f32 %v347, %v1725
    %v1727 = vmul.f32 %v352, %v1725
    %v1729 = vsel %vm273, %v1726, 0
    %1731 = vmatprep.subr.mxu0 0.0
    %1732 = vmatpush1.xpose.msra.mxu0 0.0
    %1733 = vmatprep.subr.mxu0 0.0
    %1734 = vmatpush1.xpose.msra.mxu0 0.0
    %1735 = vmatprep.subr.mxu0 0.0
    %1736 = vmatpush1.xpose.msra.mxu0 0.0
    %1737 = vmatprep.subr.mxu0 0.0
    %1738 = vmatpush1.xpose.msra.mxu0 0.0
    %1739 = vmatprep.subr.mxu0 0.0
    %1740 = vmatpush1.xpose.msra.mxu0 0.0
    %1741 = vmatprep.subr.mxu0 0.0
    %1742 = vmatpush1.xpose.msra.mxu0 0.0
    %1743 = vmatprep.subr.mxu0 0.0
    %1744 = vmatpush1.xpose.msra.mxu0 0.0
    %1745 = vmatprep.subr.mxu0 0.0
    %1746 = vmatpush1.xpose.msra.mxu0 0.0
    %1747 = vmatprep.subr.mxu0 0.0
    %1748 = vmatpush1.xpose.msra.mxu0 0.0
    %1749 = vmatprep.subr.mxu0 0.0
    %1750 = vmatpush1.xpose.msra.mxu0 0.0
    %1751 = vmatprep.subr.mxu0 0.0
    %1752 = vmatpush1.xpose.msra.mxu0 0.0
    %1753 = vmatprep.subr.mxu0 0.0
    %1754 = vmatpush1.xpose.msra.mxu0 0.0
    %1755 = vmatprep.subr.mxu0 0.0
    %1756 = vmatpush1.xpose.msra.mxu0 0.0
    %1757 = vmatprep.subr.mxu0 0.0
    %1758 = vmatpush1.xpose.msra.mxu0 0.0
    %1759 = vmatprep.subr.mxu0 0.0
    %1760 = vmatpush1.xpose.msra.mxu0 0.0
    %1761 = vmatprep.subr.mxu0 0.0
    %1762 = vmatpush1.xpose.msra.mxu0 %v367
    %1763 = vmatprep.subr.mxu0 0.0
    %1764 = vmatpush2.xpose.msra.mxu0 0.0
    %1765 = vmatprep.subr.mxu0 0.0
    %1766 = vmatpush2.xpose.msra.mxu0 0.0
    %1767 = vmatprep.subr.mxu0 0.0
    %1768 = vmatpush2.xpose.msra.mxu0 0.0
    %1769 = vmatprep.subr.mxu0 0.0
    %1770 = vmatpush2.xpose.msra.mxu0 0.0
    %1771 = vmatprep.subr.mxu0 0.0
    %1772 = vmatpush2.xpose.msra.mxu0 0.0
    %1773 = vmatprep.subr.mxu0 0.0
    %1774 = vmatpush2.xpose.msra.mxu0 0.0
    %1775 = vmatprep.subr.mxu0 0.0
    %1776 = vmatpush2.xpose.msra.mxu0 0.0
    %1777 = vmatprep.subr.mxu0 0.0
    %1778 = vmatpush2.xpose.msra.mxu0 0.0
    %1779 = vmatprep.subr.mxu0 0.0
    %1780 = vmatpush2.xpose.msra.mxu0 0.0
    %1781 = vmatprep.subr.mxu0 0.0
    %1782 = vmatpush2.xpose.msra.mxu0 0.0
    %1783 = vmatprep.subr.mxu0 0.0
    %1784 = vmatpush2.xpose.msra.mxu0 0.0
    %1785 = vmatprep.subr.mxu0 0.0
    %1786 = vmatpush2.xpose.msra.mxu0 0.0
    %1787 = vmatprep.subr.mxu0 0.0
    %1788 = vmatpush2.xpose.msra.mxu0 0.0
    %1789 = vmatprep.subr.mxu0 0.0
    %1790 = vmatpush2.xpose.msra.mxu0 0.0
    %1791 = vmatprep.subr.mxu0 0.0
    %1792 = vmatpush2.xpose.msra.mxu0 0.0
    %1793 = vmatprep.subr.mxu0 0.0
    %1794 = vmatpush2.xpose.msra.mxu0 0.0
    %1795 = vmatprep.mubr.f32.mxu0 0.0
    %1796 = vmatmul.mubr.f32.gmra.mxu0 %v1729
    %v1797 = vpop.f32.mrf.mxu0
    %v1798 = vadd.f32 0.0, %v1797
    %v1799 = vpop.f32.mrf.mxu0
    %1800 = vdwg.mxu0
    %v1802 = vsel %vm273, %v1727, 0
    %1804 = vmatprep.subr.mxu0 0.0
    %1805 = vmatpush1.xpose.msra.mxu0 0.0
    %1806 = vmatprep.subr.mxu0 0.0
    %1807 = vmatpush1.xpose.msra.mxu0 0.0
    %1808 = vmatprep.subr.mxu0 0.0
    %1809 = vmatpush1.xpose.msra.mxu0 0.0
    %1810 = vmatprep.subr.mxu0 0.0
    %1811 = vmatpush1.xpose.msra.mxu0 0.0
    %1812 = vmatprep.subr.mxu0 0.0
    %1813 = vmatpush1.xpose.msra.mxu0 0.0
    %1814 = vmatprep.subr.mxu0 0.0
    %1815 = vmatpush1.xpose.msra.mxu0 0.0
    %1816 = vmatprep.subr.mxu0 0.0
    %1817 = vmatpush1.xpose.msra.mxu0 0.0
    %1818 = vmatprep.subr.mxu0 0.0
    %1819 = vmatpush1.xpose.msra.mxu0 0.0
    %1820 = vmatprep.subr.mxu0 0.0
    %1821 = vmatpush1.xpose.msra.mxu0 0.0
    %1822 = vmatprep.subr.mxu0 0.0
    %1823 = vmatpush1.xpose.msra.mxu0 0.0
    %1824 = vmatprep.subr.mxu0 0.0
    %1825 = vmatpush1.xpose.msra.mxu0 0.0
    %1826 = vmatprep.subr.mxu0 0.0
    %1827 = vmatpush1.xpose.msra.mxu0 0.0
    %1828 = vmatprep.subr.mxu0 0.0
    %1829 = vmatpush1.xpose.msra.mxu0 0.0
    %1830 = vmatprep.subr.mxu0 0.0
    %1831 = vmatpush1.xpose.msra.mxu0 0.0
    %1832 = vmatprep.subr.mxu0 0.0
    %1833 = vmatpush1.xpose.msra.mxu0 0.0
    %1834 = vmatprep.subr.mxu0 0.0
    %1835 = vmatpush1.xpose.msra.mxu0 %v445
    %1836 = vmatprep.subr.mxu0 0.0
    %1837 = vmatpush2.xpose.msra.mxu0 0.0
    %1838 = vmatprep.subr.mxu0 0.0
    %1839 = vmatpush2.xpose.msra.mxu0 0.0
    %1840 = vmatprep.subr.mxu0 0.0
    %1841 = vmatpush2.xpose.msra.mxu0 0.0
    %1842 = vmatprep.subr.mxu0 0.0
    %1843 = vmatpush2.xpose.msra.mxu0 0.0
    %1844 = vmatprep.subr.mxu0 0.0
    %1845 = vmatpush2.xpose.msra.mxu0 0.0
    %1846 = vmatprep.subr.mxu0 0.0
    %1847 = vmatpush2.xpose.msra.mxu0 0.0
    %1848 = vmatprep.subr.mxu0 0.0
    %1849 = vmatpush2.xpose.msra.mxu0 0.0
    %1850 = vmatprep.subr.mxu0 0.0
    %1851 = vmatpush2.xpose.msra.mxu0 0.0
    %1852 = vmatprep.subr.mxu0 0.0
    %1853 = vmatpush2.xpose.msra.mxu0 0.0
    %1854 = vmatprep.subr.mxu0 0.0
    %1855 = vmatpush2.xpose.msra.mxu0 0.0
    %1856 = vmatprep.subr.mxu0 0.0
    %1857 = vmatpush2.xpose.msra.mxu0 0.0
    %1858 = vmatprep.subr.mxu0 0.0
    %1859 = vmatpush2.xpose.msra.mxu0 0.0
    %1860 = vmatprep.subr.mxu0 0.0
    %1861 = vmatpush2.xpose.msra.mxu0 0.0
    %1862 = vmatprep.subr.mxu0 0.0
    %1863 = vmatpush2.xpose.msra.mxu0 0.0
    %1864 = vmatprep.subr.mxu0 0.0
    %1865 = vmatpush2.xpose.msra.mxu0 0.0
    %1866 = vmatprep.subr.mxu0 0.0
    %1867 = vmatpush2.xpose.msra.mxu0 0.0
    %1868 = vmatprep.mubr.f32.mxu0 0.0
    %1869 = vmatmul.mubr.f32.gmra.mxu0 %v1802
    %v1870 = vpop.f32.mrf.mxu0
    %v1871 = vadd.f32 0.0, %v1870
    %v1872 = vpop.f32.mrf.mxu0
    %1873 = vdwg.mxu0
    %v1874 = vmul.f32 %v1798, 0.5
    %v1875 = vmul.f32 %v1871, 0.5
    %v1876 = vadd.f32 %v1874, %v75
    %v1877 = vadd.f32 %v1875, %v75
    %v1878 = vsel %vm521, %v1876, -inf
    %1879 = vmax.xlane.f32.xlu0 %v1878
    %v1880 = vpop.xlane.xlu0 %1879
    %v1881 = vsel %vm521, %v1877, -inf
    %1882 = vmax.xlane.f32.xlu0 %v1881
    %v1883 = vpop.xlane.xlu0 %1882
    %v1884 = vsub.f32 %v1876, %v1880
    %v1885 = vsub.f32 %v1877, %v1883
    %v1886 = vmul.f32 %v1884, 1.442695
    %v1887 = vpow.pop %v1886
    %v1888 = vmul.f32 %v1885, 1.442695
    %v1889 = vpow.pop %v1888
    %v1890 = vsel %vm521, %v1887, 0.0
    %1891 = vadd.xlane.f32.xlu0 %v1890
    %v1892 = vpop.xlane.xlu0 %1891
    %v1893 = vsel %vm521, %v1889, 0.0
    %1894 = vadd.xlane.f32.xlu0 %v1893
    %v1895 = vpop.xlane.xlu0 %1894
    %v1896 = vrcp.pop %v1892
    %v1897 = vrcp.pop %v1895
    %v1898 = vmul.f32 %v1887, %v1896
    %v1899 = vmul.f32 %v1889, %v1897
    %1901 = vrot.lane.b32.xlu0 %v1725, 64
    %v1902 = vpop.permute.xlu0 %1901
    %v1904 = vmul.f32 %v347, %v1902
    %v1905 = vmul.f32 %v352, %v1902
    %1907 = vrot.lane.b32.xlu0 %v1904, 64
    %v1908 = vpop.permute.xlu0 %1907
    %v1911 = vsel %vm521, %v1898, 0
    %1913 = vmatprep.subr.mxu0 0.0
    %1914 = vmatpush1.msra.mxu0 0.0
    %1915 = vmatprep.subr.mxu0 0.0
    %1916 = vmatpush1.msra.mxu0 0.0
    %1917 = vmatprep.subr.mxu0 0.0
    %1918 = vmatpush1.msra.mxu0 0.0
    %1919 = vmatprep.subr.mxu0 0.0
    %1920 = vmatpush1.msra.mxu0 0.0
    %1921 = vmatprep.subr.mxu0 0.0
    %1922 = vmatpush1.msra.mxu0 0.0
    %1923 = vmatprep.subr.mxu0 0.0
    %1924 = vmatpush1.msra.mxu0 0.0
    %1925 = vmatprep.subr.mxu0 0.0
    %1926 = vmatpush1.msra.mxu0 0.0
    %1927 = vmatprep.subr.mxu0 0.0
    %1928 = vmatpush1.msra.mxu0 0.0
    %1929 = vmatprep.subr.mxu0 0.0
    %1930 = vmatpush1.msra.mxu0 0.0
    %1931 = vmatprep.subr.mxu0 0.0
    %1932 = vmatpush1.msra.mxu0 0.0
    %1933 = vmatprep.subr.mxu0 0.0
    %1934 = vmatpush1.msra.mxu0 0.0
    %1935 = vmatprep.subr.mxu0 0.0
    %1936 = vmatpush1.msra.mxu0 0.0
    %1937 = vmatprep.subr.mxu0 0.0
    %1938 = vmatpush1.msra.mxu0 0.0
    %1939 = vmatprep.subr.mxu0 0.0
    %1940 = vmatpush1.msra.mxu0 0.0
    %1941 = vmatprep.subr.mxu0 0.0
    %1942 = vmatpush1.msra.mxu0 0.0
    %1943 = vmatprep.subr.mxu0 0.0
    %1944 = vmatpush1.msra.mxu0 %v1908
    %1945 = vmatprep.subr.mxu0 0.0
    %1946 = vmatpush2.msra.mxu0 0.0
    %1947 = vmatprep.subr.mxu0 0.0
    %1948 = vmatpush2.msra.mxu0 0.0
    %1949 = vmatprep.subr.mxu0 0.0
    %1950 = vmatpush2.msra.mxu0 0.0
    %1951 = vmatprep.subr.mxu0 0.0
    %1952 = vmatpush2.msra.mxu0 0.0
    %1953 = vmatprep.subr.mxu0 0.0
    %1954 = vmatpush2.msra.mxu0 0.0
    %1955 = vmatprep.subr.mxu0 0.0
    %1956 = vmatpush2.msra.mxu0 0.0
    %1957 = vmatprep.subr.mxu0 0.0
    %1958 = vmatpush2.msra.mxu0 0.0
    %1959 = vmatprep.subr.mxu0 0.0
    %1960 = vmatpush2.msra.mxu0 0.0
    %1961 = vmatprep.subr.mxu0 0.0
    %1962 = vmatpush2.msra.mxu0 0.0
    %1963 = vmatprep.subr.mxu0 0.0
    %1964 = vmatpush2.msra.mxu0 0.0
    %1965 = vmatprep.subr.mxu0 0.0
    %1966 = vmatpush2.msra.mxu0 0.0
    %1967 = vmatprep.subr.mxu0 0.0
    %1968 = vmatpush2.msra.mxu0 0.0
    %1969 = vmatprep.subr.mxu0 0.0
    %1970 = vmatpush2.msra.mxu0 0.0
    %1971 = vmatprep.subr.mxu0 0.0
    %1972 = vmatpush2.msra.mxu0 0.0
    %1973 = vmatprep.subr.mxu0 0.0
    %1974 = vmatpush2.msra.mxu0 0.0
    %1975 = vmatprep.subr.mxu0 0.0
    %1976 = vmatpush2.msra.mxu0 0.0
    %1977 = vmatprep.mubr.f32.mxu0 0.0
    %1978 = vmatmul.mubr.f32.gmra.mxu0 %v1911
    %v1979 = vpop.f32.mrf.mxu0
    %v1980 = vadd.f32 0.0, %v1979
    %v1981 = vpop.f32.mrf.mxu0
    %1982 = vdwg.mxu0
    %1984 = vrot.lane.b32.xlu0 %v1905, 64
    %v1985 = vpop.permute.xlu0 %1984
    %v1988 = vsel %vm521, %v1899, 0
    %1990 = vmatprep.subr.mxu0 0.0
    %1991 = vmatpush1.msra.mxu0 0.0
    %1992 = vmatprep.subr.mxu0 0.0
    %1993 = vmatpush1.msra.mxu0 0.0
    %1994 = vmatprep.subr.mxu0 0.0
    %1995 = vmatpush1.msra.mxu0 0.0
    %1996 = vmatprep.subr.mxu0 0.0
    %1997 = vmatpush1.msra.mxu0 0.0
    %1998 = vmatprep.subr.mxu0 0.0
    %1999 = vmatpush1.msra.mxu0 0.0
    %2000 = vmatprep.subr.mxu0 0.0
    %2001 = vmatpush1.msra.mxu0 0.0
    %2002 = vmatprep.subr.mxu0 0.0
    %2003 = vmatpush1.msra.mxu0 0.0
    %2004 = vmatprep.subr.mxu0 0.0
    %2005 = vmatpush1.msra.mxu0 0.0
    %2006 = vmatprep.subr.mxu0 0.0
    %2007 = vmatpush1.msra.mxu0 0.0
    %2008 = vmatprep.subr.mxu0 0.0
    %2009 = vmatpush1.msra.mxu0 0.0
    %2010 = vmatprep.subr.mxu0 0.0
    %2011 = vmatpush1.msra.mxu0 0.0
    %2012 = vmatprep.subr.mxu0 0.0
    %2013 = vmatpush1.msra.mxu0 0.0
    %2014 = vmatprep.subr.mxu0 0.0
    %2015 = vmatpush1.msra.mxu0 0.0
    %2016 = vmatprep.subr.mxu0 0.0
    %2017 = vmatpush1.msra.mxu0 0.0
    %2018 = vmatprep.subr.mxu0 0.0
    %2019 = vmatpush1.msra.mxu0 0.0
    %2020 = vmatprep.subr.mxu0 0.0
    %2021 = vmatpush1.msra.mxu0 %v1985
    %2022 = vmatprep.subr.mxu0 0.0
    %2023 = vmatpush2.msra.mxu0 0.0
    %2024 = vmatprep.subr.mxu0 0.0
    %2025 = vmatpush2.msra.mxu0 0.0
    %2026 = vmatprep.subr.mxu0 0.0
    %2027 = vmatpush2.msra.mxu0 0.0
    %2028 = vmatprep.subr.mxu0 0.0
    %2029 = vmatpush2.msra.mxu0 0.0
    %2030 = vmatprep.subr.mxu0 0.0
    %2031 = vmatpush2.msra.mxu0 0.0
    %2032 = vmatprep.subr.mxu0 0.0
    %2033 = vmatpush2.msra.mxu0 0.0
    %2034 = vmatprep.subr.mxu0 0.0
    %2035 = vmatpush2.msra.mxu0 0.0
    %2036 = vmatprep.subr.mxu0 0.0
    %2037 = vmatpush2.msra.mxu0 0.0
    %2038 = vmatprep.subr.mxu0 0.0
    %2039 = vmatpush2.msra.mxu0 0.0
    %2040 = vmatprep.subr.mxu0 0.0
    %2041 = vmatpush2.msra.mxu0 0.0
    %2042 = vmatprep.subr.mxu0 0.0
    %2043 = vmatpush2.msra.mxu0 0.0
    %2044 = vmatprep.subr.mxu0 0.0
    %2045 = vmatpush2.msra.mxu0 0.0
    %2046 = vmatprep.subr.mxu0 0.0
    %2047 = vmatpush2.msra.mxu0 0.0
    %2048 = vmatprep.subr.mxu0 0.0
    %2049 = vmatpush2.msra.mxu0 0.0
    %2050 = vmatprep.subr.mxu0 0.0
    %2051 = vmatpush2.msra.mxu0 0.0
    %2052 = vmatprep.subr.mxu0 0.0
    %2053 = vmatpush2.msra.mxu0 0.0
    %2054 = vmatprep.mubr.f32.mxu0 0.0
    %2055 = vmatmul.mubr.f32.gmra.mxu0 %v1988
    %v2056 = vpop.f32.mrf.mxu0
    %v2057 = vadd.f32 0.0, %v2056
    %v2058 = vpop.f32.mrf.mxu0
    %2059 = vdwg.mxu0
    %v2060 = vadd.f32 %v1720, %v1980
    %v2061 = vadd.f32 %v1721, %v2057
    %v2062 = vlaneseq
    %v2063 = vshrl.u32 %v2062, 7
    %v2064 = vsub.s32 5, %v2063
    %v2065 = vrot.slane %v76, %v2064
    %v2066 = vmul.f32 %v347, %v2065
    %v2067 = vmul.f32 %v352, %v2065
    %v2069 = vsel %vm273, %v2066, 0
    %2071 = vmatprep.subr.mxu0 0.0
    %2072 = vmatpush1.xpose.msra.mxu0 0.0
    %2073 = vmatprep.subr.mxu0 0.0
    %2074 = vmatpush1.xpose.msra.mxu0 0.0
    %2075 = vmatprep.subr.mxu0 0.0
    %2076 = vmatpush1.xpose.msra.mxu0 0.0
    %2077 = vmatprep.subr.mxu0 0.0
    %2078 = vmatpush1.xpose.msra.mxu0 0.0
    %2079 = vmatprep.subr.mxu0 0.0
    %2080 = vmatpush1.xpose.msra.mxu0 0.0
    %2081 = vmatprep.subr.mxu0 0.0
    %2082 = vmatpush1.xpose.msra.mxu0 0.0
    %2083 = vmatprep.subr.mxu0 0.0
    %2084 = vmatpush1.xpose.msra.mxu0 0.0
    %2085 = vmatprep.subr.mxu0 0.0
    %2086 = vmatpush1.xpose.msra.mxu0 0.0
    %2087 = vmatprep.subr.mxu0 0.0
    %2088 = vmatpush1.xpose.msra.mxu0 0.0
    %2089 = vmatprep.subr.mxu0 0.0
    %2090 = vmatpush1.xpose.msra.mxu0 0.0
    %2091 = vmatprep.subr.mxu0 0.0
    %2092 = vmatpush1.xpose.msra.mxu0 0.0
    %2093 = vmatprep.subr.mxu0 0.0
    %2094 = vmatpush1.xpose.msra.mxu0 0.0
    %2095 = vmatprep.subr.mxu0 0.0
    %2096 = vmatpush1.xpose.msra.mxu0 0.0
    %2097 = vmatprep.subr.mxu0 0.0
    %2098 = vmatpush1.xpose.msra.mxu0 0.0
    %2099 = vmatprep.subr.mxu0 0.0
    %2100 = vmatpush1.xpose.msra.mxu0 0.0
    %2101 = vmatprep.subr.mxu0 0.0
    %2102 = vmatpush1.xpose.msra.mxu0 %v367
    %2103 = vmatprep.subr.mxu0 0.0
    %2104 = vmatpush2.xpose.msra.mxu0 0.0
    %2105 = vmatprep.subr.mxu0 0.0
    %2106 = vmatpush2.xpose.msra.mxu0 0.0
    %2107 = vmatprep.subr.mxu0 0.0
    %2108 = vmatpush2.xpose.msra.mxu0 0.0
    %2109 = vmatprep.subr.mxu0 0.0
    %2110 = vmatpush2.xpose.msra.mxu0 0.0
    %2111 = vmatprep.subr.mxu0 0.0
    %2112 = vmatpush2.xpose.msra.mxu0 0.0
    %2113 = vmatprep.subr.mxu0 0.0
    %2114 = vmatpush2.xpose.msra.mxu0 0.0
    %2115 = vmatprep.subr.mxu0 0.0
    %2116 = vmatpush2.xpose.msra.mxu0 0.0
    %2117 = vmatprep.subr.mxu0 0.0
    %2118 = vmatpush2.xpose.msra.mxu0 0.0
    %2119 = vmatprep.subr.mxu0 0.0
    %2120 = vmatpush2.xpose.msra.mxu0 0.0
    %2121 = vmatprep.subr.mxu0 0.0
    %2122 = vmatpush2.xpose.msra.mxu0 0.0
    %2123 = vmatprep.subr.mxu0 0.0
    %2124 = vmatpush2.xpose.msra.mxu0 0.0
    %2125 = vmatprep.subr.mxu0 0.0
    %2126 = vmatpush2.xpose.msra.mxu0 0.0
    %2127 = vmatprep.subr.mxu0 0.0
    %2128 = vmatpush2.xpose.msra.mxu0 0.0
    %2129 = vmatprep.subr.mxu0 0.0
    %2130 = vmatpush2.xpose.msra.mxu0 0.0
    %2131 = vmatprep.subr.mxu0 0.0
    %2132 = vmatpush2.xpose.msra.mxu0 0.0
    %2133 = vmatprep.subr.mxu0 0.0
    %2134 = vmatpush2.xpose.msra.mxu0 0.0
    %2135 = vmatprep.mubr.f32.mxu0 0.0
    %2136 = vmatmul.mubr.f32.gmra.mxu0 %v2069
    %v2137 = vpop.f32.mrf.mxu0
    %v2138 = vadd.f32 0.0, %v2137
    %v2139 = vpop.f32.mrf.mxu0
    %2140 = vdwg.mxu0
    %v2142 = vsel %vm273, %v2067, 0
    %2144 = vmatprep.subr.mxu0 0.0
    %2145 = vmatpush1.xpose.msra.mxu0 0.0
    %2146 = vmatprep.subr.mxu0 0.0
    %2147 = vmatpush1.xpose.msra.mxu0 0.0
    %2148 = vmatprep.subr.mxu0 0.0
    %2149 = vmatpush1.xpose.msra.mxu0 0.0
    %2150 = vmatprep.subr.mxu0 0.0
    %2151 = vmatpush1.xpose.msra.mxu0 0.0
    %2152 = vmatprep.subr.mxu0 0.0
    %2153 = vmatpush1.xpose.msra.mxu0 0.0
    %2154 = vmatprep.subr.mxu0 0.0
    %2155 = vmatpush1.xpose.msra.mxu0 0.0
    %2156 = vmatprep.subr.mxu0 0.0
    %2157 = vmatpush1.xpose.msra.mxu0 0.0
    %2158 = vmatprep.subr.mxu0 0.0
    %2159 = vmatpush1.xpose.msra.mxu0 0.0
    %2160 = vmatprep.subr.mxu0 0.0
    %2161 = vmatpush1.xpose.msra.mxu0 0.0
    %2162 = vmatprep.subr.mxu0 0.0
    %2163 = vmatpush1.xpose.msra.mxu0 0.0
    %2164 = vmatprep.subr.mxu0 0.0
    %2165 = vmatpush1.xpose.msra.mxu0 0.0
    %2166 = vmatprep.subr.mxu0 0.0
    %2167 = vmatpush1.xpose.msra.mxu0 0.0
    %2168 = vmatprep.subr.mxu0 0.0
    %2169 = vmatpush1.xpose.msra.mxu0 0.0
    %2170 = vmatprep.subr.mxu0 0.0
    %2171 = vmatpush1.xpose.msra.mxu0 0.0
    %2172 = vmatprep.subr.mxu0 0.0
    %2173 = vmatpush1.xpose.msra.mxu0 0.0
    %2174 = vmatprep.subr.mxu0 0.0
    %2175 = vmatpush1.xpose.msra.mxu0 %v445
    %2176 = vmatprep.subr.mxu0 0.0
    %2177 = vmatpush2.xpose.msra.mxu0 0.0
    %2178 = vmatprep.subr.mxu0 0.0
    %2179 = vmatpush2.xpose.msra.mxu0 0.0
    %2180 = vmatprep.subr.mxu0 0.0
    %2181 = vmatpush2.xpose.msra.mxu0 0.0
    %2182 = vmatprep.subr.mxu0 0.0
    %2183 = vmatpush2.xpose.msra.mxu0 0.0
    %2184 = vmatprep.subr.mxu0 0.0
    %2185 = vmatpush2.xpose.msra.mxu0 0.0
    %2186 = vmatprep.subr.mxu0 0.0
    %2187 = vmatpush2.xpose.msra.mxu0 0.0
    %2188 = vmatprep.subr.mxu0 0.0
    %2189 = vmatpush2.xpose.msra.mxu0 0.0
    %2190 = vmatprep.subr.mxu0 0.0
    %2191 = vmatpush2.xpose.msra.mxu0 0.0
    %2192 = vmatprep.subr.mxu0 0.0
    %2193 = vmatpush2.xpose.msra.mxu0 0.0
    %2194 = vmatprep.subr.mxu0 0.0
    %2195 = vmatpush2.xpose.msra.mxu0 0.0
    %2196 = vmatprep.subr.mxu0 0.0
    %2197 = vmatpush2.xpose.msra.mxu0 0.0
    %2198 = vmatprep.subr.mxu0 0.0
    %2199 = vmatpush2.xpose.msra.mxu0 0.0
    %2200 = vmatprep.subr.mxu0 0.0
    %2201 = vmatpush2.xpose.msra.mxu0 0.0
    %2202 = vmatprep.subr.mxu0 0.0
    %2203 = vmatpush2.xpose.msra.mxu0 0.0
    %2204 = vmatprep.subr.mxu0 0.0
    %2205 = vmatpush2.xpose.msra.mxu0 0.0
    %2206 = vmatprep.subr.mxu0 0.0
    %2207 = vmatpush2.xpose.msra.mxu0 0.0
    %2208 = vmatprep.mubr.f32.mxu0 0.0
    %2209 = vmatmul.mubr.f32.gmra.mxu0 %v2142
    %v2210 = vpop.f32.mrf.mxu0
    %v2211 = vadd.f32 0.0, %v2210
    %v2212 = vpop.f32.mrf.mxu0
    %2213 = vdwg.mxu0
    %v2214 = vmul.f32 %v2138, 0.5
    %v2215 = vmul.f32 %v2211, 0.5
    %v2216 = vadd.f32 %v2214, %v75
    %v2217 = vadd.f32 %v2215, %v75
    %v2218 = vsel %vm521, %v2216, -inf
    %2219 = vmax.xlane.f32.xlu0 %v2218
    %v2220 = vpop.xlane.xlu0 %2219
    %v2221 = vsel %vm521, %v2217, -inf
    %2222 = vmax.xlane.f32.xlu0 %v2221
    %v2223 = vpop.xlane.xlu0 %2222
    %v2224 = vsub.f32 %v2216, %v2220
    %v2225 = vsub.f32 %v2217, %v2223
    %v2226 = vmul.f32 %v2224, 1.442695
    %v2227 = vpow.pop %v2226
    %v2228 = vmul.f32 %v2225, 1.442695
    %v2229 = vpow.pop %v2228
    %v2230 = vsel %vm521, %v2227, 0.0
    %2231 = vadd.xlane.f32.xlu0 %v2230
    %v2232 = vpop.xlane.xlu0 %2231
    %v2233 = vsel %vm521, %v2229, 0.0
    %2234 = vadd.xlane.f32.xlu0 %v2233
    %v2235 = vpop.xlane.xlu0 %2234
    %v2236 = vrcp.pop %v2232
    %v2237 = vrcp.pop %v2235
    %v2238 = vmul.f32 %v2227, %v2236
    %v2239 = vmul.f32 %v2229, %v2237
    %2241 = vrot.lane.b32.xlu0 %v2065, 64
    %v2242 = vpop.permute.xlu0 %2241
    %v2244 = vmul.f32 %v347, %v2242
    %v2245 = vmul.f32 %v352, %v2242
    %2247 = vrot.lane.b32.xlu0 %v2244, 64
    %v2248 = vpop.permute.xlu0 %2247
    %v2251 = vsel %vm521, %v2238, 0
    %2253 = vmatprep.subr.mxu0 0.0
    %2254 = vmatpush1.msra.mxu0 0.0
    %2255 = vmatprep.subr.mxu0 0.0
    %2256 = vmatpush1.msra.mxu0 0.0
    %2257 = vmatprep.subr.mxu0 0.0
    %2258 = vmatpush1.msra.mxu0 0.0
    %2259 = vmatprep.subr.mxu0 0.0
    %2260 = vmatpush1.msra.mxu0 0.0
    %2261 = vmatprep.subr.mxu0 0.0
    %2262 = vmatpush1.msra.mxu0 0.0
    %2263 = vmatprep.subr.mxu0 0.0
    %2264 = vmatpush1.msra.mxu0 0.0
    %2265 = vmatprep.subr.mxu0 0.0
    %2266 = vmatpush1.msra.mxu0 0.0
    %2267 = vmatprep.subr.mxu0 0.0
    %2268 = vmatpush1.msra.mxu0 0.0
    %2269 = vmatprep.subr.mxu0 0.0
    %2270 = vmatpush1.msra.mxu0 0.0
    %2271 = vmatprep.subr.mxu0 0.0
    %2272 = vmatpush1.msra.mxu0 0.0
    %2273 = vmatprep.subr.mxu0 0.0
    %2274 = vmatpush1.msra.mxu0 0.0
    %2275 = vmatprep.subr.mxu0 0.0
    %2276 = vmatpush1.msra.mxu0 0.0
    %2277 = vmatprep.subr.mxu0 0.0
    %2278 = vmatpush1.msra.mxu0 0.0
    %2279 = vmatprep.subr.mxu0 0.0
    %2280 = vmatpush1.msra.mxu0 0.0
    %2281 = vmatprep.subr.mxu0 0.0
    %2282 = vmatpush1.msra.mxu0 0.0
    %2283 = vmatprep.subr.mxu0 0.0
    %2284 = vmatpush1.msra.mxu0 %v2248
    %2285 = vmatprep.subr.mxu0 0.0
    %2286 = vmatpush2.msra.mxu0 0.0
    %2287 = vmatprep.subr.mxu0 0.0
    %2288 = vmatpush2.msra.mxu0 0.0
    %2289 = vmatprep.subr.mxu0 0.0
    %2290 = vmatpush2.msra.mxu0 0.0
    %2291 = vmatprep.subr.mxu0 0.0
    %2292 = vmatpush2.msra.mxu0 0.0
    %2293 = vmatprep.subr.mxu0 0.0
    %2294 = vmatpush2.msra.mxu0 0.0
    %2295 = vmatprep.subr.mxu0 0.0
    %2296 = vmatpush2.msra.mxu0 0.0
    %2297 = vmatprep.subr.mxu0 0.0
    %2298 = vmatpush2.msra.mxu0 0.0
    %2299 = vmatprep.subr.mxu0 0.0
    %2300 = vmatpush2.msra.mxu0 0.0
    %2301 = vmatprep.subr.mxu0 0.0
    %2302 = vmatpush2.msra.mxu0 0.0
    %2303 = vmatprep.subr.mxu0 0.0
    %2304 = vmatpush2.msra.mxu0 0.0
    %2305 = vmatprep.subr.mxu0 0.0
    %2306 = vmatpush2.msra.mxu0 0.0
    %2307 = vmatprep.subr.mxu0 0.0
    %2308 = vmatpush2.msra.mxu0 0.0
    %2309 = vmatprep.subr.mxu0 0.0
    %2310 = vmatpush2.msra.mxu0 0.0
    %2311 = vmatprep.subr.mxu0 0.0
    %2312 = vmatpush2.msra.mxu0 0.0
    %2313 = vmatprep.subr.mxu0 0.0
    %2314 = vmatpush2.msra.mxu0 0.0
    %2315 = vmatprep.subr.mxu0 0.0
    %2316 = vmatpush2.msra.mxu0 0.0
    %2317 = vmatprep.mubr.f32.mxu0 0.0
    %2318 = vmatmul.mubr.f32.gmra.mxu0 %v2251
    %v2319 = vpop.f32.mrf.mxu0
    %v2320 = vadd.f32 0.0, %v2319
    %v2321 = vpop.f32.mrf.mxu0
    %2322 = vdwg.mxu0
    %2324 = vrot.lane.b32.xlu0 %v2245, 64
    %v2325 = vpop.permute.xlu0 %2324
    %v2328 = vsel %vm521, %v2239, 0
    %2330 = vmatprep.subr.mxu0 0.0
    %2331 = vmatpush1.msra.mxu0 0.0
    %2332 = vmatprep.subr.mxu0 0.0
    %2333 = vmatpush1.msra.mxu0 0.0
    %2334 = vmatprep.subr.mxu0 0.0
    %2335 = vmatpush1.msra.mxu0 0.0
    %2336 = vmatprep.subr.mxu0 0.0
    %2337 = vmatpush1.msra.mxu0 0.0
    %2338 = vmatprep.subr.mxu0 0.0
    %2339 = vmatpush1.msra.mxu0 0.0
    %2340 = vmatprep.subr.mxu0 0.0
    %2341 = vmatpush1.msra.mxu0 0.0
    %2342 = vmatprep.subr.mxu0 0.0
    %2343 = vmatpush1.msra.mxu0 0.0
    %2344 = vmatprep.subr.mxu0 0.0
    %2345 = vmatpush1.msra.mxu0 0.0
    %2346 = vmatprep.subr.mxu0 0.0
    %2347 = vmatpush1.msra.mxu0 0.0
    %2348 = vmatprep.subr.mxu0 0.0
    %2349 = vmatpush1.msra.mxu0 0.0
    %2350 = vmatprep.subr.mxu0 0.0
    %2351 = vmatpush1.msra.mxu0 0.0
    %2352 = vmatprep.subr.mxu0 0.0
    %2353 = vmatpush1.msra.mxu0 0.0
    %2354 = vmatprep.subr.mxu0 0.0
    %2355 = vmatpush1.msra.mxu0 0.0
    %2356 = vmatprep.subr.mxu0 0.0
    %2357 = vmatpush1.msra.mxu0 0.0
    %2358 = vmatprep.subr.mxu0 0.0
    %2359 = vmatpush1.msra.mxu0 0.0
    %2360 = vmatprep.subr.mxu0 0.0
    %2361 = vmatpush1.msra.mxu0 %v2325
    %2362 = vmatprep.subr.mxu0 0.0
    %2363 = vmatpush2.msra.mxu0 0.0
    %2364 = vmatprep.subr.mxu0 0.0
    %2365 = vmatpush2.msra.mxu0 0.0
    %2366 = vmatprep.subr.mxu0 0.0
    %2367 = vmatpush2.msra.mxu0 0.0
    %2368 = vmatprep.subr.mxu0 0.0
    %2369 = vmatpush2.msra.mxu0 0.0
    %2370 = vmatprep.subr.mxu0 0.0
    %2371 = vmatpush2.msra.mxu0 0.0
    %2372 = vmatprep.subr.mxu0 0.0
    %2373 = vmatpush2.msra.mxu0 0.0
    %2374 = vmatprep.subr.mxu0 0.0
    %2375 = vmatpush2.msra.mxu0 0.0
    %2376 = vmatprep.subr.mxu0 0.0
    %2377 = vmatpush2.msra.mxu0 0.0
    %2378 = vmatprep.subr.mxu0 0.0
    %2379 = vmatpush2.msra.mxu0 0.0
    %2380 = vmatprep.subr.mxu0 0.0
    %2381 = vmatpush2.msra.mxu0 0.0
    %2382 = vmatprep.subr.mxu0 0.0
    %2383 = vmatpush2.msra.mxu0 0.0
    %2384 = vmatprep.subr.mxu0 0.0
    %2385 = vmatpush2.msra.mxu0 0.0
    %2386 = vmatprep.subr.mxu0 0.0
    %2387 = vmatpush2.msra.mxu0 0.0
    %2388 = vmatprep.subr.mxu0 0.0
    %2389 = vmatpush2.msra.mxu0 0.0
    %2390 = vmatprep.subr.mxu0 0.0
    %2391 = vmatpush2.msra.mxu0 0.0
    %2392 = vmatprep.subr.mxu0 0.0
    %2393 = vmatpush2.msra.mxu0 0.0
    %2394 = vmatprep.mubr.f32.mxu0 0.0
    %2395 = vmatmul.mubr.f32.gmra.mxu0 %v2328
    %v2396 = vpop.f32.mrf.mxu0
    %v2397 = vadd.f32 0.0, %v2396
    %v2398 = vpop.f32.mrf.mxu0
    %2399 = vdwg.mxu0
    %v2400 = vadd.f32 %v2060, %v2320
    %v2401 = vadd.f32 %v2061, %v2397
    %v2402 = vlaneseq
    %v2403 = vshrl.u32 %v2402, 7
    %v2404 = vsub.s32 6, %v2403
    %v2405 = vrot.slane %v76, %v2404
    %v2406 = vmul.f32 %v347, %v2405
    %v2407 = vmul.f32 %v352, %v2405
    %v2409 = vsel %vm273, %v2406, 0
    %2411 = vmatprep.subr.mxu0 0.0
    %2412 = vmatpush1.xpose.msra.mxu0 0.0
    %2413 = vmatprep.subr.mxu0 0.0
    %2414 = vmatpush1.xpose.msra.mxu0 0.0
    %2415 = vmatprep.subr.mxu0 0.0
    %2416 = vmatpush1.xpose.msra.mxu0 0.0
    %2417 = vmatprep.subr.mxu0 0.0
    %2418 = vmatpush1.xpose.msra.mxu0 0.0
    %2419 = vmatprep.subr.mxu0 0.0
    %2420 = vmatpush1.xpose.msra.mxu0 0.0
    %2421 = vmatprep.subr.mxu0 0.0
    %2422 = vmatpush1.xpose.msra.mxu0 0.0
    %2423 = vmatprep.subr.mxu0 0.0
    %2424 = vmatpush1.xpose.msra.mxu0 0.0
    %2425 = vmatprep.subr.mxu0 0.0
    %2426 = vmatpush1.xpose.msra.mxu0 0.0
    %2427 = vmatprep.subr.mxu0 0.0
    %2428 = vmatpush1.xpose.msra.mxu0 0.0
    %2429 = vmatprep.subr.mxu0 0.0
    %2430 = vmatpush1.xpose.msra.mxu0 0.0
    %2431 = vmatprep.subr.mxu0 0.0
    %2432 = vmatpush1.xpose.msra.mxu0 0.0
    %2433 = vmatprep.subr.mxu0 0.0
    %2434 = vmatpush1.xpose.msra.mxu0 0.0
    %2435 = vmatprep.subr.mxu0 0.0
    %2436 = vmatpush1.xpose.msra.mxu0 0.0
    %2437 = vmatprep.subr.mxu0 0.0
    %2438 = vmatpush1.xpose.msra.mxu0 0.0
    %2439 = vmatprep.subr.mxu0 0.0
    %2440 = vmatpush1.xpose.msra.mxu0 0.0
    %2441 = vmatprep.subr.mxu0 0.0
    %2442 = vmatpush1.xpose.msra.mxu0 %v367
    %2443 = vmatprep.subr.mxu0 0.0
    %2444 = vmatpush2.xpose.msra.mxu0 0.0
    %2445 = vmatprep.subr.mxu0 0.0
    %2446 = vmatpush2.xpose.msra.mxu0 0.0
    %2447 = vmatprep.subr.mxu0 0.0
    %2448 = vmatpush2.xpose.msra.mxu0 0.0
    %2449 = vmatprep.subr.mxu0 0.0
    %2450 = vmatpush2.xpose.msra.mxu0 0.0
    %2451 = vmatprep.subr.mxu0 0.0
    %2452 = vmatpush2.xpose.msra.mxu0 0.0
    %2453 = vmatprep.subr.mxu0 0.0
    %2454 = vmatpush2.xpose.msra.mxu0 0.0
    %2455 = vmatprep.subr.mxu0 0.0
    %2456 = vmatpush2.xpose.msra.mxu0 0.0
    %2457 = vmatprep.subr.mxu0 0.0
    %2458 = vmatpush2.xpose.msra.mxu0 0.0
    %2459 = vmatprep.subr.mxu0 0.0
    %2460 = vmatpush2.xpose.msra.mxu0 0.0
    %2461 = vmatprep.subr.mxu0 0.0
    %2462 = vmatpush2.xpose.msra.mxu0 0.0
    %2463 = vmatprep.subr.mxu0 0.0
    %2464 = vmatpush2.xpose.msra.mxu0 0.0
    %2465 = vmatprep.subr.mxu0 0.0
    %2466 = vmatpush2.xpose.msra.mxu0 0.0
    %2467 = vmatprep.subr.mxu0 0.0
    %2468 = vmatpush2.xpose.msra.mxu0 0.0
    %2469 = vmatprep.subr.mxu0 0.0
    %2470 = vmatpush2.xpose.msra.mxu0 0.0
    %2471 = vmatprep.subr.mxu0 0.0
    %2472 = vmatpush2.xpose.msra.mxu0 0.0
    %2473 = vmatprep.subr.mxu0 0.0
    %2474 = vmatpush2.xpose.msra.mxu0 0.0
    %2475 = vmatprep.mubr.f32.mxu0 0.0
    %2476 = vmatmul.mubr.f32.gmra.mxu0 %v2409
    %v2477 = vpop.f32.mrf.mxu0
    %v2478 = vadd.f32 0.0, %v2477
    %v2479 = vpop.f32.mrf.mxu0
    %2480 = vdwg.mxu0
    %v2482 = vsel %vm273, %v2407, 0
    %2484 = vmatprep.subr.mxu0 0.0
    %2485 = vmatpush1.xpose.msra.mxu0 0.0
    %2486 = vmatprep.subr.mxu0 0.0
    %2487 = vmatpush1.xpose.msra.mxu0 0.0
    %2488 = vmatprep.subr.mxu0 0.0
    %2489 = vmatpush1.xpose.msra.mxu0 0.0
    %2490 = vmatprep.subr.mxu0 0.0
    %2491 = vmatpush1.xpose.msra.mxu0 0.0
    %2492 = vmatprep.subr.mxu0 0.0
    %2493 = vmatpush1.xpose.msra.mxu0 0.0
    %2494 = vmatprep.subr.mxu0 0.0
    %2495 = vmatpush1.xpose.msra.mxu0 0.0
    %2496 = vmatprep.subr.mxu0 0.0
    %2497 = vmatpush1.xpose.msra.mxu0 0.0
    %2498 = vmatprep.subr.mxu0 0.0
    %2499 = vmatpush1.xpose.msra.mxu0 0.0
    %2500 = vmatprep.subr.mxu0 0.0
    %2501 = vmatpush1.xpose.msra.mxu0 0.0
    %2502 = vmatprep.subr.mxu0 0.0
    %2503 = vmatpush1.xpose.msra.mxu0 0.0
    %2504 = vmatprep.subr.mxu0 0.0
    %2505 = vmatpush1.xpose.msra.mxu0 0.0
    %2506 = vmatprep.subr.mxu0 0.0
    %2507 = vmatpush1.xpose.msra.mxu0 0.0
    %2508 = vmatprep.subr.mxu0 0.0
    %2509 = vmatpush1.xpose.msra.mxu0 0.0
    %2510 = vmatprep.subr.mxu0 0.0
    %2511 = vmatpush1.xpose.msra.mxu0 0.0
    %2512 = vmatprep.subr.mxu0 0.0
    %2513 = vmatpush1.xpose.msra.mxu0 0.0
    %2514 = vmatprep.subr.mxu0 0.0
    %2515 = vmatpush1.xpose.msra.mxu0 %v445
    %2516 = vmatprep.subr.mxu0 0.0
    %2517 = vmatpush2.xpose.msra.mxu0 0.0
    %2518 = vmatprep.subr.mxu0 0.0
    %2519 = vmatpush2.xpose.msra.mxu0 0.0
    %2520 = vmatprep.subr.mxu0 0.0
    %2521 = vmatpush2.xpose.msra.mxu0 0.0
    %2522 = vmatprep.subr.mxu0 0.0
    %2523 = vmatpush2.xpose.msra.mxu0 0.0
    %2524 = vmatprep.subr.mxu0 0.0
    %2525 = vmatpush2.xpose.msra.mxu0 0.0
    %2526 = vmatprep.subr.mxu0 0.0
    %2527 = vmatpush2.xpose.msra.mxu0 0.0
    %2528 = vmatprep.subr.mxu0 0.0
    %2529 = vmatpush2.xpose.msra.mxu0 0.0
    %2530 = vmatprep.subr.mxu0 0.0
    %2531 = vmatpush2.xpose.msra.mxu0 0.0
    %2532 = vmatprep.subr.mxu0 0.0
    %2533 = vmatpush2.xpose.msra.mxu0 0.0
    %2534 = vmatprep.subr.mxu0 0.0
    %2535 = vmatpush2.xpose.msra.mxu0 0.0
    %2536 = vmatprep.subr.mxu0 0.0
    %2537 = vmatpush2.xpose.msra.mxu0 0.0
    %2538 = vmatprep.subr.mxu0 0.0
    %2539 = vmatpush2.xpose.msra.mxu0 0.0
    %2540 = vmatprep.subr.mxu0 0.0
    %2541 = vmatpush2.xpose.msra.mxu0 0.0
    %2542 = vmatprep.subr.mxu0 0.0
    %2543 = vmatpush2.xpose.msra.mxu0 0.0
    %2544 = vmatprep.subr.mxu0 0.0
    %2545 = vmatpush2.xpose.msra.mxu0 0.0
    %2546 = vmatprep.subr.mxu0 0.0
    %2547 = vmatpush2.xpose.msra.mxu0 0.0
    %2548 = vmatprep.mubr.f32.mxu0 0.0
    %2549 = vmatmul.mubr.f32.gmra.mxu0 %v2482
    %v2550 = vpop.f32.mrf.mxu0
    %v2551 = vadd.f32 0.0, %v2550
    %v2552 = vpop.f32.mrf.mxu0
    %2553 = vdwg.mxu0
    %v2554 = vmul.f32 %v2478, 0.5
    %v2555 = vmul.f32 %v2551, 0.5
    %v2556 = vadd.f32 %v2554, %v75
    %v2557 = vadd.f32 %v2555, %v75
    %v2558 = vsel %vm521, %v2556, -inf
    %2559 = vmax.xlane.f32.xlu0 %v2558
    %v2560 = vpop.xlane.xlu0 %2559
    %v2561 = vsel %vm521, %v2557, -inf
    %2562 = vmax.xlane.f32.xlu0 %v2561
    %v2563 = vpop.xlane.xlu0 %2562
    %v2564 = vsub.f32 %v2556, %v2560
    %v2565 = vsub.f32 %v2557, %v2563
    %v2566 = vmul.f32 %v2564, 1.442695
    %v2567 = vpow.pop %v2566
    %v2568 = vmul.f32 %v2565, 1.442695
    %v2569 = vpow.pop %v2568
    %v2570 = vsel %vm521, %v2567, 0.0
    %2571 = vadd.xlane.f32.xlu0 %v2570
    %v2572 = vpop.xlane.xlu0 %2571
    %v2573 = vsel %vm521, %v2569, 0.0
    %2574 = vadd.xlane.f32.xlu0 %v2573
    %v2575 = vpop.xlane.xlu0 %2574
    %v2576 = vrcp.pop %v2572
    %v2577 = vrcp.pop %v2575
    %v2578 = vmul.f32 %v2567, %v2576
    %v2579 = vmul.f32 %v2569, %v2577
    %2581 = vrot.lane.b32.xlu0 %v2405, 64
    %v2582 = vpop.permute.xlu0 %2581
    %v2584 = vmul.f32 %v347, %v2582
    %v2585 = vmul.f32 %v352, %v2582
    %2587 = vrot.lane.b32.xlu0 %v2584, 64
    %v2588 = vpop.permute.xlu0 %2587
    %v2591 = vsel %vm521, %v2578, 0
    %2593 = vmatprep.subr.mxu0 0.0
    %2594 = vmatpush1.msra.mxu0 0.0
    %2595 = vmatprep.subr.mxu0 0.0
    %2596 = vmatpush1.msra.mxu0 0.0
    %2597 = vmatprep.subr.mxu0 0.0
    %2598 = vmatpush1.msra.mxu0 0.0
    %2599 = vmatprep.subr.mxu0 0.0
    %2600 = vmatpush1.msra.mxu0 0.0
    %2601 = vmatprep.subr.mxu0 0.0
    %2602 = vmatpush1.msra.mxu0 0.0
    %2603 = vmatprep.subr.mxu0 0.0
    %2604 = vmatpush1.msra.mxu0 0.0
    %2605 = vmatprep.subr.mxu0 0.0
    %2606 = vmatpush1.msra.mxu0 0.0
    %2607 = vmatprep.subr.mxu0 0.0
    %2608 = vmatpush1.msra.mxu0 0.0
    %2609 = vmatprep.subr.mxu0 0.0
    %2610 = vmatpush1.msra.mxu0 0.0
    %2611 = vmatprep.subr.mxu0 0.0
    %2612 = vmatpush1.msra.mxu0 0.0
    %2613 = vmatprep.subr.mxu0 0.0
    %2614 = vmatpush1.msra.mxu0 0.0
    %2615 = vmatprep.subr.mxu0 0.0
    %2616 = vmatpush1.msra.mxu0 0.0
    %2617 = vmatprep.subr.mxu0 0.0
    %2618 = vmatpush1.msra.mxu0 0.0
    %2619 = vmatprep.subr.mxu0 0.0
    %2620 = vmatpush1.msra.mxu0 0.0
    %2621 = vmatprep.subr.mxu0 0.0
    %2622 = vmatpush1.msra.mxu0 0.0
    %2623 = vmatprep.subr.mxu0 0.0
    %2624 = vmatpush1.msra.mxu0 %v2588
    %2625 = vmatprep.subr.mxu0 0.0
    %2626 = vmatpush2.msra.mxu0 0.0
    %2627 = vmatprep.subr.mxu0 0.0
    %2628 = vmatpush2.msra.mxu0 0.0
    %2629 = vmatprep.subr.mxu0 0.0
    %2630 = vmatpush2.msra.mxu0 0.0
    %2631 = vmatprep.subr.mxu0 0.0
    %2632 = vmatpush2.msra.mxu0 0.0
    %2633 = vmatprep.subr.mxu0 0.0
    %2634 = vmatpush2.msra.mxu0 0.0
    %2635 = vmatprep.subr.mxu0 0.0
    %2636 = vmatpush2.msra.mxu0 0.0
    %2637 = vmatprep.subr.mxu0 0.0
    %2638 = vmatpush2.msra.mxu0 0.0
    %2639 = vmatprep.subr.mxu0 0.0
    %2640 = vmatpush2.msra.mxu0 0.0
    %2641 = vmatprep.subr.mxu0 0.0
    %2642 = vmatpush2.msra.mxu0 0.0
    %2643 = vmatprep.subr.mxu0 0.0
    %2644 = vmatpush2.msra.mxu0 0.0
    %2645 = vmatprep.subr.mxu0 0.0
    %2646 = vmatpush2.msra.mxu0 0.0
    %2647 = vmatprep.subr.mxu0 0.0
    %2648 = vmatpush2.msra.mxu0 0.0
    %2649 = vmatprep.subr.mxu0 0.0
    %2650 = vmatpush2.msra.mxu0 0.0
    %2651 = vmatprep.subr.mxu0 0.0
    %2652 = vmatpush2.msra.mxu0 0.0
    %2653 = vmatprep.subr.mxu0 0.0
    %2654 = vmatpush2.msra.mxu0 0.0
    %2655 = vmatprep.subr.mxu0 0.0
    %2656 = vmatpush2.msra.mxu0 0.0
    %2657 = vmatprep.mubr.f32.mxu0 0.0
    %2658 = vmatmul.mubr.f32.gmra.mxu0 %v2591
    %v2659 = vpop.f32.mrf.mxu0
    %v2660 = vadd.f32 0.0, %v2659
    %v2661 = vpop.f32.mrf.mxu0
    %2662 = vdwg.mxu0
    %2664 = vrot.lane.b32.xlu0 %v2585, 64
    %v2665 = vpop.permute.xlu0 %2664
    %v2668 = vsel %vm521, %v2579, 0
    %2670 = vmatprep.subr.mxu0 0.0
    %2671 = vmatpush1.msra.mxu0 0.0
    %2672 = vmatprep.subr.mxu0 0.0
    %2673 = vmatpush1.msra.mxu0 0.0
    %2674 = vmatprep.subr.mxu0 0.0
    %2675 = vmatpush1.msra.mxu0 0.0
    %2676 = vmatprep.subr.mxu0 0.0
    %2677 = vmatpush1.msra.mxu0 0.0
    %2678 = vmatprep.subr.mxu0 0.0
    %2679 = vmatpush1.msra.mxu0 0.0
    %2680 = vmatprep.subr.mxu0 0.0
    %2681 = vmatpush1.msra.mxu0 0.0
    %2682 = vmatprep.subr.mxu0 0.0
    %2683 = vmatpush1.msra.mxu0 0.0
    %2684 = vmatprep.subr.mxu0 0.0
    %2685 = vmatpush1.msra.mxu0 0.0
    %2686 = vmatprep.subr.mxu0 0.0
    %2687 = vmatpush1.msra.mxu0 0.0
    %2688 = vmatprep.subr.mxu0 0.0
    %2689 = vmatpush1.msra.mxu0 0.0
    %2690 = vmatprep.subr.mxu0 0.0
    %2691 = vmatpush1.msra.mxu0 0.0
    %2692 = vmatprep.subr.mxu0 0.0
    %2693 = vmatpush1.msra.mxu0 0.0
    %2694 = vmatprep.subr.mxu0 0.0
    %2695 = vmatpush1.msra.mxu0 0.0
    %2696 = vmatprep.subr.mxu0 0.0
    %2697 = vmatpush1.msra.mxu0 0.0
    %2698 = vmatprep.subr.mxu0 0.0
    %2699 = vmatpush1.msra.mxu0 0.0
    %2700 = vmatprep.subr.mxu0 0.0
    %2701 = vmatpush1.msra.mxu0 %v2665
    %2702 = vmatprep.subr.mxu0 0.0
    %2703 = vmatpush2.msra.mxu0 0.0
    %2704 = vmatprep.subr.mxu0 0.0
    %2705 = vmatpush2.msra.mxu0 0.0
    %2706 = vmatprep.subr.mxu0 0.0
    %2707 = vmatpush2.msra.mxu0 0.0
    %2708 = vmatprep.subr.mxu0 0.0
    %2709 = vmatpush2.msra.mxu0 0.0
    %2710 = vmatprep.subr.mxu0 0.0
    %2711 = vmatpush2.msra.mxu0 0.0
    %2712 = vmatprep.subr.mxu0 0.0
    %2713 = vmatpush2.msra.mxu0 0.0
    %2714 = vmatprep.subr.mxu0 0.0
    %2715 = vmatpush2.msra.mxu0 0.0
    %2716 = vmatprep.subr.mxu0 0.0
    %2717 = vmatpush2.msra.mxu0 0.0
    %2718 = vmatprep.subr.mxu0 0.0
    %2719 = vmatpush2.msra.mxu0 0.0
    %2720 = vmatprep.subr.mxu0 0.0
    %2721 = vmatpush2.msra.mxu0 0.0
    %2722 = vmatprep.subr.mxu0 0.0
    %2723 = vmatpush2.msra.mxu0 0.0
    %2724 = vmatprep.subr.mxu0 0.0
    %2725 = vmatpush2.msra.mxu0 0.0
    %2726 = vmatprep.subr.mxu0 0.0
    %2727 = vmatpush2.msra.mxu0 0.0
    %2728 = vmatprep.subr.mxu0 0.0
    %2729 = vmatpush2.msra.mxu0 0.0
    %2730 = vmatprep.subr.mxu0 0.0
    %2731 = vmatpush2.msra.mxu0 0.0
    %2732 = vmatprep.subr.mxu0 0.0
    %2733 = vmatpush2.msra.mxu0 0.0
    %2734 = vmatprep.mubr.f32.mxu0 0.0
    %2735 = vmatmul.mubr.f32.gmra.mxu0 %v2668
    %v2736 = vpop.f32.mrf.mxu0
    %v2737 = vadd.f32 0.0, %v2736
    %v2738 = vpop.f32.mrf.mxu0
    %2739 = vdwg.mxu0
    %v2740 = vadd.f32 %v2400, %v2660
    %v2741 = vadd.f32 %v2401, %v2737
    %v2742 = vlaneseq
    %v2743 = vshrl.u32 %v2742, 7
    %v2744 = vsub.s32 7, %v2743
    %v2745 = vrot.slane %v76, %v2744
    %v2746 = vmul.f32 %v347, %v2745
    %v2747 = vmul.f32 %v352, %v2745
    %v2749 = vsel %vm273, %v2746, 0
    %2751 = vmatprep.subr.mxu0 0.0
    %2752 = vmatpush1.xpose.msra.mxu0 0.0
    %2753 = vmatprep.subr.mxu0 0.0
    %2754 = vmatpush1.xpose.msra.mxu0 0.0
    %2755 = vmatprep.subr.mxu0 0.0
    %2756 = vmatpush1.xpose.msra.mxu0 0.0
    %2757 = vmatprep.subr.mxu0 0.0
    %2758 = vmatpush1.xpose.msra.mxu0 0.0
    %2759 = vmatprep.subr.mxu0 0.0
    %2760 = vmatpush1.xpose.msra.mxu0 0.0
    %2761 = vmatprep.subr.mxu0 0.0
    %2762 = vmatpush1.xpose.msra.mxu0 0.0
    %2763 = vmatprep.subr.mxu0 0.0
    %2764 = vmatpush1.xpose.msra.mxu0 0.0
    %2765 = vmatprep.subr.mxu0 0.0
    %2766 = vmatpush1.xpose.msra.mxu0 0.0
    %2767 = vmatprep.subr.mxu0 0.0
    %2768 = vmatpush1.xpose.msra.mxu0 0.0
    %2769 = vmatprep.subr.mxu0 0.0
    %2770 = vmatpush1.xpose.msra.mxu0 0.0
    %2771 = vmatprep.subr.mxu0 0.0
    %2772 = vmatpush1.xpose.msra.mxu0 0.0
    %2773 = vmatprep.subr.mxu0 0.0
    %2774 = vmatpush1.xpose.msra.mxu0 0.0
    %2775 = vmatprep.subr.mxu0 0.0
    %2776 = vmatpush1.xpose.msra.mxu0 0.0
    %2777 = vmatprep.subr.mxu0 0.0
    %2778 = vmatpush1.xpose.msra.mxu0 0.0
    %2779 = vmatprep.subr.mxu0 0.0
    %2780 = vmatpush1.xpose.msra.mxu0 0.0
    %2781 = vmatprep.subr.mxu0 0.0
    %2782 = vmatpush1.xpose.msra.mxu0 %v367
    %2783 = vmatprep.subr.mxu0 0.0
    %2784 = vmatpush2.xpose.msra.mxu0 0.0
    %2785 = vmatprep.subr.mxu0 0.0
    %2786 = vmatpush2.xpose.msra.mxu0 0.0
    %2787 = vmatprep.subr.mxu0 0.0
    %2788 = vmatpush2.xpose.msra.mxu0 0.0
    %2789 = vmatprep.subr.mxu0 0.0
    %2790 = vmatpush2.xpose.msra.mxu0 0.0
    %2791 = vmatprep.subr.mxu0 0.0
    %2792 = vmatpush2.xpose.msra.mxu0 0.0
    %2793 = vmatprep.subr.mxu0 0.0
    %2794 = vmatpush2.xpose.msra.mxu0 0.0
    %2795 = vmatprep.subr.mxu0 0.0
    %2796 = vmatpush2.xpose.msra.mxu0 0.0
    %2797 = vmatprep.subr.mxu0 0.0
    %2798 = vmatpush2.xpose.msra.mxu0 0.0
    %2799 = vmatprep.subr.mxu0 0.0
    %2800 = vmatpush2.xpose.msra.mxu0 0.0
    %2801 = vmatprep.subr.mxu0 0.0
    %2802 = vmatpush2.xpose.msra.mxu0 0.0
    %2803 = vmatprep.subr.mxu0 0.0
    %2804 = vmatpush2.xpose.msra.mxu0 0.0
    %2805 = vmatprep.subr.mxu0 0.0
    %2806 = vmatpush2.xpose.msra.mxu0 0.0
    %2807 = vmatprep.subr.mxu0 0.0
    %2808 = vmatpush2.xpose.msra.mxu0 0.0
    %2809 = vmatprep.subr.mxu0 0.0
    %2810 = vmatpush2.xpose.msra.mxu0 0.0
    %2811 = vmatprep.subr.mxu0 0.0
    %2812 = vmatpush2.xpose.msra.mxu0 0.0
    %2813 = vmatprep.subr.mxu0 0.0
    %2814 = vmatpush2.xpose.msra.mxu0 0.0
    %2815 = vmatprep.mubr.f32.mxu0 0.0
    %2816 = vmatmul.mubr.f32.gmra.mxu0 %v2749
    %v2817 = vpop.f32.mrf.mxu0
    %v2818 = vadd.f32 0.0, %v2817
    %v2819 = vpop.f32.mrf.mxu0
    %2820 = vdwg.mxu0
    %v2822 = vsel %vm273, %v2747, 0
    %2824 = vmatprep.subr.mxu0 0.0
    %2825 = vmatpush1.xpose.msra.mxu0 0.0
    %2826 = vmatprep.subr.mxu0 0.0
    %2827 = vmatpush1.xpose.msra.mxu0 0.0
    %2828 = vmatprep.subr.mxu0 0.0
    %2829 = vmatpush1.xpose.msra.mxu0 0.0
    %2830 = vmatprep.subr.mxu0 0.0
    %2831 = vmatpush1.xpose.msra.mxu0 0.0
    %2832 = vmatprep.subr.mxu0 0.0
    %2833 = vmatpush1.xpose.msra.mxu0 0.0
    %2834 = vmatprep.subr.mxu0 0.0
    %2835 = vmatpush1.xpose.msra.mxu0 0.0
    %2836 = vmatprep.subr.mxu0 0.0
    %2837 = vmatpush1.xpose.msra.mxu0 0.0
    %2838 = vmatprep.subr.mxu0 0.0
    %2839 = vmatpush1.xpose.msra.mxu0 0.0
    %2840 = vmatprep.subr.mxu0 0.0
    %2841 = vmatpush1.xpose.msra.mxu0 0.0
    %2842 = vmatprep.subr.mxu0 0.0
    %2843 = vmatpush1.xpose.msra.mxu0 0.0
    %2844 = vmatprep.subr.mxu0 0.0
    %2845 = vmatpush1.xpose.msra.mxu0 0.0
    %2846 = vmatprep.subr.mxu0 0.0
    %2847 = vmatpush1.xpose.msra.mxu0 0.0
    %2848 = vmatprep.subr.mxu0 0.0
    %2849 = vmatpush1.xpose.msra.mxu0 0.0
    %2850 = vmatprep.subr.mxu0 0.0
    %2851 = vmatpush1.xpose.msra.mxu0 0.0
    %2852 = vmatprep.subr.mxu0 0.0
    %2853 = vmatpush1.xpose.msra.mxu0 0.0
    %2854 = vmatprep.subr.mxu0 0.0
    %2855 = vmatpush1.xpose.msra.mxu0 %v445
    %2856 = vmatprep.subr.mxu0 0.0
    %2857 = vmatpush2.xpose.msra.mxu0 0.0
    %2858 = vmatprep.subr.mxu0 0.0
    %2859 = vmatpush2.xpose.msra.mxu0 0.0
    %2860 = vmatprep.subr.mxu0 0.0
    %2861 = vmatpush2.xpose.msra.mxu0 0.0
    %2862 = vmatprep.subr.mxu0 0.0
    %2863 = vmatpush2.xpose.msra.mxu0 0.0
    %2864 = vmatprep.subr.mxu0 0.0
    %2865 = vmatpush2.xpose.msra.mxu0 0.0
    %2866 = vmatprep.subr.mxu0 0.0
    %2867 = vmatpush2.xpose.msra.mxu0 0.0
    %2868 = vmatprep.subr.mxu0 0.0
    %2869 = vmatpush2.xpose.msra.mxu0 0.0
    %2870 = vmatprep.subr.mxu0 0.0
    %2871 = vmatpush2.xpose.msra.mxu0 0.0
    %2872 = vmatprep.subr.mxu0 0.0
    %2873 = vmatpush2.xpose.msra.mxu0 0.0
    %2874 = vmatprep.subr.mxu0 0.0
    %2875 = vmatpush2.xpose.msra.mxu0 0.0
    %2876 = vmatprep.subr.mxu0 0.0
    %2877 = vmatpush2.xpose.msra.mxu0 0.0
    %2878 = vmatprep.subr.mxu0 0.0
    %2879 = vmatpush2.xpose.msra.mxu0 0.0
    %2880 = vmatprep.subr.mxu0 0.0
    %2881 = vmatpush2.xpose.msra.mxu0 0.0
    %2882 = vmatprep.subr.mxu0 0.0
    %2883 = vmatpush2.xpose.msra.mxu0 0.0
    %2884 = vmatprep.subr.mxu0 0.0
    %2885 = vmatpush2.xpose.msra.mxu0 0.0
    %2886 = vmatprep.subr.mxu0 0.0
    %2887 = vmatpush2.xpose.msra.mxu0 0.0
    %2888 = vmatprep.mubr.f32.mxu0 0.0
    %2889 = vmatmul.mubr.f32.gmra.mxu0 %v2822
    %v2890 = vpop.f32.mrf.mxu0
    %v2891 = vadd.f32 0.0, %v2890
    %v2892 = vpop.f32.mrf.mxu0
    %2893 = vdwg.mxu0
    %v2894 = vmul.f32 %v2818, 0.5
    %v2895 = vmul.f32 %v2891, 0.5
    %v2896 = vadd.f32 %v2894, %v75
    %v2897 = vadd.f32 %v2895, %v75
    %v2898 = vsel %vm521, %v2896, -inf
    %2899 = vmax.xlane.f32.xlu0 %v2898
    %v2900 = vpop.xlane.xlu0 %2899
    %v2901 = vsel %vm521, %v2897, -inf
    %2902 = vmax.xlane.f32.xlu0 %v2901
    %v2903 = vpop.xlane.xlu0 %2902
    %v2904 = vsub.f32 %v2896, %v2900
    %v2905 = vsub.f32 %v2897, %v2903
    %v2906 = vmul.f32 %v2904, 1.442695
    %v2907 = vpow.pop %v2906
    %v2908 = vmul.f32 %v2905, 1.442695
    %v2909 = vpow.pop %v2908
    %v2910 = vsel %vm521, %v2907, 0.0
    %2911 = vadd.xlane.f32.xlu0 %v2910
    %v2912 = vpop.xlane.xlu0 %2911
    %v2913 = vsel %vm521, %v2909, 0.0
    %2914 = vadd.xlane.f32.xlu0 %v2913
    %v2915 = vpop.xlane.xlu0 %2914
    %v2916 = vrcp.pop %v2912
    %v2917 = vrcp.pop %v2915
    %v2918 = vmul.f32 %v2907, %v2916
    %v2919 = vmul.f32 %v2909, %v2917
    %2921 = vrot.lane.b32.xlu0 %v2745, 64
    %v2922 = vpop.permute.xlu0 %2921
    %v2924 = vmul.f32 %v347, %v2922
    %v2925 = vmul.f32 %v352, %v2922
    %2927 = vrot.lane.b32.xlu0 %v2924, 64
    %v2928 = vpop.permute.xlu0 %2927
    %v2931 = vsel %vm521, %v2918, 0
    %2933 = vmatprep.subr.mxu0 0.0
    %2934 = vmatpush1.msra.mxu0 0.0
    %2935 = vmatprep.subr.mxu0 0.0
    %2936 = vmatpush1.msra.mxu0 0.0
    %2937 = vmatprep.subr.mxu0 0.0
    %2938 = vmatpush1.msra.mxu0 0.0
    %2939 = vmatprep.subr.mxu0 0.0
    %2940 = vmatpush1.msra.mxu0 0.0
    %2941 = vmatprep.subr.mxu0 0.0
    %2942 = vmatpush1.msra.mxu0 0.0
    %2943 = vmatprep.subr.mxu0 0.0
    %2944 = vmatpush1.msra.mxu0 0.0
    %2945 = vmatprep.subr.mxu0 0.0
    %2946 = vmatpush1.msra.mxu0 0.0
    %2947 = vmatprep.subr.mxu0 0.0
    %2948 = vmatpush1.msra.mxu0 0.0
    %2949 = vmatprep.subr.mxu0 0.0
    %2950 = vmatpush1.msra.mxu0 0.0
    %2951 = vmatprep.subr.mxu0 0.0
    %2952 = vmatpush1.msra.mxu0 0.0
    %2953 = vmatprep.subr.mxu0 0.0
    %2954 = vmatpush1.msra.mxu0 0.0
    %2955 = vmatprep.subr.mxu0 0.0
    %2956 = vmatpush1.msra.mxu0 0.0
    %2957 = vmatprep.subr.mxu0 0.0
    %2958 = vmatpush1.msra.mxu0 0.0
    %2959 = vmatprep.subr.mxu0 0.0
    %2960 = vmatpush1.msra.mxu0 0.0
    %2961 = vmatprep.subr.mxu0 0.0
    %2962 = vmatpush1.msra.mxu0 0.0
    %2963 = vmatprep.subr.mxu0 0.0
    %2964 = vmatpush1.msra.mxu0 %v2928
    %2965 = vmatprep.subr.mxu0 0.0
    %2966 = vmatpush2.msra.mxu0 0.0
    %2967 = vmatprep.subr.mxu0 0.0
    %2968 = vmatpush2.msra.mxu0 0.0
    %2969 = vmatprep.subr.mxu0 0.0
    %2970 = vmatpush2.msra.mxu0 0.0
    %2971 = vmatprep.subr.mxu0 0.0
    %2972 = vmatpush2.msra.mxu0 0.0
    %2973 = vmatprep.subr.mxu0 0.0
    %2974 = vmatpush2.msra.mxu0 0.0
    %2975 = vmatprep.subr.mxu0 0.0
    %2976 = vmatpush2.msra.mxu0 0.0
    %2977 = vmatprep.subr.mxu0 0.0
    %2978 = vmatpush2.msra.mxu0 0.0
    %2979 = vmatprep.subr.mxu0 0.0
    %2980 = vmatpush2.msra.mxu0 0.0
    %2981 = vmatprep.subr.mxu0 0.0
    %2982 = vmatpush2.msra.mxu0 0.0
    %2983 = vmatprep.subr.mxu0 0.0
    %2984 = vmatpush2.msra.mxu0 0.0
    %2985 = vmatprep.subr.mxu0 0.0
    %2986 = vmatpush2.msra.mxu0 0.0
    %2987 = vmatprep.subr.mxu0 0.0
    %2988 = vmatpush2.msra.mxu0 0.0
    %2989 = vmatprep.subr.mxu0 0.0
    %2990 = vmatpush2.msra.mxu0 0.0
    %2991 = vmatprep.subr.mxu0 0.0
    %2992 = vmatpush2.msra.mxu0 0.0
    %2993 = vmatprep.subr.mxu0 0.0
    %2994 = vmatpush2.msra.mxu0 0.0
    %2995 = vmatprep.subr.mxu0 0.0
    %2996 = vmatpush2.msra.mxu0 0.0
    %2997 = vmatprep.mubr.f32.mxu0 0.0
    %2998 = vmatmul.mubr.f32.gmra.mxu0 %v2931
    %v2999 = vpop.f32.mrf.mxu0
    %v3000 = vadd.f32 0.0, %v2999
    %v3001 = vpop.f32.mrf.mxu0
    %3002 = vdwg.mxu0
    %3004 = vrot.lane.b32.xlu0 %v2925, 64
    %v3005 = vpop.permute.xlu0 %3004
    %v3008 = vsel %vm521, %v2919, 0
    %3010 = vmatprep.subr.mxu0 0.0
    %3011 = vmatpush1.msra.mxu0 0.0
    %3012 = vmatprep.subr.mxu0 0.0
    %3013 = vmatpush1.msra.mxu0 0.0
    %3014 = vmatprep.subr.mxu0 0.0
    %3015 = vmatpush1.msra.mxu0 0.0
    %3016 = vmatprep.subr.mxu0 0.0
    %3017 = vmatpush1.msra.mxu0 0.0
    %3018 = vmatprep.subr.mxu0 0.0
    %3019 = vmatpush1.msra.mxu0 0.0
    %3020 = vmatprep.subr.mxu0 0.0
    %3021 = vmatpush1.msra.mxu0 0.0
    %3022 = vmatprep.subr.mxu0 0.0
    %3023 = vmatpush1.msra.mxu0 0.0
    %3024 = vmatprep.subr.mxu0 0.0
    %3025 = vmatpush1.msra.mxu0 0.0
    %3026 = vmatprep.subr.mxu0 0.0
    %3027 = vmatpush1.msra.mxu0 0.0
    %3028 = vmatprep.subr.mxu0 0.0
    %3029 = vmatpush1.msra.mxu0 0.0
    %3030 = vmatprep.subr.mxu0 0.0
    %3031 = vmatpush1.msra.mxu0 0.0
    %3032 = vmatprep.subr.mxu0 0.0
    %3033 = vmatpush1.msra.mxu0 0.0
    %3034 = vmatprep.subr.mxu0 0.0
    %3035 = vmatpush1.msra.mxu0 0.0
    %3036 = vmatprep.subr.mxu0 0.0
    %3037 = vmatpush1.msra.mxu0 0.0
    %3038 = vmatprep.subr.mxu0 0.0
    %3039 = vmatpush1.msra.mxu0 0.0
    %3040 = vmatprep.subr.mxu0 0.0
    %3041 = vmatpush1.msra.mxu0 %v3005
    %3042 = vmatprep.subr.mxu0 0.0
    %3043 = vmatpush2.msra.mxu0 0.0
    %3044 = vmatprep.subr.mxu0 0.0
    %3045 = vmatpush2.msra.mxu0 0.0
    %3046 = vmatprep.subr.mxu0 0.0
    %3047 = vmatpush2.msra.mxu0 0.0
    %3048 = vmatprep.subr.mxu0 0.0
    %3049 = vmatpush2.msra.mxu0 0.0
    %3050 = vmatprep.subr.mxu0 0.0
    %3051 = vmatpush2.msra.mxu0 0.0
    %3052 = vmatprep.subr.mxu0 0.0
    %3053 = vmatpush2.msra.mxu0 0.0
    %3054 = vmatprep.subr.mxu0 0.0
    %3055 = vmatpush2.msra.mxu0 0.0
    %3056 = vmatprep.subr.mxu0 0.0
    %3057 = vmatpush2.msra.mxu0 0.0
    %3058 = vmatprep.subr.mxu0 0.0
    %3059 = vmatpush2.msra.mxu0 0.0
    %3060 = vmatprep.subr.mxu0 0.0
    %3061 = vmatpush2.msra.mxu0 0.0
    %3062 = vmatprep.subr.mxu0 0.0
    %3063 = vmatpush2.msra.mxu0 0.0
    %3064 = vmatprep.subr.mxu0 0.0
    %3065 = vmatpush2.msra.mxu0 0.0
    %3066 = vmatprep.subr.mxu0 0.0
    %3067 = vmatpush2.msra.mxu0 0.0
    %3068 = vmatprep.subr.mxu0 0.0
    %3069 = vmatpush2.msra.mxu0 0.0
    %3070 = vmatprep.subr.mxu0 0.0
    %3071 = vmatpush2.msra.mxu0 0.0
    %3072 = vmatprep.subr.mxu0 0.0
    %3073 = vmatpush2.msra.mxu0 0.0
    %3074 = vmatprep.mubr.f32.mxu0 0.0
    %3075 = vmatmul.mubr.f32.gmra.mxu0 %v3008
    %v3076 = vpop.f32.mrf.mxu0
    %v3077 = vadd.f32 0.0, %v3076
    %v3078 = vpop.f32.mrf.mxu0
    %3079 = vdwg.mxu0
    %v3080 = vadd.f32 %v2740, %v3000
    %v3081 = vadd.f32 %v2741, %v3077
    %v3082 = vld [vmem:[%s9] sm:$0xff]
    %v3083 = vld [vmem:[%s9 + $0x8] sm:$0xff]
    %v3084 = vld [vmem:[%s9 + $0x10] sm:$0xff]
    %v3085 = vld [vmem:[%s9 + $0x18] sm:$0xff]
    %v3086 = vld [vmem:[%s10] sm:$0x1]
    %v3087 = vlaneseq
    %v3088 = vshrl.u32 %v3087, 7
    %v3089 = vsub.s32 0, %v3088
    %v3090 = vrot.slane %v3086, %v3089
    %v3092 = vsel %vm273, %v3080, 0
    %v3095 = vsel %vm273, %v3081, 0
    %3097 = vmatprep.subr.mxu0 0.0
    %3098 = vmatpush1.msra.mxu0 0.0
    %3099 = vmatprep.subr.mxu0 0.0
    %3100 = vmatpush1.msra.mxu0 0.0
    %3101 = vmatprep.subr.mxu0 0.0
    %3102 = vmatpush1.msra.mxu0 0.0
    %3103 = vmatprep.subr.mxu0 0.0
    %3104 = vmatpush1.msra.mxu0 0.0
    %3105 = vmatprep.subr.mxu0 0.0
    %3106 = vmatpush1.msra.mxu0 0.0
    %3107 = vmatprep.subr.mxu0 0.0
    %3108 = vmatpush1.msra.mxu0 0.0
    %3109 = vmatprep.subr.mxu0 0.0
    %3110 = vmatpush1.msra.mxu0 0.0
    %3111 = vmatprep.subr.mxu0 0.0
    %3112 = vmatpush1.msra.mxu0 0.0
    %3113 = vmatprep.subr.mxu0 0.0
    %3114 = vmatpush1.msra.mxu0 0.0
    %3115 = vmatprep.subr.mxu0 0.0
    %3116 = vmatpush1.msra.mxu0 0.0
    %3117 = vmatprep.subr.mxu0 0.0
    %3118 = vmatpush1.msra.mxu0 0.0
    %3119 = vmatprep.subr.mxu0 0.0
    %3120 = vmatpush1.msra.mxu0 0.0
    %3121 = vmatprep.subr.mxu0 0.0
    %3122 = vmatpush1.msra.mxu0 %v3085
    %3123 = vmatprep.subr.mxu0 0.0
    %3124 = vmatpush1.msra.mxu0 %v3084
    %3125 = vmatprep.subr.mxu0 0.0
    %3126 = vmatpush1.msra.mxu0 %v3083
    %3127 = vmatprep.subr.mxu0 0.0
    %3128 = vmatpush1.msra.mxu0 %v3082
    %3129 = vmatprep.subr.mxu0 0.0
    %3130 = vmatpush2.msra.mxu0 0.0
    %3131 = vmatprep.subr.mxu0 0.0
    %3132 = vmatpush2.msra.mxu0 0.0
    %3133 = vmatprep.subr.mxu0 0.0
    %3134 = vmatpush2.msra.mxu0 0.0
    %3135 = vmatprep.subr.mxu0 0.0
    %3136 = vmatpush2.msra.mxu0 0.0
    %3137 = vmatprep.subr.mxu0 0.0
    %3138 = vmatpush2.msra.mxu0 0.0
    %3139 = vmatprep.subr.mxu0 0.0
    %3140 = vmatpush2.msra.mxu0 0.0
    %3141 = vmatprep.subr.mxu0 0.0
    %3142 = vmatpush2.msra.mxu0 0.0
    %3143 = vmatprep.subr.mxu0 0.0
    %3144 = vmatpush2.msra.mxu0 0.0
    %3145 = vmatprep.subr.mxu0 0.0
    %3146 = vmatpush2.msra.mxu0 0.0
    %3147 = vmatprep.subr.mxu0 0.0
    %3148 = vmatpush2.msra.mxu0 0.0
    %3149 = vmatprep.subr.mxu0 0.0
    %3150 = vmatpush2.msra.mxu0 0.0
    %3151 = vmatprep.subr.mxu0 0.0
    %3152 = vmatpush2.msra.mxu0 0.0
    %3153 = vmatprep.subr.mxu0 0.0
    %3154 = vmatpush2.msra.mxu0 0.0
    %3155 = vmatprep.subr.mxu0 0.0
    %3156 = vmatpush2.msra.mxu0 0.0
    %3157 = vmatprep.subr.mxu0 0.0
    %3158 = vmatpush2.msra.mxu0 0.0
    %3159 = vmatprep.subr.mxu0 0.0
    %3160 = vmatpush2.msra.mxu0 0.0
    %3161 = vmatprep.mubr.f32.mxu0 0.0
    %3162 = vmatmul.mubr.f32.gmra.mxu0 %v3092
    %v3163 = vpop.f32.mrf.mxu0
    %v3164 = vadd.f32 %v3090, %v3163
    %v3165 = vpop.f32.mrf.mxu0
    %3166 = vmatprep.mubr.f32.mxu0 0.0
    %3167 = vmatmul.mubr.f32.gmra.mxu0 %v3095
    %v3168 = vpop.f32.mrf.mxu0
    %v3169 = vadd.f32 %v3090, %v3168
    %v3170 = vpop.f32.mrf.mxu0
    %3171 = vdwg.mxu0
    %v3172 = vadd.f32 %v262, %v3164
    %v3173 = vadd.f32 %v263, %v3169
    %v3174 = vld [vmem:[%s11] sm:$0x1]
    %v3175 = vld [vmem:[%s12] sm:$0x1]
    %v3176 = vsel %vm273, %v3172, 0.0
    %3177 = vadd.xlane.f32.xlu0 %v3176
    %v3178 = vpop.xlane.xlu0 %3177
    %v3179 = vsel %vm273, %v3173, 0.0
    %3180 = vadd.xlane.f32.xlu0 %v3179
    %v3181 = vpop.xlane.xlu0 %3180
    %v3182 = vrcp.pop 32.0
    %v3183 = vmul.f32 %v3178, %v3182
    %v3184 = vmul.f32 %v3181, %v3182
    %v3185 = vsub.f32 %v3172, %v3183
    %v3186 = vsub.f32 %v3173, %v3184
    %v3187 = vmul.f32 %v3185, %v3185
    %v3188 = vmul.f32 %v3186, %v3186
    %v3189 = vsel %vm273, %v3187, 0.0
    %3190 = vadd.xlane.f32.xlu0 %v3189
    %v3191 = vpop.xlane.xlu0 %3190
    %v3192 = vsel %vm273, %v3188, 0.0
    %3193 = vadd.xlane.f32.xlu0 %v3192
    %v3194 = vpop.xlane.xlu0 %3193
    %v3195 = vmul.f32 %v3191, %v3182
    %v3196 = vmul.f32 %v3194, %v3182
    %v3197 = vadd.f32 %v3195, 1e-05
    %v3198 = vadd.f32 %v3196, 1e-05
    %v3199 = vrsqrt.pop %v3197
    %v3200 = vrsqrt.pop %v3198
    %v3201 = vmul.f32 %v3185, %v3199
    %v3202 = vmul.f32 %v3186, %v3200
    %v3203 = vlaneseq
    %v3204 = vshrl.u32 %v3203, 7
    %v3205 = vsub.s32 0, %v3204
    %v3206 = vrot.slane %v3174, %v3205
    %v3207 = vmul.f32 %v3201, %v3206
    %v3208 = vmul.f32 %v3202, %v3206
    %v3209 = vlaneseq
    %v3210 = vshrl.u32 %v3209, 7
    %v3211 = vsub.s32 0, %v3210
    %v3212 = vrot.slane %v3175, %v3211
    %v3213 = vadd.f32 %v3207, %v3212
    %v3214 = vadd.f32 %v3208, %v3212
    %v3215 = vld [vmem:[%s15] sm:$0xff]
    %v3216 = vld [vmem:[%s15 + $0x8] sm:$0xff]
    %v3217 = vld [vmem:[%s15 + $0x10] sm:$0xff]
    %v3218 = vld [vmem:[%s15 + $0x18] sm:$0xff]
    %v3219 = vld [vmem:[%s15 + $0x20] sm:$0xff]
    %v3220 = vld [vmem:[%s15 + $0x28] sm:$0xff]
    %v3221 = vld [vmem:[%s15 + $0x30] sm:$0xff]
    %v3222 = vld [vmem:[%s15 + $0x38] sm:$0xff]
    %v3223 = vld [vmem:[%s16] ss:$2 sm:$0x3]
    %v3225 = vlaneseq
    %v3226 = vshrl.u32 %v3225, 7
    %v3227 = vsub.s32 0, %v3226
    %v3228 = vrot.slane %v3223, %v3227
    %v3229 = vlaneseq
    %v3230 = vshrl.u32 %v3229, 7
    %v3231 = vsub.s32 1, %v3230
    %v3232 = vrot.slane %v3223, %v3231
    %v3236 = vsel %vm273, %v3213, 0
    %v3239 = vsel %vm273, %v3214, 0
    %3241 = vmatprep.subr.mxu0 0.0
    %3242 = vmatpush1.msra.mxu0 0.0
    %3243 = vmatprep.subr.mxu0 0.0
    %3244 = vmatpush1.msra.mxu0 0.0
    %3245 = vmatprep.subr.mxu0 0.0
    %3246 = vmatpush1.msra.mxu0 0.0
    %3247 = vmatprep.subr.mxu0 0.0
    %3248 = vmatpush1.msra.mxu0 0.0
    %3249 = vmatprep.subr.mxu0 0.0
    %3250 = vmatpush1.msra.mxu0 0.0
    %3251 = vmatprep.subr.mxu0 0.0
    %3252 = vmatpush1.msra.mxu0 0.0
    %3253 = vmatprep.subr.mxu0 0.0
    %3254 = vmatpush1.msra.mxu0 0.0
    %3255 = vmatprep.subr.mxu0 0.0
    %3256 = vmatpush1.msra.mxu0 0.0
    %3257 = vmatprep.subr.mxu0 0.0
    %3258 = vmatpush1.msra.mxu0 0.0
    %3259 = vmatprep.subr.mxu0 0.0
    %3260 = vmatpush1.msra.mxu0 0.0
    %3261 = vmatprep.subr.mxu0 0.0
    %3262 = vmatpush1.msra.mxu0 0.0
    %3263 = vmatprep.subr.mxu0 0.0
    %3264 = vmatpush1.msra.mxu0 0.0
    %3265 = vmatprep.subr.mxu0 %v3222
    %3266 = vmatpush1.msra.mxu0 %v3221
    %3267 = vmatprep.subr.mxu0 %v3220
    %3268 = vmatpush1.msra.mxu0 %v3219
    %3269 = vmatprep.subr.mxu0 %v3218
    %3270 = vmatpush1.msra.mxu0 %v3217
    %3271 = vmatprep.subr.mxu0 %v3216
    %3272 = vmatpush1.msra.mxu0 %v3215
    %3273 = vmatprep.subr.mxu0 0.0
    %3274 = vmatpush2.msra.mxu0 0.0
    %3275 = vmatprep.subr.mxu0 0.0
    %3276 = vmatpush2.msra.mxu0 0.0
    %3277 = vmatprep.subr.mxu0 0.0
    %3278 = vmatpush2.msra.mxu0 0.0
    %3279 = vmatprep.subr.mxu0 0.0
    %3280 = vmatpush2.msra.mxu0 0.0
    %3281 = vmatprep.subr.mxu0 0.0
    %3282 = vmatpush2.msra.mxu0 0.0
    %3283 = vmatprep.subr.mxu0 0.0
    %3284 = vmatpush2.msra.mxu0 0.0
    %3285 = vmatprep.subr.mxu0 0.0
    %3286 = vmatpush2.msra.mxu0 0.0
    %3287 = vmatprep.subr.mxu0 0.0
    %3288 = vmatpush2.msra.mxu0 0.0
    %3289 = vmatprep.subr.mxu0 0.0
    %3290 = vmatpush2.msra.mxu0 0.0
    %3291 = vmatprep.subr.mxu0 0.0
    %3292 = vmatpush2.msra.mxu0 0.0
    %3293 = vmatprep.subr.mxu0 0.0
    %3294 = vmatpush2.msra.mxu0 0.0
    %3295 = vmatprep.subr.mxu0 0.0
    %3296 = vmatpush2.msra.mxu0 0.0
    %3297 = vmatprep.subr.mxu0 0.0
    %3298 = vmatpush2.msra.mxu0 0.0
    %3299 = vmatprep.subr.mxu0 0.0
    %3300 = vmatpush2.msra.mxu0 0.0
    %3301 = vmatprep.subr.mxu0 0.0
    %3302 = vmatpush2.msra.mxu0 0.0
    %3303 = vmatprep.subr.mxu0 0.0
    %3304 = vmatpush2.msra.mxu0 0.0
    %3305 = vmatprep.mubr.f32.mxu0 0.0
    %3306 = vmatmul.mubr.f32.gmra.mxu0 %v3236
    %v3307 = vpop.f32.mrf.mxu0
    %v3308 = vadd.f32 %v3228, %v3307
    %v3309 = vpop.f32.mrf.mxu0
    %v3310 = vadd.f32 %v3232, %v3309
    %3311 = vmatprep.mubr.f32.mxu0 0.0
    %3312 = vmatmul.mubr.f32.gmra.mxu0 %v3239
    %v3313 = vpop.f32.mrf.mxu0
    %v3314 = vadd.f32 %v3228, %v3313
    %v3315 = vpop.f32.mrf.mxu0
    %v3316 = vadd.f32 %v3232, %v3315
    %3317 = vdwg.mxu0
    %v3318 = vmax.f32 %v3308, 0.0
    %v3319 = vmax.f32 %v3310, 0.0
    %v3320 = vmax.f32 %v3314, 0.0
    %v3321 = vmax.f32 %v3316, 0.0
    %v3322 = vld [vmem:[%s17] sm:$0xff]
    %v3323 = vld [vmem:[%s17 + $0x8] sm:$0xff]
    %v3324 = vld [vmem:[%s17 + $0x10] sm:$0xff]
    %v3325 = vld [vmem:[%s17 + $0x18] sm:$0xff]
    %v3326 = vld [vmem:[%s17 + $0x20] sm:$0xff]
    %v3327 = vld [vmem:[%s17 + $0x28] sm:$0xff]
    %v3328 = vld [vmem:[%s17 + $0x30] sm:$0xff]
    %v3329 = vld [vmem:[%s17 + $0x38] sm:$0xff]
    %v3330 = vld [vmem:[%s17 + $0x40] sm:$0xff]
    %v3331 = vld [vmem:[%s17 + $0x48] sm:$0xff]
    %v3332 = vld [vmem:[%s17 + $0x50] sm:$0xff]
    %v3333 = vld [vmem:[%s17 + $0x58] sm:$0xff]
    %v3334 = vld [vmem:[%s17 + $0x60] sm:$0xff]
    %v3335 = vld [vmem:[%s17 + $0x68] sm:$0xff]
    %v3336 = vld [vmem:[%s17 + $0x70] sm:$0xff]
    %v3337 = vld [vmem:[%s17 + $0x78] sm:$0xff]
    %v3338 = vld [vmem:[%s17 + $0x80] sm:$0xff]
    %v3339 = vld [vmem:[%s17 + $0x88] sm:$0xff]
    %v3340 = vld [vmem:[%s17 + $0x90] sm:$0xff]
    %v3341 = vld [vmem:[%s17 + $0x98] sm:$0xff]
    %v3342 = vld [vmem:[%s17 + $0xa0] sm:$0xff]
    %v3343 = vld [vmem:[%s17 + $0xa8] sm:$0xff]
    %v3344 = vld [vmem:[%s17 + $0xb0] sm:$0xff]
    %v3345 = vld [vmem:[%s17 + $0xb8] sm:$0xff]
    %v3346 = vld [vmem:[%s17 + $0xc0] sm:$0xff]
    %v3347 = vld [vmem:[%s17 + $0xc8] sm:$0xff]
    %v3348 = vld [vmem:[%s17 + $0xd0] sm:$0xff]
    %v3349 = vld [vmem:[%s17 + $0xd8] sm:$0xff]
    %v3350 = vld [vmem:[%s17 + $0xe0] sm:$0xff]
    %v3351 = vld [vmem:[%s17 + $0xe8] sm:$0xff]
    %v3352 = vld [vmem:[%s17 + $0xf0] sm:$0xff]
    %v3353 = vld [vmem:[%s17 + $0xf8] sm:$0xff]
    %v3354 = vld [vmem:[%s18] sm:$0x1]
    %v3355 = vlaneseq
    %v3356 = vshrl.u32 %v3355, 7
    %v3357 = vsub.s32 0, %v3356
    %v3358 = vrot.slane %v3354, %v3357
    %3359 = vmatprep.subr.mxu0 0.0
    %3360 = vmatpush1.msra.mxu0 %v3337
    %3361 = vmatprep.subr.mxu0 0.0
    %3362 = vmatpush1.msra.mxu0 %v3336
    %3363 = vmatprep.subr.mxu0 0.0
    %3364 = vmatpush1.msra.mxu0 %v3335
    %3365 = vmatprep.subr.mxu0 0.0
    %3366 = vmatpush1.msra.mxu0 %v3334
    %3367 = vmatprep.subr.mxu0 0.0
    %3368 = vmatpush1.msra.mxu0 %v3333
    %3369 = vmatprep.subr.mxu0 0.0
    %3370 = vmatpush1.msra.mxu0 %v3332
    %3371 = vmatprep.subr.mxu0 0.0
    %3372 = vmatpush1.msra.mxu0 %v3331
    %3373 = vmatprep.subr.mxu0 0.0
    %3374 = vmatpush1.msra.mxu0 %v3330
    %3375 = vmatprep.subr.mxu0 0.0
    %3376 = vmatpush1.msra.mxu0 %v3329
    %3377 = vmatprep.subr.mxu0 0.0
    %3378 = vmatpush1.msra.mxu0 %v3328
    %3379 = vmatprep.subr.mxu0 0.0
    %3380 = vmatpush1.msra.mxu0 %v3327
    %3381 = vmatprep.subr.mxu0 0.0
    %3382 = vmatpush1.msra.mxu0 %v3326
    %3383 = vmatprep.subr.mxu0 0.0
    %3384 = vmatpush1.msra.mxu0 %v3325
    %3385 = vmatprep.subr.mxu0 0.0
    %3386 = vmatpush1.msra.mxu0 %v3324
    %3387 = vmatprep.subr.mxu0 0.0
    %3388 = vmatpush1.msra.mxu0 %v3323
    %3389 = vmatprep.subr.mxu0 0.0
    %3390 = vmatpush1.msra.mxu0 %v3322
    %3391 = vmatprep.subr.mxu0 0.0
    %3392 = vmatpush2.msra.mxu0 %v3353
    %3393 = vmatprep.subr.mxu0 0.0
    %3394 = vmatpush2.msra.mxu0 %v3352
    %3395 = vmatprep.subr.mxu0 0.0
    %3396 = vmatpush2.msra.mxu0 %v3351
    %3397 = vmatprep.subr.mxu0 0.0
    %3398 = vmatpush2.msra.mxu0 %v3350
    %3399 = vmatprep.subr.mxu0 0.0
    %3400 = vmatpush2.msra.mxu0 %v3349
    %3401 = vmatprep.subr.mxu0 0.0
    %3402 = vmatpush2.msra.mxu0 %v3348
    %3403 = vmatprep.subr.mxu0 0.0
    %3404 = vmatpush2.msra.mxu0 %v3347
    %3405 = vmatprep.subr.mxu0 0.0
    %3406 = vmatpush2.msra.mxu0 %v3346
    %3407 = vmatprep.subr.mxu0 0.0
    %3408 = vmatpush2.msra.mxu0 %v3345
    %3409 = vmatprep.subr.mxu0 0.0
    %3410 = vmatpush2.msra.mxu0 %v3344
    %3411 = vmatprep.subr.mxu0 0.0
    %3412 = vmatpush2.msra.mxu0 %v3343
    %3413 = vmatprep.subr.mxu0 0.0
    %3414 = vmatpush2.msra.mxu0 %v3342
    %3415 = vmatprep.subr.mxu0 0.0
    %3416 = vmatpush2.msra.mxu0 %v3341
    %3417 = vmatprep.subr.mxu0 0.0
    %3418 = vmatpush2.msra.mxu0 %v3340
    %3419 = vmatprep.subr.mxu0 0.0
    %3420 = vmatpush2.msra.mxu0 %v3339
    %3421 = vmatprep.subr.mxu0 0.0
    %3422 = vmatpush2.msra.mxu0 %v3338
    %3423 = vmatprep.mubr.f32.mxu0 %v3319
    %3424 = vmatmul.mubr.f32.gmra.mxu0 %v3318
    %v3425 = vpop.f32.mrf.mxu0
    %v3426 = vadd.f32 %v3358, %v3425
    %v3427 = vpop.f32.mrf.mxu0
    %3428 = vmatprep.mubr.f32.mxu0 %v3321
    %3429 = vmatmul.mubr.f32.gmra.mxu0 %v3320
    %v3430 = vpop.f32.mrf.mxu0
    %v3431 = vadd.f32 %v3358, %v3430
    %v3432 = vpop.f32.mrf.mxu0
    %3433 = vdwg.mxu0
    %v3434 = vadd.f32 %v3213, %v3426
    %v3435 = vadd.f32 %v3214, %v3431
    %v3436 = vld [vmem:[%s13] sm:$0x1]
    %v3437 = vld [vmem:[%s14] sm:$0x1]
    %v3438 = vsel %vm273, %v3434, 0.0
    %3439 = vadd.xlane.f32.xlu0 %v3438
    %v3440 = vpop.xlane.xlu0 %3439
    %v3441 = vsel %vm273, %v3435, 0.0
    %3442 = vadd.xlane.f32.xlu0 %v3441
    %v3443 = vpop.xlane.xlu0 %3442
    %v3444 = vmul.f32 %v3440, %v3182
    %v3445 = vmul.f32 %v3443, %v3182
    %v3446 = vsub.f32 %v3434, %v3444
    %v3447 = vsub.f32 %v3435, %v3445
    %v3448 = vmul.f32 %v3446, %v3446
    %v3449 = vmul.f32 %v3447, %v3447
    %v3450 = vsel %vm273, %v3448, 0.0
    %3451 = vadd.xlane.f32.xlu0 %v3450
    %v3452 = vpop.xlane.xlu0 %3451
    %v3453 = vsel %vm273, %v3449, 0.0
    %3454 = vadd.xlane.f32.xlu0 %v3453
    %v3455 = vpop.xlane.xlu0 %3454
    %v3456 = vmul.f32 %v3452, %v3182
    %v3457 = vmul.f32 %v3455, %v3182
    %v3458 = vadd.f32 %v3456, 1e-05
    %v3459 = vadd.f32 %v3457, 1e-05
    %v3460 = vrsqrt.pop %v3458
    %v3461 = vrsqrt.pop %v3459
    %v3462 = vmul.f32 %v3446, %v3460
    %v3463 = vmul.f32 %v3447, %v3461
    %v3464 = vlaneseq
    %v3465 = vshrl.u32 %v3464, 7
    %v3466 = vsub.s32 0, %v3465
    %v3467 = vrot.slane %v3436, %v3466
    %v3468 = vmul.f32 %v3462, %v3467
    %v3469 = vmul.f32 %v3463, %v3467
    %v3470 = vlaneseq
    %v3471 = vshrl.u32 %v3470, 7
    %v3472 = vsub.s32 0, %v3471
    %v3473 = vrot.slane %v3437, %v3472
    %v3474 = vadd.f32 %v3468, %v3473
    %v3475 = vadd.f32 %v3469, %v3473
    %s3476 = scalar_lea.vmem %s7, 32
    %v3477 = vld [vmem:[%s3476] sm:$0xff]
    %v3478 = vld [vmem:[%s3476 + $0x8] sm:$0xff]
    %v3479 = vld [vmem:[%s3476 + $0x10] sm:$0xff]
    %v3480 = vld [vmem:[%s3476 + $0x18] sm:$0xff]
    %v3481 = vld [vmem:[%s8 + $0x1] sm:$0x1]
    %v3482 = vlaneseq
    %v3483 = vshrl.u32 %v3482, 7
    %v3484 = vsub.s32 0, %v3483
    %v3485 = vrot.slane %v3481, %v3484
    %v3487 = vsel %vm273, %v3474, 0
    %v3490 = vsel %vm273, %v3475, 0
    %3492 = vmatprep.subr.mxu0 0.0
    %3493 = vmatpush1.msra.mxu0 0.0
    %3494 = vmatprep.subr.mxu0 0.0
    %3495 = vmatpush1.msra.mxu0 0.0
    %3496 = vmatprep.subr.mxu0 0.0
    %3497 = vmatpush1.msra.mxu0 0.0
    %3498 = vmatprep.subr.mxu0 0.0
    %3499 = vmatpush1.msra.mxu0 0.0
    %3500 = vmatprep.subr.mxu0 0.0
    %3501 = vmatpush1.msra.mxu0 0.0
    %3502 = vmatprep.subr.mxu0 0.0
    %3503 = vmatpush1.msra.mxu0 0.0
    %3504 = vmatprep.subr.mxu0 0.0
    %3505 = vmatpush1.msra.mxu0 0.0
    %3506 = vmatprep.subr.mxu0 0.0
    %3507 = vmatpush1.msra.mxu0 0.0
    %3508 = vmatprep.subr.mxu0 0.0
    %3509 = vmatpush1.msra.mxu0 0.0
    %3510 = vmatprep.subr.mxu0 0.0
    %3511 = vmatpush1.msra.mxu0 0.0
    %3512 = vmatprep.subr.mxu0 0.0
    %3513 = vmatpush1.msra.mxu0 0.0
    %3514 = vmatprep.subr.mxu0 0.0
    %3515 = vmatpush1.msra.mxu0 0.0
    %3516 = vmatprep.subr.mxu0 0.0
    %3517 = vmatpush1.msra.mxu0 %v3480
    %3518 = vmatprep.subr.mxu0 0.0
    %3519 = vmatpush1.msra.mxu0 %v3479
    %3520 = vmatprep.subr.mxu0 0.0
    %3521 = vmatpush1.msra.mxu0 %v3478
    %3522 = vmatprep.subr.mxu0 0.0
    %3523 = vmatpush1.msra.mxu0 %v3477
    %3524 = vmatprep.subr.mxu0 0.0
    %3525 = vmatpush2.msra.mxu0 0.0
    %3526 = vmatprep.subr.mxu0 0.0
    %3527 = vmatpush2.msra.mxu0 0.0
    %3528 = vmatprep.subr.mxu0 0.0
    %3529 = vmatpush2.msra.mxu0 0.0
    %3530 = vmatprep.subr.mxu0 0.0
    %3531 = vmatpush2.msra.mxu0 0.0
    %3532 = vmatprep.subr.mxu0 0.0
    %3533 = vmatpush2.msra.mxu0 0.0
    %3534 = vmatprep.subr.mxu0 0.0
    %3535 = vmatpush2.msra.mxu0 0.0
    %3536 = vmatprep.subr.mxu0 0.0
    %3537 = vmatpush2.msra.mxu0 0.0
    %3538 = vmatprep.subr.mxu0 0.0
    %3539 = vmatpush2.msra.mxu0 0.0
    %3540 = vmatprep.subr.mxu0 0.0
    %3541 = vmatpush2.msra.mxu0 0.0
    %3542 = vmatprep.subr.mxu0 0.0
    %3543 = vmatpush2.msra.mxu0 0.0
    %3544 = vmatprep.subr.mxu0 0.0
    %3545 = vmatpush2.msra.mxu0 0.0
    %3546 = vmatprep.subr.mxu0 0.0
    %3547 = vmatpush2.msra.mxu0 0.0
    %3548 = vmatprep.subr.mxu0 0.0
    %3549 = vmatpush2.msra.mxu0 0.0
    %3550 = vmatprep.subr.mxu0 0.0
    %3551 = vmatpush2.msra.mxu0 0.0
    %3552 = vmatprep.subr.mxu0 0.0
    %3553 = vmatpush2.msra.mxu0 0.0
    %3554 = vmatprep.subr.mxu0 0.0
    %3555 = vmatpush2.msra.mxu0 0.0
    %3556 = vmatprep.mubr.f32.mxu0 0.0
    %3557 = vmatmul.mubr.f32.gmra.mxu0 %v3487
    %v3558 = vpop.f32.mrf.mxu0
    %v3559 = vadd.f32 %v3485, %v3558
    %v3560 = vpop.f32.mrf.mxu0
    %3561 = vmatprep.mubr.f32.mxu0 0.0
    %3562 = vmatmul.mubr.f32.gmra.mxu0 %v3490
    %v3563 = vpop.f32.mrf.mxu0
    %v3564 = vadd.f32 %v3485, %v3563
    %v3565 = vpop.f32.mrf.mxu0
    %3566 = vdwg.mxu0
    %v3567 = vmul.f32 %v3559, %v358
    %v3568 = vmul.f32 %v3564, %v358
    %3570 = vrot.lane.b32.xlu0 %v3559, 96
    %v3571 = vpop.permute.xlu0 %3570
    %v3573 = vsel %vm273, %v3567, 0
    %v3575 = vsel %vm273, %v3571, 0
    %3577 = vmatprep.subr.mxu0 0.0
    %3578 = vmatpush1.xpose.msra.mxu0 0.0
    %3579 = vmatprep.subr.mxu0 0.0
    %3580 = vmatpush1.xpose.msra.mxu0 0.0
    %3581 = vmatprep.subr.mxu0 0.0
    %3582 = vmatpush1.xpose.msra.mxu0 0.0
    %3583 = vmatprep.subr.mxu0 0.0
    %3584 = vmatpush1.xpose.msra.mxu0 0.0
    %3585 = vmatprep.subr.mxu0 0.0
    %3586 = vmatpush1.xpose.msra.mxu0 0.0
    %3587 = vmatprep.subr.mxu0 0.0
    %3588 = vmatpush1.xpose.msra.mxu0 0.0
    %3589 = vmatprep.subr.mxu0 0.0
    %3590 = vmatpush1.xpose.msra.mxu0 0.0
    %3591 = vmatprep.subr.mxu0 0.0
    %3592 = vmatpush1.xpose.msra.mxu0 0.0
    %3593 = vmatprep.subr.mxu0 0.0
    %3594 = vmatpush1.xpose.msra.mxu0 0.0
    %3595 = vmatprep.subr.mxu0 0.0
    %3596 = vmatpush1.xpose.msra.mxu0 0.0
    %3597 = vmatprep.subr.mxu0 0.0
    %3598 = vmatpush1.xpose.msra.mxu0 0.0
    %3599 = vmatprep.subr.mxu0 0.0
    %3600 = vmatpush1.xpose.msra.mxu0 0.0
    %3601 = vmatprep.subr.mxu0 0.0
    %3602 = vmatpush1.xpose.msra.mxu0 0.0
    %3603 = vmatprep.subr.mxu0 0.0
    %3604 = vmatpush1.xpose.msra.mxu0 0.0
    %3605 = vmatprep.subr.mxu0 0.0
    %3606 = vmatpush1.xpose.msra.mxu0 0.0
    %3607 = vmatprep.subr.mxu0 0.0
    %3608 = vmatpush1.xpose.msra.mxu0 %v3575
    %3609 = vmatprep.subr.mxu0 0.0
    %3610 = vmatpush2.xpose.msra.mxu0 0.0
    %3611 = vmatprep.subr.mxu0 0.0
    %3612 = vmatpush2.xpose.msra.mxu0 0.0
    %3613 = vmatprep.subr.mxu0 0.0
    %3614 = vmatpush2.xpose.msra.mxu0 0.0
    %3615 = vmatprep.subr.mxu0 0.0
    %3616 = vmatpush2.xpose.msra.mxu0 0.0
    %3617 = vmatprep.subr.mxu0 0.0
    %3618 = vmatpush2.xpose.msra.mxu0 0.0
    %3619 = vmatprep.subr.mxu0 0.0
    %3620 = vmatpush2.xpose.msra.mxu0 0.0
    %3621 = vmatprep.subr.mxu0 0.0
    %3622 = vmatpush2.xpose.msra.mxu0 0.0
    %3623 = vmatprep.subr.mxu0 0.0
    %3624 = vmatpush2.xpose.msra.mxu0 0.0
    %3625 = vmatprep.subr.mxu0 0.0
    %3626 = vmatpush2.xpose.msra.mxu0 0.0
    %3627 = vmatprep.subr.mxu0 0.0
    %3628 = vmatpush2.xpose.msra.mxu0 0.0
    %3629 = vmatprep.subr.mxu0 0.0
    %3630 = vmatpush2.xpose.msra.mxu0 0.0
    %3631 = vmatprep.subr.mxu0 0.0
    %3632 = vmatpush2.xpose.msra.mxu0 0.0
    %3633 = vmatprep.subr.mxu0 0.0
    %3634 = vmatpush2.xpose.msra.mxu0 0.0
    %3635 = vmatprep.subr.mxu0 0.0
    %3636 = vmatpush2.xpose.msra.mxu0 0.0
    %3637 = vmatprep.subr.mxu0 0.0
    %3638 = vmatpush2.xpose.msra.mxu0 0.0
    %3639 = vmatprep.subr.mxu0 0.0
    %3640 = vmatpush2.xpose.msra.mxu0 0.0
    %3641 = vmatprep.mubr.f32.mxu0 0.0
    %3642 = vmatmul.mubr.f32.gmra.mxu0 %v3573
    %v3643 = vpop.f32.mrf.mxu0
    %v3644 = vadd.f32 0.0, %v3643
    %v3645 = vpop.f32.mrf.mxu0
    %3646 = vdwg.mxu0
    %3648 = vrot.lane.b32.xlu0 %v3564, 96
    %v3649 = vpop.permute.xlu0 %3648
    %v3651 = vsel %vm273, %v3568, 0
    %v3653 = vsel %vm273, %v3649, 0
    %3655 = vmatprep.subr.mxu0 0.0
    %3656 = vmatpush1.xpose.msra.mxu0 0.0
    %3657 = vmatprep.subr.mxu0 0.0
    %3658 = vmatpush1.xpose.msra.mxu0 0.0
    %3659 = vmatprep.subr.mxu0 0.0
    %3660 = vmatpush1.xpose.msra.mxu0 0.0
    %3661 = vmatprep.subr.mxu0 0.0
    %3662 = vmatpush1.xpose.msra.mxu0 0.0
    %3663 = vmatprep.subr.mxu0 0.0
    %3664 = vmatpush1.xpose.msra.mxu0 0.0
    %3665 = vmatprep.subr.mxu0 0.0
    %3666 = vmatpush1.xpose.msra.mxu0 0.0
    %3667 = vmatprep.subr.mxu0 0.0
    %3668 = vmatpush1.xpose.msra.mxu0 0.0
    %3669 = vmatprep.subr.mxu0 0.0
    %3670 = vmatpush1.xpose.msra.mxu0 0.0
    %3671 = vmatprep.subr.mxu0 0.0
    %3672 = vmatpush1.xpose.msra.mxu0 0.0
    %3673 = vmatprep.subr.mxu0 0.0
    %3674 = vmatpush1.xpose.msra.mxu0 0.0
    %3675 = vmatprep.subr.mxu0 0.0
    %3676 = vmatpush1.xpose.msra.mxu0 0.0
    %3677 = vmatprep.subr.mxu0 0.0
    %3678 = vmatpush1.xpose.msra.mxu0 0.0
    %3679 = vmatprep.subr.mxu0 0.0
    %3680 = vmatpush1.xpose.msra.mxu0 0.0
    %3681 = vmatprep.subr.mxu0 0.0
    %3682 = vmatpush1.xpose.msra.mxu0 0.0
    %3683 = vmatprep.subr.mxu0 0.0
    %3684 = vmatpush1.xpose.msra.mxu0 0.0
    %3685 = vmatprep.subr.mxu0 0.0
    %3686 = vmatpush1.xpose.msra.mxu0 %v3653
    %3687 = vmatprep.subr.mxu0 0.0
    %3688 = vmatpush2.xpose.msra.mxu0 0.0
    %3689 = vmatprep.subr.mxu0 0.0
    %3690 = vmatpush2.xpose.msra.mxu0 0.0
    %3691 = vmatprep.subr.mxu0 0.0
    %3692 = vmatpush2.xpose.msra.mxu0 0.0
    %3693 = vmatprep.subr.mxu0 0.0
    %3694 = vmatpush2.xpose.msra.mxu0 0.0
    %3695 = vmatprep.subr.mxu0 0.0
    %3696 = vmatpush2.xpose.msra.mxu0 0.0
    %3697 = vmatprep.subr.mxu0 0.0
    %3698 = vmatpush2.xpose.msra.mxu0 0.0
    %3699 = vmatprep.subr.mxu0 0.0
    %3700 = vmatpush2.xpose.msra.mxu0 0.0
    %3701 = vmatprep.subr.mxu0 0.0
    %3702 = vmatpush2.xpose.msra.mxu0 0.0
    %3703 = vmatprep.subr.mxu0 0.0
    %3704 = vmatpush2.xpose.msra.mxu0 0.0
    %3705 = vmatprep.subr.mxu0 0.0
    %3706 = vmatpush2.xpose.msra.mxu0 0.0
    %3707 = vmatprep.subr.mxu0 0.0
    %3708 = vmatpush2.xpose.msra.mxu0 0.0
    %3709 = vmatprep.subr.mxu0 0.0
    %3710 = vmatpush2.xpose.msra.mxu0 0.0
    %3711 = vmatprep.subr.mxu0 0.0
    %3712 = vmatpush2.xpose.msra.mxu0 0.0
    %3713 = vmatprep.subr.mxu0 0.0
    %3714 = vmatpush2.xpose.msra.mxu0 0.0
    %3715 = vmatprep.subr.mxu0 0.0
    %3716 = vmatpush2.xpose.msra.mxu0 0.0
    %3717 = vmatprep.subr.mxu0 0.0
    %3718 = vmatpush2.xpose.msra.mxu0 0.0
    %3719 = vmatprep.mubr.f32.mxu0 0.0
    %3720 = vmatmul.mubr.f32.gmra.mxu0 %v3651
    %v3721 = vpop.f32.mrf.mxu0
    %v3722 = vadd.f32 0.0, %v3721
    %v3723 = vpop.f32.mrf.mxu0
    %3724 = vdwg.mxu0
    %v3725 = vmul.f32 %v3644, 0.5
    %v3726 = vmul.f32 %v3722, 0.5
    %v3727 = vadd.f32 %v3725, %v75
    %v3728 = vadd.f32 %v3726, %v75
    %v3729 = vsel %vm521, %v3727, -inf
    %3730 = vmax.xlane.f32.xlu0 %v3729
    %v3731 = vpop.xlane.xlu0 %3730
    %v3732 = vsel %vm521, %v3728, -inf
    %3733 = vmax.xlane.f32.xlu0 %v3732
    %v3734 = vpop.xlane.xlu0 %3733
    %v3735 = vsub.f32 %v3727, %v3731
    %v3736 = vsub.f32 %v3728, %v3734
    %v3737 = vmul.f32 %v3735, 1.442695
    %v3738 = vpow.pop %v3737
    %v3739 = vmul.f32 %v3736, 1.442695
    %v3740 = vpow.pop %v3739
    %v3741 = vsel %vm521, %v3738, 0.0
    %3742 = vadd.xlane.f32.xlu0 %v3741
    %v3743 = vpop.xlane.xlu0 %3742
    %v3744 = vsel %vm521, %v3740, 0.0
    %3745 = vadd.xlane.f32.xlu0 %v3744
    %v3746 = vpop.xlane.xlu0 %3745
    %v3747 = vrcp.pop %v3743
    %v3748 = vrcp.pop %v3746
    %v3749 = vmul.f32 %v3738, %v3747
    %v3750 = vmul.f32 %v3740, %v3748
    %v3751 = vmul.f32 %v3559, %v546
    %v3752 = vmul.f32 %v3564, %v546
    %v3753 = vmul.f32 %v3559, %v553
    %v3754 = vmul.f32 %v3564, %v553
    %v3756 = vsel %vm273, %v3753, 0
    %3758 = vmatprep.subr.mxu0 0.0
    %3759 = vmatpush1.xpose.msra.mxu0 0.0
    %3760 = vmatprep.subr.mxu0 0.0
    %3761 = vmatpush1.xpose.msra.mxu0 0.0
    %3762 = vmatprep.subr.mxu0 0.0
    %3763 = vmatpush1.xpose.msra.mxu0 0.0
    %3764 = vmatprep.subr.mxu0 0.0
    %3765 = vmatpush1.xpose.msra.mxu0 0.0
    %3766 = vmatprep.subr.mxu0 0.0
    %3767 = vmatpush1.xpose.msra.mxu0 0.0
    %3768 = vmatprep.subr.mxu0 0.0
    %3769 = vmatpush1.xpose.msra.mxu0 0.0
    %3770 = vmatprep.subr.mxu0 0.0
    %3771 = vmatpush1.xpose.msra.mxu0 0.0
    %3772 = vmatprep.subr.mxu0 0.0
    %3773 = vmatpush1.xpose.msra.mxu0 0.0
    %3774 = vmatprep.subr.mxu0 0.0
    %3775 = vmatpush1.xpose.msra.mxu0 0.0
    %3776 = vmatprep.subr.mxu0 0.0
    %3777 = vmatpush1.xpose.msra.mxu0 0.0
    %3778 = vmatprep.subr.mxu0 0.0
    %3779 = vmatpush1.xpose.msra.mxu0 0.0
    %3780 = vmatprep.subr.mxu0 0.0
    %3781 = vmatpush1.xpose.msra.mxu0 0.0
    %3782 = vmatprep.subr.mxu0 0.0
    %3783 = vmatpush1.xpose.msra.mxu0 0.0
    %3784 = vmatprep.subr.mxu0 0.0
    %3785 = vmatpush1.xpose.msra.mxu0 0.0
    %3786 = vmatprep.subr.mxu0 0.0
    %3787 = vmatpush1.xpose.msra.mxu0 0.0
    %3788 = vmatprep.subr.mxu0 0.0
    %3789 = vmatpush1.xpose.msra.mxu0 %v3575
    %3790 = vmatprep.subr.mxu0 0.0
    %3791 = vmatpush2.xpose.msra.mxu0 0.0
    %3792 = vmatprep.subr.mxu0 0.0
    %3793 = vmatpush2.xpose.msra.mxu0 0.0
    %3794 = vmatprep.subr.mxu0 0.0
    %3795 = vmatpush2.xpose.msra.mxu0 0.0
    %3796 = vmatprep.subr.mxu0 0.0
    %3797 = vmatpush2.xpose.msra.mxu0 0.0
    %3798 = vmatprep.subr.mxu0 0.0
    %3799 = vmatpush2.xpose.msra.mxu0 0.0
    %3800 = vmatprep.subr.mxu0 0.0
    %3801 = vmatpush2.xpose.msra.mxu0 0.0
    %3802 = vmatprep.subr.mxu0 0.0
    %3803 = vmatpush2.xpose.msra.mxu0 0.0
    %3804 = vmatprep.subr.mxu0 0.0
    %3805 = vmatpush2.xpose.msra.mxu0 0.0
    %3806 = vmatprep.subr.mxu0 0.0
    %3807 = vmatpush2.xpose.msra.mxu0 0.0
    %3808 = vmatprep.subr.mxu0 0.0
    %3809 = vmatpush2.xpose.msra.mxu0 0.0
    %3810 = vmatprep.subr.mxu0 0.0
    %3811 = vmatpush2.xpose.msra.mxu0 0.0
    %3812 = vmatprep.subr.mxu0 0.0
    %3813 = vmatpush2.xpose.msra.mxu0 0.0
    %3814 = vmatprep.subr.mxu0 0.0
    %3815 = vmatpush2.xpose.msra.mxu0 0.0
    %3816 = vmatprep.subr.mxu0 0.0
    %3817 = vmatpush2.xpose.msra.mxu0 0.0
    %3818 = vmatprep.subr.mxu0 0.0
    %3819 = vmatpush2.xpose.msra.mxu0 0.0
    %3820 = vmatprep.subr.mxu0 0.0
    %3821 = vmatpush2.xpose.msra.mxu0 0.0
    %3822 = vmatprep.mubr.f32.mxu0 0.0
    %3823 = vmatmul.mubr.f32.gmra.mxu0 %v3756
    %v3824 = vpop.f32.mrf.mxu0
    %v3825 = vadd.f32 0.0, %v3824
    %v3826 = vpop.f32.mrf.mxu0
    %3827 = vdwg.mxu0
    %v3829 = vsel %vm273, %v3754, 0
    %3831 = vmatprep.subr.mxu0 0.0
    %3832 = vmatpush1.xpose.msra.mxu0 0.0
    %3833 = vmatprep.subr.mxu0 0.0
    %3834 = vmatpush1.xpose.msra.mxu0 0.0
    %3835 = vmatprep.subr.mxu0 0.0
    %3836 = vmatpush1.xpose.msra.mxu0 0.0
    %3837 = vmatprep.subr.mxu0 0.0
    %3838 = vmatpush1.xpose.msra.mxu0 0.0
    %3839 = vmatprep.subr.mxu0 0.0
    %3840 = vmatpush1.xpose.msra.mxu0 0.0
    %3841 = vmatprep.subr.mxu0 0.0
    %3842 = vmatpush1.xpose.msra.mxu0 0.0
    %3843 = vmatprep.subr.mxu0 0.0
    %3844 = vmatpush1.xpose.msra.mxu0 0.0
    %3845 = vmatprep.subr.mxu0 0.0
    %3846 = vmatpush1.xpose.msra.mxu0 0.0
    %3847 = vmatprep.subr.mxu0 0.0
    %3848 = vmatpush1.xpose.msra.mxu0 0.0
    %3849 = vmatprep.subr.mxu0 0.0
    %3850 = vmatpush1.xpose.msra.mxu0 0.0
    %3851 = vmatprep.subr.mxu0 0.0
    %3852 = vmatpush1.xpose.msra.mxu0 0.0
    %3853 = vmatprep.subr.mxu0 0.0
    %3854 = vmatpush1.xpose.msra.mxu0 0.0
    %3855 = vmatprep.subr.mxu0 0.0
    %3856 = vmatpush1.xpose.msra.mxu0 0.0
    %3857 = vmatprep.subr.mxu0 0.0
    %3858 = vmatpush1.xpose.msra.mxu0 0.0
    %3859 = vmatprep.subr.mxu0 0.0
    %3860 = vmatpush1.xpose.msra.mxu0 0.0
    %3861 = vmatprep.subr.mxu0 0.0
    %3862 = vmatpush1.xpose.msra.mxu0 %v3653
    %3863 = vmatprep.subr.mxu0 0.0
    %3864 = vmatpush2.xpose.msra.mxu0 0.0
    %3865 = vmatprep.subr.mxu0 0.0
    %3866 = vmatpush2.xpose.msra.mxu0 0.0
    %3867 = vmatprep.subr.mxu0 0.0
    %3868 = vmatpush2.xpose.msra.mxu0 0.0
    %3869 = vmatprep.subr.mxu0 0.0
    %3870 = vmatpush2.xpose.msra.mxu0 0.0
    %3871 = vmatprep.subr.mxu0 0.0
    %3872 = vmatpush2.xpose.msra.mxu0 0.0
    %3873 = vmatprep.subr.mxu0 0.0
    %3874 = vmatpush2.xpose.msra.mxu0 0.0
    %3875 = vmatprep.subr.mxu0 0.0
    %3876 = vmatpush2.xpose.msra.mxu0 0.0
    %3877 = vmatprep.subr.mxu0 0.0
    %3878 = vmatpush2.xpose.msra.mxu0 0.0
    %3879 = vmatprep.subr.mxu0 0.0
    %3880 = vmatpush2.xpose.msra.mxu0 0.0
    %3881 = vmatprep.subr.mxu0 0.0
    %3882 = vmatpush2.xpose.msra.mxu0 0.0
    %3883 = vmatprep.subr.mxu0 0.0
    %3884 = vmatpush2.xpose.msra.mxu0 0.0
    %3885 = vmatprep.subr.mxu0 0.0
    %3886 = vmatpush2.xpose.msra.mxu0 0.0
    %3887 = vmatprep.subr.mxu0 0.0
    %3888 = vmatpush2.xpose.msra.mxu0 0.0
    %3889 = vmatprep.subr.mxu0 0.0
    %3890 = vmatpush2.xpose.msra.mxu0 0.0
    %3891 = vmatprep.subr.mxu0 0.0
    %3892 = vmatpush2.xpose.msra.mxu0 0.0
    %3893 = vmatprep.subr.mxu0 0.0
    %3894 = vmatpush2.xpose.msra.mxu0 0.0
    %3895 = vmatprep.mubr.f32.mxu0 0.0
    %3896 = vmatmul.mubr.f32.gmra.mxu0 %v3829
    %v3897 = vpop.f32.mrf.mxu0
    %v3898 = vadd.f32 0.0, %v3897
    %v3899 = vpop.f32.mrf.mxu0
    %3900 = vdwg.mxu0
    %v3901 = vmul.f32 %v3825, 0.5
    %v3902 = vmul.f32 %v3898, 0.5
    %v3903 = vadd.f32 %v3901, %v75
    %v3904 = vadd.f32 %v3902, %v75
    %v3905 = vsel %vm521, %v3903, -inf
    %3906 = vmax.xlane.f32.xlu0 %v3905
    %v3907 = vpop.xlane.xlu0 %3906
    %v3908 = vsel %vm521, %v3904, -inf
    %3909 = vmax.xlane.f32.xlu0 %v3908
    %v3910 = vpop.xlane.xlu0 %3909
    %v3911 = vsub.f32 %v3903, %v3907
    %v3912 = vsub.f32 %v3904, %v3910
    %v3913 = vmul.f32 %v3911, 1.442695
    %v3914 = vpow.pop %v3913
    %v3915 = vmul.f32 %v3912, 1.442695
    %v3916 = vpow.pop %v3915
    %v3917 = vsel %vm521, %v3914, 0.0
    %3918 = vadd.xlane.f32.xlu0 %v3917
    %v3919 = vpop.xlane.xlu0 %3918
    %v3920 = vsel %vm521, %v3916, 0.0
    %3921 = vadd.xlane.f32.xlu0 %v3920
    %v3922 = vpop.xlane.xlu0 %3921
    %v3923 = vrcp.pop %v3919
    %v3924 = vrcp.pop %v3922
    %v3925 = vmul.f32 %v3914, %v3923
    %v3926 = vmul.f32 %v3916, %v3924
    %v3927 = vmul.f32 %v3559, %v730
    %v3928 = vmul.f32 %v3564, %v730
    %3930 = vrot.lane.b32.xlu0 %v3927, 64
    %v3931 = vpop.permute.xlu0 %3930
    %v3934 = vsel %vm521, %v3925, 0
    %3936 = vmatprep.subr.mxu0 0.0
    %3937 = vmatpush1.msra.mxu0 0.0
    %3938 = vmatprep.subr.mxu0 0.0
    %3939 = vmatpush1.msra.mxu0 0.0
    %3940 = vmatprep.subr.mxu0 0.0
    %3941 = vmatpush1.msra.mxu0 0.0
    %3942 = vmatprep.subr.mxu0 0.0
    %3943 = vmatpush1.msra.mxu0 0.0
    %3944 = vmatprep.subr.mxu0 0.0
    %3945 = vmatpush1.msra.mxu0 0.0
    %3946 = vmatprep.subr.mxu0 0.0
    %3947 = vmatpush1.msra.mxu0 0.0
    %3948 = vmatprep.subr.mxu0 0.0
    %3949 = vmatpush1.msra.mxu0 0.0
    %3950 = vmatprep.subr.mxu0 0.0
    %3951 = vmatpush1.msra.mxu0 0.0
    %3952 = vmatprep.subr.mxu0 0.0
    %3953 = vmatpush1.msra.mxu0 0.0
    %3954 = vmatprep.subr.mxu0 0.0
    %3955 = vmatpush1.msra.mxu0 0.0
    %3956 = vmatprep.subr.mxu0 0.0
    %3957 = vmatpush1.msra.mxu0 0.0
    %3958 = vmatprep.subr.mxu0 0.0
    %3959 = vmatpush1.msra.mxu0 0.0
    %3960 = vmatprep.subr.mxu0 0.0
    %3961 = vmatpush1.msra.mxu0 0.0
    %3962 = vmatprep.subr.mxu0 0.0
    %3963 = vmatpush1.msra.mxu0 0.0
    %3964 = vmatprep.subr.mxu0 0.0
    %3965 = vmatpush1.msra.mxu0 0.0
    %3966 = vmatprep.subr.mxu0 0.0
    %3967 = vmatpush1.msra.mxu0 %v3931
    %3968 = vmatprep.subr.mxu0 0.0
    %3969 = vmatpush2.msra.mxu0 0.0
    %3970 = vmatprep.subr.mxu0 0.0
    %3971 = vmatpush2.msra.mxu0 0.0
    %3972 = vmatprep.subr.mxu0 0.0
    %3973 = vmatpush2.msra.mxu0 0.0
    %3974 = vmatprep.subr.mxu0 0.0
    %3975 = vmatpush2.msra.mxu0 0.0
    %3976 = vmatprep.subr.mxu0 0.0
    %3977 = vmatpush2.msra.mxu0 0.0
    %3978 = vmatprep.subr.mxu0 0.0
    %3979 = vmatpush2.msra.mxu0 0.0
    %3980 = vmatprep.subr.mxu0 0.0
    %3981 = vmatpush2.msra.mxu0 0.0
    %3982 = vmatprep.subr.mxu0 0.0
    %3983 = vmatpush2.msra.mxu0 0.0
    %3984 = vmatprep.subr.mxu0 0.0
    %3985 = vmatpush2.msra.mxu0 0.0
    %3986 = vmatprep.subr.mxu0 0.0
    %3987 = vmatpush2.msra.mxu0 0.0
    %3988 = vmatprep.subr.mxu0 0.0
    %3989 = vmatpush2.msra.mxu0 0.0
    %3990 = vmatprep.subr.mxu0 0.0
    %3991 = vmatpush2.msra.mxu0 0.0
    %3992 = vmatprep.subr.mxu0 0.0
    %3993 = vmatpush2.msra.mxu0 0.0
    %3994 = vmatprep.subr.mxu0 0.0
    %3995 = vmatpush2.msra.mxu0 0.0
    %3996 = vmatprep.subr.mxu0 0.0
    %3997 = vmatpush2.msra.mxu0 0.0
    %3998 = vmatprep.subr.mxu0 0.0
    %3999 = vmatpush2.msra.mxu0 0.0
    %4000 = vmatprep.mubr.f32.mxu0 0.0
    %4001 = vmatmul.mubr.f32.gmra.mxu0 %v3934
    %v4002 = vpop.f32.mrf.mxu0
    %v4003 = vadd.f32 0.0, %v4002
    %v4004 = vpop.f32.mrf.mxu0
    %4005 = vdwg.mxu0
    %4007 = vrot.lane.b32.xlu0 %v3928, 64
    %v4008 = vpop.permute.xlu0 %4007
    %v4011 = vsel %vm521, %v3926, 0
    %4013 = vmatprep.subr.mxu0 0.0
    %4014 = vmatpush1.msra.mxu0 0.0
    %4015 = vmatprep.subr.mxu0 0.0
    %4016 = vmatpush1.msra.mxu0 0.0
    %4017 = vmatprep.subr.mxu0 0.0
    %4018 = vmatpush1.msra.mxu0 0.0
    %4019 = vmatprep.subr.mxu0 0.0
    %4020 = vmatpush1.msra.mxu0 0.0
    %4021 = vmatprep.subr.mxu0 0.0
    %4022 = vmatpush1.msra.mxu0 0.0
    %4023 = vmatprep.subr.mxu0 0.0
    %4024 = vmatpush1.msra.mxu0 0.0
    %4025 = vmatprep.subr.mxu0 0.0
    %4026 = vmatpush1.msra.mxu0 0.0
    %4027 = vmatprep.subr.mxu0 0.0
    %4028 = vmatpush1.msra.mxu0 0.0
    %4029 = vmatprep.subr.mxu0 0.0
    %4030 = vmatpush1.msra.mxu0 0.0
    %4031 = vmatprep.subr.mxu0 0.0
    %4032 = vmatpush1.msra.mxu0 0.0
    %4033 = vmatprep.subr.mxu0 0.0
    %4034 = vmatpush1.msra.mxu0 0.0
    %4035 = vmatprep.subr.mxu0 0.0
    %4036 = vmatpush1.msra.mxu0 0.0
    %4037 = vmatprep.subr.mxu0 0.0
    %4038 = vmatpush1.msra.mxu0 0.0
    %4039 = vmatprep.subr.mxu0 0.0
    %4040 = vmatpush1.msra.mxu0 0.0
    %4041 = vmatprep.subr.mxu0 0.0
    %4042 = vmatpush1.msra.mxu0 0.0
    %4043 = vmatprep.subr.mxu0 0.0
    %4044 = vmatpush1.msra.mxu0 %v4008
    %4045 = vmatprep.subr.mxu0 0.0
    %4046 = vmatpush2.msra.mxu0 0.0
    %4047 = vmatprep.subr.mxu0 0.0
    %4048 = vmatpush2.msra.mxu0 0.0
    %4049 = vmatprep.subr.mxu0 0.0
    %4050 = vmatpush2.msra.mxu0 0.0
    %4051 = vmatprep.subr.mxu0 0.0
    %4052 = vmatpush2.msra.mxu0 0.0
    %4053 = vmatprep.subr.mxu0 0.0
    %4054 = vmatpush2.msra.mxu0 0.0
    %4055 = vmatprep.subr.mxu0 0.0
    %4056 = vmatpush2.msra.mxu0 0.0
    %4057 = vmatprep.subr.mxu0 0.0
    %4058 = vmatpush2.msra.mxu0 0.0
    %4059 = vmatprep.subr.mxu0 0.0
    %4060 = vmatpush2.msra.mxu0 0.0
    %4061 = vmatprep.subr.mxu0 0.0
    %4062 = vmatpush2.msra.mxu0 0.0
    %4063 = vmatprep.subr.mxu0 0.0
    %4064 = vmatpush2.msra.mxu0 0.0
    %4065 = vmatprep.subr.mxu0 0.0
    %4066 = vmatpush2.msra.mxu0 0.0
    %4067 = vmatprep.subr.mxu0 0.0
    %4068 = vmatpush2.msra.mxu0 0.0
    %4069 = vmatprep.subr.mxu0 0.0
    %4070 = vmatpush2.msra.mxu0 0.0
    %4071 = vmatprep.subr.mxu0 0.0
    %4072 = vmatpush2.msra.mxu0 0.0
    %4073 = vmatprep.subr.mxu0 0.0
    %4074 = vmatpush2.msra.mxu0 0.0
    %4075 = vmatprep.subr.mxu0 0.0
    %4076 = vmatpush2.msra.mxu0 0.0
    %4077 = vmatprep.mubr.f32.mxu0 0.0
    %4078 = vmatmul.mubr.f32.gmra.mxu0 %v4011
    %v4079 = vpop.f32.mrf.mxu0
    %v4080 = vadd.f32 0.0, %v4079
    %v4081 = vpop.f32.mrf.mxu0
    %4082 = vdwg.mxu0
    %4084 = vrot.lane.b32.xlu0 %v3751, 64
    %v4085 = vpop.permute.xlu0 %4084
    %v4088 = vsel %vm521, %v3749, 0
    %4090 = vmatprep.subr.mxu0 0.0
    %4091 = vmatpush1.msra.mxu0 0.0
    %4092 = vmatprep.subr.mxu0 0.0
    %4093 = vmatpush1.msra.mxu0 0.0
    %4094 = vmatprep.subr.mxu0 0.0
    %4095 = vmatpush1.msra.mxu0 0.0
    %4096 = vmatprep.subr.mxu0 0.0
    %4097 = vmatpush1.msra.mxu0 0.0
    %4098 = vmatprep.subr.mxu0 0.0
    %4099 = vmatpush1.msra.mxu0 0.0
    %4100 = vmatprep.subr.mxu0 0.0
    %4101 = vmatpush1.msra.mxu0 0.0
    %4102 = vmatprep.subr.mxu0 0.0
    %4103 = vmatpush1.msra.mxu0 0.0
    %4104 = vmatprep.subr.mxu0 0.0
    %4105 = vmatpush1.msra.mxu0 0.0
    %4106 = vmatprep.subr.mxu0 0.0
    %4107 = vmatpush1.msra.mxu0 0.0
    %4108 = vmatprep.subr.mxu0 0.0
    %4109 = vmatpush1.msra.mxu0 0.0
    %4110 = vmatprep.subr.mxu0 0.0
    %4111 = vmatpush1.msra.mxu0 0.0
    %4112 = vmatprep.subr.mxu0 0.0
    %4113 = vmatpush1.msra.mxu0 0.0
    %4114 = vmatprep.subr.mxu0 0.0
    %4115 = vmatpush1.msra.mxu0 0.0
    %4116 = vmatprep.subr.mxu0 0.0
    %4117 = vmatpush1.msra.mxu0 0.0
    %4118 = vmatprep.subr.mxu0 0.0
    %4119 = vmatpush1.msra.mxu0 0.0
    %4120 = vmatprep.subr.mxu0 0.0
    %4121 = vmatpush1.msra.mxu0 %v4085
    %4122 = vmatprep.subr.mxu0 0.0
    %4123 = vmatpush2.msra.mxu0 0.0
    %4124 = vmatprep.subr.mxu0 0.0
    %4125 = vmatpush2.msra.mxu0 0.0
    %4126 = vmatprep.subr.mxu0 0.0
    %4127 = vmatpush2.msra.mxu0 0.0
    %4128 = vmatprep.subr.mxu0 0.0
    %4129 = vmatpush2.msra.mxu0 0.0
    %4130 = vmatprep.subr.mxu0 0.0
    %4131 = vmatpush2.msra.mxu0 0.0
    %4132 = vmatprep.subr.mxu0 0.0
    %4133 = vmatpush2.msra.mxu0 0.0
    %4134 = vmatprep.subr.mxu0 0.0
    %4135 = vmatpush2.msra.mxu0 0.0
    %4136 = vmatprep.subr.mxu0 0.0
    %4137 = vmatpush2.msra.mxu0 0.0
    %4138 = vmatprep.subr.mxu0 0.0
    %4139 = vmatpush2.msra.mxu0 0.0
    %4140 = vmatprep.subr.mxu0 0.0
    %4141 = vmatpush2.msra.mxu0 0.0
    %4142 = vmatprep.subr.mxu0 0.0
    %4143 = vmatpush2.msra.mxu0 0.0
    %4144 = vmatprep.subr.mxu0 0.0
    %4145 = vmatpush2.msra.mxu0 0.0
    %4146 = vmatprep.subr.mxu0 0.0
    %4147 = vmatpush2.msra.mxu0 0.0
    %4148 = vmatprep.subr.mxu0 0.0
    %4149 = vmatpush2.msra.mxu0 0.0
    %4150 = vmatprep.subr.mxu0 0.0
    %4151 = vmatpush2.msra.mxu0 0.0
    %4152 = vmatprep.subr.mxu0 0.0
    %4153 = vmatpush2.msra.mxu0 0.0
    %4154 = vmatprep.mubr.f32.mxu0 0.0
    %4155 = vmatmul.mubr.f32.gmra.mxu0 %v4088
    %v4156 = vpop.f32.mrf.mxu0
    %v4157 = vadd.f32 %v4003, %v4156
    %v4158 = vpop.f32.mrf.mxu0
    %4159 = vdwg.mxu0
    %4161 = vrot.lane.b32.xlu0 %v3752, 64
    %v4162 = vpop.permute.xlu0 %4161
    %v4165 = vsel %vm521, %v3750, 0
    %4167 = vmatprep.subr.mxu0 0.0
    %4168 = vmatpush1.msra.mxu0 0.0
    %4169 = vmatprep.subr.mxu0 0.0
    %4170 = vmatpush1.msra.mxu0 0.0
    %4171 = vmatprep.subr.mxu0 0.0
    %4172 = vmatpush1.msra.mxu0 0.0
    %4173 = vmatprep.subr.mxu0 0.0
    %4174 = vmatpush1.msra.mxu0 0.0
    %4175 = vmatprep.subr.mxu0 0.0
    %4176 = vmatpush1.msra.mxu0 0.0
    %4177 = vmatprep.subr.mxu0 0.0
    %4178 = vmatpush1.msra.mxu0 0.0
    %4179 = vmatprep.subr.mxu0 0.0
    %4180 = vmatpush1.msra.mxu0 0.0
    %4181 = vmatprep.subr.mxu0 0.0
    %4182 = vmatpush1.msra.mxu0 0.0
    %4183 = vmatprep.subr.mxu0 0.0
    %4184 = vmatpush1.msra.mxu0 0.0
    %4185 = vmatprep.subr.mxu0 0.0
    %4186 = vmatpush1.msra.mxu0 0.0
    %4187 = vmatprep.subr.mxu0 0.0
    %4188 = vmatpush1.msra.mxu0 0.0
    %4189 = vmatprep.subr.mxu0 0.0
    %4190 = vmatpush1.msra.mxu0 0.0
    %4191 = vmatprep.subr.mxu0 0.0
    %4192 = vmatpush1.msra.mxu0 0.0
    %4193 = vmatprep.subr.mxu0 0.0
    %4194 = vmatpush1.msra.mxu0 0.0
    %4195 = vmatprep.subr.mxu0 0.0
    %4196 = vmatpush1.msra.mxu0 0.0
    %4197 = vmatprep.subr.mxu0 0.0
    %4198 = vmatpush1.msra.mxu0 %v4162
    %4199 = vmatprep.subr.mxu0 0.0
    %4200 = vmatpush2.msra.mxu0 0.0
    %4201 = vmatprep.subr.mxu0 0.0
    %4202 = vmatpush2.msra.mxu0 0.0
    %4203 = vmatprep.subr.mxu0 0.0
    %4204 = vmatpush2.msra.mxu0 0.0
    %4205 = vmatprep.subr.mxu0 0.0
    %4206 = vmatpush2.msra.mxu0 0.0
    %4207 = vmatprep.subr.mxu0 0.0
    %4208 = vmatpush2.msra.mxu0 0.0
    %4209 = vmatprep.subr.mxu0 0.0
    %4210 = vmatpush2.msra.mxu0 0.0
    %4211 = vmatprep.subr.mxu0 0.0
    %4212 = vmatpush2.msra.mxu0 0.0
    %4213 = vmatprep.subr.mxu0 0.0
    %4214 = vmatpush2.msra.mxu0 0.0
    %4215 = vmatprep.subr.mxu0 0.0
    %4216 = vmatpush2.msra.mxu0 0.0
    %4217 = vmatprep.subr.mxu0 0.0
    %4218 = vmatpush2.msra.mxu0 0.0
    %4219 = vmatprep.subr.mxu0 0.0
    %4220 = vmatpush2.msra.mxu0 0.0
    %4221 = vmatprep.subr.mxu0 0.0
    %4222 = vmatpush2.msra.mxu0 0.0
    %4223 = vmatprep.subr.mxu0 0.0
    %4224 = vmatpush2.msra.mxu0 0.0
    %4225 = vmatprep.subr.mxu0 0.0
    %4226 = vmatpush2.msra.mxu0 0.0
    %4227 = vmatprep.subr.mxu0 0.0
    %4228 = vmatpush2.msra.mxu0 0.0
    %4229 = vmatprep.subr.mxu0 0.0
    %4230 = vmatpush2.msra.mxu0 0.0
    %4231 = vmatprep.mubr.f32.mxu0 0.0
    %4232 = vmatmul.mubr.f32.gmra.mxu0 %v4165
    %v4233 = vpop.f32.mrf.mxu0
    %v4234 = vadd.f32 %v4080, %v4233
    %v4235 = vpop.f32.mrf.mxu0
    %4236 = vdwg.mxu0
    %v4237 = vmul.f32 %v3559, %v1045
    %v4238 = vmul.f32 %v3564, %v1045
    %v4240 = vsel %vm273, %v4237, 0
    %4242 = vmatprep.subr.mxu0 0.0
    %4243 = vmatpush1.xpose.msra.mxu0 0.0
    %4244 = vmatprep.subr.mxu0 0.0
    %4245 = vmatpush1.xpose.msra.mxu0 0.0
    %4246 = vmatprep.subr.mxu0 0.0
    %4247 = vmatpush1.xpose.msra.mxu0 0.0
    %4248 = vmatprep.subr.mxu0 0.0
    %4249 = vmatpush1.xpose.msra.mxu0 0.0
    %4250 = vmatprep.subr.mxu0 0.0
    %4251 = vmatpush1.xpose.msra.mxu0 0.0
    %4252 = vmatprep.subr.mxu0 0.0
    %4253 = vmatpush1.xpose.msra.mxu0 0.0
    %4254 = vmatprep.subr.mxu0 0.0
    %4255 = vmatpush1.xpose.msra.mxu0 0.0
    %4256 = vmatprep.subr.mxu0 0.0
    %4257 = vmatpush1.xpose.msra.mxu0 0.0
    %4258 = vmatprep.subr.mxu0 0.0
    %4259 = vmatpush1.xpose.msra.mxu0 0.0
    %4260 = vmatprep.subr.mxu0 0.0
    %4261 = vmatpush1.xpose.msra.mxu0 0.0
    %4262 = vmatprep.subr.mxu0 0.0
    %4263 = vmatpush1.xpose.msra.mxu0 0.0
    %4264 = vmatprep.subr.mxu0 0.0
    %4265 = vmatpush1.xpose.msra.mxu0 0.0
    %4266 = vmatprep.subr.mxu0 0.0
    %4267 = vmatpush1.xpose.msra.mxu0 0.0
    %4268 = vmatprep.subr.mxu0 0.0
    %4269 = vmatpush1.xpose.msra.mxu0 0.0
    %4270 = vmatprep.subr.mxu0 0.0
    %4271 = vmatpush1.xpose.msra.mxu0 0.0
    %4272 = vmatprep.subr.mxu0 0.0
    %4273 = vmatpush1.xpose.msra.mxu0 %v3575
    %4274 = vmatprep.subr.mxu0 0.0
    %4275 = vmatpush2.xpose.msra.mxu0 0.0
    %4276 = vmatprep.subr.mxu0 0.0
    %4277 = vmatpush2.xpose.msra.mxu0 0.0
    %4278 = vmatprep.subr.mxu0 0.0
    %4279 = vmatpush2.xpose.msra.mxu0 0.0
    %4280 = vmatprep.subr.mxu0 0.0
    %4281 = vmatpush2.xpose.msra.mxu0 0.0
    %4282 = vmatprep.subr.mxu0 0.0
    %4283 = vmatpush2.xpose.msra.mxu0 0.0
    %4284 = vmatprep.subr.mxu0 0.0
    %4285 = vmatpush2.xpose.msra.mxu0 0.0
    %4286 = vmatprep.subr.mxu0 0.0
    %4287 = vmatpush2.xpose.msra.mxu0 0.0
    %4288 = vmatprep.subr.mxu0 0.0
    %4289 = vmatpush2.xpose.msra.mxu0 0.0
    %4290 = vmatprep.subr.mxu0 0.0
    %4291 = vmatpush2.xpose.msra.mxu0 0.0
    %4292 = vmatprep.subr.mxu0 0.0
    %4293 = vmatpush2.xpose.msra.mxu0 0.0
    %4294 = vmatprep.subr.mxu0 0.0
    %4295 = vmatpush2.xpose.msra.mxu0 0.0
    %4296 = vmatprep.subr.mxu0 0.0
    %4297 = vmatpush2.xpose.msra.mxu0 0.0
    %4298 = vmatprep.subr.mxu0 0.0
    %4299 = vmatpush2.xpose.msra.mxu0 0.0
    %4300 = vmatprep.subr.mxu0 0.0
    %4301 = vmatpush2.xpose.msra.mxu0 0.0
    %4302 = vmatprep.subr.mxu0 0.0
    %4303 = vmatpush2.xpose.msra.mxu0 0.0
    %4304 = vmatprep.subr.mxu0 0.0
    %4305 = vmatpush2.xpose.msra.mxu0 0.0
    %4306 = vmatprep.mubr.f32.mxu0 0.0
    %4307 = vmatmul.mubr.f32.gmra.mxu0 %v4240
    %v4308 = vpop.f32.mrf.mxu0
    %v4309 = vadd.f32 0.0, %v4308
    %v4310 = vpop.f32.mrf.mxu0
    %4311 = vdwg.mxu0
    %v4313 = vsel %vm273, %v4238, 0
    %4315 = vmatprep.subr.mxu0 0.0
    %4316 = vmatpush1.xpose.msra.mxu0 0.0
    %4317 = vmatprep.subr.mxu0 0.0
    %4318 = vmatpush1.xpose.msra.mxu0 0.0
    %4319 = vmatprep.subr.mxu0 0.0
    %4320 = vmatpush1.xpose.msra.mxu0 0.0
    %4321 = vmatprep.subr.mxu0 0.0
    %4322 = vmatpush1.xpose.msra.mxu0 0.0
    %4323 = vmatprep.subr.mxu0 0.0
    %4324 = vmatpush1.xpose.msra.mxu0 0.0
    %4325 = vmatprep.subr.mxu0 0.0
    %4326 = vmatpush1.xpose.msra.mxu0 0.0
    %4327 = vmatprep.subr.mxu0 0.0
    %4328 = vmatpush1.xpose.msra.mxu0 0.0
    %4329 = vmatprep.subr.mxu0 0.0
    %4330 = vmatpush1.xpose.msra.mxu0 0.0
    %4331 = vmatprep.subr.mxu0 0.0
    %4332 = vmatpush1.xpose.msra.mxu0 0.0
    %4333 = vmatprep.subr.mxu0 0.0
    %4334 = vmatpush1.xpose.msra.mxu0 0.0
    %4335 = vmatprep.subr.mxu0 0.0
    %4336 = vmatpush1.xpose.msra.mxu0 0.0
    %4337 = vmatprep.subr.mxu0 0.0
    %4338 = vmatpush1.xpose.msra.mxu0 0.0
    %4339 = vmatprep.subr.mxu0 0.0
    %4340 = vmatpush1.xpose.msra.mxu0 0.0
    %4341 = vmatprep.subr.mxu0 0.0
    %4342 = vmatpush1.xpose.msra.mxu0 0.0
    %4343 = vmatprep.subr.mxu0 0.0
    %4344 = vmatpush1.xpose.msra.mxu0 0.0
    %4345 = vmatprep.subr.mxu0 0.0
    %4346 = vmatpush1.xpose.msra.mxu0 %v3653
    %4347 = vmatprep.subr.mxu0 0.0
    %4348 = vmatpush2.xpose.msra.mxu0 0.0
    %4349 = vmatprep.subr.mxu0 0.0
    %4350 = vmatpush2.xpose.msra.mxu0 0.0
    %4351 = vmatprep.subr.mxu0 0.0
    %4352 = vmatpush2.xpose.msra.mxu0 0.0
    %4353 = vmatprep.subr.mxu0 0.0
    %4354 = vmatpush2.xpose.msra.mxu0 0.0
    %4355 = vmatprep.subr.mxu0 0.0
    %4356 = vmatpush2.xpose.msra.mxu0 0.0
    %4357 = vmatprep.subr.mxu0 0.0
    %4358 = vmatpush2.xpose.msra.mxu0 0.0
    %4359 = vmatprep.subr.mxu0 0.0
    %4360 = vmatpush2.xpose.msra.mxu0 0.0
    %4361 = vmatprep.subr.mxu0 0.0
    %4362 = vmatpush2.xpose.msra.mxu0 0.0
    %4363 = vmatprep.subr.mxu0 0.0
    %4364 = vmatpush2.xpose.msra.mxu0 0.0
    %4365 = vmatprep.subr.mxu0 0.0
    %4366 = vmatpush2.xpose.msra.mxu0 0.0
    %4367 = vmatprep.subr.mxu0 0.0
    %4368 = vmatpush2.xpose.msra.mxu0 0.0
    %4369 = vmatprep.subr.mxu0 0.0
    %4370 = vmatpush2.xpose.msra.mxu0 0.0
    %4371 = vmatprep.subr.mxu0 0.0
    %4372 = vmatpush2.xpose.msra.mxu0 0.0
    %4373 = vmatprep.subr.mxu0 0.0
    %4374 = vmatpush2.xpose.msra.mxu0 0.0
    %4375 = vmatprep.subr.mxu0 0.0
    %4376 = vmatpush2.xpose.msra.mxu0 0.0
    %4377 = vmatprep.subr.mxu0 0.0
    %4378 = vmatpush2.xpose.msra.mxu0 0.0
    %4379 = vmatprep.mubr.f32.mxu0 0.0
    %4380 = vmatmul.mubr.f32.gmra.mxu0 %v4313
    %v4381 = vpop.f32.mrf.mxu0
    %v4382 = vadd.f32 0.0, %v4381
    %v4383 = vpop.f32.mrf.mxu0
    %4384 = vdwg.mxu0
    %v4385 = vmul.f32 %v4309, 0.5
    %v4386 = vmul.f32 %v4382, 0.5
    %v4387 = vadd.f32 %v4385, %v75
    %v4388 = vadd.f32 %v4386, %v75
    %v4389 = vsel %vm521, %v4387, -inf
    %4390 = vmax.xlane.f32.xlu0 %v4389
    %v4391 = vpop.xlane.xlu0 %4390
    %v4392 = vsel %vm521, %v4388, -inf
    %4393 = vmax.xlane.f32.xlu0 %v4392
    %v4394 = vpop.xlane.xlu0 %4393
    %v4395 = vsub.f32 %v4387, %v4391
    %v4396 = vsub.f32 %v4388, %v4394
    %v4397 = vmul.f32 %v4395, 1.442695
    %v4398 = vpow.pop %v4397
    %v4399 = vmul.f32 %v4396, 1.442695
    %v4400 = vpow.pop %v4399
    %v4401 = vsel %vm521, %v4398, 0.0
    %4402 = vadd.xlane.f32.xlu0 %v4401
    %v4403 = vpop.xlane.xlu0 %4402
    %v4404 = vsel %vm521, %v4400, 0.0
    %4405 = vadd.xlane.f32.xlu0 %v4404
    %v4406 = vpop.xlane.xlu0 %4405
    %v4407 = vrcp.pop %v4403
    %v4408 = vrcp.pop %v4406
    %v4409 = vmul.f32 %v4398, %v4407
    %v4410 = vmul.f32 %v4400, %v4408
    %v4411 = vmul.f32 %v3559, %v1222
    %v4412 = vmul.f32 %v3564, %v1222
    %4414 = vrot.lane.b32.xlu0 %v4411, 64
    %v4415 = vpop.permute.xlu0 %4414
    %v4418 = vsel %vm521, %v4409, 0
    %4420 = vmatprep.subr.mxu0 0.0
    %4421 = vmatpush1.msra.mxu0 0.0
    %4422 = vmatprep.subr.mxu0 0.0
    %4423 = vmatpush1.msra.mxu0 0.0
    %4424 = vmatprep.subr.mxu0 0.0
    %4425 = vmatpush1.msra.mxu0 0.0
    %4426 = vmatprep.subr.mxu0 0.0
    %4427 = vmatpush1.msra.mxu0 0.0
    %4428 = vmatprep.subr.mxu0 0.0
    %4429 = vmatpush1.msra.mxu0 0.0
    %4430 = vmatprep.subr.mxu0 0.0
    %4431 = vmatpush1.msra.mxu0 0.0
    %4432 = vmatprep.subr.mxu0 0.0
    %4433 = vmatpush1.msra.mxu0 0.0
    %4434 = vmatprep.subr.mxu0 0.0
    %4435 = vmatpush1.msra.mxu0 0.0
    %4436 = vmatprep.subr.mxu0 0.0
    %4437 = vmatpush1.msra.mxu0 0.0
    %4438 = vmatprep.subr.mxu0 0.0
    %4439 = vmatpush1.msra.mxu0 0.0
    %4440 = vmatprep.subr.mxu0 0.0
    %4441 = vmatpush1.msra.mxu0 0.0
    %4442 = vmatprep.subr.mxu0 0.0
    %4443 = vmatpush1.msra.mxu0 0.0
    %4444 = vmatprep.subr.mxu0 0.0
    %4445 = vmatpush1.msra.mxu0 0.0
    %4446 = vmatprep.subr.mxu0 0.0
    %4447 = vmatpush1.msra.mxu0 0.0
    %4448 = vmatprep.subr.mxu0 0.0
    %4449 = vmatpush1.msra.mxu0 0.0
    %4450 = vmatprep.subr.mxu0 0.0
    %4451 = vmatpush1.msra.mxu0 %v4415
    %4452 = vmatprep.subr.mxu0 0.0
    %4453 = vmatpush2.msra.mxu0 0.0
    %4454 = vmatprep.subr.mxu0 0.0
    %4455 = vmatpush2.msra.mxu0 0.0
    %4456 = vmatprep.subr.mxu0 0.0
    %4457 = vmatpush2.msra.mxu0 0.0
    %4458 = vmatprep.subr.mxu0 0.0
    %4459 = vmatpush2.msra.mxu0 0.0
    %4460 = vmatprep.subr.mxu0 0.0
    %4461 = vmatpush2.msra.mxu0 0.0
    %4462 = vmatprep.subr.mxu0 0.0
    %4463 = vmatpush2.msra.mxu0 0.0
    %4464 = vmatprep.subr.mxu0 0.0
    %4465 = vmatpush2.msra.mxu0 0.0
    %4466 = vmatprep.subr.mxu0 0.0
    %4467 = vmatpush2.msra.mxu0 0.0
    %4468 = vmatprep.subr.mxu0 0.0
    %4469 = vmatpush2.msra.mxu0 0.0
    %4470 = vmatprep.subr.mxu0 0.0
    %4471 = vmatpush2.msra.mxu0 0.0
    %4472 = vmatprep.subr.mxu0 0.0
    %4473 = vmatpush2.msra.mxu0 0.0
    %4474 = vmatprep.subr.mxu0 0.0
    %4475 = vmatpush2.msra.mxu0 0.0
    %4476 = vmatprep.subr.mxu0 0.0
    %4477 = vmatpush2.msra.mxu0 0.0
    %4478 = vmatprep.subr.mxu0 0.0
    %4479 = vmatpush2.msra.mxu0 0.0
    %4480 = vmatprep.subr.mxu0 0.0
    %4481 = vmatpush2.msra.mxu0 0.0
    %4482 = vmatprep.subr.mxu0 0.0
    %4483 = vmatpush2.msra.mxu0 0.0
    %4484 = vmatprep.mubr.f32.mxu0 0.0
    %4485 = vmatmul.mubr.f32.gmra.mxu0 %v4418
    %v4486 = vpop.f32.mrf.mxu0
    %v4487 = vadd.f32 0.0, %v4486
    %v4488 = vpop.f32.mrf.mxu0
    %4489 = vdwg.mxu0
    %4491 = vrot.lane.b32.xlu0 %v4412, 64
    %v4492 = vpop.permute.xlu0 %4491
    %v4495 = vsel %vm521, %v4410, 0
    %4497 = vmatprep.subr.mxu0 0.0
    %4498 = vmatpush1.msra.mxu0 0.0
    %4499 = vmatprep.subr.mxu0 0.0
    %4500 = vmatpush1.msra.mxu0 0.0
    %4501 = vmatprep.subr.mxu0 0.0
    %4502 = vmatpush1.msra.mxu0 0.0
    %4503 = vmatprep.subr.mxu0 0.0
    %4504 = vmatpush1.msra.mxu0 0.0
    %4505 = vmatprep.subr.mxu0 0.0
    %4506 = vmatpush1.msra.mxu0 0.0
    %4507 = vmatprep.subr.mxu0 0.0
    %4508 = vmatpush1.msra.mxu0 0.0
    %4509 = vmatprep.subr.mxu0 0.0
    %4510 = vmatpush1.msra.mxu0 0.0
    %4511 = vmatprep.subr.mxu0 0.0
    %4512 = vmatpush1.msra.mxu0 0.0
    %4513 = vmatprep.subr.mxu0 0.0
    %4514 = vmatpush1.msra.mxu0 0.0
    %4515 = vmatprep.subr.mxu0 0.0
    %4516 = vmatpush1.msra.mxu0 0.0
    %4517 = vmatprep.subr.mxu0 0.0
    %4518 = vmatpush1.msra.mxu0 0.0
    %4519 = vmatprep.subr.mxu0 0.0
    %4520 = vmatpush1.msra.mxu0 0.0
    %4521 = vmatprep.subr.mxu0 0.0
    %4522 = vmatpush1.msra.mxu0 0.0
    %4523 = vmatprep.subr.mxu0 0.0
    %4524 = vmatpush1.msra.mxu0 0.0
    %4525 = vmatprep.subr.mxu0 0.0
    %4526 = vmatpush1.msra.mxu0 0.0
    %4527 = vmatprep.subr.mxu0 0.0
    %4528 = vmatpush1.msra.mxu0 %v4492
    %4529 = vmatprep.subr.mxu0 0.0
    %4530 = vmatpush2.msra.mxu0 0.0
    %4531 = vmatprep.subr.mxu0 0.0
    %4532 = vmatpush2.msra.mxu0 0.0
    %4533 = vmatprep.subr.mxu0 0.0
    %4534 = vmatpush2.msra.mxu0 0.0
    %4535 = vmatprep.subr.mxu0 0.0
    %4536 = vmatpush2.msra.mxu0 0.0
    %4537 = vmatprep.subr.mxu0 0.0
    %4538 = vmatpush2.msra.mxu0 0.0
    %4539 = vmatprep.subr.mxu0 0.0
    %4540 = vmatpush2.msra.mxu0 0.0
    %4541 = vmatprep.subr.mxu0 0.0
    %4542 = vmatpush2.msra.mxu0 0.0
    %4543 = vmatprep.subr.mxu0 0.0
    %4544 = vmatpush2.msra.mxu0 0.0
    %4545 = vmatprep.subr.mxu0 0.0
    %4546 = vmatpush2.msra.mxu0 0.0
    %4547 = vmatprep.subr.mxu0 0.0
    %4548 = vmatpush2.msra.mxu0 0.0
    %4549 = vmatprep.subr.mxu0 0.0
    %4550 = vmatpush2.msra.mxu0 0.0
    %4551 = vmatprep.subr.mxu0 0.0
    %4552 = vmatpush2.msra.mxu0 0.0
    %4553 = vmatprep.subr.mxu0 0.0
    %4554 = vmatpush2.msra.mxu0 0.0
    %4555 = vmatprep.subr.mxu0 0.0
    %4556 = vmatpush2.msra.mxu0 0.0
    %4557 = vmatprep.subr.mxu0 0.0
    %4558 = vmatpush2.msra.mxu0 0.0
    %4559 = vmatprep.subr.mxu0 0.0
    %4560 = vmatpush2.msra.mxu0 0.0
    %4561 = vmatprep.mubr.f32.mxu0 0.0
    %4562 = vmatmul.mubr.f32.gmra.mxu0 %v4495
    %v4563 = vpop.f32.mrf.mxu0
    %v4564 = vadd.f32 0.0, %v4563
    %v4565 = vpop.f32.mrf.mxu0
    %4566 = vdwg.mxu0
    %v4567 = vadd.f32 %v4157, %v4487
    %v4568 = vadd.f32 %v4234, %v4564
    %v4569 = vmul.f32 %v3559, %v1385
    %v4570 = vmul.f32 %v3564, %v1385
    %v4572 = vsel %vm273, %v4569, 0
    %4574 = vmatprep.subr.mxu0 0.0
    %4575 = vmatpush1.xpose.msra.mxu0 0.0
    %4576 = vmatprep.subr.mxu0 0.0
    %4577 = vmatpush1.xpose.msra.mxu0 0.0
    %4578 = vmatprep.subr.mxu0 0.0
    %4579 = vmatpush1.xpose.msra.mxu0 0.0
    %4580 = vmatprep.subr.mxu0 0.0
    %4581 = vmatpush1.xpose.msra.mxu0 0.0
    %4582 = vmatprep.subr.mxu0 0.0
    %4583 = vmatpush1.xpose.msra.mxu0 0.0
    %4584 = vmatprep.subr.mxu0 0.0
    %4585 = vmatpush1.xpose.msra.mxu0 0.0
    %4586 = vmatprep.subr.mxu0 0.0
    %4587 = vmatpush1.xpose.msra.mxu0 0.0
    %4588 = vmatprep.subr.mxu0 0.0
    %4589 = vmatpush1.xpose.msra.mxu0 0.0
    %4590 = vmatprep.subr.mxu0 0.0
    %4591 = vmatpush1.xpose.msra.mxu0 0.0
    %4592 = vmatprep.subr.mxu0 0.0
    %4593 = vmatpush1.xpose.msra.mxu0 0.0
    %4594 = vmatprep.subr.mxu0 0.0
    %4595 = vmatpush1.xpose.msra.mxu0 0.0
    %4596 = vmatprep.subr.mxu0 0.0
    %4597 = vmatpush1.xpose.msra.mxu0 0.0
    %4598 = vmatprep.subr.mxu0 0.0
    %4599 = vmatpush1.xpose.msra.mxu0 0.0
    %4600 = vmatprep.subr.mxu0 0.0
    %4601 = vmatpush1.xpose.msra.mxu0 0.0
    %4602 = vmatprep.subr.mxu0 0.0
    %4603 = vmatpush1.xpose.msra.mxu0 0.0
    %4604 = vmatprep.subr.mxu0 0.0
    %4605 = vmatpush1.xpose.msra.mxu0 %v3575
    %4606 = vmatprep.subr.mxu0 0.0
    %4607 = vmatpush2.xpose.msra.mxu0 0.0
    %4608 = vmatprep.subr.mxu0 0.0
    %4609 = vmatpush2.xpose.msra.mxu0 0.0
    %4610 = vmatprep.subr.mxu0 0.0
    %4611 = vmatpush2.xpose.msra.mxu0 0.0
    %4612 = vmatprep.subr.mxu0 0.0
    %4613 = vmatpush2.xpose.msra.mxu0 0.0
    %4614 = vmatprep.subr.mxu0 0.0
    %4615 = vmatpush2.xpose.msra.mxu0 0.0
    %4616 = vmatprep.subr.mxu0 0.0
    %4617 = vmatpush2.xpose.msra.mxu0 0.0
    %4618 = vmatprep.subr.mxu0 0.0
    %4619 = vmatpush2.xpose.msra.mxu0 0.0
    %4620 = vmatprep.subr.mxu0 0.0
    %4621 = vmatpush2.xpose.msra.mxu0 0.0
    %4622 = vmatprep.subr.mxu0 0.0
    %4623 = vmatpush2.xpose.msra.mxu0 0.0
    %4624 = vmatprep.subr.mxu0 0.0
    %4625 = vmatpush2.xpose.msra.mxu0 0.0
    %4626 = vmatprep.subr.mxu0 0.0
    %4627 = vmatpush2.xpose.msra.mxu0 0.0
    %4628 = vmatprep.subr.mxu0 0.0
    %4629 = vmatpush2.xpose.msra.mxu0 0.0
    %4630 = vmatprep.subr.mxu0 0.0
    %4631 = vmatpush2.xpose.msra.mxu0 0.0
    %4632 = vmatprep.subr.mxu0 0.0
    %4633 = vmatpush2.xpose.msra.mxu0 0.0
    %4634 = vmatprep.subr.mxu0 0.0
    %4635 = vmatpush2.xpose.msra.mxu0 0.0
    %4636 = vmatprep.subr.mxu0 0.0
    %4637 = vmatpush2.xpose.msra.mxu0 0.0
    %4638 = vmatprep.mubr.f32.mxu0 0.0
    %4639 = vmatmul.mubr.f32.gmra.mxu0 %v4572
    %v4640 = vpop.f32.mrf.mxu0
    %v4641 = vadd.f32 0.0, %v4640
    %v4642 = vpop.f32.mrf.mxu0
    %4643 = vdwg.mxu0
    %v4645 = vsel %vm273, %v4570, 0
    %4647 = vmatprep.subr.mxu0 0.0
    %4648 = vmatpush1.xpose.msra.mxu0 0.0
    %4649 = vmatprep.subr.mxu0 0.0
    %4650 = vmatpush1.xpose.msra.mxu0 0.0
    %4651 = vmatprep.subr.mxu0 0.0
    %4652 = vmatpush1.xpose.msra.mxu0 0.0
    %4653 = vmatprep.subr.mxu0 0.0
    %4654 = vmatpush1.xpose.msra.mxu0 0.0
    %4655 = vmatprep.subr.mxu0 0.0
    %4656 = vmatpush1.xpose.msra.mxu0 0.0
    %4657 = vmatprep.subr.mxu0 0.0
    %4658 = vmatpush1.xpose.msra.mxu0 0.0
    %4659 = vmatprep.subr.mxu0 0.0
    %4660 = vmatpush1.xpose.msra.mxu0 0.0
    %4661 = vmatprep.subr.mxu0 0.0
    %4662 = vmatpush1.xpose.msra.mxu0 0.0
    %4663 = vmatprep.subr.mxu0 0.0
    %4664 = vmatpush1.xpose.msra.mxu0 0.0
    %4665 = vmatprep.subr.mxu0 0.0
    %4666 = vmatpush1.xpose.msra.mxu0 0.0
    %4667 = vmatprep.subr.mxu0 0.0
    %4668 = vmatpush1.xpose.msra.mxu0 0.0
    %4669 = vmatprep.subr.mxu0 0.0
    %4670 = vmatpush1.xpose.msra.mxu0 0.0
    %4671 = vmatprep.subr.mxu0 0.0
    %4672 = vmatpush1.xpose.msra.mxu0 0.0
    %4673 = vmatprep.subr.mxu0 0.0
    %4674 = vmatpush1.xpose.msra.mxu0 0.0
    %4675 = vmatprep.subr.mxu0 0.0
    %4676 = vmatpush1.xpose.msra.mxu0 0.0
    %4677 = vmatprep.subr.mxu0 0.0
    %4678 = vmatpush1.xpose.msra.mxu0 %v3653
    %4679 = vmatprep.subr.mxu0 0.0
    %4680 = vmatpush2.xpose.msra.mxu0 0.0
    %4681 = vmatprep.subr.mxu0 0.0
    %4682 = vmatpush2.xpose.msra.mxu0 0.0
    %4683 = vmatprep.subr.mxu0 0.0
    %4684 = vmatpush2.xpose.msra.mxu0 0.0
    %4685 = vmatprep.subr.mxu0 0.0
    %4686 = vmatpush2.xpose.msra.mxu0 0.0
    %4687 = vmatprep.subr.mxu0 0.0
    %4688 = vmatpush2.xpose.msra.mxu0 0.0
    %4689 = vmatprep.subr.mxu0 0.0
    %4690 = vmatpush2.xpose.msra.mxu0 0.0
    %4691 = vmatprep.subr.mxu0 0.0
    %4692 = vmatpush2.xpose.msra.mxu0 0.0
    %4693 = vmatprep.subr.mxu0 0.0
    %4694 = vmatpush2.xpose.msra.mxu0 0.0
    %4695 = vmatprep.subr.mxu0 0.0
    %4696 = vmatpush2.xpose.msra.mxu0 0.0
    %4697 = vmatprep.subr.mxu0 0.0
    %4698 = vmatpush2.xpose.msra.mxu0 0.0
    %4699 = vmatprep.subr.mxu0 0.0
    %4700 = vmatpush2.xpose.msra.mxu0 0.0
    %4701 = vmatprep.subr.mxu0 0.0
    %4702 = vmatpush2.xpose.msra.mxu0 0.0
    %4703 = vmatprep.subr.mxu0 0.0
    %4704 = vmatpush2.xpose.msra.mxu0 0.0
    %4705 = vmatprep.subr.mxu0 0.0
    %4706 = vmatpush2.xpose.msra.mxu0 0.0
    %4707 = vmatprep.subr.mxu0 0.0
    %4708 = vmatpush2.xpose.msra.mxu0 0.0
    %4709 = vmatprep.subr.mxu0 0.0
    %4710 = vmatpush2.xpose.msra.mxu0 0.0
    %4711 = vmatprep.mubr.f32.mxu0 0.0
    %4712 = vmatmul.mubr.f32.gmra.mxu0 %v4645
    %v4713 = vpop.f32.mrf.mxu0
    %v4714 = vadd.f32 0.0, %v4713
    %v4715 = vpop.f32.mrf.mxu0
    %4716 = vdwg.mxu0
    %v4717 = vmul.f32 %v4641, 0.5
    %v4718 = vmul.f32 %v4714, 0.5
    %v4719 = vadd.f32 %v4717, %v75
    %v4720 = vadd.f32 %v4718, %v75
    %v4721 = vsel %vm521, %v4719, -inf
    %4722 = vmax.xlane.f32.xlu0 %v4721
    %v4723 = vpop.xlane.xlu0 %4722
    %v4724 = vsel %vm521, %v4720, -inf
    %4725 = vmax.xlane.f32.xlu0 %v4724
    %v4726 = vpop.xlane.xlu0 %4725
    %v4727 = vsub.f32 %v4719, %v4723
    %v4728 = vsub.f32 %v4720, %v4726
    %v4729 = vmul.f32 %v4727, 1.442695
    %v4730 = vpow.pop %v4729
    %v4731 = vmul.f32 %v4728, 1.442695
    %v4732 = vpow.pop %v4731
    %v4733 = vsel %vm521, %v4730, 0.0
    %4734 = vadd.xlane.f32.xlu0 %v4733
    %v4735 = vpop.xlane.xlu0 %4734
    %v4736 = vsel %vm521, %v4732, 0.0
    %4737 = vadd.xlane.f32.xlu0 %v4736
    %v4738 = vpop.xlane.xlu0 %4737
    %v4739 = vrcp.pop %v4735
    %v4740 = vrcp.pop %v4738
    %v4741 = vmul.f32 %v4730, %v4739
    %v4742 = vmul.f32 %v4732, %v4740
    %v4743 = vmul.f32 %v3559, %v1562
    %v4744 = vmul.f32 %v3564, %v1562
    %4746 = vrot.lane.b32.xlu0 %v4743, 64
    %v4747 = vpop.permute.xlu0 %4746
    %v4750 = vsel %vm521, %v4741, 0
    %4752 = vmatprep.subr.mxu0 0.0
    %4753 = vmatpush1.msra.mxu0 0.0
    %4754 = vmatprep.subr.mxu0 0.0
    %4755 = vmatpush1.msra.mxu0 0.0
    %4756 = vmatprep.subr.mxu0 0.0
    %4757 = vmatpush1.msra.mxu0 0.0
    %4758 = vmatprep.subr.mxu0 0.0
    %4759 = vmatpush1.msra.mxu0 0.0
    %4760 = vmatprep.subr.mxu0 0.0
    %4761 = vmatpush1.msra.mxu0 0.0
    %4762 = vmatprep.subr.mxu0 0.0
    %4763 = vmatpush1.msra.mxu0 0.0
    %4764 = vmatprep.subr.mxu0 0.0
    %4765 = vmatpush1.msra.mxu0 0.0
    %4766 = vmatprep.subr.mxu0 0.0
    %4767 = vmatpush1.msra.mxu0 0.0
    %4768 = vmatprep.subr.mxu0 0.0
    %4769 = vmatpush1.msra.mxu0 0.0
    %4770 = vmatprep.subr.mxu0 0.0
    %4771 = vmatpush1.msra.mxu0 0.0
    %4772 = vmatprep.subr.mxu0 0.0
    %4773 = vmatpush1.msra.mxu0 0.0
    %4774 = vmatprep.subr.mxu0 0.0
    %4775 = vmatpush1.msra.mxu0 0.0
    %4776 = vmatprep.subr.mxu0 0.0
    %4777 = vmatpush1.msra.mxu0 0.0
    %4778 = vmatprep.subr.mxu0 0.0
    %4779 = vmatpush1.msra.mxu0 0.0
    %4780 = vmatprep.subr.mxu0 0.0
    %4781 = vmatpush1.msra.mxu0 0.0
    %4782 = vmatprep.subr.mxu0 0.0
    %4783 = vmatpush1.msra.mxu0 %v4747
    %4784 = vmatprep.subr.mxu0 0.0
    %4785 = vmatpush2.msra.mxu0 0.0
    %4786 = vmatprep.subr.mxu0 0.0
    %4787 = vmatpush2.msra.mxu0 0.0
    %4788 = vmatprep.subr.mxu0 0.0
    %4789 = vmatpush2.msra.mxu0 0.0
    %4790 = vmatprep.subr.mxu0 0.0
    %4791 = vmatpush2.msra.mxu0 0.0
    %4792 = vmatprep.subr.mxu0 0.0
    %4793 = vmatpush2.msra.mxu0 0.0
    %4794 = vmatprep.subr.mxu0 0.0
    %4795 = vmatpush2.msra.mxu0 0.0
    %4796 = vmatprep.subr.mxu0 0.0
    %4797 = vmatpush2.msra.mxu0 0.0
    %4798 = vmatprep.subr.mxu0 0.0
    %4799 = vmatpush2.msra.mxu0 0.0
    %4800 = vmatprep.subr.mxu0 0.0
    %4801 = vmatpush2.msra.mxu0 0.0
    %4802 = vmatprep.subr.mxu0 0.0
    %4803 = vmatpush2.msra.mxu0 0.0
    %4804 = vmatprep.subr.mxu0 0.0
    %4805 = vmatpush2.msra.mxu0 0.0
    %4806 = vmatprep.subr.mxu0 0.0
    %4807 = vmatpush2.msra.mxu0 0.0
    %4808 = vmatprep.subr.mxu0 0.0
    %4809 = vmatpush2.msra.mxu0 0.0
    %4810 = vmatprep.subr.mxu0 0.0
    %4811 = vmatpush2.msra.mxu0 0.0
    %4812 = vmatprep.subr.mxu0 0.0
    %4813 = vmatpush2.msra.mxu0 0.0
    %4814 = vmatprep.subr.mxu0 0.0
    %4815 = vmatpush2.msra.mxu0 0.0
    %4816 = vmatprep.mubr.f32.mxu0 0.0
    %4817 = vmatmul.mubr.f32.gmra.mxu0 %v4750
    %v4818 = vpop.f32.mrf.mxu0
    %v4819 = vadd.f32 0.0, %v4818
    %v4820 = vpop.f32.mrf.mxu0
    %4821 = vdwg.mxu0
    %4823 = vrot.lane.b32.xlu0 %v4744, 64
    %v4824 = vpop.permute.xlu0 %4823
    %v4827 = vsel %vm521, %v4742, 0
    %4829 = vmatprep.subr.mxu0 0.0
    %4830 = vmatpush1.msra.mxu0 0.0
    %4831 = vmatprep.subr.mxu0 0.0
    %4832 = vmatpush1.msra.mxu0 0.0
    %4833 = vmatprep.subr.mxu0 0.0
    %4834 = vmatpush1.msra.mxu0 0.0
    %4835 = vmatprep.subr.mxu0 0.0
    %4836 = vmatpush1.msra.mxu0 0.0
    %4837 = vmatprep.subr.mxu0 0.0
    %4838 = vmatpush1.msra.mxu0 0.0
    %4839 = vmatprep.subr.mxu0 0.0
    %4840 = vmatpush1.msra.mxu0 0.0
    %4841 = vmatprep.subr.mxu0 0.0
    %4842 = vmatpush1.msra.mxu0 0.0
    %4843 = vmatprep.subr.mxu0 0.0
    %4844 = vmatpush1.msra.mxu0 0.0
    %4845 = vmatprep.subr.mxu0 0.0
    %4846 = vmatpush1.msra.mxu0 0.0
    %4847 = vmatprep.subr.mxu0 0.0
    %4848 = vmatpush1.msra.mxu0 0.0
    %4849 = vmatprep.subr.mxu0 0.0
    %4850 = vmatpush1.msra.mxu0 0.0
    %4851 = vmatprep.subr.mxu0 0.0
    %4852 = vmatpush1.msra.mxu0 0.0
    %4853 = vmatprep.subr.mxu0 0.0
    %4854 = vmatpush1.msra.mxu0 0.0
    %4855 = vmatprep.subr.mxu0 0.0
    %4856 = vmatpush1.msra.mxu0 0.0
    %4857 = vmatprep.subr.mxu0 0.0
    %4858 = vmatpush1.msra.mxu0 0.0
    %4859 = vmatprep.subr.mxu0 0.0
    %4860 = vmatpush1.msra.mxu0 %v4824
    %4861 = vmatprep.subr.mxu0 0.0
    %4862 = vmatpush2.msra.mxu0 0.0
    %4863 = vmatprep.subr.mxu0 0.0
    %4864 = vmatpush2.msra.mxu0 0.0
    %4865 = vmatprep.subr.mxu0 0.0
    %4866 = vmatpush2.msra.mxu0 0.0
    %4867 = vmatprep.subr.mxu0 0.0
    %4868 = vmatpush2.msra.mxu0 0.0
    %4869 = vmatprep.subr.mxu0 0.0
    %4870 = vmatpush2.msra.mxu0 0.0
    %4871 = vmatprep.subr.mxu0 0.0
    %4872 = vmatpush2.msra.mxu0 0.0
    %4873 = vmatprep.subr.mxu0 0.0
    %4874 = vmatpush2.msra.mxu0 0.0
    %4875 = vmatprep.subr.mxu0 0.0
    %4876 = vmatpush2.msra.mxu0 0.0
    %4877 = vmatprep.subr.mxu0 0.0
    %4878 = vmatpush2.msra.mxu0 0.0
    %4879 = vmatprep.subr.mxu0 0.0
    %4880 = vmatpush2.msra.mxu0 0.0
    %4881 = vmatprep.subr.mxu0 0.0
    %4882 = vmatpush2.msra.mxu0 0.0
    %4883 = vmatprep.subr.mxu0 0.0
    %4884 = vmatpush2.msra.mxu0 0.0
    %4885 = vmatprep.subr.mxu0 0.0
    %4886 = vmatpush2.msra.mxu0 0.0
    %4887 = vmatprep.subr.mxu0 0.0
    %4888 = vmatpush2.msra.mxu0 0.0
    %4889 = vmatprep.subr.mxu0 0.0
    %4890 = vmatpush2.msra.mxu0 0.0
    %4891 = vmatprep.subr.mxu0 0.0
    %4892 = vmatpush2.msra.mxu0 0.0
    %4893 = vmatprep.mubr.f32.mxu0 0.0
    %4894 = vmatmul.mubr.f32.gmra.mxu0 %v4827
    %v4895 = vpop.f32.mrf.mxu0
    %v4896 = vadd.f32 0.0, %v4895
    %v4897 = vpop.f32.mrf.mxu0
    %4898 = vdwg.mxu0
    %v4899 = vadd.f32 %v4567, %v4819
    %v4900 = vadd.f32 %v4568, %v4896
    %v4901 = vmul.f32 %v3559, %v1725
    %v4902 = vmul.f32 %v3564, %v1725
    %v4904 = vsel %vm273, %v4901, 0
    %4906 = vmatprep.subr.mxu0 0.0
    %4907 = vmatpush1.xpose.msra.mxu0 0.0
    %4908 = vmatprep.subr.mxu0 0.0
    %4909 = vmatpush1.xpose.msra.mxu0 0.0
    %4910 = vmatprep.subr.mxu0 0.0
    %4911 = vmatpush1.xpose.msra.mxu0 0.0
    %4912 = vmatprep.subr.mxu0 0.0
    %4913 = vmatpush1.xpose.msra.mxu0 0.0
    %4914 = vmatprep.subr.mxu0 0.0
    %4915 = vmatpush1.xpose.msra.mxu0 0.0
    %4916 = vmatprep.subr.mxu0 0.0
    %4917 = vmatpush1.xpose.msra.mxu0 0.0
    %4918 = vmatprep.subr.mxu0 0.0
    %4919 = vmatpush1.xpose.msra.mxu0 0.0
    %4920 = vmatprep.subr.mxu0 0.0
    %4921 = vmatpush1.xpose.msra.mxu0 0.0
    %4922 = vmatprep.subr.mxu0 0.0
    %4923 = vmatpush1.xpose.msra.mxu0 0.0
    %4924 = vmatprep.subr.mxu0 0.0
    %4925 = vmatpush1.xpose.msra.mxu0 0.0
    %4926 = vmatprep.subr.mxu0 0.0
    %4927 = vmatpush1.xpose.msra.mxu0 0.0
    %4928 = vmatprep.subr.mxu0 0.0
    %4929 = vmatpush1.xpose.msra.mxu0 0.0
    %4930 = vmatprep.subr.mxu0 0.0
    %4931 = vmatpush1.xpose.msra.mxu0 0.0
    %4932 = vmatprep.subr.mxu0 0.0
    %4933 = vmatpush1.xpose.msra.mxu0 0.0
    %4934 = vmatprep.subr.mxu0 0.0
    %4935 = vmatpush1.xpose.msra.mxu0 0.0
    %4936 = vmatprep.subr.mxu0 0.0
    %4937 = vmatpush1.xpose.msra.mxu0 %v3575
    %4938 = vmatprep.subr.mxu0 0.0
    %4939 = vmatpush2.xpose.msra.mxu0 0.0
    %4940 = vmatprep.subr.mxu0 0.0
    %4941 = vmatpush2.xpose.msra.mxu0 0.0
    %4942 = vmatprep.subr.mxu0 0.0
    %4943 = vmatpush2.xpose.msra.mxu0 0.0
    %4944 = vmatprep.subr.mxu0 0.0
    %4945 = vmatpush2.xpose.msra.mxu0 0.0
    %4946 = vmatprep.subr.mxu0 0.0
    %4947 = vmatpush2.xpose.msra.mxu0 0.0
    %4948 = vmatprep.subr.mxu0 0.0
    %4949 = vmatpush2.xpose.msra.mxu0 0.0
    %4950 = vmatprep.subr.mxu0 0.0
    %4951 = vmatpush2.xpose.msra.mxu0 0.0
    %4952 = vmatprep.subr.mxu0 0.0
    %4953 = vmatpush2.xpose.msra.mxu0 0.0
    %4954 = vmatprep.subr.mxu0 0.0
    %4955 = vmatpush2.xpose.msra.mxu0 0.0
    %4956 = vmatprep.subr.mxu0 0.0
    %4957 = vmatpush2.xpose.msra.mxu0 0.0
    %4958 = vmatprep.subr.mxu0 0.0
    %4959 = vmatpush2.xpose.msra.mxu0 0.0
    %4960 = vmatprep.subr.mxu0 0.0
    %4961 = vmatpush2.xpose.msra.mxu0 0.0
    %4962 = vmatprep.subr.mxu0 0.0
    %4963 = vmatpush2.xpose.msra.mxu0 0.0
    %4964 = vmatprep.subr.mxu0 0.0
    %4965 = vmatpush2.xpose.msra.mxu0 0.0
    %4966 = vmatprep.subr.mxu0 0.0
    %4967 = vmatpush2.xpose.msra.mxu0 0.0
    %4968 = vmatprep.subr.mxu0 0.0
    %4969 = vmatpush2.xpose.msra.mxu0 0.0
    %4970 = vmatprep.mubr.f32.mxu0 0.0
    %4971 = vmatmul.mubr.f32.gmra.mxu0 %v4904
    %v4972 = vpop.f32.mrf.mxu0
    %v4973 = vadd.f32 0.0, %v4972
    %v4974 = vpop.f32.mrf.mxu0
    %4975 = vdwg.mxu0
    %v4977 = vsel %vm273, %v4902, 0
    %4979 = vmatprep.subr.mxu0 0.0
    %4980 = vmatpush1.xpose.msra.mxu0 0.0
    %4981 = vmatprep.subr.mxu0 0.0
    %4982 = vmatpush1.xpose.msra.mxu0 0.0
    %4983 = vmatprep.subr.mxu0 0.0
    %4984 = vmatpush1.xpose.msra.mxu0 0.0
    %4985 = vmatprep.subr.mxu0 0.0
    %4986 = vmatpush1.xpose.msra.mxu0 0.0
    %4987 = vmatprep.subr.mxu0 0.0
    %4988 = vmatpush1.xpose.msra.mxu0 0.0
    %4989 = vmatprep.subr.mxu0 0.0
    %4990 = vmatpush1.xpose.msra.mxu0 0.0
    %4991 = vmatprep.subr.mxu0 0.0
    %4992 = vmatpush1.xpose.msra.mxu0 0.0
    %4993 = vmatprep.subr.mxu0 0.0
    %4994 = vmatpush1.xpose.msra.mxu0 0.0
    %4995 = vmatprep.subr.mxu0 0.0
    %4996 = vmatpush1.xpose.msra.mxu0 0.0
    %4997 = vmatprep.subr.mxu0 0.0
    %4998 = vmatpush1.xpose.msra.mxu0 0.0
    %4999 = vmatprep.subr.mxu0 0.0
    %5000 = vmatpush1.xpose.msra.mxu0 0.0
    %5001 = vmatprep.subr.mxu0 0.0
    %5002 = vmatpush1.xpose.msra.mxu0 0.0
    %5003 = vmatprep.subr.mxu0 0.0
    %5004 = vmatpush1.xpose.msra.mxu0 0.0
    %5005 = vmatprep.subr.mxu0 0.0
    %5006 = vmatpush1.xpose.msra.mxu0 0.0
    %5007 = vmatprep.subr.mxu0 0.0
    %5008 = vmatpush1.xpose.msra.mxu0 0.0
    %5009 = vmatprep.subr.mxu0 0.0
    %5010 = vmatpush1.xpose.msra.mxu0 %v3653
    %5011 = vmatprep.subr.mxu0 0.0
    %5012 = vmatpush2.xpose.msra.mxu0 0.0
    %5013 = vmatprep.subr.mxu0 0.0
    %5014 = vmatpush2.xpose.msra.mxu0 0.0
    %5015 = vmatprep.subr.mxu0 0.0
    %5016 = vmatpush2.xpose.msra.mxu0 0.0
    %5017 = vmatprep.subr.mxu0 0.0
    %5018 = vmatpush2.xpose.msra.mxu0 0.0
    %5019 = vmatprep.subr.mxu0 0.0
    %5020 = vmatpush2.xpose.msra.mxu0 0.0
    %5021 = vmatprep.subr.mxu0 0.0
    %5022 = vmatpush2.xpose.msra.mxu0 0.0
    %5023 = vmatprep.subr.mxu0 0.0
    %5024 = vmatpush2.xpose.msra.mxu0 0.0
    %5025 = vmatprep.subr.mxu0 0.0
    %5026 = vmatpush2.xpose.msra.mxu0 0.0
    %5027 = vmatprep.subr.mxu0 0.0
    %5028 = vmatpush2.xpose.msra.mxu0 0.0
    %5029 = vmatprep.subr.mxu0 0.0
    %5030 = vmatpush2.xpose.msra.mxu0 0.0
    %5031 = vmatprep.subr.mxu0 0.0
    %5032 = vmatpush2.xpose.msra.mxu0 0.0
    %5033 = vmatprep.subr.mxu0 0.0
    %5034 = vmatpush2.xpose.msra.mxu0 0.0
    %5035 = vmatprep.subr.mxu0 0.0
    %5036 = vmatpush2.xpose.msra.mxu0 0.0
    %5037 = vmatprep.subr.mxu0 0.0
    %5038 = vmatpush2.xpose.msra.mxu0 0.0
    %5039 = vmatprep.subr.mxu0 0.0
    %5040 = vmatpush2.xpose.msra.mxu0 0.0
    %5041 = vmatprep.subr.mxu0 0.0
    %5042 = vmatpush2.xpose.msra.mxu0 0.0
    %5043 = vmatprep.mubr.f32.mxu0 0.0
    %5044 = vmatmul.mubr.f32.gmra.mxu0 %v4977
    %v5045 = vpop.f32.mrf.mxu0
    %v5046 = vadd.f32 0.0, %v5045
    %v5047 = vpop.f32.mrf.mxu0
    %5048 = vdwg.mxu0
    %v5049 = vmul.f32 %v4973, 0.5
    %v5050 = vmul.f32 %v5046, 0.5
    %v5051 = vadd.f32 %v5049, %v75
    %v5052 = vadd.f32 %v5050, %v75
    %v5053 = vsel %vm521, %v5051, -inf
    %5054 = vmax.xlane.f32.xlu0 %v5053
    %v5055 = vpop.xlane.xlu0 %5054
    %v5056 = vsel %vm521, %v5052, -inf
    %5057 = vmax.xlane.f32.xlu0 %v5056
    %v5058 = vpop.xlane.xlu0 %5057
    %v5059 = vsub.f32 %v5051, %v5055
    %v5060 = vsub.f32 %v5052, %v5058
    %v5061 = vmul.f32 %v5059, 1.442695
    %v5062 = vpow.pop %v5061
    %v5063 = vmul.f32 %v5060, 1.442695
    %v5064 = vpow.pop %v5063
    %v5065 = vsel %vm521, %v5062, 0.0
    %5066 = vadd.xlane.f32.xlu0 %v5065
    %v5067 = vpop.xlane.xlu0 %5066
    %v5068 = vsel %vm521, %v5064, 0.0
    %5069 = vadd.xlane.f32.xlu0 %v5068
    %v5070 = vpop.xlane.xlu0 %5069
    %v5071 = vrcp.pop %v5067
    %v5072 = vrcp.pop %v5070
    %v5073 = vmul.f32 %v5062, %v5071
    %v5074 = vmul.f32 %v5064, %v5072
    %v5075 = vmul.f32 %v3559, %v1902
    %v5076 = vmul.f32 %v3564, %v1902
    %5078 = vrot.lane.b32.xlu0 %v5075, 64
    %v5079 = vpop.permute.xlu0 %5078
    %v5082 = vsel %vm521, %v5073, 0
    %5084 = vmatprep.subr.mxu0 0.0
    %5085 = vmatpush1.msra.mxu0 0.0
    %5086 = vmatprep.subr.mxu0 0.0
    %5087 = vmatpush1.msra.mxu0 0.0
    %5088 = vmatprep.subr.mxu0 0.0
    %5089 = vmatpush1.msra.mxu0 0.0
    %5090 = vmatprep.subr.mxu0 0.0
    %5091 = vmatpush1.msra.mxu0 0.0
    %5092 = vmatprep.subr.mxu0 0.0
    %5093 = vmatpush1.msra.mxu0 0.0
    %5094 = vmatprep.subr.mxu0 0.0
    %5095 = vmatpush1.msra.mxu0 0.0
    %5096 = vmatprep.subr.mxu0 0.0
    %5097 = vmatpush1.msra.mxu0 0.0
    %5098 = vmatprep.subr.mxu0 0.0
    %5099 = vmatpush1.msra.mxu0 0.0
    %5100 = vmatprep.subr.mxu0 0.0
    %5101 = vmatpush1.msra.mxu0 0.0
    %5102 = vmatprep.subr.mxu0 0.0
    %5103 = vmatpush1.msra.mxu0 0.0
    %5104 = vmatprep.subr.mxu0 0.0
    %5105 = vmatpush1.msra.mxu0 0.0
    %5106 = vmatprep.subr.mxu0 0.0
    %5107 = vmatpush1.msra.mxu0 0.0
    %5108 = vmatprep.subr.mxu0 0.0
    %5109 = vmatpush1.msra.mxu0 0.0
    %5110 = vmatprep.subr.mxu0 0.0
    %5111 = vmatpush1.msra.mxu0 0.0
    %5112 = vmatprep.subr.mxu0 0.0
    %5113 = vmatpush1.msra.mxu0 0.0
    %5114 = vmatprep.subr.mxu0 0.0
    %5115 = vmatpush1.msra.mxu0 %v5079
    %5116 = vmatprep.subr.mxu0 0.0
    %5117 = vmatpush2.msra.mxu0 0.0
    %5118 = vmatprep.subr.mxu0 0.0
    %5119 = vmatpush2.msra.mxu0 0.0
    %5120 = vmatprep.subr.mxu0 0.0
    %5121 = vmatpush2.msra.mxu0 0.0
    %5122 = vmatprep.subr.mxu0 0.0
    %5123 = vmatpush2.msra.mxu0 0.0
    %5124 = vmatprep.subr.mxu0 0.0
    %5125 = vmatpush2.msra.mxu0 0.0
    %5126 = vmatprep.subr.mxu0 0.0
    %5127 = vmatpush2.msra.mxu0 0.0
    %5128 = vmatprep.subr.mxu0 0.0
    %5129 = vmatpush2.msra.mxu0 0.0
    %5130 = vmatprep.subr.mxu0 0.0
    %5131 = vmatpush2.msra.mxu0 0.0
    %5132 = vmatprep.subr.mxu0 0.0
    %5133 = vmatpush2.msra.mxu0 0.0
    %5134 = vmatprep.subr.mxu0 0.0
    %5135 = vmatpush2.msra.mxu0 0.0
    %5136 = vmatprep.subr.mxu0 0.0
    %5137 = vmatpush2.msra.mxu0 0.0
    %5138 = vmatprep.subr.mxu0 0.0
    %5139 = vmatpush2.msra.mxu0 0.0
    %5140 = vmatprep.subr.mxu0 0.0
    %5141 = vmatpush2.msra.mxu0 0.0
    %5142 = vmatprep.subr.mxu0 0.0
    %5143 = vmatpush2.msra.mxu0 0.0
    %5144 = vmatprep.subr.mxu0 0.0
    %5145 = vmatpush2.msra.mxu0 0.0
    %5146 = vmatprep.subr.mxu0 0.0
    %5147 = vmatpush2.msra.mxu0 0.0
    %5148 = vmatprep.mubr.f32.mxu0 0.0
    %5149 = vmatmul.mubr.f32.gmra.mxu0 %v5082
    %v5150 = vpop.f32.mrf.mxu0
    %v5151 = vadd.f32 0.0, %v5150
    %v5152 = vpop.f32.mrf.mxu0
    %5153 = vdwg.mxu0
    %5155 = vrot.lane.b32.xlu0 %v5076, 64
    %v5156 = vpop.permute.xlu0 %5155
    %v5159 = vsel %vm521, %v5074, 0
    %5161 = vmatprep.subr.mxu0 0.0
    %5162 = vmatpush1.msra.mxu0 0.0
    %5163 = vmatprep.subr.mxu0 0.0
    %5164 = vmatpush1.msra.mxu0 0.0
    %5165 = vmatprep.subr.mxu0 0.0
    %5166 = vmatpush1.msra.mxu0 0.0
    %5167 = vmatprep.subr.mxu0 0.0
    %5168 = vmatpush1.msra.mxu0 0.0
    %5169 = vmatprep.subr.mxu0 0.0
    %5170 = vmatpush1.msra.mxu0 0.0
    %5171 = vmatprep.subr.mxu0 0.0
    %5172 = vmatpush1.msra.mxu0 0.0
    %5173 = vmatprep.subr.mxu0 0.0
    %5174 = vmatpush1.msra.mxu0 0.0
    %5175 = vmatprep.subr.mxu0 0.0
    %5176 = vmatpush1.msra.mxu0 0.0
    %5177 = vmatprep.subr.mxu0 0.0
    %5178 = vmatpush1.msra.mxu0 0.0
    %5179 = vmatprep.subr.mxu0 0.0
    %5180 = vmatpush1.msra.mxu0 0.0
    %5181 = vmatprep.subr.mxu0 0.0
    %5182 = vmatpush1.msra.mxu0 0.0
    %5183 = vmatprep.subr.mxu0 0.0
    %5184 = vmatpush1.msra.mxu0 0.0
    %5185 = vmatprep.subr.mxu0 0.0
    %5186 = vmatpush1.msra.mxu0 0.0
    %5187 = vmatprep.subr.mxu0 0.0
    %5188 = vmatpush1.msra.mxu0 0.0
    %5189 = vmatprep.subr.mxu0 0.0
    %5190 = vmatpush1.msra.mxu0 0.0
    %5191 = vmatprep.subr.mxu0 0.0
    %5192 = vmatpush1.msra.mxu0 %v5156
    %5193 = vmatprep.subr.mxu0 0.0
    %5194 = vmatpush2.msra.mxu0 0.0
    %5195 = vmatprep.subr.mxu0 0.0
    %5196 = vmatpush2.msra.mxu0 0.0
    %5197 = vmatprep.subr.mxu0 0.0
    %5198 = vmatpush2.msra.mxu0 0.0
    %5199 = vmatprep.subr.mxu0 0.0
    %5200 = vmatpush2.msra.mxu0 0.0
    %5201 = vmatprep.subr.mxu0 0.0
    %5202 = vmatpush2.msra.mxu0 0.0
    %5203 = vmatprep.subr.mxu0 0.0
    %5204 = vmatpush2.msra.mxu0 0.0
    %5205 = vmatprep.subr.mxu0 0.0
    %5206 = vmatpush2.msra.mxu0 0.0
    %5207 = vmatprep.subr.mxu0 0.0
    %5208 = vmatpush2.msra.mxu0 0.0
    %5209 = vmatprep.subr.mxu0 0.0
    %5210 = vmatpush2.msra.mxu0 0.0
    %5211 = vmatprep.subr.mxu0 0.0
    %5212 = vmatpush2.msra.mxu0 0.0
    %5213 = vmatprep.subr.mxu0 0.0
    %5214 = vmatpush2.msra.mxu0 0.0
    %5215 = vmatprep.subr.mxu0 0.0
    %5216 = vmatpush2.msra.mxu0 0.0
    %5217 = vmatprep.subr.mxu0 0.0
    %5218 = vmatpush2.msra.mxu0 0.0
    %5219 = vmatprep.subr.mxu0 0.0
    %5220 = vmatpush2.msra.mxu0 0.0
    %5221 = vmatprep.subr.mxu0 0.0
    %5222 = vmatpush2.msra.mxu0 0.0
    %5223 = vmatprep.subr.mxu0 0.0
    %5224 = vmatpush2.msra.mxu0 0.0
    %5225 = vmatprep.mubr.f32.mxu0 0.0
    %5226 = vmatmul.mubr.f32.gmra.mxu0 %v5159
    %v5227 = vpop.f32.mrf.mxu0
    %v5228 = vadd.f32 0.0, %v5227
    %v5229 = vpop.f32.mrf.mxu0
    %5230 = vdwg.mxu0
    %v5231 = vadd.f32 %v4899, %v5151
    %v5232 = vadd.f32 %v4900, %v5228
    %v5233 = vmul.f32 %v3559, %v2065
    %v5234 = vmul.f32 %v3564, %v2065
    %v5236 = vsel %vm273, %v5233, 0
    %5238 = vmatprep.subr.mxu0 0.0
    %5239 = vmatpush1.xpose.msra.mxu0 0.0
    %5240 = vmatprep.subr.mxu0 0.0
    %5241 = vmatpush1.xpose.msra.mxu0 0.0
    %5242 = vmatprep.subr.mxu0 0.0
    %5243 = vmatpush1.xpose.msra.mxu0 0.0
    %5244 = vmatprep.subr.mxu0 0.0
    %5245 = vmatpush1.xpose.msra.mxu0 0.0
    %5246 = vmatprep.subr.mxu0 0.0
    %5247 = vmatpush1.xpose.msra.mxu0 0.0
    %5248 = vmatprep.subr.mxu0 0.0
    %5249 = vmatpush1.xpose.msra.mxu0 0.0
    %5250 = vmatprep.subr.mxu0 0.0
    %5251 = vmatpush1.xpose.msra.mxu0 0.0
    %5252 = vmatprep.subr.mxu0 0.0
    %5253 = vmatpush1.xpose.msra.mxu0 0.0
    %5254 = vmatprep.subr.mxu0 0.0
    %5255 = vmatpush1.xpose.msra.mxu0 0.0
    %5256 = vmatprep.subr.mxu0 0.0
    %5257 = vmatpush1.xpose.msra.mxu0 0.0
    %5258 = vmatprep.subr.mxu0 0.0
    %5259 = vmatpush1.xpose.msra.mxu0 0.0
    %5260 = vmatprep.subr.mxu0 0.0
    %5261 = vmatpush1.xpose.msra.mxu0 0.0
    %5262 = vmatprep.subr.mxu0 0.0
    %5263 = vmatpush1.xpose.msra.mxu0 0.0
    %5264 = vmatprep.subr.mxu0 0.0
    %5265 = vmatpush1.xpose.msra.mxu0 0.0
    %5266 = vmatprep.subr.mxu0 0.0
    %5267 = vmatpush1.xpose.msra.mxu0 0.0
    %5268 = vmatprep.subr.mxu0 0.0
    %5269 = vmatpush1.xpose.msra.mxu0 %v3575
    %5270 = vmatprep.subr.mxu0 0.0
    %5271 = vmatpush2.xpose.msra.mxu0 0.0
    %5272 = vmatprep.subr.mxu0 0.0
    %5273 = vmatpush2.xpose.msra.mxu0 0.0
    %5274 = vmatprep.subr.mxu0 0.0
    %5275 = vmatpush2.xpose.msra.mxu0 0.0
    %5276 = vmatprep.subr.mxu0 0.0
    %5277 = vmatpush2.xpose.msra.mxu0 0.0
    %5278 = vmatprep.subr.mxu0 0.0
    %5279 = vmatpush2.xpose.msra.mxu0 0.0
    %5280 = vmatprep.subr.mxu0 0.0
    %5281 = vmatpush2.xpose.msra.mxu0 0.0
    %5282 = vmatprep.subr.mxu0 0.0
    %5283 = vmatpush2.xpose.msra.mxu0 0.0
    %5284 = vmatprep.subr.mxu0 0.0
    %5285 = vmatpush2.xpose.msra.mxu0 0.0
    %5286 = vmatprep.subr.mxu0 0.0
    %5287 = vmatpush2.xpose.msra.mxu0 0.0
    %5288 = vmatprep.subr.mxu0 0.0
    %5289 = vmatpush2.xpose.msra.mxu0 0.0
    %5290 = vmatprep.subr.mxu0 0.0
    %5291 = vmatpush2.xpose.msra.mxu0 0.0
    %5292 = vmatprep.subr.mxu0 0.0
    %5293 = vmatpush2.xpose.msra.mxu0 0.0
    %5294 = vmatprep.subr.mxu0 0.0
    %5295 = vmatpush2.xpose.msra.mxu0 0.0
    %5296 = vmatprep.subr.mxu0 0.0
    %5297 = vmatpush2.xpose.msra.mxu0 0.0
    %5298 = vmatprep.subr.mxu0 0.0
    %5299 = vmatpush2.xpose.msra.mxu0 0.0
    %5300 = vmatprep.subr.mxu0 0.0
    %5301 = vmatpush2.xpose.msra.mxu0 0.0
    %5302 = vmatprep.mubr.f32.mxu0 0.0
    %5303 = vmatmul.mubr.f32.gmra.mxu0 %v5236
    %v5304 = vpop.f32.mrf.mxu0
    %v5305 = vadd.f32 0.0, %v5304
    %v5306 = vpop.f32.mrf.mxu0
    %5307 = vdwg.mxu0
    %v5309 = vsel %vm273, %v5234, 0
    %5311 = vmatprep.subr.mxu0 0.0
    %5312 = vmatpush1.xpose.msra.mxu0 0.0
    %5313 = vmatprep.subr.mxu0 0.0
    %5314 = vmatpush1.xpose.msra.mxu0 0.0
    %5315 = vmatprep.subr.mxu0 0.0
    %5316 = vmatpush1.xpose.msra.mxu0 0.0
    %5317 = vmatprep.subr.mxu0 0.0
    %5318 = vmatpush1.xpose.msra.mxu0 0.0
    %5319 = vmatprep.subr.mxu0 0.0
    %5320 = vmatpush1.xpose.msra.mxu0 0.0
    %5321 = vmatprep.subr.mxu0 0.0
    %5322 = vmatpush1.xpose.msra.mxu0 0.0
    %5323 = vmatprep.subr.mxu0 0.0
    %5324 = vmatpush1.xpose.msra.mxu0 0.0
    %5325 = vmatprep.subr.mxu0 0.0
    %5326 = vmatpush1.xpose.msra.mxu0 0.0
    %5327 = vmatprep.subr.mxu0 0.0
    %5328 = vmatpush1.xpose.msra.mxu0 0.0
    %5329 = vmatprep.subr.mxu0 0.0
    %5330 = vmatpush1.xpose.msra.mxu0 0.0
    %5331 = vmatprep.subr.mxu0 0.0
    %5332 = vmatpush1.xpose.msra.mxu0 0.0
    %5333 = vmatprep.subr.mxu0 0.0
    %5334 = vmatpush1.xpose.msra.mxu0 0.0
    %5335 = vmatprep.subr.mxu0 0.0
    %5336 = vmatpush1.xpose.msra.mxu0 0.0
    %5337 = vmatprep.subr.mxu0 0.0
    %5338 = vmatpush1.xpose.msra.mxu0 0.0
    %5339 = vmatprep.subr.mxu0 0.0
    %5340 = vmatpush1.xpose.msra.mxu0 0.0
    %5341 = vmatprep.subr.mxu0 0.0
    %5342 = vmatpush1.xpose.msra.mxu0 %v3653
    %5343 = vmatprep.subr.mxu0 0.0
    %5344 = vmatpush2.xpose.msra.mxu0 0.0
    %5345 = vmatprep.subr.mxu0 0.0
    %5346 = vmatpush2.xpose.msra.mxu0 0.0
    %5347 = vmatprep.subr.mxu0 0.0
    %5348 = vmatpush2.xpose.msra.mxu0 0.0
    %5349 = vmatprep.subr.mxu0 0.0
    %5350 = vmatpush2.xpose.msra.mxu0 0.0
    %5351 = vmatprep.subr.mxu0 0.0
    %5352 = vmatpush2.xpose.msra.mxu0 0.0
    %5353 = vmatprep.subr.mxu0 0.0
    %5354 = vmatpush2.xpose.msra.mxu0 0.0
    %5355 = vmatprep.subr.mxu0 0.0
    %5356 = vmatpush2.xpose.msra.mxu0 0.0
    %5357 = vmatprep.subr.mxu0 0.0
    %5358 = vmatpush2.xpose.msra.mxu0 0.0
    %5359 = vmatprep.subr.mxu0 0.0
    %5360 = vmatpush2.xpose.msra.mxu0 0.0
    %5361 = vmatprep.subr.mxu0 0.0
    %5362 = vmatpush2.xpose.msra.mxu0 0.0
    %5363 = vmatprep.subr.mxu0 0.0
    %5364 = vmatpush2.xpose.msra.mxu0 0.0
    %5365 = vmatprep.subr.mxu0 0.0
    %5366 = vmatpush2.xpose.msra.mxu0 0.0
    %5367 = vmatprep.subr.mxu0 0.0
    %5368 = vmatpush2.xpose.msra.mxu0 0.0
    %5369 = vmatprep.subr.mxu0 0.0
    %5370 = vmatpush2.xpose.msra.mxu0 0.0
    %5371 = vmatprep.subr.mxu0 0.0
    %5372 = vmatpush2.xpose.msra.mxu0 0.0
    %5373 = vmatprep.subr.mxu0 0.0
    %5374 = vmatpush2.xpose.msra.mxu0 0.0
    %5375 = vmatprep.mubr.f32.mxu0 0.0
    %5376 = vmatmul.mubr.f32.gmra.mxu0 %v5309
    %v5377 = vpop.f32.mrf.mxu0
    %v5378 = vadd.f32 0.0, %v5377
    %v5379 = vpop.f32.mrf.mxu0
    %5380 = vdwg.mxu0
    %v5381 = vmul.f32 %v5305, 0.5
    %v5382 = vmul.f32 %v5378, 0.5
    %v5383 = vadd.f32 %v5381, %v75
    %v5384 = vadd.f32 %v5382, %v75
    %v5385 = vsel %vm521, %v5383, -inf
    %5386 = vmax.xlane.f32.xlu0 %v5385
    %v5387 = vpop.xlane.xlu0 %5386
    %v5388 = vsel %vm521, %v5384, -inf
    %5389 = vmax.xlane.f32.xlu0 %v5388
    %v5390 = vpop.xlane.xlu0 %5389
    %v5391 = vsub.f32 %v5383, %v5387
    %v5392 = vsub.f32 %v5384, %v5390
    %v5393 = vmul.f32 %v5391, 1.442695
    %v5394 = vpow.pop %v5393
    %v5395 = vmul.f32 %v5392, 1.442695
    %v5396 = vpow.pop %v5395
    %v5397 = vsel %vm521, %v5394, 0.0
    %5398 = vadd.xlane.f32.xlu0 %v5397
    %v5399 = vpop.xlane.xlu0 %5398
    %v5400 = vsel %vm521, %v5396, 0.0
    %5401 = vadd.xlane.f32.xlu0 %v5400
    %v5402 = vpop.xlane.xlu0 %5401
    %v5403 = vrcp.pop %v5399
    %v5404 = vrcp.pop %v5402
    %v5405 = vmul.f32 %v5394, %v5403
    %v5406 = vmul.f32 %v5396, %v5404
    %v5407 = vmul.f32 %v3559, %v2242
    %v5408 = vmul.f32 %v3564, %v2242
    %5410 = vrot.lane.b32.xlu0 %v5407, 64
    %v5411 = vpop.permute.xlu0 %5410
    %v5414 = vsel %vm521, %v5405, 0
    %5416 = vmatprep.subr.mxu0 0.0
    %5417 = vmatpush1.msra.mxu0 0.0
    %5418 = vmatprep.subr.mxu0 0.0
    %5419 = vmatpush1.msra.mxu0 0.0
    %5420 = vmatprep.subr.mxu0 0.0
    %5421 = vmatpush1.msra.mxu0 0.0
    %5422 = vmatprep.subr.mxu0 0.0
    %5423 = vmatpush1.msra.mxu0 0.0
    %5424 = vmatprep.subr.mxu0 0.0
    %5425 = vmatpush1.msra.mxu0 0.0
    %5426 = vmatprep.subr.mxu0 0.0
    %5427 = vmatpush1.msra.mxu0 0.0
    %5428 = vmatprep.subr.mxu0 0.0
    %5429 = vmatpush1.msra.mxu0 0.0
    %5430 = vmatprep.subr.mxu0 0.0
    %5431 = vmatpush1.msra.mxu0 0.0
    %5432 = vmatprep.subr.mxu0 0.0
    %5433 = vmatpush1.msra.mxu0 0.0
    %5434 = vmatprep.subr.mxu0 0.0
    %5435 = vmatpush1.msra.mxu0 0.0
    %5436 = vmatprep.subr.mxu0 0.0
    %5437 = vmatpush1.msra.mxu0 0.0
    %5438 = vmatprep.subr.mxu0 0.0
    %5439 = vmatpush1.msra.mxu0 0.0
    %5440 = vmatprep.subr.mxu0 0.0
    %5441 = vmatpush1.msra.mxu0 0.0
    %5442 = vmatprep.subr.mxu0 0.0
    %5443 = vmatpush1.msra.mxu0 0.0
    %5444 = vmatprep.subr.mxu0 0.0
    %5445 = vmatpush1.msra.mxu0 0.0
    %5446 = vmatprep.subr.mxu0 0.0
    %5447 = vmatpush1.msra.mxu0 %v5411
    %5448 = vmatprep.subr.mxu0 0.0
    %5449 = vmatpush2.msra.mxu0 0.0
    %5450 = vmatprep.subr.mxu0 0.0
    %5451 = vmatpush2.msra.mxu0 0.0
    %5452 = vmatprep.subr.mxu0 0.0
    %5453 = vmatpush2.msra.mxu0 0.0
    %5454 = vmatprep.subr.mxu0 0.0
    %5455 = vmatpush2.msra.mxu0 0.0
    %5456 = vmatprep.subr.mxu0 0.0
    %5457 = vmatpush2.msra.mxu0 0.0
    %5458 = vmatprep.subr.mxu0 0.0
    %5459 = vmatpush2.msra.mxu0 0.0
    %5460 = vmatprep.subr.mxu0 0.0
    %5461 = vmatpush2.msra.mxu0 0.0
    %5462 = vmatprep.subr.mxu0 0.0
    %5463 = vmatpush2.msra.mxu0 0.0
    %5464 = vmatprep.subr.mxu0 0.0
    %5465 = vmatpush2.msra.mxu0 0.0
    %5466 = vmatprep.subr.mxu0 0.0
    %5467 = vmatpush2.msra.mxu0 0.0
    %5468 = vmatprep.subr.mxu0 0.0
    %5469 = vmatpush2.msra.mxu0 0.0
    %5470 = vmatprep.subr.mxu0 0.0
    %5471 = vmatpush2.msra.mxu0 0.0
    %5472 = vmatprep.subr.mxu0 0.0
    %5473 = vmatpush2.msra.mxu0 0.0
    %5474 = vmatprep.subr.mxu0 0.0
    %5475 = vmatpush2.msra.mxu0 0.0
    %5476 = vmatprep.subr.mxu0 0.0
    %5477 = vmatpush2.msra.mxu0 0.0
    %5478 = vmatprep.subr.mxu0 0.0
    %5479 = vmatpush2.msra.mxu0 0.0
    %5480 = vmatprep.mubr.f32.mxu0 0.0
    %5481 = vmatmul.mubr.f32.gmra.mxu0 %v5414
    %v5482 = vpop.f32.mrf.mxu0
    %v5483 = vadd.f32 0.0, %v5482
    %v5484 = vpop.f32.mrf.mxu0
    %5485 = vdwg.mxu0
    %5487 = vrot.lane.b32.xlu0 %v5408, 64
    %v5488 = vpop.permute.xlu0 %5487
    %v5491 = vsel %vm521, %v5406, 0
    %5493 = vmatprep.subr.mxu0 0.0
    %5494 = vmatpush1.msra.mxu0 0.0
    %5495 = vmatprep.subr.mxu0 0.0
    %5496 = vmatpush1.msra.mxu0 0.0
    %5497 = vmatprep.subr.mxu0 0.0
    %5498 = vmatpush1.msra.mxu0 0.0
    %5499 = vmatprep.subr.mxu0 0.0
    %5500 = vmatpush1.msra.mxu0 0.0
    %5501 = vmatprep.subr.mxu0 0.0
    %5502 = vmatpush1.msra.mxu0 0.0
    %5503 = vmatprep.subr.mxu0 0.0
    %5504 = vmatpush1.msra.mxu0 0.0
    %5505 = vmatprep.subr.mxu0 0.0
    %5506 = vmatpush1.msra.mxu0 0.0
    %5507 = vmatprep.subr.mxu0 0.0
    %5508 = vmatpush1.msra.mxu0 0.0
    %5509 = vmatprep.subr.mxu0 0.0
    %5510 = vmatpush1.msra.mxu0 0.0
    %5511 = vmatprep.subr.mxu0 0.0
    %5512 = vmatpush1.msra.mxu0 0.0
    %5513 = vmatprep.subr.mxu0 0.0
    %5514 = vmatpush1.msra.mxu0 0.0
    %5515 = vmatprep.subr.mxu0 0.0
    %5516 = vmatpush1.msra.mxu0 0.0
    %5517 = vmatprep.subr.mxu0 0.0
    %5518 = vmatpush1.msra.mxu0 0.0
    %5519 = vmatprep.subr.mxu0 0.0
    %5520 = vmatpush1.msra.mxu0 0.0
    %5521 = vmatprep.subr.mxu0 0.0
    %5522 = vmatpush1.msra.mxu0 0.0
    %5523 = vmatprep.subr.mxu0 0.0
    %5524 = vmatpush1.msra.mxu0 %v5488
    %5525 = vmatprep.subr.mxu0 0.0
    %5526 = vmatpush2.msra.mxu0 0.0
    %5527 = vmatprep.subr.mxu0 0.0
    %5528 = vmatpush2.msra.mxu0 0.0
    %5529 = vmatprep.subr.mxu0 0.0
    %5530 = vmatpush2.msra.mxu0 0.0
    %5531 = vmatprep.subr.mxu0 0.0
    %5532 = vmatpush2.msra.mxu0 0.0
    %5533 = vmatprep.subr.mxu0 0.0
    %5534 = vmatpush2.msra.mxu0 0.0
    %5535 = vmatprep.subr.mxu0 0.0
    %5536 = vmatpush2.msra.mxu0 0.0
    %5537 = vmatprep.subr.mxu0 0.0
    %5538 = vmatpush2.msra.mxu0 0.0
    %5539 = vmatprep.subr.mxu0 0.0
    %5540 = vmatpush2.msra.mxu0 0.0
    %5541 = vmatprep.subr.mxu0 0.0
    %5542 = vmatpush2.msra.mxu0 0.0
    %5543 = vmatprep.subr.mxu0 0.0
    %5544 = vmatpush2.msra.mxu0 0.0
    %5545 = vmatprep.subr.mxu0 0.0
    %5546 = vmatpush2.msra.mxu0 0.0
    %5547 = vmatprep.subr.mxu0 0.0
    %5548 = vmatpush2.msra.mxu0 0.0
    %5549 = vmatprep.subr.mxu0 0.0
    %5550 = vmatpush2.msra.mxu0 0.0
    %5551 = vmatprep.subr.mxu0 0.0
    %5552 = vmatpush2.msra.mxu0 0.0
    %5553 = vmatprep.subr.mxu0 0.0
    %5554 = vmatpush2.msra.mxu0 0.0
    %5555 = vmatprep.subr.mxu0 0.0
    %5556 = vmatpush2.msra.mxu0 0.0
    %5557 = vmatprep.mubr.f32.mxu0 0.0
    %5558 = vmatmul.mubr.f32.gmra.mxu0 %v5491
    %v5559 = vpop.f32.mrf.mxu0
    %v5560 = vadd.f32 0.0, %v5559
    %v5561 = vpop.f32.mrf.mxu0
    %5562 = vdwg.mxu0
    %v5563 = vadd.f32 %v5231, %v5483
    %v5564 = vadd.f32 %v5232, %v5560
    %v5565 = vmul.f32 %v3559, %v2405
    %v5566 = vmul.f32 %v3564, %v2405
    %v5568 = vsel %vm273, %v5565, 0
    %5570 = vmatprep.subr.mxu0 0.0
    %5571 = vmatpush1.xpose.msra.mxu0 0.0
    %5572 = vmatprep.subr.mxu0 0.0
    %5573 = vmatpush1.xpose.msra.mxu0 0.0
    %5574 = vmatprep.subr.mxu0 0.0
    %5575 = vmatpush1.xpose.msra.mxu0 0.0
    %5576 = vmatprep.subr.mxu0 0.0
    %5577 = vmatpush1.xpose.msra.mxu0 0.0
    %5578 = vmatprep.subr.mxu0 0.0
    %5579 = vmatpush1.xpose.msra.mxu0 0.0
    %5580 = vmatprep.subr.mxu0 0.0
    %5581 = vmatpush1.xpose.msra.mxu0 0.0
    %5582 = vmatprep.subr.mxu0 0.0
    %5583 = vmatpush1.xpose.msra.mxu0 0.0
    %5584 = vmatprep.subr.mxu0 0.0
    %5585 = vmatpush1.xpose.msra.mxu0 0.0
    %5586 = vmatprep.subr.mxu0 0.0
    %5587 = vmatpush1.xpose.msra.mxu0 0.0
    %5588 = vmatprep.subr.mxu0 0.0
    %5589 = vmatpush1.xpose.msra.mxu0 0.0
    %5590 = vmatprep.subr.mxu0 0.0
    %5591 = vmatpush1.xpose.msra.mxu0 0.0
    %5592 = vmatprep.subr.mxu0 0.0
    %5593 = vmatpush1.xpose.msra.mxu0 0.0
    %5594 = vmatprep.subr.mxu0 0.0
    %5595 = vmatpush1.xpose.msra.mxu0 0.0
    %5596 = vmatprep.subr.mxu0 0.0
    %5597 = vmatpush1.xpose.msra.mxu0 0.0
    %5598 = vmatprep.subr.mxu0 0.0
    %5599 = vmatpush1.xpose.msra.mxu0 0.0
    %5600 = vmatprep.subr.mxu0 0.0
    %5601 = vmatpush1.xpose.msra.mxu0 %v3575
    %5602 = vmatprep.subr.mxu0 0.0
    %5603 = vmatpush2.xpose.msra.mxu0 0.0
    %5604 = vmatprep.subr.mxu0 0.0
    %5605 = vmatpush2.xpose.msra.mxu0 0.0
    %5606 = vmatprep.subr.mxu0 0.0
    %5607 = vmatpush2.xpose.msra.mxu0 0.0
    %5608 = vmatprep.subr.mxu0 0.0
    %5609 = vmatpush2.xpose.msra.mxu0 0.0
    %5610 = vmatprep.subr.mxu0 0.0
    %5611 = vmatpush2.xpose.msra.mxu0 0.0
    %5612 = vmatprep.subr.mxu0 0.0
    %5613 = vmatpush2.xpose.msra.mxu0 0.0
    %5614 = vmatprep.subr.mxu0 0.0
    %5615 = vmatpush2.xpose.msra.mxu0 0.0
    %5616 = vmatprep.subr.mxu0 0.0
    %5617 = vmatpush2.xpose.msra.mxu0 0.0
    %5618 = vmatprep.subr.mxu0 0.0
    %5619 = vmatpush2.xpose.msra.mxu0 0.0
    %5620 = vmatprep.subr.mxu0 0.0
    %5621 = vmatpush2.xpose.msra.mxu0 0.0
    %5622 = vmatprep.subr.mxu0 0.0
    %5623 = vmatpush2.xpose.msra.mxu0 0.0
    %5624 = vmatprep.subr.mxu0 0.0
    %5625 = vmatpush2.xpose.msra.mxu0 0.0
    %5626 = vmatprep.subr.mxu0 0.0
    %5627 = vmatpush2.xpose.msra.mxu0 0.0
    %5628 = vmatprep.subr.mxu0 0.0
    %5629 = vmatpush2.xpose.msra.mxu0 0.0
    %5630 = vmatprep.subr.mxu0 0.0
    %5631 = vmatpush2.xpose.msra.mxu0 0.0
    %5632 = vmatprep.subr.mxu0 0.0
    %5633 = vmatpush2.xpose.msra.mxu0 0.0
    %5634 = vmatprep.mubr.f32.mxu0 0.0
    %5635 = vmatmul.mubr.f32.gmra.mxu0 %v5568
    %v5636 = vpop.f32.mrf.mxu0
    %v5637 = vadd.f32 0.0, %v5636
    %v5638 = vpop.f32.mrf.mxu0
    %5639 = vdwg.mxu0
    %v5641 = vsel %vm273, %v5566, 0
    %5643 = vmatprep.subr.mxu0 0.0
    %5644 = vmatpush1.xpose.msra.mxu0 0.0
    %5645 = vmatprep.subr.mxu0 0.0
    %5646 = vmatpush1.xpose.msra.mxu0 0.0
    %5647 = vmatprep.subr.mxu0 0.0
    %5648 = vmatpush1.xpose.msra.mxu0 0.0
    %5649 = vmatprep.subr.mxu0 0.0
    %5650 = vmatpush1.xpose.msra.mxu0 0.0
    %5651 = vmatprep.subr.mxu0 0.0
    %5652 = vmatpush1.xpose.msra.mxu0 0.0
    %5653 = vmatprep.subr.mxu0 0.0
    %5654 = vmatpush1.xpose.msra.mxu0 0.0
    %5655 = vmatprep.subr.mxu0 0.0
    %5656 = vmatpush1.xpose.msra.mxu0 0.0
    %5657 = vmatprep.subr.mxu0 0.0
    %5658 = vmatpush1.xpose.msra.mxu0 0.0
    %5659 = vmatprep.subr.mxu0 0.0
    %5660 = vmatpush1.xpose.msra.mxu0 0.0
    %5661 = vmatprep.subr.mxu0 0.0
    %5662 = vmatpush1.xpose.msra.mxu0 0.0
    %5663 = vmatprep.subr.mxu0 0.0
    %5664 = vmatpush1.xpose.msra.mxu0 0.0
    %5665 = vmatprep.subr.mxu0 0.0
    %5666 = vmatpush1.xpose.msra.mxu0 0.0
    %5667 = vmatprep.subr.mxu0 0.0
    %5668 = vmatpush1.xpose.msra.mxu0 0.0
    %5669 = vmatprep.subr.mxu0 0.0
    %5670 = vmatpush1.xpose.msra.mxu0 0.0
    %5671 = vmatprep.subr.mxu0 0.0
    %5672 = vmatpush1.xpose.msra.mxu0 0.0
    %5673 = vmatprep.subr.mxu0 0.0
    %5674 = vmatpush1.xpose.msra.mxu0 %v3653
    %5675 = vmatprep.subr.mxu0 0.0
    %5676 = vmatpush2.xpose.msra.mxu0 0.0
    %5677 = vmatprep.subr.mxu0 0.0
    %5678 = vmatpush2.xpose.msra.mxu0 0.0
    %5679 = vmatprep.subr.mxu0 0.0
    %5680 = vmatpush2.xpose.msra.mxu0 0.0
    %5681 = vmatprep.subr.mxu0 0.0
    %5682 = vmatpush2.xpose.msra.mxu0 0.0
    %5683 = vmatprep.subr.mxu0 0.0
    %5684 = vmatpush2.xpose.msra.mxu0 0.0
    %5685 = vmatprep.subr.mxu0 0.0
    %5686 = vmatpush2.xpose.msra.mxu0 0.0
    %5687 = vmatprep.subr.mxu0 0.0
    %5688 = vmatpush2.xpose.msra.mxu0 0.0
    %5689 = vmatprep.subr.mxu0 0.0
    %5690 = vmatpush2.xpose.msra.mxu0 0.0
    %5691 = vmatprep.subr.mxu0 0.0
    %5692 = vmatpush2.xpose.msra.mxu0 0.0
    %5693 = vmatprep.subr.mxu0 0.0
    %5694 = vmatpush2.xpose.msra.mxu0 0.0
    %5695 = vmatprep.subr.mxu0 0.0
    %5696 = vmatpush2.xpose.msra.mxu0 0.0
    %5697 = vmatprep.subr.mxu0 0.0
    %5698 = vmatpush2.xpose.msra.mxu0 0.0
    %5699 = vmatprep.subr.mxu0 0.0
    %5700 = vmatpush2.xpose.msra.mxu0 0.0
    %5701 = vmatprep.subr.mxu0 0.0
    %5702 = vmatpush2.xpose.msra.mxu0 0.0
    %5703 = vmatprep.subr.mxu0 0.0
    %5704 = vmatpush2.xpose.msra.mxu0 0.0
    %5705 = vmatprep.subr.mxu0 0.0
    %5706 = vmatpush2.xpose.msra.mxu0 0.0
    %5707 = vmatprep.mubr.f32.mxu0 0.0
    %5708 = vmatmul.mubr.f32.gmra.mxu0 %v5641
    %v5709 = vpop.f32.mrf.mxu0
    %v5710 = vadd.f32 0.0, %v5709
    %v5711 = vpop.f32.mrf.mxu0
    %5712 = vdwg.mxu0
    %v5713 = vmul.f32 %v5637, 0.5
    %v5714 = vmul.f32 %v5710, 0.5
    %v5715 = vadd.f32 %v5713, %v75
    %v5716 = vadd.f32 %v5714, %v75
    %v5717 = vsel %vm521, %v5715, -inf
    %5718 = vmax.xlane.f32.xlu0 %v5717
    %v5719 = vpop.xlane.xlu0 %5718
    %v5720 = vsel %vm521, %v5716, -inf
    %5721 = vmax.xlane.f32.xlu0 %v5720
    %v5722 = vpop.xlane.xlu0 %5721
    %v5723 = vsub.f32 %v5715, %v5719
    %v5724 = vsub.f32 %v5716, %v5722
    %v5725 = vmul.f32 %v5723, 1.442695
    %v5726 = vpow.pop %v5725
    %v5727 = vmul.f32 %v5724, 1.442695
    %v5728 = vpow.pop %v5727
    %v5729 = vsel %vm521, %v5726, 0.0
    %5730 = vadd.xlane.f32.xlu0 %v5729
    %v5731 = vpop.xlane.xlu0 %5730
    %v5732 = vsel %vm521, %v5728, 0.0
    %5733 = vadd.xlane.f32.xlu0 %v5732
    %v5734 = vpop.xlane.xlu0 %5733
    %v5735 = vrcp.pop %v5731
    %v5736 = vrcp.pop %v5734
    %v5737 = vmul.f32 %v5726, %v5735
    %v5738 = vmul.f32 %v5728, %v5736
    %v5739 = vmul.f32 %v3559, %v2582
    %v5740 = vmul.f32 %v3564, %v2582
    %5742 = vrot.lane.b32.xlu0 %v5739, 64
    %v5743 = vpop.permute.xlu0 %5742
    %v5746 = vsel %vm521, %v5737, 0
    %5748 = vmatprep.subr.mxu0 0.0
    %5749 = vmatpush1.msra.mxu0 0.0
    %5750 = vmatprep.subr.mxu0 0.0
    %5751 = vmatpush1.msra.mxu0 0.0
    %5752 = vmatprep.subr.mxu0 0.0
    %5753 = vmatpush1.msra.mxu0 0.0
    %5754 = vmatprep.subr.mxu0 0.0
    %5755 = vmatpush1.msra.mxu0 0.0
    %5756 = vmatprep.subr.mxu0 0.0
    %5757 = vmatpush1.msra.mxu0 0.0
    %5758 = vmatprep.subr.mxu0 0.0
    %5759 = vmatpush1.msra.mxu0 0.0
    %5760 = vmatprep.subr.mxu0 0.0
    %5761 = vmatpush1.msra.mxu0 0.0
    %5762 = vmatprep.subr.mxu0 0.0
    %5763 = vmatpush1.msra.mxu0 0.0
    %5764 = vmatprep.subr.mxu0 0.0
    %5765 = vmatpush1.msra.mxu0 0.0
    %5766 = vmatprep.subr.mxu0 0.0
    %5767 = vmatpush1.msra.mxu0 0.0
    %5768 = vmatprep.subr.mxu0 0.0
    %5769 = vmatpush1.msra.mxu0 0.0
    %5770 = vmatprep.subr.mxu0 0.0
    %5771 = vmatpush1.msra.mxu0 0.0
    %5772 = vmatprep.subr.mxu0 0.0
    %5773 = vmatpush1.msra.mxu0 0.0
    %5774 = vmatprep.subr.mxu0 0.0
    %5775 = vmatpush1.msra.mxu0 0.0
    %5776 = vmatprep.subr.mxu0 0.0
    %5777 = vmatpush1.msra.mxu0 0.0
    %5778 = vmatprep.subr.mxu0 0.0
    %5779 = vmatpush1.msra.mxu0 %v5743
    %5780 = vmatprep.subr.mxu0 0.0
    %5781 = vmatpush2.msra.mxu0 0.0
    %5782 = vmatprep.subr.mxu0 0.0
    %5783 = vmatpush2.msra.mxu0 0.0
    %5784 = vmatprep.subr.mxu0 0.0
    %5785 = vmatpush2.msra.mxu0 0.0
    %5786 = vmatprep.subr.mxu0 0.0
    %5787 = vmatpush2.msra.mxu0 0.0
    %5788 = vmatprep.subr.mxu0 0.0
    %5789 = vmatpush2.msra.mxu0 0.0
    %5790 = vmatprep.subr.mxu0 0.0
    %5791 = vmatpush2.msra.mxu0 0.0
    %5792 = vmatprep.subr.mxu0 0.0
    %5793 = vmatpush2.msra.mxu0 0.0
    %5794 = vmatprep.subr.mxu0 0.0
    %5795 = vmatpush2.msra.mxu0 0.0
    %5796 = vmatprep.subr.mxu0 0.0
    %5797 = vmatpush2.msra.mxu0 0.0
    %5798 = vmatprep.subr.mxu0 0.0
    %5799 = vmatpush2.msra.mxu0 0.0
    %5800 = vmatprep.subr.mxu0 0.0
    %5801 = vmatpush2.msra.mxu0 0.0
    %5802 = vmatprep.subr.mxu0 0.0
    %5803 = vmatpush2.msra.mxu0 0.0
    %5804 = vmatprep.subr.mxu0 0.0
    %5805 = vmatpush2.msra.mxu0 0.0
    %5806 = vmatprep.subr.mxu0 0.0
    %5807 = vmatpush2.msra.mxu0 0.0
    %5808 = vmatprep.subr.mxu0 0.0
    %5809 = vmatpush2.msra.mxu0 0.0
    %5810 = vmatprep.subr.mxu0 0.0
    %5811 = vmatpush2.msra.mxu0 0.0
    %5812 = vmatprep.mubr.f32.mxu0 0.0
    %5813 = vmatmul.mubr.f32.gmra.mxu0 %v5746
    %v5814 = vpop.f32.mrf.mxu0
    %v5815 = vadd.f32 0.0, %v5814
    %v5816 = vpop.f32.mrf.mxu0
    %5817 = vdwg.mxu0
    %5819 = vrot.lane.b32.xlu0 %v5740, 64
    %v5820 = vpop.permute.xlu0 %5819
    %v5823 = vsel %vm521, %v5738, 0
    %5825 = vmatprep.subr.mxu0 0.0
    %5826 = vmatpush1.msra.mxu0 0.0
    %5827 = vmatprep.subr.mxu0 0.0
    %5828 = vmatpush1.msra.mxu0 0.0
    %5829 = vmatprep.subr.mxu0 0.0
    %5830 = vmatpush1.msra.mxu0 0.0
    %5831 = vmatprep.subr.mxu0 0.0
    %5832 = vmatpush1.msra.mxu0 0.0
    %5833 = vmatprep.subr.mxu0 0.0
    %5834 = vmatpush1.msra.mxu0 0.0
    %5835 = vmatprep.subr.mxu0 0.0
    %5836 = vmatpush1.msra.mxu0 0.0
    %5837 = vmatprep.subr.mxu0 0.0
    %5838 = vmatpush1.msra.mxu0 0.0
    %5839 = vmatprep.subr.mxu0 0.0
    %5840 = vmatpush1.msra.mxu0 0.0
    %5841 = vmatprep.subr.mxu0 0.0
    %5842 = vmatpush1.msra.mxu0 0.0
    %5843 = vmatprep.subr.mxu0 0.0
    %5844 = vmatpush1.msra.mxu0 0.0
    %5845 = vmatprep.subr.mxu0 0.0
    %5846 = vmatpush1.msra.mxu0 0.0
    %5847 = vmatprep.subr.mxu0 0.0
    %5848 = vmatpush1.msra.mxu0 0.0
    %5849 = vmatprep.subr.mxu0 0.0
    %5850 = vmatpush1.msra.mxu0 0.0
    %5851 = vmatprep.subr.mxu0 0.0
    %5852 = vmatpush1.msra.mxu0 0.0
    %5853 = vmatprep.subr.mxu0 0.0
    %5854 = vmatpush1.msra.mxu0 0.0
    %5855 = vmatprep.subr.mxu0 0.0
    %5856 = vmatpush1.msra.mxu0 %v5820
    %5857 = vmatprep.subr.mxu0 0.0
    %5858 = vmatpush2.msra.mxu0 0.0
    %5859 = vmatprep.subr.mxu0 0.0
    %5860 = vmatpush2.msra.mxu0 0.0
    %5861 = vmatprep.subr.mxu0 0.0
    %5862 = vmatpush2.msra.mxu0 0.0
    %5863 = vmatprep.subr.mxu0 0.0
    %5864 = vmatpush2.msra.mxu0 0.0
    %5865 = vmatprep.subr.mxu0 0.0
    %5866 = vmatpush2.msra.mxu0 0.0
    %5867 = vmatprep.subr.mxu0 0.0
    %5868 = vmatpush2.msra.mxu0 0.0
    %5869 = vmatprep.subr.mxu0 0.0
    %5870 = vmatpush2.msra.mxu0 0.0
    %5871 = vmatprep.subr.mxu0 0.0
    %5872 = vmatpush2.msra.mxu0 0.0
    %5873 = vmatprep.subr.mxu0 0.0
    %5874 = vmatpush2.msra.mxu0 0.0
    %5875 = vmatprep.subr.mxu0 0.0
    %5876 = vmatpush2.msra.mxu0 0.0
    %5877 = vmatprep.subr.mxu0 0.0
    %5878 = vmatpush2.msra.mxu0 0.0
    %5879 = vmatprep.subr.mxu0 0.0
    %5880 = vmatpush2.msra.mxu0 0.0
    %5881 = vmatprep.subr.mxu0 0.0
    %5882 = vmatpush2.msra.mxu0 0.0
    %5883 = vmatprep.subr.mxu0 0.0
    %5884 = vmatpush2.msra.mxu0 0.0
    %5885 = vmatprep.subr.mxu0 0.0
    %5886 = vmatpush2.msra.mxu0 0.0
    %5887 = vmatprep.subr.mxu0 0.0
    %5888 = vmatpush2.msra.mxu0 0.0
    %5889 = vmatprep.mubr.f32.mxu0 0.0
    %5890 = vmatmul.mubr.f32.gmra.mxu0 %v5823
    %v5891 = vpop.f32.mrf.mxu0
    %v5892 = vadd.f32 0.0, %v5891
    %v5893 = vpop.f32.mrf.mxu0
    %5894 = vdwg.mxu0
    %v5895 = vadd.f32 %v5563, %v5815
    %v5896 = vadd.f32 %v5564, %v5892
    %v5897 = vmul.f32 %v3559, %v2745
    %v5898 = vmul.f32 %v3564, %v2745
    %v5900 = vsel %vm273, %v5897, 0
    %5902 = vmatprep.subr.mxu0 0.0
    %5903 = vmatpush1.xpose.msra.mxu0 0.0
    %5904 = vmatprep.subr.mxu0 0.0
    %5905 = vmatpush1.xpose.msra.mxu0 0.0
    %5906 = vmatprep.subr.mxu0 0.0
    %5907 = vmatpush1.xpose.msra.mxu0 0.0
    %5908 = vmatprep.subr.mxu0 0.0
    %5909 = vmatpush1.xpose.msra.mxu0 0.0
    %5910 = vmatprep.subr.mxu0 0.0
    %5911 = vmatpush1.xpose.msra.mxu0 0.0
    %5912 = vmatprep.subr.mxu0 0.0
    %5913 = vmatpush1.xpose.msra.mxu0 0.0
    %5914 = vmatprep.subr.mxu0 0.0
    %5915 = vmatpush1.xpose.msra.mxu0 0.0
    %5916 = vmatprep.subr.mxu0 0.0
    %5917 = vmatpush1.xpose.msra.mxu0 0.0
    %5918 = vmatprep.subr.mxu0 0.0
    %5919 = vmatpush1.xpose.msra.mxu0 0.0
    %5920 = vmatprep.subr.mxu0 0.0
    %5921 = vmatpush1.xpose.msra.mxu0 0.0
    %5922 = vmatprep.subr.mxu0 0.0
    %5923 = vmatpush1.xpose.msra.mxu0 0.0
    %5924 = vmatprep.subr.mxu0 0.0
    %5925 = vmatpush1.xpose.msra.mxu0 0.0
    %5926 = vmatprep.subr.mxu0 0.0
    %5927 = vmatpush1.xpose.msra.mxu0 0.0
    %5928 = vmatprep.subr.mxu0 0.0
    %5929 = vmatpush1.xpose.msra.mxu0 0.0
    %5930 = vmatprep.subr.mxu0 0.0
    %5931 = vmatpush1.xpose.msra.mxu0 0.0
    %5932 = vmatprep.subr.mxu0 0.0
    %5933 = vmatpush1.xpose.msra.mxu0 %v3575
    %5934 = vmatprep.subr.mxu0 0.0
    %5935 = vmatpush2.xpose.msra.mxu0 0.0
    %5936 = vmatprep.subr.mxu0 0.0
    %5937 = vmatpush2.xpose.msra.mxu0 0.0
    %5938 = vmatprep.subr.mxu0 0.0
    %5939 = vmatpush2.xpose.msra.mxu0 0.0
    %5940 = vmatprep.subr.mxu0 0.0
    %5941 = vmatpush2.xpose.msra.mxu0 0.0
    %5942 = vmatprep.subr.mxu0 0.0
    %5943 = vmatpush2.xpose.msra.mxu0 0.0
    %5944 = vmatprep.subr.mxu0 0.0
    %5945 = vmatpush2.xpose.msra.mxu0 0.0
    %5946 = vmatprep.subr.mxu0 0.0
    %5947 = vmatpush2.xpose.msra.mxu0 0.0
    %5948 = vmatprep.subr.mxu0 0.0
    %5949 = vmatpush2.xpose.msra.mxu0 0.0
    %5950 = vmatprep.subr.mxu0 0.0
    %5951 = vmatpush2.xpose.msra.mxu0 0.0
    %5952 = vmatprep.subr.mxu0 0.0
    %5953 = vmatpush2.xpose.msra.mxu0 0.0
    %5954 = vmatprep.subr.mxu0 0.0
    %5955 = vmatpush2.xpose.msra.mxu0 0.0
    %5956 = vmatprep.subr.mxu0 0.0
    %5957 = vmatpush2.xpose.msra.mxu0 0.0
    %5958 = vmatprep.subr.mxu0 0.0
    %5959 = vmatpush2.xpose.msra.mxu0 0.0
    %5960 = vmatprep.subr.mxu0 0.0
    %5961 = vmatpush2.xpose.msra.mxu0 0.0
    %5962 = vmatprep.subr.mxu0 0.0
    %5963 = vmatpush2.xpose.msra.mxu0 0.0
    %5964 = vmatprep.subr.mxu0 0.0
    %5965 = vmatpush2.xpose.msra.mxu0 0.0
    %5966 = vmatprep.mubr.f32.mxu0 0.0
    %5967 = vmatmul.mubr.f32.gmra.mxu0 %v5900
    %v5968 = vpop.f32.mrf.mxu0
    %v5969 = vadd.f32 0.0, %v5968
    %v5970 = vpop.f32.mrf.mxu0
    %5971 = vdwg.mxu0
    %v5973 = vsel %vm273, %v5898, 0
    %5975 = vmatprep.subr.mxu0 0.0
    %5976 = vmatpush1.xpose.msra.mxu0 0.0
    %5977 = vmatprep.subr.mxu0 0.0
    %5978 = vmatpush1.xpose.msra.mxu0 0.0
    %5979 = vmatprep.subr.mxu0 0.0
    %5980 = vmatpush1.xpose.msra.mxu0 0.0
    %5981 = vmatprep.subr.mxu0 0.0
    %5982 = vmatpush1.xpose.msra.mxu0 0.0
    %5983 = vmatprep.subr.mxu0 0.0
    %5984 = vmatpush1.xpose.msra.mxu0 0.0
    %5985 = vmatprep.subr.mxu0 0.0
    %5986 = vmatpush1.xpose.msra.mxu0 0.0
    %5987 = vmatprep.subr.mxu0 0.0
    %5988 = vmatpush1.xpose.msra.mxu0 0.0
    %5989 = vmatprep.subr.mxu0 0.0
    %5990 = vmatpush1.xpose.msra.mxu0 0.0
    %5991 = vmatprep.subr.mxu0 0.0
    %5992 = vmatpush1.xpose.msra.mxu0 0.0
    %5993 = vmatprep.subr.mxu0 0.0
    %5994 = vmatpush1.xpose.msra.mxu0 0.0
    %5995 = vmatprep.subr.mxu0 0.0
    %5996 = vmatpush1.xpose.msra.mxu0 0.0
    %5997 = vmatprep.subr.mxu0 0.0
    %5998 = vmatpush1.xpose.msra.mxu0 0.0
    %5999 = vmatprep.subr.mxu0 0.0
    %6000 = vmatpush1.xpose.msra.mxu0 0.0
    %6001 = vmatprep.subr.mxu0 0.0
    %6002 = vmatpush1.xpose.msra.mxu0 0.0
    %6003 = vmatprep.subr.mxu0 0.0
    %6004 = vmatpush1.xpose.msra.mxu0 0.0
    %6005 = vmatprep.subr.mxu0 0.0
    %6006 = vmatpush1.xpose.msra.mxu0 %v3653
    %6007 = vmatprep.subr.mxu0 0.0
    %6008 = vmatpush2.xpose.msra.mxu0 0.0
    %6009 = vmatprep.subr.mxu0 0.0
    %6010 = vmatpush2.xpose.msra.mxu0 0.0
    %6011 = vmatprep.subr.mxu0 0.0
    %6012 = vmatpush2.xpose.msra.mxu0 0.0
    %6013 = vmatprep.subr.mxu0 0.0
    %6014 = vmatpush2.xpose.msra.mxu0 0.0
    %6015 = vmatprep.subr.mxu0 0.0
    %6016 = vmatpush2.xpose.msra.mxu0 0.0
    %6017 = vmatprep.subr.mxu0 0.0
    %6018 = vmatpush2.xpose.msra.mxu0 0.0
    %6019 = vmatprep.subr.mxu0 0.0
    %6020 = vmatpush2.xpose.msra.mxu0 0.0
    %6021 = vmatprep.subr.mxu0 0.0
    %6022 = vmatpush2.xpose.msra.mxu0 0.0
    %6023 = vmatprep.subr.mxu0 0.0
    %6024 = vmatpush2.xpose.msra.mxu0 0.0
    %6025 = vmatprep.subr.mxu0 0.0
    %6026 = vmatpush2.xpose.msra.mxu0 0.0
    %6027 = vmatprep.subr.mxu0 0.0
    %6028 = vmatpush2.xpose.msra.mxu0 0.0
    %6029 = vmatprep.subr.mxu0 0.0
    %6030 = vmatpush2.xpose.msra.mxu0 0.0
    %6031 = vmatprep.subr.mxu0 0.0
    %6032 = vmatpush2.xpose.msra.mxu0 0.0
    %6033 = vmatprep.subr.mxu0 0.0
    %6034 = vmatpush2.xpose.msra.mxu0 0.0
    %6035 = vmatprep.subr.mxu0 0.0
    %6036 = vmatpush2.xpose.msra.mxu0 0.0
    %6037 = vmatprep.subr.mxu0 0.0
    %6038 = vmatpush2.xpose.msra.mxu0 0.0
    %6039 = vmatprep.mubr.f32.mxu0 0.0
    %6040 = vmatmul.mubr.f32.gmra.mxu0 %v5973
    %v6041 = vpop.f32.mrf.mxu0
    %v6042 = vadd.f32 0.0, %v6041
    %v6043 = vpop.f32.mrf.mxu0
    %6044 = vdwg.mxu0
    %v6045 = vmul.f32 %v5969, 0.5
    %v6046 = vmul.f32 %v6042, 0.5
    %v6047 = vadd.f32 %v6045, %v75
    %v6048 = vadd.f32 %v6046, %v75
    %v6049 = vsel %vm521, %v6047, -inf
    %6050 = vmax.xlane.f32.xlu0 %v6049
    %v6051 = vpop.xlane.xlu0 %6050
    %v6052 = vsel %vm521, %v6048, -inf
    %6053 = vmax.xlane.f32.xlu0 %v6052
    %v6054 = vpop.xlane.xlu0 %6053
    %v6055 = vsub.f32 %v6047, %v6051
    %v6056 = vsub.f32 %v6048, %v6054
    %v6057 = vmul.f32 %v6055, 1.442695
    %v6058 = vpow.pop %v6057
    %v6059 = vmul.f32 %v6056, 1.442695
    %v6060 = vpow.pop %v6059
    %v6061 = vsel %vm521, %v6058, 0.0
    %6062 = vadd.xlane.f32.xlu0 %v6061
    %v6063 = vpop.xlane.xlu0 %6062
    %v6064 = vsel %vm521, %v6060, 0.0
    %6065 = vadd.xlane.f32.xlu0 %v6064
    %v6066 = vpop.xlane.xlu0 %6065
    %v6067 = vrcp.pop %v6063
    %v6068 = vrcp.pop %v6066
    %v6069 = vmul.f32 %v6058, %v6067
    %v6070 = vmul.f32 %v6060, %v6068
    %v6071 = vmul.f32 %v3559, %v2922
    %v6072 = vmul.f32 %v3564, %v2922
    %6074 = vrot.lane.b32.xlu0 %v6071, 64
    %v6075 = vpop.permute.xlu0 %6074
    %v6078 = vsel %vm521, %v6069, 0
    %6080 = vmatprep.subr.mxu0 0.0
    %6081 = vmatpush1.msra.mxu0 0.0
    %6082 = vmatprep.subr.mxu0 0.0
    %6083 = vmatpush1.msra.mxu0 0.0
    %6084 = vmatprep.subr.mxu0 0.0
    %6085 = vmatpush1.msra.mxu0 0.0
    %6086 = vmatprep.subr.mxu0 0.0
    %6087 = vmatpush1.msra.mxu0 0.0
    %6088 = vmatprep.subr.mxu0 0.0
    %6089 = vmatpush1.msra.mxu0 0.0
    %6090 = vmatprep.subr.mxu0 0.0
    %6091 = vmatpush1.msra.mxu0 0.0
    %6092 = vmatprep.subr.mxu0 0.0
    %6093 = vmatpush1.msra.mxu0 0.0
    %6094 = vmatprep.subr.mxu0 0.0
    %6095 = vmatpush1.msra.mxu0 0.0
    %6096 = vmatprep.subr.mxu0 0.0
    %6097 = vmatpush1.msra.mxu0 0.0
    %6098 = vmatprep.subr.mxu0 0.0
    %6099 = vmatpush1.msra.mxu0 0.0
    %6100 = vmatprep.subr.mxu0 0.0
    %6101 = vmatpush1.msra.mxu0 0.0
    %6102 = vmatprep.subr.mxu0 0.0
    %6103 = vmatpush1.msra.mxu0 0.0
    %6104 = vmatprep.subr.mxu0 0.0
    %6105 = vmatpush1.msra.mxu0 0.0
    %6106 = vmatprep.subr.mxu0 0.0
    %6107 = vmatpush1.msra.mxu0 0.0
    %6108 = vmatprep.subr.mxu0 0.0
    %6109 = vmatpush1.msra.mxu0 0.0
    %6110 = vmatprep.subr.mxu0 0.0
    %6111 = vmatpush1.msra.mxu0 %v6075
    %6112 = vmatprep.subr.mxu0 0.0
    %6113 = vmatpush2.msra.mxu0 0.0
    %6114 = vmatprep.subr.mxu0 0.0
    %6115 = vmatpush2.msra.mxu0 0.0
    %6116 = vmatprep.subr.mxu0 0.0
    %6117 = vmatpush2.msra.mxu0 0.0
    %6118 = vmatprep.subr.mxu0 0.0
    %6119 = vmatpush2.msra.mxu0 0.0
    %6120 = vmatprep.subr.mxu0 0.0
    %6121 = vmatpush2.msra.mxu0 0.0
    %6122 = vmatprep.subr.mxu0 0.0
    %6123 = vmatpush2.msra.mxu0 0.0
    %6124 = vmatprep.subr.mxu0 0.0
    %6125 = vmatpush2.msra.mxu0 0.0
    %6126 = vmatprep.subr.mxu0 0.0
    %6127 = vmatpush2.msra.mxu0 0.0
    %6128 = vmatprep.subr.mxu0 0.0
    %6129 = vmatpush2.msra.mxu0 0.0
    %6130 = vmatprep.subr.mxu0 0.0
    %6131 = vmatpush2.msra.mxu0 0.0
    %6132 = vmatprep.subr.mxu0 0.0
    %6133 = vmatpush2.msra.mxu0 0.0
    %6134 = vmatprep.subr.mxu0 0.0
    %6135 = vmatpush2.msra.mxu0 0.0
    %6136 = vmatprep.subr.mxu0 0.0
    %6137 = vmatpush2.msra.mxu0 0.0
    %6138 = vmatprep.subr.mxu0 0.0
    %6139 = vmatpush2.msra.mxu0 0.0
    %6140 = vmatprep.subr.mxu0 0.0
    %6141 = vmatpush2.msra.mxu0 0.0
    %6142 = vmatprep.subr.mxu0 0.0
    %6143 = vmatpush2.msra.mxu0 0.0
    %6144 = vmatprep.mubr.f32.mxu0 0.0
    %6145 = vmatmul.mubr.f32.gmra.mxu0 %v6078
    %v6146 = vpop.f32.mrf.mxu0
    %v6147 = vadd.f32 0.0, %v6146
    %v6148 = vpop.f32.mrf.mxu0
    %6149 = vdwg.mxu0
    %6151 = vrot.lane.b32.xlu0 %v6072, 64
    %v6152 = vpop.permute.xlu0 %6151
    %v6155 = vsel %vm521, %v6070, 0
    %6157 = vmatprep.subr.mxu0 0.0
    %6158 = vmatpush1.msra.mxu0 0.0
    %6159 = vmatprep.subr.mxu0 0.0
    %6160 = vmatpush1.msra.mxu0 0.0
    %6161 = vmatprep.subr.mxu0 0.0
    %6162 = vmatpush1.msra.mxu0 0.0
    %6163 = vmatprep.subr.mxu0 0.0
    %6164 = vmatpush1.msra.mxu0 0.0
    %6165 = vmatprep.subr.mxu0 0.0
    %6166 = vmatpush1.msra.mxu0 0.0
    %6167 = vmatprep.subr.mxu0 0.0
    %6168 = vmatpush1.msra.mxu0 0.0
    %6169 = vmatprep.subr.mxu0 0.0
    %6170 = vmatpush1.msra.mxu0 0.0
    %6171 = vmatprep.subr.mxu0 0.0
    %6172 = vmatpush1.msra.mxu0 0.0
    %6173 = vmatprep.subr.mxu0 0.0
    %6174 = vmatpush1.msra.mxu0 0.0
    %6175 = vmatprep.subr.mxu0 0.0
    %6176 = vmatpush1.msra.mxu0 0.0
    %6177 = vmatprep.subr.mxu0 0.0
    %6178 = vmatpush1.msra.mxu0 0.0
    %6179 = vmatprep.subr.mxu0 0.0
    %6180 = vmatpush1.msra.mxu0 0.0
    %6181 = vmatprep.subr.mxu0 0.0
    %6182 = vmatpush1.msra.mxu0 0.0
    %6183 = vmatprep.subr.mxu0 0.0
    %6184 = vmatpush1.msra.mxu0 0.0
    %6185 = vmatprep.subr.mxu0 0.0
    %6186 = vmatpush1.msra.mxu0 0.0
    %6187 = vmatprep.subr.mxu0 0.0
    %6188 = vmatpush1.msra.mxu0 %v6152
    %6189 = vmatprep.subr.mxu0 0.0
    %6190 = vmatpush2.msra.mxu0 0.0
    %6191 = vmatprep.subr.mxu0 0.0
    %6192 = vmatpush2.msra.mxu0 0.0
    %6193 = vmatprep.subr.mxu0 0.0
    %6194 = vmatpush2.msra.mxu0 0.0
    %6195 = vmatprep.subr.mxu0 0.0
    %6196 = vmatpush2.msra.mxu0 0.0
    %6197 = vmatprep.subr.mxu0 0.0
    %6198 = vmatpush2.msra.mxu0 0.0
    %6199 = vmatprep.subr.mxu0 0.0
    %6200 = vmatpush2.msra.mxu0 0.0
    %6201 = vmatprep.subr.mxu0 0.0
    %6202 = vmatpush2.msra.mxu0 0.0
    %6203 = vmatprep.subr.mxu0 0.0
    %6204 = vmatpush2.msra.mxu0 0.0
    %6205 = vmatprep.subr.mxu0 0.0
    %6206 = vmatpush2.msra.mxu0 0.0
    %6207 = vmatprep.subr.mxu0 0.0
    %6208 = vmatpush2.msra.mxu0 0.0
    %6209 = vmatprep.subr.mxu0 0.0
    %6210 = vmatpush2.msra.mxu0 0.0
    %6211 = vmatprep.subr.mxu0 0.0
    %6212 = vmatpush2.msra.mxu0 0.0
    %6213 = vmatprep.subr.mxu0 0.0
    %6214 = vmatpush2.msra.mxu0 0.0
    %6215 = vmatprep.subr.mxu0 0.0
    %6216 = vmatpush2.msra.mxu0 0.0
    %6217 = vmatprep.subr.mxu0 0.0
    %6218 = vmatpush2.msra.mxu0 0.0
    %6219 = vmatprep.subr.mxu0 0.0
    %6220 = vmatpush2.msra.mxu0 0.0
    %6221 = vmatprep.mubr.f32.mxu0 0.0
    %6222 = vmatmul.mubr.f32.gmra.mxu0 %v6155
    %v6223 = vpop.f32.mrf.mxu0
    %v6224 = vadd.f32 0.0, %v6223
    %v6225 = vpop.f32.mrf.mxu0
    %6226 = vdwg.mxu0
    %v6227 = vadd.f32 %v5895, %v6147
    %v6228 = vadd.f32 %v5896, %v6224
    %s6229 = scalar_lea.vmem %s9, 32
    %v6230 = vld [vmem:[%s6229] sm:$0xff]
    %v6231 = vld [vmem:[%s6229 + $0x8] sm:$0xff]
    %v6232 = vld [vmem:[%s6229 + $0x10] sm:$0xff]
    %v6233 = vld [vmem:[%s6229 + $0x18] sm:$0xff]
    %v6234 = vld [vmem:[%s10 + $0x1] sm:$0x1]
    %v6235 = vlaneseq
    %v6236 = vshrl.u32 %v6235, 7
    %v6237 = vsub.s32 0, %v6236
    %v6238 = vrot.slane %v6234, %v6237
    %v6240 = vsel %vm273, %v6227, 0
    %v6243 = vsel %vm273, %v6228, 0
    %6245 = vmatprep.subr.mxu0 0.0
    %6246 = vmatpush1.msra.mxu0 0.0
    %6247 = vmatprep.subr.mxu0 0.0
    %6248 = vmatpush1.msra.mxu0 0.0
    %6249 = vmatprep.subr.mxu0 0.0
    %6250 = vmatpush1.msra.mxu0 0.0
    %6251 = vmatprep.subr.mxu0 0.0
    %6252 = vmatpush1.msra.mxu0 0.0
    %6253 = vmatprep.subr.mxu0 0.0
    %6254 = vmatpush1.msra.mxu0 0.0
    %6255 = vmatprep.subr.mxu0 0.0
    %6256 = vmatpush1.msra.mxu0 0.0
    %6257 = vmatprep.subr.mxu0 0.0
    %6258 = vmatpush1.msra.mxu0 0.0
    %6259 = vmatprep.subr.mxu0 0.0
    %6260 = vmatpush1.msra.mxu0 0.0
    %6261 = vmatprep.subr.mxu0 0.0
    %6262 = vmatpush1.msra.mxu0 0.0
    %6263 = vmatprep.subr.mxu0 0.0
    %6264 = vmatpush1.msra.mxu0 0.0
    %6265 = vmatprep.subr.mxu0 0.0
    %6266 = vmatpush1.msra.mxu0 0.0
    %6267 = vmatprep.subr.mxu0 0.0
    %6268 = vmatpush1.msra.mxu0 0.0
    %6269 = vmatprep.subr.mxu0 0.0
    %6270 = vmatpush1.msra.mxu0 %v6233
    %6271 = vmatprep.subr.mxu0 0.0
    %6272 = vmatpush1.msra.mxu0 %v6232
    %6273 = vmatprep.subr.mxu0 0.0
    %6274 = vmatpush1.msra.mxu0 %v6231
    %6275 = vmatprep.subr.mxu0 0.0
    %6276 = vmatpush1.msra.mxu0 %v6230
    %6277 = vmatprep.subr.mxu0 0.0
    %6278 = vmatpush2.msra.mxu0 0.0
    %6279 = vmatprep.subr.mxu0 0.0
    %6280 = vmatpush2.msra.mxu0 0.0
    %6281 = vmatprep.subr.mxu0 0.0
    %6282 = vmatpush2.msra.mxu0 0.0
    %6283 = vmatprep.subr.mxu0 0.0
    %6284 = vmatpush2.msra.mxu0 0.0
    %6285 = vmatprep.subr.mxu0 0.0
    %6286 = vmatpush2.msra.mxu0 0.0
    %6287 = vmatprep.subr.mxu0 0.0
    %6288 = vmatpush2.msra.mxu0 0.0
    %6289 = vmatprep.subr.mxu0 0.0
    %6290 = vmatpush2.msra.mxu0 0.0
    %6291 = vmatprep.subr.mxu0 0.0
    %6292 = vmatpush2.msra.mxu0 0.0
    %6293 = vmatprep.subr.mxu0 0.0
    %6294 = vmatpush2.msra.mxu0 0.0
    %6295 = vmatprep.subr.mxu0 0.0
    %6296 = vmatpush2.msra.mxu0 0.0
    %6297 = vmatprep.subr.mxu0 0.0
    %6298 = vmatpush2.msra.mxu0 0.0
    %6299 = vmatprep.subr.mxu0 0.0
    %6300 = vmatpush2.msra.mxu0 0.0
    %6301 = vmatprep.subr.mxu0 0.0
    %6302 = vmatpush2.msra.mxu0 0.0
    %6303 = vmatprep.subr.mxu0 0.0
    %6304 = vmatpush2.msra.mxu0 0.0
    %6305 = vmatprep.subr.mxu0 0.0
    %6306 = vmatpush2.msra.mxu0 0.0
    %6307 = vmatprep.subr.mxu0 0.0
    %6308 = vmatpush2.msra.mxu0 0.0
    %6309 = vmatprep.mubr.f32.mxu0 0.0
    %6310 = vmatmul.mubr.f32.gmra.mxu0 %v6240
    %v6311 = vpop.f32.mrf.mxu0
    %v6312 = vadd.f32 %v6238, %v6311
    %v6313 = vpop.f32.mrf.mxu0
    %6314 = vmatprep.mubr.f32.mxu0 0.0
    %6315 = vmatmul.mubr.f32.gmra.mxu0 %v6243
    %v6316 = vpop.f32.mrf.mxu0
    %v6317 = vadd.f32 %v6238, %v6316
    %v6318 = vpop.f32.mrf.mxu0
    %6319 = vdwg.mxu0
    %v6320 = vadd.f32 %v3474, %v6312
    %v6321 = vadd.f32 %v3475, %v6317
    %v6322 = vld [vmem:[%s11 + $0x1] sm:$0x1]
    %v6323 = vld [vmem:[%s12 + $0x1] sm:$0x1]
    %v6324 = vsel %vm273, %v6320, 0.0
    %6325 = vadd.xlane.f32.xlu0 %v6324
    %v6326 = vpop.xlane.xlu0 %6325
    %v6327 = vsel %vm273, %v6321, 0.0
    %6328 = vadd.xlane.f32.xlu0 %v6327
    %v6329 = vpop.xlane.xlu0 %6328
    %v6330 = vmul.f32 %v6326, %v3182
    %v6331 = vmul.f32 %v6329, %v3182
    %v6332 = vsub.f32 %v6320, %v6330
    %v6333 = vsub.f32 %v6321, %v6331
    %v6334 = vmul.f32 %v6332, %v6332
    %v6335 = vmul.f32 %v6333, %v6333
    %v6336 = vsel %vm273, %v6334, 0.0
    %6337 = vadd.xlane.f32.xlu0 %v6336
    %v6338 = vpop.xlane.xlu0 %6337
    %v6339 = vsel %vm273, %v6335, 0.0
    %6340 = vadd.xlane.f32.xlu0 %v6339
    %v6341 = vpop.xlane.xlu0 %6340
    %v6342 = vmul.f32 %v6338, %v3182
    %v6343 = vmul.f32 %v6341, %v3182
    %v6344 = vadd.f32 %v6342, 1e-05
    %v6345 = vadd.f32 %v6343, 1e-05
    %v6346 = vrsqrt.pop %v6344
    %v6347 = vrsqrt.pop %v6345
    %v6348 = vmul.f32 %v6332, %v6346
    %v6349 = vmul.f32 %v6333, %v6347
    %v6350 = vlaneseq
    %v6351 = vshrl.u32 %v6350, 7
    %v6352 = vsub.s32 0, %v6351
    %v6353 = vrot.slane %v6322, %v6352
    %v6354 = vmul.f32 %v6348, %v6353
    %v6355 = vmul.f32 %v6349, %v6353
    %v6356 = vlaneseq
    %v6357 = vshrl.u32 %v6356, 7
    %v6358 = vsub.s32 0, %v6357
    %v6359 = vrot.slane %v6323, %v6358
    %v6360 = vadd.f32 %v6354, %v6359
    %v6361 = vadd.f32 %v6355, %v6359
    %s6362 = scalar_lea.vmem %s15, 64
    %v6363 = vld [vmem:[%s6362] sm:$0xff]
    %v6364 = vld [vmem:[%s6362 + $0x8] sm:$0xff]
    %v6365 = vld [vmem:[%s6362 + $0x10] sm:$0xff]
    %v6366 = vld [vmem:[%s6362 + $0x18] sm:$0xff]
    %v6367 = vld [vmem:[%s6362 + $0x20] sm:$0xff]
    %v6368 = vld [vmem:[%s6362 + $0x28] sm:$0xff]
    %v6369 = vld [vmem:[%s6362 + $0x30] sm:$0xff]
    %v6370 = vld [vmem:[%s6362 + $0x38] sm:$0xff]
    %s6371 = scalar_lea.vmem %s16, 1
    %v6372 = vld [vmem:[%s6371] ss:$2 sm:$0x3]
    %v6374 = vlaneseq
    %v6375 = vshrl.u32 %v6374, 7
    %v6376 = vsub.s32 0, %v6375
    %v6377 = vrot.slane %v6372, %v6376
    %v6378 = vlaneseq
    %v6379 = vshrl.u32 %v6378, 7
    %v6380 = vsub.s32 1, %v6379
    %v6381 = vrot.slane %v6372, %v6380
    %v6385 = vsel %vm273, %v6360, 0
    %v6388 = vsel %vm273, %v6361, 0
    %6390 = vmatprep.subr.mxu0 0.0
    %6391 = vmatpush1.msra.mxu0 0.0
    %6392 = vmatprep.subr.mxu0 0.0
    %6393 = vmatpush1.msra.mxu0 0.0
    %6394 = vmatprep.subr.mxu0 0.0
    %6395 = vmatpush1.msra.mxu0 0.0
    %6396 = vmatprep.subr.mxu0 0.0
    %6397 = vmatpush1.msra.mxu0 0.0
    %6398 = vmatprep.subr.mxu0 0.0
    %6399 = vmatpush1.msra.mxu0 0.0
    %6400 = vmatprep.subr.mxu0 0.0
    %6401 = vmatpush1.msra.mxu0 0.0
    %6402 = vmatprep.subr.mxu0 0.0
    %6403 = vmatpush1.msra.mxu0 0.0
    %6404 = vmatprep.subr.mxu0 0.0
    %6405 = vmatpush1.msra.mxu0 0.0
    %6406 = vmatprep.subr.mxu0 0.0
    %6407 = vmatpush1.msra.mxu0 0.0
    %6408 = vmatprep.subr.mxu0 0.0
    %6409 = vmatpush1.msra.mxu0 0.0
    %6410 = vmatprep.subr.mxu0 0.0
    %6411 = vmatpush1.msra.mxu0 0.0
    %6412 = vmatprep.subr.mxu0 0.0
    %6413 = vmatpush1.msra.mxu0 0.0
    %6414 = vmatprep.subr.mxu0 %v6370
    %6415 = vmatpush1.msra.mxu0 %v6369
    %6416 = vmatprep.subr.mxu0 %v6368
    %6417 = vmatpush1.msra.mxu0 %v6367
    %6418 = vmatprep.subr.mxu0 %v6366
    %6419 = vmatpush1.msra.mxu0 %v6365
    %6420 = vmatprep.subr.mxu0 %v6364
    %6421 = vmatpush1.msra.mxu0 %v6363
    %6422 = vmatprep.subr.mxu0 0.0
    %6423 = vmatpush2.msra.mxu0 0.0
    %6424 = vmatprep.subr.mxu0 0.0
    %6425 = vmatpush2.msra.mxu0 0.0
    %6426 = vmatprep.subr.mxu0 0.0
    %6427 = vmatpush2.msra.mxu0 0.0
    %6428 = vmatprep.subr.mxu0 0.0
    %6429 = vmatpush2.msra.mxu0 0.0
    %6430 = vmatprep.subr.mxu0 0.0
    %6431 = vmatpush2.msra.mxu0 0.0
    %6432 = vmatprep.subr.mxu0 0.0
    %6433 = vmatpush2.msra.mxu0 0.0
    %6434 = vmatprep.subr.mxu0 0.0
    %6435 = vmatpush2.msra.mxu0 0.0
    %6436 = vmatprep.subr.mxu0 0.0
    %6437 = vmatpush2.msra.mxu0 0.0
    %6438 = vmatprep.subr.mxu0 0.0
    %6439 = vmatpush2.msra.mxu0 0.0
    %6440 = vmatprep.subr.mxu0 0.0
    %6441 = vmatpush2.msra.mxu0 0.0
    %6442 = vmatprep.subr.mxu0 0.0
    %6443 = vmatpush2.msra.mxu0 0.0
    %6444 = vmatprep.subr.mxu0 0.0
    %6445 = vmatpush2.msra.mxu0 0.0
    %6446 = vmatprep.subr.mxu0 0.0
    %6447 = vmatpush2.msra.mxu0 0.0
    %6448 = vmatprep.subr.mxu0 0.0
    %6449 = vmatpush2.msra.mxu0 0.0
    %6450 = vmatprep.subr.mxu0 0.0
    %6451 = vmatpush2.msra.mxu0 0.0
    %6452 = vmatprep.subr.mxu0 0.0
    %6453 = vmatpush2.msra.mxu0 0.0
    %6454 = vmatprep.mubr.f32.mxu0 0.0
    %6455 = vmatmul.mubr.f32.gmra.mxu0 %v6385
    %v6456 = vpop.f32.mrf.mxu0
    %v6457 = vadd.f32 %v6377, %v6456
    %v6458 = vpop.f32.mrf.mxu0
    %v6459 = vadd.f32 %v6381, %v6458
    %6460 = vmatprep.mubr.f32.mxu0 0.0
    %6461 = vmatmul.mubr.f32.gmra.mxu0 %v6388
    %v6462 = vpop.f32.mrf.mxu0
    %v6463 = vadd.f32 %v6377, %v6462
    %v6464 = vpop.f32.mrf.mxu0
    %v6465 = vadd.f32 %v6381, %v6464
    %6466 = vdwg.mxu0
    %v6467 = vmax.f32 %v6457, 0.0
    %v6468 = vmax.f32 %v6459, 0.0
    %v6469 = vmax.f32 %v6463, 0.0
    %v6470 = vmax.f32 %v6465, 0.0
    %s6471 = scalar_lea.vmem %s17, 256
    %v6472 = vld [vmem:[%s6471] sm:$0xff]
    %v6473 = vld [vmem:[%s6471 + $0x8] sm:$0xff]
    %v6474 = vld [vmem:[%s6471 + $0x10] sm:$0xff]
    %v6475 = vld [vmem:[%s6471 + $0x18] sm:$0xff]
    %v6476 = vld [vmem:[%s6471 + $0x20] sm:$0xff]
    %v6477 = vld [vmem:[%s6471 + $0x28] sm:$0xff]
    %v6478 = vld [vmem:[%s6471 + $0x30] sm:$0xff]
    %v6479 = vld [vmem:[%s6471 + $0x38] sm:$0xff]
    %v6480 = vld [vmem:[%s6471 + $0x40] sm:$0xff]
    %v6481 = vld [vmem:[%s6471 + $0x48] sm:$0xff]
    %v6482 = vld [vmem:[%s6471 + $0x50] sm:$0xff]
    %v6483 = vld [vmem:[%s6471 + $0x58] sm:$0xff]
    %v6484 = vld [vmem:[%s6471 + $0x60] sm:$0xff]
    %v6485 = vld [vmem:[%s6471 + $0x68] sm:$0xff]
    %v6486 = vld [vmem:[%s6471 + $0x70] sm:$0xff]
    %v6487 = vld [vmem:[%s6471 + $0x78] sm:$0xff]
    %v6488 = vld [vmem:[%s6471 + $0x80] sm:$0xff]
    %v6489 = vld [vmem:[%s6471 + $0x88] sm:$0xff]
    %v6490 = vld [vmem:[%s6471 + $0x90] sm:$0xff]
    %v6491 = vld [vmem:[%s6471 + $0x98] sm:$0xff]
    %v6492 = vld [vmem:[%s6471 + $0xa0] sm:$0xff]
    %v6493 = vld [vmem:[%s6471 + $0xa8] sm:$0xff]
    %v6494 = vld [vmem:[%s6471 + $0xb0] sm:$0xff]
    %v6495 = vld [vmem:[%s6471 + $0xb8] sm:$0xff]
    %v6496 = vld [vmem:[%s6471 + $0xc0] sm:$0xff]
    %v6497 = vld [vmem:[%s6471 + $0xc8] sm:$0xff]
    %v6498 = vld [vmem:[%s6471 + $0xd0] sm:$0xff]
    %v6499 = vld [vmem:[%s6471 + $0xd8] sm:$0xff]
    %v6500 = vld [vmem:[%s6471 + $0xe0] sm:$0xff]
    %v6501 = vld [vmem:[%s6471 + $0xe8] sm:$0xff]
    %v6502 = vld [vmem:[%s6471 + $0xf0] sm:$0xff]
    %v6503 = vld [vmem:[%s6471 + $0xf8] sm:$0xff]
    %v6504 = vld [vmem:[%s18 + $0x1] sm:$0x1]
    %v6505 = vlaneseq
    %v6506 = vshrl.u32 %v6505, 7
    %v6507 = vsub.s32 0, %v6506
    %v6508 = vrot.slane %v6504, %v6507
    %6509 = vmatprep.subr.mxu0 0.0
    %6510 = vmatpush1.msra.mxu0 %v6487
    %6511 = vmatprep.subr.mxu0 0.0
    %6512 = vmatpush1.msra.mxu0 %v6486
    %6513 = vmatprep.subr.mxu0 0.0
    %6514 = vmatpush1.msra.mxu0 %v6485
    %6515 = vmatprep.subr.mxu0 0.0
    %6516 = vmatpush1.msra.mxu0 %v6484
    %6517 = vmatprep.subr.mxu0 0.0
    %6518 = vmatpush1.msra.mxu0 %v6483
    %6519 = vmatprep.subr.mxu0 0.0
    %6520 = vmatpush1.msra.mxu0 %v6482
    %6521 = vmatprep.subr.mxu0 0.0
    %6522 = vmatpush1.msra.mxu0 %v6481
    %6523 = vmatprep.subr.mxu0 0.0
    %6524 = vmatpush1.msra.mxu0 %v6480
    %6525 = vmatprep.subr.mxu0 0.0
    %6526 = vmatpush1.msra.mxu0 %v6479
    %6527 = vmatprep.subr.mxu0 0.0
    %6528 = vmatpush1.msra.mxu0 %v6478
    %6529 = vmatprep.subr.mxu0 0.0
    %6530 = vmatpush1.msra.mxu0 %v6477
    %6531 = vmatprep.subr.mxu0 0.0
    %6532 = vmatpush1.msra.mxu0 %v6476
    %6533 = vmatprep.subr.mxu0 0.0
    %6534 = vmatpush1.msra.mxu0 %v6475
    %6535 = vmatprep.subr.mxu0 0.0
    %6536 = vmatpush1.msra.mxu0 %v6474
    %6537 = vmatprep.subr.mxu0 0.0
    %6538 = vmatpush1.msra.mxu0 %v6473
    %6539 = vmatprep.subr.mxu0 0.0
    %6540 = vmatpush1.msra.mxu0 %v6472
    %6541 = vmatprep.subr.mxu0 0.0
    %6542 = vmatpush2.msra.mxu0 %v6503
    %6543 = vmatprep.subr.mxu0 0.0
    %6544 = vmatpush2.msra.mxu0 %v6502
    %6545 = vmatprep.subr.mxu0 0.0
    %6546 = vmatpush2.msra.mxu0 %v6501
    %6547 = vmatprep.subr.mxu0 0.0
    %6548 = vmatpush2.msra.mxu0 %v6500
    %6549 = vmatprep.subr.mxu0 0.0
    %6550 = vmatpush2.msra.mxu0 %v6499
    %6551 = vmatprep.subr.mxu0 0.0
    %6552 = vmatpush2.msra.mxu0 %v6498
    %6553 = vmatprep.subr.mxu0 0.0
    %6554 = vmatpush2.msra.mxu0 %v6497
    %6555 = vmatprep.subr.mxu0 0.0
    %6556 = vmatpush2.msra.mxu0 %v6496
    %6557 = vmatprep.subr.mxu0 0.0
    %6558 = vmatpush2.msra.mxu0 %v6495
    %6559 = vmatprep.subr.mxu0 0.0
    %6560 = vmatpush2.msra.mxu0 %v6494
    %6561 = vmatprep.subr.mxu0 0.0
    %6562 = vmatpush2.msra.mxu0 %v6493
    %6563 = vmatprep.subr.mxu0 0.0
    %6564 = vmatpush2.msra.mxu0 %v6492
    %6565 = vmatprep.subr.mxu0 0.0
    %6566 = vmatpush2.msra.mxu0 %v6491
    %6567 = vmatprep.subr.mxu0 0.0
    %6568 = vmatpush2.msra.mxu0 %v6490
    %6569 = vmatprep.subr.mxu0 0.0
    %6570 = vmatpush2.msra.mxu0 %v6489
    %6571 = vmatprep.subr.mxu0 0.0
    %6572 = vmatpush2.msra.mxu0 %v6488
    %6573 = vmatprep.mubr.f32.mxu0 %v6468
    %6574 = vmatmul.mubr.f32.gmra.mxu0 %v6467
    %v6575 = vpop.f32.mrf.mxu0
    %v6576 = vadd.f32 %v6508, %v6575
    %v6577 = vpop.f32.mrf.mxu0
    %6578 = vmatprep.mubr.f32.mxu0 %v6470
    %6579 = vmatmul.mubr.f32.gmra.mxu0 %v6469
    %v6580 = vpop.f32.mrf.mxu0
    %v6581 = vadd.f32 %v6508, %v6580
    %v6582 = vpop.f32.mrf.mxu0
    %6583 = vdwg.mxu0
    %v6584 = vadd.f32 %v6360, %v6576
    %v6585 = vadd.f32 %v6361, %v6581
    %v6586 = vld [vmem:[%s13 + $0x1] sm:$0x1]
    %v6587 = vld [vmem:[%s14 + $0x1] sm:$0x1]
    %v6588 = vsel %vm273, %v6584, 0.0
    %6589 = vadd.xlane.f32.xlu0 %v6588
    %v6590 = vpop.xlane.xlu0 %6589
    %v6591 = vsel %vm273, %v6585, 0.0
    %6592 = vadd.xlane.f32.xlu0 %v6591
    %v6593 = vpop.xlane.xlu0 %6592
    %v6594 = vmul.f32 %v6590, %v3182
    %v6595 = vmul.f32 %v6593, %v3182
    %v6596 = vsub.f32 %v6584, %v6594
    %v6597 = vsub.f32 %v6585, %v6595
    %v6598 = vmul.f32 %v6596, %v6596
    %v6599 = vmul.f32 %v6597, %v6597
    %v6600 = vsel %vm273, %v6598, 0.0
    %6601 = vadd.xlane.f32.xlu0 %v6600
    %v6602 = vpop.xlane.xlu0 %6601
    %v6603 = vsel %vm273, %v6599, 0.0
    %6604 = vadd.xlane.f32.xlu0 %v6603
    %v6605 = vpop.xlane.xlu0 %6604
    %v6606 = vmul.f32 %v6602, %v3182
    %v6607 = vmul.f32 %v6605, %v3182
    %v6608 = vadd.f32 %v6606, 1e-05
    %v6609 = vadd.f32 %v6607, 1e-05
    %v6610 = vrsqrt.pop %v6608
    %v6611 = vrsqrt.pop %v6609
    %v6612 = vmul.f32 %v6596, %v6610
    %v6613 = vmul.f32 %v6597, %v6611
    %v6614 = vlaneseq
    %v6615 = vshrl.u32 %v6614, 7
    %v6616 = vsub.s32 0, %v6615
    %v6617 = vrot.slane %v6586, %v6616
    %v6618 = vmul.f32 %v6612, %v6617
    %v6619 = vmul.f32 %v6613, %v6617
    %v6620 = vlaneseq
    %v6621 = vshrl.u32 %v6620, 7
    %v6622 = vsub.s32 0, %v6621
    %v6623 = vrot.slane %v6587, %v6622
    %v6624 = vadd.f32 %v6618, %v6623
    %v6625 = vadd.f32 %v6619, %v6623
    %v6626 = vld [vmem:[%s19] sm:$0x1]
    %v6627 = vld [vmem:[%s20] sm:$0x1]
    %v6628 = vsel %vm273, %v6624, 0.0
    %6629 = vadd.xlane.f32.xlu0 %v6628
    %v6630 = vpop.xlane.xlu0 %6629
    %v6631 = vsel %vm273, %v6625, 0.0
    %6632 = vadd.xlane.f32.xlu0 %v6631
    %v6633 = vpop.xlane.xlu0 %6632
    %v6634 = vmul.f32 %v6630, %v3182
    %v6635 = vmul.f32 %v6633, %v3182
    %v6636 = vsub.f32 %v6624, %v6634
    %v6637 = vsub.f32 %v6625, %v6635
    %v6638 = vmul.f32 %v6636, %v6636
    %v6639 = vmul.f32 %v6637, %v6637
    %v6640 = vsel %vm273, %v6638, 0.0
    %6641 = vadd.xlane.f32.xlu0 %v6640
    %v6642 = vpop.xlane.xlu0 %6641
    %v6643 = vsel %vm273, %v6639, 0.0
    %6644 = vadd.xlane.f32.xlu0 %v6643
    %v6645 = vpop.xlane.xlu0 %6644
    %v6646 = vmul.f32 %v6642, %v3182
    %v6647 = vmul.f32 %v6645, %v3182
    %v6648 = vadd.f32 %v6646, 1e-05
    %v6649 = vadd.f32 %v6647, 1e-05
    %v6650 = vrsqrt.pop %v6648
    %v6651 = vrsqrt.pop %v6649
    %v6652 = vmul.f32 %v6636, %v6650
    %v6653 = vmul.f32 %v6637, %v6651
    %v6655 = vlaneseq
    %v6656 = vshrl.u32 %v6655, 7
    %v6657 = vsub.s32 0, %v6656
    %v6658 = vrot.slane %v6626, %v6657
    %v6660 = vmul.f32 %v6652, %v6658
    %v6661 = vmul.f32 %v6653, %v6658
    %v6663 = vlaneseq
    %v6664 = vshrl.u32 %v6663, 7
    %v6665 = vsub.s32 0, %v6664
    %v6666 = vrot.slane %v6627, %v6665
    %v6668 = vadd.f32 %v6660, %v6666
    %v6669 = vadd.f32 %v6661, %v6666
    %v6670 = vsel %vm273, %v6668, 0.0
    %v6671 = vrot.slane %v6670, 4
    %v6672 = vadd.f32 %v6670, %v6671
    %v6673 = vrot.slane %v6672, 2
    %v6674 = vadd.f32 %v6672, %v6673
    %v6675 = vrot.slane %v6674, 1
    %v6676 = vadd.f32 %v6674, %v6675
    %v6677 = vsel %vm273, %v6669, 0.0
    %v6678 = vrot.slane %v6677, 4
    %v6679 = vadd.f32 %v6677, %v6678
    %v6680 = vrot.slane %v6679, 2
    %v6681 = vadd.f32 %v6679, %v6680
    %v6682 = vrot.slane %v6681, 1
    %v6683 = vadd.f32 %v6681, %v6682
    %v6684 = vrcp.pop 8.0
    %v6685 = vmul.f32 %v6676, %v6684
    %v6686 = vmul.f32 %v6683, %v6684
    %v6687 = vsel %vm273, %v6668, -inf
    %v6688 = vrot.slane %v6687, 4
    %v6689 = vmax.f32 %v6687, %v6688
    %v6690 = vrot.slane %v6689, 2
    %v6691 = vmax.f32 %v6689, %v6690
    %v6692 = vrot.slane %v6691, 1
    %v6693 = vmax.f32 %v6691, %v6692
    %v6694 = vsel %vm273, %v6669, -inf
    %v6695 = vrot.slane %v6694, 4
    %v6696 = vmax.f32 %v6694, %v6695
    %v6697 = vrot.slane %v6696, 2
    %v6698 = vmax.f32 %v6696, %v6697
    %v6699 = vrot.slane %v6698, 1
    %v6700 = vmax.f32 %v6698, %v6699
    %vm6703 = vcmask 1041409
    %v6704 = vsel %vm6703, %v6686, %v6685
    %v6708 = vrot.slane %v6668, 7
    %v6709 = vrot.slane %v6669, 6
    %v6710 = vsel %vm6703, %v6709, %v6708
    %6711 = vrot.lane.b32.xlu0 %v6710, 32
    %v6712 = vpop.permute.xlu0 %6711
    %v6716 = vsel %vm6703, %v6700, %v6693
    %6717 = vrot.lane.b32.xlu0 %v6716, 64
    %v6718 = vpop.permute.xlu0 %6717
    %v6720 = vsel %vm273, %v6704, %v6712
    %vm6721 = vcmask 523264
    %v6722 = vsel %vm6721, %v6720, %v6718
    %v6723 = vld [vmem:[%s21] sm:$0xff]
    %v6724 = vld [vmem:[%s21 + $0x8] sm:$0xff]
    %v6725 = vld [vmem:[%s21 + $0x10] sm:$0xff]
    %v6726 = vld [vmem:[%s21 + $0x18] sm:$0xff]
    %v6727 = vld [vmem:[%s21 + $0x20] sm:$0xff]
    %v6728 = vld [vmem:[%s21 + $0x28] sm:$0xff]
    %v6729 = vld [vmem:[%s21 + $0x30] sm:$0xff]
    %v6730 = vld [vmem:[%s21 + $0x38] sm:$0xff]
    %v6731 = vld [vmem:[%s21 + $0x40] sm:$0xff]
    %v6732 = vld [vmem:[%s21 + $0x48] sm:$0xff]
    %v6733 = vld [vmem:[%s21 + $0x50] sm:$0xff]
    %v6734 = vld [vmem:[%s21 + $0x58] sm:$0xff]
    %v6735 = vld [vmem:[%s22] sm:$0x1]
    %v6737 = vlaneseq
    %v6738 = vshrl.u32 %v6737, 7
    %v6739 = vsub.s32 0, %v6738
    %v6740 = vrot.slane %v6735, %v6739
    %vm6742 = vcmask 785408
    %v6744 = vsel %vm6742, %v6722, 0
    %6746 = vmatprep.subr.mxu0 0.0
    %6747 = vmatpush1.msra.mxu0 0.0
    %6748 = vmatprep.subr.mxu0 0.0
    %6749 = vmatpush1.msra.mxu0 0.0
    %6750 = vmatprep.subr.mxu0 0.0
    %6751 = vmatpush1.msra.mxu0 0.0
    %6752 = vmatprep.subr.mxu0 0.0
    %6753 = vmatpush1.msra.mxu0 0.0
    %6754 = vmatprep.subr.mxu0 0.0
    %6755 = vmatpush1.msra.mxu0 %v6734
    %6756 = vmatprep.subr.mxu0 0.0
    %6757 = vmatpush1.msra.mxu0 %v6733
    %6758 = vmatprep.subr.mxu0 0.0
    %6759 = vmatpush1.msra.mxu0 %v6732
    %6760 = vmatprep.subr.mxu0 0.0
    %6761 = vmatpush1.msra.mxu0 %v6731
    %6762 = vmatprep.subr.mxu0 0.0
    %6763 = vmatpush1.msra.mxu0 %v6730
    %6764 = vmatprep.subr.mxu0 0.0
    %6765 = vmatpush1.msra.mxu0 %v6729
    %6766 = vmatprep.subr.mxu0 0.0
    %6767 = vmatpush1.msra.mxu0 %v6728
    %6768 = vmatprep.subr.mxu0 0.0
    %6769 = vmatpush1.msra.mxu0 %v6727
    %6770 = vmatprep.subr.mxu0 0.0
    %6771 = vmatpush1.msra.mxu0 %v6726
    %6772 = vmatprep.subr.mxu0 0.0
    %6773 = vmatpush1.msra.mxu0 %v6725
    %6774 = vmatprep.subr.mxu0 0.0
    %6775 = vmatpush1.msra.mxu0 %v6724
    %6776 = vmatprep.subr.mxu0 0.0
    %6777 = vmatpush1.msra.mxu0 %v6723
    %6778 = vmatprep.subr.mxu0 0.0
    %6779 = vmatpush2.msra.mxu0 0.0
    %6780 = vmatprep.subr.mxu0 0.0
    %6781 = vmatpush2.msra.mxu0 0.0
    %6782 = vmatprep.subr.mxu0 0.0
    %6783 = vmatpush2.msra.mxu0 0.0
    %6784 = vmatprep.subr.mxu0 0.0
    %6785 = vmatpush2.msra.mxu0 0.0
    %6786 = vmatprep.subr.mxu0 0.0
    %6787 = vmatpush2.msra.mxu0 0.0
    %6788 = vmatprep.subr.mxu0 0.0
    %6789 = vmatpush2.msra.mxu0 0.0
    %6790 = vmatprep.subr.mxu0 0.0
    %6791 = vmatpush2.msra.mxu0 0.0
    %6792 = vmatprep.subr.mxu0 0.0
    %6793 = vmatpush2.msra.mxu0 0.0
    %6794 = vmatprep.subr.mxu0 0.0
    %6795 = vmatpush2.msra.mxu0 0.0
    %6796 = vmatprep.subr.mxu0 0.0
    %6797 = vmatpush2.msra.mxu0 0.0
    %6798 = vmatprep.subr.mxu0 0.0
    %6799 = vmatpush2.msra.mxu0 0.0
    %6800 = vmatprep.subr.mxu0 0.0
    %6801 = vmatpush2.msra.mxu0 0.0
    %6802 = vmatprep.subr.mxu0 0.0
    %6803 = vmatpush2.msra.mxu0 0.0
    %6804 = vmatprep.subr.mxu0 0.0
    %6805 = vmatpush2.msra.mxu0 0.0
    %6806 = vmatprep.subr.mxu0 0.0
    %6807 = vmatpush2.msra.mxu0 0.0
    %6808 = vmatprep.subr.mxu0 0.0
    %6809 = vmatpush2.msra.mxu0 0.0
    %6810 = vmatprep.mubr.f32.mxu0 0.0
    %6811 = vmatmul.mubr.f32.gmra.mxu0 %v6744
    %v6812 = vpop.f32.mrf.mxu0
    %v6813 = vadd.f32 %v6740, %v6812
    %v6814 = vpop.f32.mrf.mxu0
    %6815 = vdwg.mxu0
    %v6816 = vmul.f32 %v6813, 0.5
    %v6817 = vxor.u32 %v6816, 2147483648
    %v6818 = vmul.f32 %v6817, 1.442695
    %v6819 = vpow.pop %v6818
    %v6820 = vadd.f32 %v6819, 1.0
    %v6821 = vrcp.pop %v6820
    %v6822 = vmul.f32 1.0, %v6821
    %v6823 = vmul.f32 %v6822, 0.99
    %v6824 = vadd.f32 %v6823, 0.01
    %v6825 = vsel %vm273, %v6813, %v6824
    %vm6826 = vcmask 517120
    %6827 = vst.msk [vmem:[#allocation2] sm:$0x3] %vm6826, %v6825
    // Predicated region
    $region94: #{tpu_custom_call.1} parent=1 // pred_check
      _
    $region95: #{tpu_custom_call.1} parent=1 // pred_check_branch
      %6829 = sbr.rel (0) target = $region97
    $region96: #{tpu_custom_call.1} parent=1 // pred_region
      %s6831 = ssub.s32 32, 32
      %6832 = vsyncadd [#allocation3], %s6831
      %s6834 = sshll.u32 [#allocation2], 4
      %s6835 = int_to_ptr.vmem [resolvable:$true] %s6834
      %6837 = dma.vmem_to_hbm [thread:$0]  %s6835, 32, %s23, [#allocation3]
    $region97: #{tpu_custom_call.1} parent=1 // pred_fallthru
      _
    // Predicated region
    $region98: #{tpu_custom_call.1} parent=1 // pred_check
      _
    $region99: #{tpu_custom_call.1} parent=1 // pred_check_branch
      %6839 = sbr.rel (0) target = $region101
    $region100: #{tpu_custom_call.1} parent=1 // pred_region
      %6840 = dma.done [#allocation3], 32
    $region101: #{tpu_custom_call.1} parent=1 // pred_fallthru
      _
    %6841 = vsyncpa [#allocation3], 1

</llo_original>
